<compile_context>
chip_gen: v7x
topology: tpu7x:2x2x1
jax: 0.10.0
libtpu: 0.0.40
codegen_flags: <defaults>
</compile_context>

<pallas_src>
import functools

import jax
import jax.numpy as jnp
from jax import lax
from jax.experimental import pallas as pl
from jax.experimental.pallas import tpu as pltpu


def _round_up(x, m):
    return (x + m - 1) // m * m


# ----------------------------------------------------------------------------
# Pallas kernels
# ----------------------------------------------------------------------------
def _make_matmul_kernel_single(has_bias, leaky_slope):
    """Single-K-step matmul: out = x @ w (+ bias) (+ LeakyReLU). No scratch."""

    def kernel(*refs):
        if has_bias:
            x_ref, w_ref, b_ref, o_ref = refs
        else:
            x_ref, w_ref, o_ref = refs
        acc = jnp.dot(x_ref[...], w_ref[...], preferred_element_type=jnp.float32)
        if has_bias:
            acc = acc + b_ref[...].astype(jnp.float32)      # (1, tn) broadcast
        if leaky_slope is not None:
            acc = jnp.where(acc >= 0, acc, leaky_slope * acc)
        o_ref[...] = acc.astype(o_ref.dtype)

    return kernel


def _make_matmul_kernel_kloop(has_bias, leaky_slope):
    """K-reduction over grid axis 2 with f32 VMEM accumulator (large-K path)."""

    def kernel(*refs):
        if has_bias:
            x_ref, w_ref, b_ref, o_ref, acc_ref = refs
        else:
            x_ref, w_ref, o_ref, acc_ref = refs

        @pl.when(pl.program_id(2) == 0)
        def _():
            acc_ref[...] = jnp.zeros_like(acc_ref)

        acc_ref[...] += jnp.dot(
            x_ref[...], w_ref[...], preferred_element_type=jnp.float32
        )

        @pl.when(pl.program_id(2) == pl.num_programs(2) - 1)
        def _():
            acc = acc_ref[...]
            if has_bias:
                acc = acc + b_ref[...].astype(jnp.float32)
            if leaky_slope is not None:
                acc = jnp.where(acc >= 0, acc, leaky_slope * acc)
            o_ref[...] = acc.astype(o_ref.dtype)

    return kernel


def _instnorm_leaky_kernel(x_ref, o_ref, *, eps, leaky_slope):
    """Single-pass InstanceNorm (biased var) + LeakyReLU on a (1, HW, cb) block.

    Channels sit on the lane axis (128-wide block), spatial reduce over
    sublanes; stats computed in one sweep via sum / sum-of-squares in f32.
    """
    x = x_ref[...].astype(jnp.float32)                      # (1, HW, cb)
    inv_n = 1.0 / x.shape[1]
    s1 = jnp.sum(x, axis=1, keepdims=True)
    s2 = jnp.sum(x * x, axis=1, keepdims=True)
    mean = s1 * inv_n
    var = jnp.maximum(s2 * inv_n - mean * mean, 0.0)        # guard cancellation
    scale = lax.rsqrt(var + eps)
    y = (x - mean) * scale
    y = jnp.where(y >= 0, y, leaky_slope * y)
    o_ref[...] = y.astype(o_ref.dtype)


# ----------------------------------------------------------------------------
# pallas_call wrappers
# ----------------------------------------------------------------------------
def matmul_bias_act(x, w, bias, *, n_out, leaky_slope=None, out_dtype=jnp.bfloat16):
    """Tiled MXU matmul with fused bias/LeakyReLU epilogue.

    x:    (M, K)  bf16 activation patches.
    w:    (K, Cop) bf16, prepacked; Cop is already a multiple of 128.
    bias: (1, Cop) f32 or None.
    Returns (M, n_out).
    """
    M, K = x.shape
    Kw, Cop = w.shape
    assert K == Kw and Cop % 128 == 0

    # --- M tiling: bf16 packed-sublane multiple of 16 --------------------
    if M >= 128:
        Mp = _round_up(M, 128)
        tm = 512 if Mp % 512 == 0 else (256 if Mp % 256 == 0 else 128)
    else:
        Mp = _round_up(M, 16)
        tm = Mp
    grid_m = Mp // tm

    # --- Cout tiling: prefer 256 (v6e/v7x MXU width), but keep >=2 blocks
    #     across the parallel axes on the tiny layers so both v7x TCs work.
    if Cop % 256 == 0 and not (grid_m == 1 and Cop == 256):
        tn = 256
    else:
        tn = 128
    if grid_m * (Cop // tn) == 1 and tm >= 64:
        tm //= 2
        grid_m = Mp // tm

    if Mp != M:
        x = jnp.pad(x, ((0, Mp - M), (0, 0)))
    x = x.astype(jnp.bfloat16)

    has_bias = bias is not None
    if has_bias:
        assert bias.shape == (1, Cop)

    # --- K handling: collapse the K grid axis whenever the panel fits VMEM.
    single_k = tm * K * 2 <= (4 << 20)

    if single_k:
        args = [x, w]
        in_specs = [
            pl.BlockSpec((tm, K), lambda i, j: (i, 0)),
            pl.BlockSpec((K, tn), lambda i, j: (0, j)),
        ]
        if has_bias:
            args.append(bias)
            in_specs.append(pl.BlockSpec((1, tn), lambda i, j: (0, j)))
        out = pl.pallas_call(
            _make_matmul_kernel_single(has_bias, leaky_slope),
            out_shape=jax.ShapeDtypeStruct((Mp, Cop), out_dtype),
            grid=(grid_m, Cop // tn),
            in_specs=in_specs,
            out_specs=pl.BlockSpec((tm, tn), lambda i, j: (i, j)),
            compiler_params=pltpu.CompilerParams(
                dimension_semantics=("parallel", "parallel")),
        )(*args)
    else:
        Kp = _round_up(K, 128)
        tk = 512 if Kp % 512 == 0 else (256 if Kp % 256 == 0 else 128)
        if Kp != K:
            x = jnp.pad(x, ((0, 0), (0, Kp - K)))
            w = jnp.pad(w, ((0, Kp - K), (0, 0)))
        args = [x, w]
        in_specs = [
            pl.BlockSpec((tm, tk), lambda i, j, k: (i, k)),
            pl.BlockSpec((tk, tn), lambda i, j, k: (k, j)),
        ]
        if has_bias:
            args.append(bias)
            in_specs.append(pl.BlockSpec((1, tn), lambda i, j, k: (0, j)))
        out = pl.pallas_call(
            _make_matmul_kernel_kloop(has_bias, leaky_slope),
            out_shape=jax.ShapeDtypeStruct((Mp, Cop), out_dtype),
            grid=(grid_m, Cop // tn, Kp // tk),
            in_specs=in_specs,
            out_specs=pl.BlockSpec((tm, tn), lambda i, j, k: (i, j)),
            scratch_shapes=[pltpu.VMEM((tm, tn), jnp.float32)],
            compiler_params=pltpu.CompilerParams(
                dimension_semantics=("parallel", "parallel", "arbitrary")),
        )(*args)

    return out[:M, :n_out]


def instance_norm_leaky_nhwc(x, eps=1e-5, leaky_slope=0.2):
    """InstanceNorm2d (affine=False) + LeakyReLU on an NHWC tensor."""
    N, H, W, C = x.shape
    HW = H * W
    Cp = _round_up(C, 128)
    x3 = x.reshape(N, HW, C)
    if Cp != C:
        x3 = jnp.pad(x3, ((0, 0), (0, 0), (0, Cp - C)))

    cb = 128                                     # 128-lane channel blocks
    kernel = functools.partial(_instnorm_leaky_kernel, eps=eps,
                               leaky_slope=leaky_slope)
    y = pl.pallas_call(
        kernel,
        out_shape=jax.ShapeDtypeStruct((N, HW, Cp), x.dtype),
        grid=(N, Cp // cb),
        in_specs=[pl.BlockSpec((1, HW, cb), lambda n, c: (n, 0, c))],
        out_specs=pl.BlockSpec((1, HW, cb), lambda n, c: (n, 0, c)),
        compiler_params=pltpu.CompilerParams(
            dimension_semantics=("parallel", "parallel")),
    )(x3)
    return y[:, :, :C].reshape(N, H, W, C)


def conv2d_nhwc(x, w_packed, bias_packed, *, k, stride, pad, cout,
                leaky_slope=None, out_dtype=jnp.bfloat16):
    """Conv2d (PyTorch semantics) on an NHWC bf16 activation.

    Stride-s convs go through space-to-depth (pure layout transform) so the
    patch slab is only a (k/s)^2 bf16 expansion instead of k^2.  The weight
    was prepacked in matching (di, dj, dr, dc, ci) K-order.
    """
    N, H, W, Cin = x.shape
    s, p = stride, pad
    Ho = (H + 2 * p - k) // s + 1
    Wo = (W + 2 * p - k) // s + 1

    if p:
        x = jnp.pad(x, ((0, 0), (p, p), (p, p), (0, 0)))

    if s > 1:
        assert k % s == 0 and (H + 2 * p) % s == 0 and (W + 2 * p) % s == 0, (
            "space-to-depth conv path needs k and padded H/W divisible by stride")
        Hs, Ws = (H + 2 * p) // s, (W + 2 * p) // s
        x = x.reshape(N, Hs, s, Ws, s, Cin)
        x = jnp.transpose(x, (0, 1, 3, 2, 4, 5)).reshape(N, Hs, Ws, s * s * Cin)
        ks = k // s
    else:
        ks = k

    if ks == 1:
        patches = x.reshape(N * Ho * Wo, -1)
    else:
        # Last-axis concat: channel-last / lane-dense, bf16, (k/s)^2 expansion.
        cols = [x[:, di:di + Ho, dj:dj + Wo, :]
                for di in range(ks) for dj in range(ks)]
        patches = jnp.concatenate(cols, axis=-1).reshape(N * Ho * Wo, -1)

    out = matmul_bias_act(patches, w_packed, bias_packed, n_out=cout,
                          leaky_slope=leaky_slope, out_dtype=out_dtype)
    return out.reshape(N, Ho, Wo, cout)


# ----------------------------------------------------------------------------
# Module: parameter init (PyTorch layout) + one-time prepack + forward
# ----------------------------------------------------------------------------
def init_params(input_channels, key):
    C = input_channels
    ks = jax.random.split(key, 9)

    def w(k_, shape):
        return (jax.random.normal(k_, shape, jnp.float32) * 0.05).astype(jnp.float32)

    return {
        "adapt_w": w(ks[0], (C, 2 * C, 1, 1)),                  # bias=False
        "w1": w(ks[1], (64, C, 4, 4)),    "b1": w(ks[2], (64,)),
        "w2": w(ks[3], (128, 64, 4, 4)),  "b2": w(ks[4], (128,)),
        "w3": w(ks[5], (256, 128, 4, 4)), "b3": w(ks[6], (256,)),
        "w4": w(ks[7], (1, 256, 4, 4)),   "b4": w(ks[8], (1,)),
    }


def prepack_params(params):
    """One-time weight prepack: tap reorder for the space-to-depth conv path,
    Cout zero-pad to a lane multiple, bf16 cast.  Biases -> (1, Cop) f32."""

    def pack_w(w_pt, stride):
        Cout, Cin, k, _ = w_pt.shape
        s = stride
        ks = k // s
        w = jnp.transpose(w_pt, (2, 3, 1, 0))                 # (i, j, ci, co)
        w = w.reshape(ks, s, ks, s, Cin, Cout)                # (di, dr, dj, dc, ci, co)
        w = jnp.transpose(w, (0, 2, 1, 3, 4, 5))              # (di, dj, dr, dc, ci, co)
        w = w.reshape(k * k * Cin, Cout)
        Cop = _round_up(Cout, 128)
        if Cop != Cout:
            w = jnp.pad(w, ((0, 0), (0, Cop - Cout)))
        return w.astype(jnp.bfloat16)

    def pack_b(b):
        Cout = b.shape[0]
        Cop = _round_up(Cout, 128)
        return jnp.pad(b.astype(jnp.float32), (0, Cop - Cout)).reshape(1, Cop)

    return {
        "adapt_w": pack_w(params["adapt_w"], 1),
        "w1": pack_w(params["w1"], 2), "b1": pack_b(params["b1"]),
        "w2": pack_w(params["w2"], 2), "b2": pack_b(params["b2"]),
        "w3": pack_w(params["w3"], 2), "b3": pack_b(params["b3"]),
        "w4": pack_w(params["w4"], 1), "b4": pack_b(params["b4"]),
    }


def task_specific_discriminator_forward(packed, task_output, labels=None):
    C = task_output.shape[1]
    # Single layout conversion + bf16 cast at the boundary; NHWC bf16 inside.
    x_nhwc = jnp.transpose(task_output, (0, 2, 3, 1)).astype(jnp.bfloat16)

    if labels is not None:
        if labels.ndim < task_output.ndim:
            labels = labels[:, None]                             # unsqueeze(1)
        if labels.shape[1] != C:
            # one_hot already produces channel-last (N, H, W, C) — no permute.
            labels_nhwc = jax.nn.one_hot(labels[:, 0], C, dtype=jnp.bfloat16)
        else:
            labels_nhwc = jnp.transpose(labels, (0, 2, 3, 1)).astype(jnp.bfloat16)
        combined = jnp.concatenate([x_nhwc, labels_nhwc], axis=-1)
        combined = conv2d_nhwc(combined, packed["adapt_w"], None,
                               k=1, stride=1, pad=0, cout=C)      # no bias/act
    else:
        combined = x_nhwc

    x = conv2d_nhwc(combined, packed["w1"], packed["b1"], k=4, stride=2, pad=1,
                    cout=64, leaky_slope=0.2)
    x = conv2d_nhwc(x, packed["w2"], packed["b2"], k=4, stride=2, pad=1,
                    cout=128)
    x = instance_norm_leaky_nhwc(x, eps=1e-5, leaky_slope=0.2)
    x = conv2d_nhwc(x, packed["w3"], packed["b3"], k=4, stride=2, pad=1,
                    cout=256)
    x = instance_norm_leaky_nhwc(x, eps=1e-5, leaky_slope=0.2)
    x = conv2d_nhwc(x, packed["w4"], packed["b4"], k=4, stride=1, pad=1,
                    cout=1, out_dtype=jnp.float32)
    return jnp.transpose(x, (0, 3, 1, 2))                        # back to NCHW


# ----------------------------------------------------------------------------
if __name__ == "__main__":
    N, C, H, W = 2, 4, 16, 16

    key = jax.random.PRNGKey(0)
    k_x, k_lab, k_par = jax.random.split(key, 3)
    task_output = jax.random.normal(k_x, (N, C, H, W), jnp.float32)
    labels = jax.random.randint(k_lab, (N, H, W), 0, C, jnp.int32)  # -> one-hot path
    params = init_params(C, k_par)
    packed = prepack_params(params)              # one-time weight prepack

    fwd = jax.jit(task_specific_discriminator_forward)
    out = fwd(packed, task_output, labels)
    jax.block_until_ready(out)
    assert out.shape == (N, 1, 1, 1), out.shape
    print("KERNEL_OK")
</pallas_src>

<mosaic_0001>
module attributes {stable_mosaic.version = 11 : i64} {
  func.func @kernel(%arg0: i32, %arg1: i32, %arg2: memref<256x8xbf16, #tpu.memory_space<vmem>>, %arg3: memref<8x128xbf16, #tpu.memory_space<vmem>>, %arg4: memref<256x128xbf16, #tpu.memory_space<vmem>>) attributes {dimension_semantics = [#tpu.dimension_semantics<parallel>, #tpu.dimension_semantics<parallel>], iteration_bounds = array<i64: 2, 1>, scalar_prefetch = 0 : i64, scratch_operands = 0 : i64, tpu.core_type = #tpu.core_type<tc>, window_params = [{transform_indices = @transform_0, window_bounds = array<i64: 256, 8>}, {transform_indices = @transform_1, window_bounds = array<i64: 8, 128>}, {transform_indices = @transform_2, window_bounds = array<i64: 256, 128>}]} {
    %c0 = arith.constant 0 : index
    %c0_0 = arith.constant 0 : index
    %0 = vector.load %arg2[%c0, %c0_0] : memref<256x8xbf16, #tpu.memory_space<vmem>>, vector<256x8xbf16>
    %c0_1 = arith.constant 0 : index
    %c0_2 = arith.constant 0 : index
    %1 = vector.load %arg3[%c0_1, %c0_2] : memref<8x128xbf16, #tpu.memory_space<vmem>>, vector<8x128xbf16>
    %cst = arith.constant dense<0.000000e+00> : vector<256x128xf32>
    %2 = tpu.matmul %0, %1, %cst {dimension_numbers = #tpu.dot_dimension_numbers<[1], [0], [0], [1], [0, 0, 1, 1], [], []>} : vector<256x8xbf16>, vector<8x128xbf16>, vector<256x128xf32> -> vector<256x128xf32>
    %3 = arith.truncf %2 : vector<256x128xf32> to vector<256x128xbf16>
    %c0_3 = arith.constant 0 : index
    %c0_4 = arith.constant 0 : index
    %4 = vector.load %arg4[%c0_3, %c0_4] : memref<256x128xbf16, #tpu.memory_space<vmem>>, vector<256x128xbf16>
    tpu.vector_store %arg4[%c0_3, %c0_4], %3 {strides = array<i32>} : memref<256x128xbf16, #tpu.memory_space<vmem>>, vector<256x128xbf16>,
    return
  }
  func.func @transform_0(%arg0: i32, %arg1: i32) -> (i32, i32) {
    %c0_i32 = arith.constant 0 : i32
    %c0_i32_0 = arith.constant 0 : i32
    return %arg0, %c0_i32 : i32, i32
  }
  func.func @transform_1(%arg0: i32, %arg1: i32) -> (i32, i32) {
    %c0_i32 = arith.constant 0 : i32
    %c0_i32_0 = arith.constant 0 : i32
    return %c0_i32, %arg1 : i32, i32
  }
  func.func @transform_2(%arg0: i32, %arg1: i32) -> (i32, i32) {
    %c0_i32 = arith.constant 0 : i32
    return %arg0, %arg1 : i32, i32
  }
}

module attributes {stable_mosaic.version = 11 : i64} {
  func.func @kernel(%arg0: i32, %arg1: i32, %arg2: memref<64x64xbf16, #tpu.memory_space<vmem>>, %arg3: memref<64x128xbf16, #tpu.memory_space<vmem>>, %arg4: memref<1x128xf32, #tpu.memory_space<vmem>>, %arg5: memref<64x128xbf16, #tpu.memory_space<vmem>>) attributes {dimension_semantics = [#tpu.dimension_semantics<parallel>, #tpu.dimension_semantics<parallel>], iteration_bounds = array<i64: 2, 1>, scalar_prefetch = 0 : i64, scratch_operands = 0 : i64, tpu.core_type = #tpu.core_type<tc>, window_params = [{transform_indices = @transform_0, window_bounds = array<i64: 64, 64>}, {transform_indices = @transform_1, window_bounds = array<i64: 64, 128>}, {transform_indices = @transform_2, window_bounds = array<i64: 1, 128>}, {transform_indices = @transform_3, window_bounds = array<i64: 64, 128>}]} {
    %c0 = arith.constant 0 : index
    %c0_0 = arith.constant 0 : index
    %0 = vector.load %arg2[%c0, %c0_0] : memref<64x64xbf16, #tpu.memory_space<vmem>>, vector<64x64xbf16>
    %c0_1 = arith.constant 0 : index
    %c0_2 = arith.constant 0 : index
    %1 = vector.load %arg3[%c0_1, %c0_2] : memref<64x128xbf16, #tpu.memory_space<vmem>>, vector<64x128xbf16>
    %cst = arith.constant dense<0.000000e+00> : vector<64x128xf32>
    %2 = tpu.matmul %0, %1, %cst {dimension_numbers = #tpu.dot_dimension_numbers<[1], [0], [0], [1], [0, 0, 1, 1], [], []>} : vector<64x64xbf16>, vector<64x128xbf16>, vector<64x128xf32> -> vector<64x128xf32>
    %c0_3 = arith.constant 0 : index
    %c0_4 = arith.constant 0 : index
    %3 = vector.load %arg4[%c0_3, %c0_4] : memref<1x128xf32, #tpu.memory_space<vmem>>, vector<1x128xf32>
    %4 = vector.broadcast %3 : vector<1x128xf32> to vector<64x128xf32>
    %5 = arith.addf %2, %4 : vector<64x128xf32>
    %cst_5 = arith.constant 0.000000e+00 : f32
    %6 = vector.broadcast %cst_5 : f32 to vector<64x128xf32>
    %7 = arith.cmpf oge, %5, %6 : vector<64x128xf32>
    %cst_6 = arith.constant 2.000000e-01 : f32
    %8 = vector.broadcast %cst_6 : f32 to vector<64x128xf32>
    %9 = arith.mulf %8, %5 : vector<64x128xf32>
    %10 = arith.select %7, %5, %9 : vector<64x128xi1>, vector<64x128xf32>
    %11 = arith.truncf %10 : vector<64x128xf32> to vector<64x128xbf16>
    %c0_7 = arith.constant 0 : index
    %c0_8 = arith.constant 0 : index
    %12 = vector.load %arg5[%c0_7, %c0_8] : memref<64x128xbf16, #tpu.memory_space<vmem>>, vector<64x128xbf16>
    tpu.vector_store %arg5[%c0_7, %c0_8], %11 {strides = array<i32>} : memref<64x128xbf16, #tpu.memory_space<vmem>>, vector<64x128xbf16>,
    return
  }
  func.func @transform_0(%arg0: i32, %arg1: i32) -> (i32, i32) {
    %c0_i32 = arith.constant 0 : i32
    %c0_i32_0 = arith.constant 0 : i32
    return %arg0, %c0_i32 : i32, i32
  }
  func.func @transform_1(%arg0: i32, %arg1: i32) -> (i32, i32) {
    %c0_i32 = arith.constant 0 : i32
    %c0_i32_0 = arith.constant 0 : i32
    return %c0_i32, %arg1 : i32, i32
  }
  func.func @transform_2(%arg0: i32, %arg1: i32) -> (i32, i32) {
    %c0_i32 = arith.constant 0 : i32
    %c0_i32_0 = arith.constant 0 : i32
    return %c0_i32, %arg1 : i32, i32
  }
  func.func @transform_3(%arg0: i32, %arg1: i32) -> (i32, i32) {
    %c0_i32 = arith.constant 0 : i32
    return %arg0, %arg1 : i32, i32
  }
}

module attributes {stable_mosaic.version = 11 : i64} {
  func.func @kernel(%arg0: i32, %arg1: i32, %arg2: memref<32x1024xbf16, #tpu.memory_space<vmem>>, %arg3: memref<1024x128xbf16, #tpu.memory_space<vmem>>, %arg4: memref<1x128xf32, #tpu.memory_space<vmem>>, %arg5: memref<32x128xbf16, #tpu.memory_space<vmem>>) attributes {dimension_semantics = [#tpu.dimension_semantics<parallel>, #tpu.dimension_semantics<parallel>], iteration_bounds = array<i64: 1, 1>, scalar_prefetch = 0 : i64, scratch_operands = 0 : i64, tpu.core_type = #tpu.core_type<tc>, window_params = [{transform_indices = @transform_0, window_bounds = array<i64: 32, 1024>}, {transform_indices = @transform_1, window_bounds = array<i64: 1024, 128>}, {transform_indices = @transform_2, window_bounds = array<i64: 1, 128>}, {transform_indices = @transform_3, window_bounds = array<i64: 32, 128>}]} {
    %c0 = arith.constant 0 : index
    %c0_0 = arith.constant 0 : index
    %0 = vector.load %arg2[%c0, %c0_0] : memref<32x1024xbf16, #tpu.memory_space<vmem>>, vector<32x1024xbf16>
    %c0_1 = arith.constant 0 : index
    %c0_2 = arith.constant 0 : index
    %1 = vector.load %arg3[%c0_1, %c0_2] : memref<1024x128xbf16, #tpu.memory_space<vmem>>, vector<1024x128xbf16>
    %cst = arith.constant dense<0.000000e+00> : vector<32x128xf32>
    %2 = tpu.matmul %0, %1, %cst {dimension_numbers = #tpu.dot_dimension_numbers<[1], [0], [0], [1], [0, 0, 1, 1], [], []>} : vector<32x1024xbf16>, vector<1024x128xbf16>, vector<32x128xf32> -> vector<32x128xf32>
    %c0_3 = arith.constant 0 : index
    %c0_4 = arith.constant 0 : index
    %3 = vector.load %arg4[%c0_3, %c0_4] : memref<1x128xf32, #tpu.memory_space<vmem>>, vector<1x128xf32>
    %4 = vector.broadcast %3 : vector<1x128xf32> to vector<32x128xf32>
    %5 = arith.addf %2, %4 : vector<32x128xf32>
    %6 = arith.truncf %5 : vector<32x128xf32> to vector<32x128xbf16>
    %c0_5 = arith.constant 0 : index
    %c0_6 = arith.constant 0 : index
    %7 = vector.load %arg5[%c0_5, %c0_6] : memref<32x128xbf16, #tpu.memory_space<vmem>>, vector<32x128xbf16>
    tpu.vector_store %arg5[%c0_5, %c0_6], %6 {strides = array<i32>} : memref<32x128xbf16, #tpu.memory_space<vmem>>, vector<32x128xbf16>,
    return
  }
  func.func @transform_0(%arg0: i32, %arg1: i32) -> (i32, i32) {
    %c0_i32 = arith.constant 0 : i32
    %c0_i32_0 = arith.constant 0 : i32
    return %arg0, %c0_i32 : i32, i32
  }
  func.func @transform_1(%arg0: i32, %arg1: i32) -> (i32, i32) {
    %c0_i32 = arith.constant 0 : i32
    %c0_i32_0 = arith.constant 0 : i32
    return %c0_i32, %arg1 : i32, i32
  }
  func.func @transform_2(%arg0: i32, %arg1: i32) -> (i32, i32) {
    %c0_i32 = arith.constant 0 : i32
    %c0_i32_0 = arith.constant 0 : i32
    return %c0_i32, %arg1 : i32, i32
  }
  func.func @transform_3(%arg0: i32, %arg1: i32) -> (i32, i32) {
    %c0_i32 = arith.constant 0 : i32
    return %arg0, %arg1 : i32, i32
  }
}

module attributes {stable_mosaic.version = 11 : i64} {
  func.func @_instnorm_leaky_kernel(%arg0: i32, %arg1: i32, %arg2: memref<1x16x128xbf16, #tpu.memory_space<vmem>>, %arg3: memref<1x16x128xbf16, #tpu.memory_space<vmem>>) attributes {dimension_semantics = [#tpu.dimension_semantics<parallel>, #tpu.dimension_semantics<parallel>], iteration_bounds = array<i64: 2, 1>, scalar_prefetch = 0 : i64, scratch_operands = 0 : i64, tpu.core_type = #tpu.core_type<tc>, window_params = [{transform_indices = @transform_0, window_bounds = array<i64: 1, 16, 128>}, {transform_indices = @transform_1, window_bounds = array<i64: 1, 16, 128>}]} {
    %c0 = arith.constant 0 : index
    %c0_0 = arith.constant 0 : index
    %c0_1 = arith.constant 0 : index
    %0 = vector.load %arg2[%c0, %c0_0, %c0_1] : memref<1x16x128xbf16, #tpu.memory_space<vmem>>, vector<1x16x128xbf16>
    %1 = arith.extf %0 : vector<1x16x128xbf16> to vector<1x16x128xf32>
    %cst = arith.constant dense<0.000000e+00> : vector<1x128xf32>
    %2 = vector.multi_reduction <add>, %1, %cst [1] : vector<1x16x128xf32> to vector<1x128xf32>
    %3 = vector.shape_cast %2 : vector<1x128xf32> to vector<1x1x128xf32>
    %4 = arith.mulf %1, %1 : vector<1x16x128xf32>
    %cst_2 = arith.constant dense<0.000000e+00> : vector<1x128xf32>
    %5 = vector.multi_reduction <add>, %4, %cst_2 [1] : vector<1x16x128xf32> to vector<1x128xf32>
    %6 = vector.shape_cast %5 : vector<1x128xf32> to vector<1x1x128xf32>
    %cst_3 = arith.constant 6.250000e-02 : f32
    %7 = vector.broadcast %cst_3 : f32 to vector<1x1x128xf32>
    %8 = arith.mulf %3, %7 : vector<1x1x128xf32>
    %cst_4 = arith.constant 6.250000e-02 : f32
    %9 = vector.broadcast %cst_4 : f32 to vector<1x1x128xf32>
    %10 = arith.mulf %6, %9 : vector<1x1x128xf32>
    %11 = arith.mulf %8, %8 : vector<1x1x128xf32>
    %12 = arith.subf %10, %11 : vector<1x1x128xf32>
    %cst_5 = arith.constant 0.000000e+00 : f32
    %13 = vector.broadcast %cst_5 : f32 to vector<1x1x128xf32>
    %14 = arith.maximumf %12, %13 : vector<1x1x128xf32>
    %cst_6 = arith.constant 9.99999974E-6 : f32
    %15 = vector.broadcast %cst_6 : f32 to vector<1x1x128xf32>
    %16 = arith.addf %14, %15 : vector<1x1x128xf32>
    %17 = math.rsqrt %16 : vector<1x1x128xf32>
    %18 = vector.broadcast %8 : vector<1x1x128xf32> to vector<1x16x128xf32>
    %19 = arith.subf %1, %18 : vector<1x16x128xf32>
    %20 = vector.broadcast %17 : vector<1x1x128xf32> to vector<1x16x128xf32>
    %21 = arith.mulf %19, %20 : vector<1x16x128xf32>
    %cst_7 = arith.constant 0.000000e+00 : f32
    %22 = vector.broadcast %cst_7 : f32 to vector<1x16x128xf32>
    %23 = arith.cmpf oge, %21, %22 : vector<1x16x128xf32>
    %cst_8 = arith.constant 2.000000e-01 : f32
    %24 = vector.broadcast %cst_8 : f32 to vector<1x16x128xf32>
    %25 = arith.mulf %24, %21 : vector<1x16x128xf32>
    %26 = arith.select %23, %21, %25 : vector<1x16x128xi1>, vector<1x16x128xf32>
    %27 = arith.truncf %26 : vector<1x16x128xf32> to vector<1x16x128xbf16>
    %c0_9 = arith.constant 0 : index
    %c0_10 = arith.constant 0 : index
    %c0_11 = arith.constant 0 : index
    %28 = vector.load %arg3[%c0_9, %c0_10, %c0_11] : memref<1x16x128xbf16, #tpu.memory_space<vmem>>, vector<1x16x128xbf16>
    tpu.vector_store %arg3[%c0_9, %c0_10, %c0_11], %27 {strides = array<i32>} : memref<1x16x128xbf16, #tpu.memory_space<vmem>>, vector<1x16x128xbf16>,
    return
  }
  func.func @transform_0(%arg0: i32, %arg1: i32) -> (i32, i32, i32) {
    %c0_i32 = arith.constant 0 : i32
    %c0_i32_0 = arith.constant 0 : i32
    return %arg0, %c0_i32, %arg1 : i32, i32, i32
  }
  func.func @transform_1(%arg0: i32, %arg1: i32) -> (i32, i32, i32) {
    %c0_i32 = arith.constant 0 : i32
    %c0_i32_0 = arith.constant 0 : i32
    return %arg0, %c0_i32, %arg1 : i32, i32, i32
  }
}

module attributes {stable_mosaic.version = 11 : i64} {
  func.func @kernel(%arg0: i32, %arg1: i32, %arg2: memref<16x2048xbf16, #tpu.memory_space<vmem>>, %arg3: memref<2048x128xbf16, #tpu.memory_space<vmem>>, %arg4: memref<1x128xf32, #tpu.memory_space<vmem>>, %arg5: memref<16x128xbf16, #tpu.memory_space<vmem>>) attributes {dimension_semantics = [#tpu.dimension_semantics<parallel>, #tpu.dimension_semantics<parallel>], iteration_bounds = array<i64: 1, 2>, scalar_prefetch = 0 : i64, scratch_operands = 0 : i64, tpu.core_type = #tpu.core_type<tc>, window_params = [{transform_indices = @transform_0, window_bounds = array<i64: 16, 2048>}, {transform_indices = @transform_1, window_bounds = array<i64: 2048, 128>}, {transform_indices = @transform_2, window_bounds = array<i64: 1, 128>}, {transform_indices = @transform_3, window_bounds = array<i64: 16, 128>}]} {
    %c0 = arith.constant 0 : index
    %c0_0 = arith.constant 0 : index
    %0 = vector.load %arg2[%c0, %c0_0] : memref<16x2048xbf16, #tpu.memory_space<vmem>>, vector<16x2048xbf16>
    %c0_1 = arith.constant 0 : index
    %c0_2 = arith.constant 0 : index
    %1 = vector.load %arg3[%c0_1, %c0_2] : memref<2048x128xbf16, #tpu.memory_space<vmem>>, vector<2048x128xbf16>
    %cst = arith.constant dense<0.000000e+00> : vector<16x128xf32>
    %2 = tpu.matmul %0, %1, %cst {dimension_numbers = #tpu.dot_dimension_numbers<[1], [0], [0], [1], [0, 0, 1, 1], [], []>} : vector<16x2048xbf16>, vector<2048x128xbf16>, vector<16x128xf32> -> vector<16x128xf32>
    %c0_3 = arith.constant 0 : index
    %c0_4 = arith.constant 0 : index
    %3 = vector.load %arg4[%c0_3, %c0_4] : memref<1x128xf32, #tpu.memory_space<vmem>>, vector<1x128xf32>
    %4 = vector.broadcast %3 : vector<1x128xf32> to vector<16x128xf32>
    %5 = arith.addf %2, %4 : vector<16x128xf32>
    %6 = arith.truncf %5 : vector<16x128xf32> to vector<16x128xbf16>
    %c0_5 = arith.constant 0 : index
    %c0_6 = arith.constant 0 : index
    %7 = vector.load %arg5[%c0_5, %c0_6] : memref<16x128xbf16, #tpu.memory_space<vmem>>, vector<16x128xbf16>
    tpu.vector_store %arg5[%c0_5, %c0_6], %6 {strides = array<i32>} : memref<16x128xbf16, #tpu.memory_space<vmem>>, vector<16x128xbf16>,
    return
  }
  func.func @transform_0(%arg0: i32, %arg1: i32) -> (i32, i32) {
    %c0_i32 = arith.constant 0 : i32
    %c0_i32_0 = arith.constant 0 : i32
    return %arg0, %c0_i32 : i32, i32
  }
  func.func @transform_1(%arg0: i32, %arg1: i32) -> (i32, i32) {
    %c0_i32 = arith.constant 0 : i32
    %c0_i32_0 = arith.constant 0 : i32
    return %c0_i32, %arg1 : i32, i32
  }
  func.func @transform_2(%arg0: i32, %arg1: i32) -> (i32, i32) {
    %c0_i32 = arith.constant 0 : i32
    %c0_i32_0 = arith.constant 0 : i32
    return %c0_i32, %arg1 : i32, i32
  }
  func.func @transform_3(%arg0: i32, %arg1: i32) -> (i32, i32) {
    %c0_i32 = arith.constant 0 : i32
    return %arg0, %arg1 : i32, i32
  }
}

module attributes {stable_mosaic.version = 11 : i64} {
  func.func @_instnorm_leaky_kernel(%arg0: i32, %arg1: i32, %arg2: memref<1x4x128xbf16, #tpu.memory_space<vmem>>, %arg3: memref<1x4x128xbf16, #tpu.memory_space<vmem>>) attributes {dimension_semantics = [#tpu.dimension_semantics<parallel>, #tpu.dimension_semantics<parallel>], iteration_bounds = array<i64: 2, 2>, scalar_prefetch = 0 : i64, scratch_operands = 0 : i64, tpu.core_type = #tpu.core_type<tc>, window_params = [{transform_indices = @transform_0, window_bounds = array<i64: 1, 4, 128>}, {transform_indices = @transform_1, window_bounds = array<i64: 1, 4, 128>}]} {
    %c0 = arith.constant 0 : index
    %c0_0 = arith.constant 0 : index
    %c0_1 = arith.constant 0 : index
    %0 = vector.load %arg2[%c0, %c0_0, %c0_1] : memref<1x4x128xbf16, #tpu.memory_space<vmem>>, vector<1x4x128xbf16>
    %1 = arith.extf %0 : vector<1x4x128xbf16> to vector<1x4x128xf32>
    %cst = arith.constant dense<0.000000e+00> : vector<1x128xf32>
    %2 = vector.multi_reduction <add>, %1, %cst [1] : vector<1x4x128xf32> to vector<1x128xf32>
    %3 = vector.shape_cast %2 : vector<1x128xf32> to vector<1x1x128xf32>
    %4 = arith.mulf %1, %1 : vector<1x4x128xf32>
    %cst_2 = arith.constant dense<0.000000e+00> : vector<1x128xf32>
    %5 = vector.multi_reduction <add>, %4, %cst_2 [1] : vector<1x4x128xf32> to vector<1x128xf32>
    %6 = vector.shape_cast %5 : vector<1x128xf32> to vector<1x1x128xf32>
    %cst_3 = arith.constant 2.500000e-01 : f32
    %7 = vector.broadcast %cst_3 : f32 to vector<1x1x128xf32>
    %8 = arith.mulf %3, %7 : vector<1x1x128xf32>
    %cst_4 = arith.constant 2.500000e-01 : f32
    %9 = vector.broadcast %cst_4 : f32 to vector<1x1x128xf32>
    %10 = arith.mulf %6, %9 : vector<1x1x128xf32>
    %11 = arith.mulf %8, %8 : vector<1x1x128xf32>
    %12 = arith.subf %10, %11 : vector<1x1x128xf32>
    %cst_5 = arith.constant 0.000000e+00 : f32
    %13 = vector.broadcast %cst_5 : f32 to vector<1x1x128xf32>
    %14 = arith.maximumf %12, %13 : vector<1x1x128xf32>
    %cst_6 = arith.constant 9.99999974E-6 : f32
    %15 = vector.broadcast %cst_6 : f32 to vector<1x1x128xf32>
    %16 = arith.addf %14, %15 : vector<1x1x128xf32>
    %17 = math.rsqrt %16 : vector<1x1x128xf32>
    %18 = vector.broadcast %8 : vector<1x1x128xf32> to vector<1x4x128xf32>
    %19 = arith.subf %1, %18 : vector<1x4x128xf32>
    %20 = vector.broadcast %17 : vector<1x1x128xf32> to vector<1x4x128xf32>
    %21 = arith.mulf %19, %20 : vector<1x4x128xf32>
    %cst_7 = arith.constant 0.000000e+00 : f32
    %22 = vector.broadcast %cst_7 : f32 to vector<1x4x128xf32>
    %23 = arith.cmpf oge, %21, %22 : vector<1x4x128xf32>
    %cst_8 = arith.constant 2.000000e-01 : f32
    %24 = vector.broadcast %cst_8 : f32 to vector<1x4x128xf32>
    %25 = arith.mulf %24, %21 : vector<1x4x128xf32>
    %26 = arith.select %23, %21, %25 : vector<1x4x128xi1>, vector<1x4x128xf32>
    %27 = arith.truncf %26 : vector<1x4x128xf32> to vector<1x4x128xbf16>
    %c0_9 = arith.constant 0 : index
    %c0_10 = arith.constant 0 : index
    %c0_11 = arith.constant 0 : index
    %28 = vector.load %arg3[%c0_9, %c0_10, %c0_11] : memref<1x4x128xbf16, #tpu.memory_space<vmem>>, vector<1x4x128xbf16>
    tpu.vector_store %arg3[%c0_9, %c0_10, %c0_11], %27 {strides = array<i32>} : memref<1x4x128xbf16, #tpu.memory_space<vmem>>, vector<1x4x128xbf16>,
    return
  }
  func.func @transform_0(%arg0: i32, %arg1: i32) -> (i32, i32, i32) {
    %c0_i32 = arith.constant 0 : i32
    %c0_i32_0 = arith.constant 0 : i32
    return %arg0, %c0_i32, %arg1 : i32, i32, i32
  }
  func.func @transform_1(%arg0: i32, %arg1: i32) -> (i32, i32, i32) {
    %c0_i32 = arith.constant 0 : i32
    %c0_i32_0 = arith.constant 0 : i32
    return %arg0, %c0_i32, %arg1 : i32, i32, i32
  }
}

module attributes {stable_mosaic.version = 11 : i64} {
  func.func @kernel(%arg0: i32, %arg1: i32, %arg2: memref<16x4096xbf16, #tpu.memory_space<vmem>>, %arg3: memref<4096x128xbf16, #tpu.memory_space<vmem>>, %arg4: memref<1x128xf32, #tpu.memory_space<vmem>>, %arg5: memref<16x128xf32, #tpu.memory_space<vmem>>) attributes {dimension_semantics = [#tpu.dimension_semantics<parallel>, #tpu.dimension_semantics<parallel>], iteration_bounds = array<i64: 1, 1>, scalar_prefetch = 0 : i64, scratch_operands = 0 : i64, tpu.core_type = #tpu.core_type<tc>, window_params = [{transform_indices = @transform_0, window_bounds = array<i64: 16, 4096>}, {transform_indices = @transform_1, window_bounds = array<i64: 4096, 128>}, {transform_indices = @transform_2, window_bounds = array<i64: 1, 128>}, {transform_indices = @transform_3, window_bounds = array<i64: 16, 128>}]} {
    %c0 = arith.constant 0 : index
    %c0_0 = arith.constant 0 : index
    %0 = vector.load %arg2[%c0, %c0_0] : memref<16x4096xbf16, #tpu.memory_space<vmem>>, vector<16x4096xbf16>
    %c0_1 = arith.constant 0 : index
    %c0_2 = arith.constant 0 : index
    %1 = vector.load %arg3[%c0_1, %c0_2] : memref<4096x128xbf16, #tpu.memory_space<vmem>>, vector<4096x128xbf16>
    %cst = arith.constant dense<0.000000e+00> : vector<16x128xf32>
    %2 = tpu.matmul %0, %1, %cst {dimension_numbers = #tpu.dot_dimension_numbers<[1], [0], [0], [1], [0, 0, 1, 1], [], []>} : vector<16x4096xbf16>, vector<4096x128xbf16>, vector<16x128xf32> -> vector<16x128xf32>
    %c0_3 = arith.constant 0 : index
    %c0_4 = arith.constant 0 : index
    %3 = vector.load %arg4[%c0_3, %c0_4] : memref<1x128xf32, #tpu.memory_space<vmem>>, vector<1x128xf32>
    %4 = vector.broadcast %3 : vector<1x128xf32> to vector<16x128xf32>
    %5 = arith.addf %2, %4 : vector<16x128xf32>
    %c0_5 = arith.constant 0 : index
    %c0_6 = arith.constant 0 : index
    %6 = vector.load %arg5[%c0_5, %c0_6] : memref<16x128xf32, #tpu.memory_space<vmem>>, vector<16x128xf32>
    tpu.vector_store %arg5[%c0_5, %c0_6], %5 {strides = array<i32>} : memref<16x128xf32, #tpu.memory_space<vmem>>, vector<16x128xf32>,
    return
  }
  func.func @transform_0(%arg0: i32, %arg1: i32) -> (i32, i32) {
    %c0_i32 = arith.constant 0 : i32
    %c0_i32_0 = arith.constant 0 : i32
    return %arg0, %c0_i32 : i32, i32
  }
  func.func @transform_1(%arg0: i32, %arg1: i32) -> (i32, i32) {
    %c0_i32 = arith.constant 0 : i32
    %c0_i32_0 = arith.constant 0 : i32
    return %c0_i32, %arg1 : i32, i32
  }
  func.func @transform_2(%arg0: i32, %arg1: i32) -> (i32, i32) {
    %c0_i32 = arith.constant 0 : i32
    %c0_i32_0 = arith.constant 0 : i32
    return %c0_i32, %arg1 : i32, i32
  }
  func.func @transform_3(%arg0: i32, %arg1: i32) -> (i32, i32) {
    %c0_i32 = arith.constant 0 : i32
    return %arg0, %arg1 : i32, i32
  }
}

</mosaic_0001>

<llo_original>
// kernel: task_specific_discriminator_forward.7
$region0: #{task_specific_discriminator_forward.7}
  #allocation0 [shape = 'u32[]', space=smem, size = 0x4, offset = 0x4, fixed_abs, tag = 'smem constant byte address 0x4 - core index']
  #allocation1 [shape = 'u32[144,128]{1,0:T(1,128)}', space=vmem, size = 0x12000, scoped, tag = 'internal scratch']
  %s0 = inlined_call_operand.vmem [shape: bf16[512,8], index: 0, kind: input, shape index: {}]
  %s1 = inlined_call_operand.vmem [shape: bf16[8,128], index: 1, kind: input, shape index: {}]
  %s2 = inlined_call_operand.vmem [shape: bf16[512,128], index: 2, kind: output, shape index: {}]
  %s3 = sld [smem:[#allocation0]]
  $region41: #{task_specific_discriminator_forward.7} parent=0
    _
  %s5 = ssub.s32 1, %s3
  %s6 = scalar_select 0, %s5, %s3
  loop: start=0, step=1, limit=4
  $region2: #{task_specific_discriminator_forward.7} parent=0 // loop_pre_header
    _
  $region3: #{task_specific_discriminator_forward.7} parent=0 // loop_header
    %s8 = sphi 0, %s12
    %p9 = scmp.ge.s32.totalorder %s8, 4
    %s15 = sphi 0, %s27
    %s16 = sphi 0, %s23
    %s17 = sphi 0, %s15
    %s18 = sphi 0, %s16
    %s19 = sphi 0, %s17
    %s20 = sphi 0, %s18
    %s30 = sphi 0, %s32
    %s33 = sphi 0, %s30
    %s34 = sphi 0, %s33
    %s50 = sphi 0, %s34
    %s56 = sphi 0, %s58
    %s59 = sphi 0, %s56
    %s60 = sphi 0, %s59
    %s76 = sphi 0, %s60
    %s84 = sphi 0, %s86
    %s87 = sphi 0, %s84
    %s88 = sphi 0, %s87
    %s104 = sphi 0, %s88
  $region4: #{task_specific_discriminator_forward.7} parent=0 // loop_header_branch
    %11 = sbr.rel (%p9) target = $region8
  $region5: #{task_specific_discriminator_forward.7} parent=0 // loop_body
    %s13 = ssub.s32 %s8, 1
    %s14 = ssub.s32 %s8, 2
    %s21 = sadd.s32 1, %s16
    %p22 = scmp.ge.s32.totalorder %s21, 1
    %s23 = scalar_select %p22, 0, %s21
    %s24 = sadd.s32 1, %s15
    %s25 = scalar_select %p22, %s24, %s15
    %p26 = scmp.ge.s32.totalorder %s25, 2
    %s27 = scalar_select %p26, 0, %s25
    %s28 = ssub.s32 %s15, %s27
    %p29 = scmp.eq.s32.totalorder %s28, 0
    %s31 = sadd.s32 %s30, 1
    %s32 = scalar_select %p29, %s30, %s31
    %p35 = pneg %p29
    %p36 = scmp.eq.s32.totalorder %s8, 1
    %p37 = por %p35, %p36
    %p38 = scmp.ne.s32.totalorder %s30, %s33
    %p39 = scmp.eq.s32.totalorder %s8, 0
    %p40 = por %p38, %p39
    %p41 = scmp.ne.s32.totalorder %s30, %s33
    %p42 = scmp.eq.s32.totalorder %s13, 1
    %p43 = por %p41, %p42
    %p44 = scmp.ne.s32.totalorder %s33, %s34
    %p45 = scmp.eq.s32.totalorder %s13, 0
    %p46 = por %p44, %p45
    %p47 = scmp.ne.s32.totalorder %s33, %s34
    %p48 = scmp.eq.s32.totalorder %s14, 1
    %p49 = por %p47, %p48
    %p51 = scmp.ne.s32.totalorder %s34, %s50
    %p52 = scmp.eq.s32.totalorder %s14, 0
    %p53 = por %p51, %p52
    %s54 = ssub.s32 %s16, %s23
    %p55 = scmp.eq.s32.totalorder %s54, 0
    %s57 = sadd.s32 %s56, 1
    %s58 = scalar_select %p55, %s56, %s57
    %p61 = pneg %p55
    %p62 = scmp.eq.s32.totalorder %s8, 1
    %p63 = por %p61, %p62
    %p64 = scmp.ne.s32.totalorder %s56, %s59
    %p65 = scmp.eq.s32.totalorder %s8, 0
    %p66 = por %p64, %p65
    %p67 = scmp.ne.s32.totalorder %s56, %s59
    %p68 = scmp.eq.s32.totalorder %s13, 1
    %p69 = por %p67, %p68
    %p70 = scmp.ne.s32.totalorder %s59, %s60
    %p71 = scmp.eq.s32.totalorder %s13, 0
    %p72 = por %p70, %p71
    %p73 = scmp.ne.s32.totalorder %s59, %s60
    %p74 = scmp.eq.s32.totalorder %s14, 1
    %p75 = por %p73, %p74
    %p77 = scmp.ne.s32.totalorder %s60, %s76
    %p78 = scmp.eq.s32.totalorder %s14, 0
    %p79 = por %p77, %p78
    %s80 = ssub.s32 %s15, %s27
    %s81 = ssub.s32 %s16, %s23
    %s82 = sor.u32 %s80, %s81
    %p83 = scmp.eq.s32.totalorder %s82, 0
    %s85 = sadd.s32 %s84, 1
    %s86 = scalar_select %p83, %s84, %s85
    %p89 = pneg %p83
    %p90 = scmp.eq.s32.totalorder %s8, 1
    %p91 = por %p89, %p90
    %p92 = scmp.ne.s32.totalorder %s84, %s87
    %p93 = scmp.eq.s32.totalorder %s8, 0
    %p94 = por %p92, %p93
    %p95 = scmp.ne.s32.totalorder %s84, %s87
    %p96 = scmp.eq.s32.totalorder %s13, 1
    %p97 = por %p95, %p96
    %p98 = scmp.ne.s32.totalorder %s87, %s88
    %p99 = scmp.eq.s32.totalorder %s13, 0
    %p100 = por %p98, %p99
    %p101 = scmp.ne.s32.totalorder %s87, %s88
    %p102 = scmp.eq.s32.totalorder %s14, 1
    %p103 = por %p101, %p102
    %p105 = scmp.ne.s32.totalorder %s88, %s104
    %p106 = scmp.eq.s32.totalorder %s14, 0
    %p107 = por %p105, %p106
    %p108 = scmp.le.s32.totalorder 1, %s8
    %p109 = scmp.lt.s32.totalorder %s8, 3
    %p110 = pnand %p108, %p109
    %p111 = pneg %p110
    // Predicated region
    $region9: #{task_specific_discriminator_forward.7} parent=5 // pred_check
      _
    $region10: #{task_specific_discriminator_forward.7} parent=5 // pred_check_branch
      %113 = sbr.rel (%p110) target = $region12
    $region11: #{task_specific_discriminator_forward.7} parent=5 // pred_region
      %s114 = ssub.s32 %s8, 1
      // Predicated region
      $region13: #{task_specific_discriminator_forward.7} parent=11 // pred_check
        %p115 = pneg %p72
      $region14: #{task_specific_discriminator_forward.7} parent=11 // pred_check_branch
        %117 = sbr.rel (%p115) target = $region16
      $region15: #{task_specific_discriminator_forward.7} parent=11 // pred_region
        %p118 = scmp.lt.s32.totalorder %s18, 0
        %s119 = scalar_select %p118, %s18, 0
        %s120 = smul.addr %s119, 4
        %s121 = scalar_lea.vmem %s1, %s120
      $region16: #{task_specific_discriminator_forward.7} parent=11 // pred_fallthru
        _
    $region12: #{task_specific_discriminator_forward.7} parent=5 // pred_fallthru
      _
    %p122 = scmp.lt.s32.totalorder %s8, 2
    // Predicated region
    $region17: #{task_specific_discriminator_forward.7} parent=5 // pred_check
      %p123 = pneg %p122
    $region18: #{task_specific_discriminator_forward.7} parent=5 // pred_check_branch
      %125 = sbr.rel (%p123) target = $region20
    $region19: #{task_specific_discriminator_forward.7} parent=5 // pred_region
      // Predicated region
      $region21: #{task_specific_discriminator_forward.7} parent=19 // pred_check
        %p126 = pneg %p40
      $region22: #{task_specific_discriminator_forward.7} parent=19 // pred_check_branch
        %128 = sbr.rel (%p126) target = $region24
      $region23: #{task_specific_discriminator_forward.7} parent=19 // pred_region
        %s129 = smul.u32 32, %s15
        %p130 = scmp.lt.s32.totalorder %s129, 63
        %s131 = scalar_select %p130, %s129, 63
        %s132 = smul.addr %s131, 4
        %s133 = scalar_lea.vmem %s0, %s132
        %s134 = smul.u32 32, %s15
      $region24: #{task_specific_discriminator_forward.7} parent=19 // pred_fallthru
        _
    $region20: #{task_specific_discriminator_forward.7} parent=5 // pred_fallthru
      _
    %p135 = scmp.le.s32.totalorder 1, %s8
    %p136 = scmp.lt.s32.totalorder %s8, 3
    %p137 = pnand %p135, %p136
    %p138 = pneg %p137
    // Predicated region
    $region25: #{task_specific_discriminator_forward.7} parent=5 // pred_check
      _
    $region26: #{task_specific_discriminator_forward.7} parent=5 // pred_check_branch
      %140 = sbr.rel (%p137) target = $region28
    $region27: #{task_specific_discriminator_forward.7} parent=5 // pred_region
      %s141 = ssub.s32 %s8, 1
      %s142 = smul.u32 32, %s17
      %p143 = scmp.lt.s32.totalorder %s142, 63
      %s144 = scalar_select %p143, %s142, 63
      %s145 = smul.addr %s144, 4
      %s146 = scalar_lea.vmem %s0, %s145
      %p147 = pneg %p46
      %p148 = pneg %p43
      %p149 = scmp.lt.s32.totalorder %s18, 0
      %s150 = scalar_select %p149, %s18, 0
      %s151 = smul.addr %s150, 4
      %s152 = scalar_lea.vmem %s1, %s151
      %p153 = pneg %p72
      %p154 = pneg %p69
      %p155 = pneg %p100
      %p156 = pneg %p97
      %s157 = smul.u32 32, %s17
      %p158 = scmp.lt.s32.totalorder %s157, 63
      %s159 = scalar_select %p158, %s157, 63
      %p160 = scmp.lt.s32.totalorder %s18, 0
      %s161 = scalar_select %p160, %s18, 0
      %s162 = sadd.s32 %s161, %s159
      %s163 = smul.addr %s162, 4
      %s164 = scalar_lea.vmem %s2, %s163
      %s165 = smul.u32 32, %s17
      %p166 = scmp.lt.s32.totalorder %s165, 63
      %s167 = scalar_select %p166, %s165, 63
      %s168 = smul.addr %s167, 4
      %s169 = scalar_lea.vmem %s0, %s168
      %s170 = smul.u32 32, %s17
      %p171 = scmp.lt.s32.totalorder %s18, 0
      %s172 = scalar_select %p171, %s18, 0
      %s173 = smul.addr %s172, 4
      %s174 = scalar_lea.vmem %s1, %s173
      %s175 = smul.u32 32, %s17
      %p176 = scmp.lt.s32.totalorder %s175, 63
      %s177 = scalar_select %p176, %s175, 63
      %p178 = scmp.lt.s32.totalorder %s18, 0
      %s179 = scalar_select %p178, %s18, 0
      %s180 = sadd.s32 %s179, %s177
      %s181 = smul.addr %s180, 4
      %s182 = scalar_lea.vmem %s2, %s181
      %s183 = smul.u32 32, %s17
      %v185 = vld [vmem:[%s169] sm:$0xf]
      %v186 = vld [vmem:[%s169 + $0x4] sm:$0xf]
      %v187 = vld [vmem:[%s169 + $0x8] sm:$0xf]
      %v188 = vld [vmem:[%s169 + $0xc] sm:$0xf]
      %v189 = vld [vmem:[%s169 + $0x10] sm:$0xf]
      %v190 = vld [vmem:[%s169 + $0x14] sm:$0xf]
      %v191 = vld [vmem:[%s169 + $0x18] sm:$0xf]
      %v192 = vld [vmem:[%s169 + $0x1c] sm:$0xf]
      %v193 = vld [vmem:[%s169 + $0x20] sm:$0xf]
      %v194 = vld [vmem:[%s169 + $0x24] sm:$0xf]
      %v195 = vld [vmem:[%s169 + $0x28] sm:$0xf]
      %v196 = vld [vmem:[%s169 + $0x2c] sm:$0xf]
      %v197 = vld [vmem:[%s169 + $0x30] sm:$0xf]
      %v198 = vld [vmem:[%s169 + $0x34] sm:$0xf]
      %v199 = vld [vmem:[%s169 + $0x38] sm:$0xf]
      %v200 = vld [vmem:[%s169 + $0x3c] sm:$0xf]
      %v201 = vld [vmem:[%s169 + $0x40] sm:$0xf]
      %v202 = vld [vmem:[%s169 + $0x44] sm:$0xf]
      %v203 = vld [vmem:[%s169 + $0x48] sm:$0xf]
      %v204 = vld [vmem:[%s169 + $0x4c] sm:$0xf]
      %v205 = vld [vmem:[%s169 + $0x50] sm:$0xf]
      %v206 = vld [vmem:[%s169 + $0x54] sm:$0xf]
      %v207 = vld [vmem:[%s169 + $0x58] sm:$0xf]
      %v208 = vld [vmem:[%s169 + $0x5c] sm:$0xf]
      %v209 = vld [vmem:[%s169 + $0x60] sm:$0xf]
      %v210 = vld [vmem:[%s169 + $0x64] sm:$0xf]
      %v211 = vld [vmem:[%s169 + $0x68] sm:$0xf]
      %v212 = vld [vmem:[%s169 + $0x6c] sm:$0xf]
      %v213 = vld [vmem:[%s169 + $0x70] sm:$0xf]
      %v214 = vld [vmem:[%s169 + $0x74] sm:$0xf]
      %v215 = vld [vmem:[%s169 + $0x78] sm:$0xf]
      %v216 = vld [vmem:[%s169 + $0x7c] sm:$0xf]
      %v217 = vld [vmem:[%s174] sm:$0xf]
      %v250 = vunpack.c.l.b16 %v185
      %v251 = vunpack.c.l.b16 %v186
      %v252 = vunpack.c.l.b16 %v187
      %v253 = vunpack.c.l.b16 %v188
      %v254 = vunpack.c.l.b16 %v189
      %v255 = vunpack.c.l.b16 %v190
      %v256 = vunpack.c.l.b16 %v191
      %v257 = vunpack.c.l.b16 %v192
      %v258 = vunpack.c.l.b16 %v193
      %v259 = vunpack.c.l.b16 %v194
      %v260 = vunpack.c.l.b16 %v195
      %v261 = vunpack.c.l.b16 %v196
      %v262 = vunpack.c.l.b16 %v197
      %v263 = vunpack.c.l.b16 %v198
      %v264 = vunpack.c.l.b16 %v199
      %v265 = vunpack.c.l.b16 %v200
      %v266 = vunpack.c.l.b16 %v201
      %v267 = vunpack.c.l.b16 %v202
      %v268 = vunpack.c.l.b16 %v203
      %v269 = vunpack.c.l.b16 %v204
      %v270 = vunpack.c.l.b16 %v205
      %v271 = vunpack.c.l.b16 %v206
      %v272 = vunpack.c.l.b16 %v207
      %v273 = vunpack.c.l.b16 %v208
      %v274 = vunpack.c.l.b16 %v209
      %v275 = vunpack.c.l.b16 %v210
      %v276 = vunpack.c.l.b16 %v211
      %v277 = vunpack.c.l.b16 %v212
      %v278 = vunpack.c.l.b16 %v213
      %v279 = vunpack.c.l.b16 %v214
      %v280 = vunpack.c.l.b16 %v215
      %v281 = vunpack.c.l.b16 %v216
      %v282 = vpack.c.b16 %v251, %v250
      %v283 = vpack.c.b16 %v253, %v252
      %v284 = vpack.c.b16 %v255, %v254
      %v285 = vpack.c.b16 %v257, %v256
      %v286 = vpack.c.b16 %v259, %v258
      %v287 = vpack.c.b16 %v261, %v260
      %v288 = vpack.c.b16 %v263, %v262
      %v289 = vpack.c.b16 %v265, %v264
      %v290 = vpack.c.b16 %v267, %v266
      %v291 = vpack.c.b16 %v269, %v268
      %v292 = vpack.c.b16 %v271, %v270
      %v293 = vpack.c.b16 %v273, %v272
      %v294 = vpack.c.b16 %v275, %v274
      %v295 = vpack.c.b16 %v277, %v276
      %v296 = vpack.c.b16 %v279, %v278
      %v297 = vpack.c.b16 %v281, %v280
      %vm298 = vcmask 64512
      %v300 = vsel %vm298, %v282, 0
      %v303 = vsel %vm298, %v283, 0
      %v306 = vsel %vm298, %v284, 0
      %v309 = vsel %vm298, %v285, 0
      %v312 = vsel %vm298, %v286, 0
      %v315 = vsel %vm298, %v287, 0
      %v318 = vsel %vm298, %v288, 0
      %v321 = vsel %vm298, %v289, 0
      %v324 = vsel %vm298, %v290, 0
      %v327 = vsel %vm298, %v291, 0
      %v330 = vsel %vm298, %v292, 0
      %v333 = vsel %vm298, %v293, 0
      %v336 = vsel %vm298, %v294, 0
      %v339 = vsel %vm298, %v295, 0
      %v342 = vsel %vm298, %v296, 0
      %v345 = vsel %vm298, %v297, 0
      %vm347 = vcmask 1043456
      %v349 = vsel %vm347, %v217, 0
      %351 = vmatprep.subr.bf16.mxu0 0
      %352 = vmatpush1.bf16.msra.mxu0 %v349
      %353 = vmatprep.subr.bf16.mxu0 0
      %354 = vmatpush1.bf16.msra.mxu0 0
      %355 = vmatprep.subr.bf16.mxu0 0
      %356 = vmatpush1.bf16.msra.mxu0 0
      %357 = vmatprep.subr.bf16.mxu0 0
      %358 = vmatpush1.bf16.msra.mxu0 0
      %359 = vmatprep.subr.bf16.mxu0 0
      %360 = vmatpush1.bf16.msra.mxu0 0
      %361 = vmatprep.subr.bf16.mxu0 0
      %362 = vmatpush1.bf16.msra.mxu0 0
      %363 = vmatprep.subr.bf16.mxu0 0
      %364 = vmatpush1.bf16.msra.mxu0 0
      %365 = vmatprep.subr.bf16.mxu0 0
      %366 = vmatpush1.bf16.msra.mxu0 0
      %367 = vmatprep.subr.bf16.mxu0 0
      %368 = vmatpush1.bf16.msra.mxu0 0
      %369 = vmatprep.subr.bf16.mxu0 0
      %370 = vmatpush1.bf16.msra.mxu0 0
      %371 = vmatprep.subr.bf16.mxu0 0
      %372 = vmatpush1.bf16.msra.mxu0 0
      %373 = vmatprep.subr.bf16.mxu0 0
      %374 = vmatpush1.bf16.msra.mxu0 0
      %375 = vmatprep.subr.bf16.mxu0 0
      %376 = vmatpush1.bf16.msra.mxu0 0
      %377 = vmatprep.subr.bf16.mxu0 0
      %378 = vmatpush1.bf16.msra.mxu0 0
      %379 = vmatprep.subr.bf16.mxu0 0
      %380 = vmatpush1.bf16.msra.mxu0 0
      %381 = vmatprep.subr.bf16.mxu0 0
      %382 = vmatpush1.bf16.msra.mxu0 0
      %383 = vmatprep.mubr.bf16.mxu0 0
      %384 = vmatmul.mubr.bf16.gmra.mrb[0].mxu0 %v300
      %v385 = vpop.f32.mrb[0].mxu0
      %v386 = vadd.f32 0.0, %v385
      %v387 = vpop.f32.mrb[0].mxu0
      %v388 = vpop.f32.mrb[0].mxu0
      %v389 = vadd.f32 0.0, %v388
      %v390 = vpop.f32.mrb[0].mxu0
      %391 = vmatprep.mubr.bf16.mxu0 0
      %392 = vmatmul.mubr.bf16.gmra.mrb[0].mxu0 %v303
      %v393 = vpop.f32.mrb[0].mxu0
      %v394 = vadd.f32 0.0, %v393
      %v395 = vpop.f32.mrb[0].mxu0
      %v396 = vpop.f32.mrb[0].mxu0
      %v397 = vadd.f32 0.0, %v396
      %v398 = vpop.f32.mrb[0].mxu0
      %399 = vmatprep.mubr.bf16.mxu0 0
      %400 = vmatmul.mubr.bf16.gmra.mrb[0].mxu0 %v306
      %v401 = vpop.f32.mrb[0].mxu0
      %v402 = vadd.f32 0.0, %v401
      %v403 = vpop.f32.mrb[0].mxu0
      %v404 = vpop.f32.mrb[0].mxu0
      %v405 = vadd.f32 0.0, %v404
      %v406 = vpop.f32.mrb[0].mxu0
      %407 = vmatprep.mubr.bf16.mxu0 0
      %408 = vmatmul.mubr.bf16.gmra.mrb[0].mxu0 %v309
      %v409 = vpop.f32.mrb[0].mxu0
      %v410 = vadd.f32 0.0, %v409
      %v411 = vpop.f32.mrb[0].mxu0
      %v412 = vpop.f32.mrb[0].mxu0
      %v413 = vadd.f32 0.0, %v412
      %v414 = vpop.f32.mrb[0].mxu0
      %415 = vmatprep.mubr.bf16.mxu0 0
      %416 = vmatmul.mubr.bf16.gmra.mrb[0].mxu0 %v312
      %v417 = vpop.f32.mrb[0].mxu0
      %v418 = vadd.f32 0.0, %v417
      %v419 = vpop.f32.mrb[0].mxu0
      %v420 = vpop.f32.mrb[0].mxu0
      %v421 = vadd.f32 0.0, %v420
      %v422 = vpop.f32.mrb[0].mxu0
      %423 = vmatprep.mubr.bf16.mxu0 0
      %424 = vmatmul.mubr.bf16.gmra.mrb[0].mxu0 %v315
      %v425 = vpop.f32.mrb[0].mxu0
      %v426 = vadd.f32 0.0, %v425
      %v427 = vpop.f32.mrb[0].mxu0
      %v428 = vpop.f32.mrb[0].mxu0
      %v429 = vadd.f32 0.0, %v428
      %v430 = vpop.f32.mrb[0].mxu0
      %431 = vmatprep.mubr.bf16.mxu0 0
      %432 = vmatmul.mubr.bf16.gmra.mrb[0].mxu0 %v318
      %v433 = vpop.f32.mrb[0].mxu0
      %v434 = vadd.f32 0.0, %v433
      %v435 = vpop.f32.mrb[0].mxu0
      %v436 = vpop.f32.mrb[0].mxu0
      %v437 = vadd.f32 0.0, %v436
      %v438 = vpop.f32.mrb[0].mxu0
      %439 = vmatprep.mubr.bf16.mxu0 0
      %440 = vmatmul.mubr.bf16.gmra.mrb[0].mxu0 %v321
      %v441 = vpop.f32.mrb[0].mxu0
      %v442 = vadd.f32 0.0, %v441
      %v443 = vpop.f32.mrb[0].mxu0
      %v444 = vpop.f32.mrb[0].mxu0
      %v445 = vadd.f32 0.0, %v444
      %v446 = vpop.f32.mrb[0].mxu0
      %447 = vmatprep.mubr.bf16.mxu0 0
      %448 = vmatmul.mubr.bf16.gmra.mrb[0].mxu0 %v324
      %v449 = vpop.f32.mrb[0].mxu0
      %v450 = vadd.f32 0.0, %v449
      %v451 = vpop.f32.mrb[0].mxu0
      %v452 = vpop.f32.mrb[0].mxu0
      %v453 = vadd.f32 0.0, %v452
      %v454 = vpop.f32.mrb[0].mxu0
      %455 = vmatprep.mubr.bf16.mxu0 0
      %456 = vmatmul.mubr.bf16.gmra.mrb[0].mxu0 %v327
      %v457 = vpop.f32.mrb[0].mxu0
      %v458 = vadd.f32 0.0, %v457
      %v459 = vpop.f32.mrb[0].mxu0
      %v460 = vpop.f32.mrb[0].mxu0
      %v461 = vadd.f32 0.0, %v460
      %v462 = vpop.f32.mrb[0].mxu0
      %463 = vmatprep.mubr.bf16.mxu0 0
      %464 = vmatmul.mubr.bf16.gmra.mrb[0].mxu0 %v330
      %v465 = vpop.f32.mrb[0].mxu0
      %v466 = vadd.f32 0.0, %v465
      %v467 = vpop.f32.mrb[0].mxu0
      %v468 = vpop.f32.mrb[0].mxu0
      %v469 = vadd.f32 0.0, %v468
      %v470 = vpop.f32.mrb[0].mxu0
      %471 = vmatprep.mubr.bf16.mxu0 0
      %472 = vmatmul.mubr.bf16.gmra.mrb[0].mxu0 %v333
      %v473 = vpop.f32.mrb[0].mxu0
      %v474 = vadd.f32 0.0, %v473
      %v475 = vpop.f32.mrb[0].mxu0
      %v476 = vpop.f32.mrb[0].mxu0
      %v477 = vadd.f32 0.0, %v476
      %v478 = vpop.f32.mrb[0].mxu0
      %479 = vmatprep.mubr.bf16.mxu0 0
      %480 = vmatmul.mubr.bf16.gmra.mrb[0].mxu0 %v336
      %v481 = vpop.f32.mrb[0].mxu0
      %v482 = vadd.f32 0.0, %v481
      %v483 = vpop.f32.mrb[0].mxu0
      %v484 = vpop.f32.mrb[0].mxu0
      %v485 = vadd.f32 0.0, %v484
      %v486 = vpop.f32.mrb[0].mxu0
      %487 = vmatprep.mubr.bf16.mxu0 0
      %488 = vmatmul.mubr.bf16.gmra.mrb[0].mxu0 %v339
      %v489 = vpop.f32.mrb[0].mxu0
      %v490 = vadd.f32 0.0, %v489
      %v491 = vpop.f32.mrb[0].mxu0
      %v492 = vpop.f32.mrb[0].mxu0
      %v493 = vadd.f32 0.0, %v492
      %v494 = vpop.f32.mrb[0].mxu0
      %495 = vmatprep.mubr.bf16.mxu0 0
      %496 = vmatmul.mubr.bf16.gmra.mrb[0].mxu0 %v342
      %v497 = vpop.f32.mrb[0].mxu0
      %v498 = vadd.f32 0.0, %v497
      %v499 = vpop.f32.mrb[0].mxu0
      %v500 = vpop.f32.mrb[0].mxu0
      %v501 = vadd.f32 0.0, %v500
      %v502 = vpop.f32.mrb[0].mxu0
      %503 = vmatprep.mubr.bf16.mxu0 0
      %504 = vmatmul.mubr.bf16.gmra.mrb[0].mxu0 %v345
      %v505 = vpop.f32.mrb[0].mxu0
      %v506 = vadd.f32 0.0, %v505
      %v507 = vpop.f32.mrb[0].mxu0
      %v508 = vpop.f32.mrb[0].mxu0
      %v509 = vadd.f32 0.0, %v508
      %v510 = vpop.f32.mrb[0].mxu0
      %511 = vdwg.mxu0
      %v512 = vpack.c.bf16 %v389, %v386
      %v513 = vpack.c.bf16 %v397, %v394
      %v514 = vpack.c.bf16 %v405, %v402
      %v515 = vpack.c.bf16 %v413, %v410
      %v516 = vpack.c.bf16 %v421, %v418
      %v517 = vpack.c.bf16 %v429, %v426
      %v518 = vpack.c.bf16 %v437, %v434
      %v519 = vpack.c.bf16 %v445, %v442
      %v520 = vpack.c.bf16 %v453, %v450
      %v521 = vpack.c.bf16 %v461, %v458
      %v522 = vpack.c.bf16 %v469, %v466
      %v523 = vpack.c.bf16 %v477, %v474
      %v524 = vpack.c.bf16 %v485, %v482
      %v525 = vpack.c.bf16 %v493, %v490
      %v526 = vpack.c.bf16 %v501, %v498
      %v527 = vpack.c.bf16 %v509, %v506
      %v544 = vunpack.c.l.b16 %v512
      %v545 = vunpack.c.h.b16 %v512
      %v546 = vunpack.c.l.b16 %v513
      %v547 = vunpack.c.h.b16 %v513
      %v548 = vunpack.c.l.b16 %v514
      %v549 = vunpack.c.h.b16 %v514
      %v550 = vunpack.c.l.b16 %v515
      %v551 = vunpack.c.h.b16 %v515
      %v552 = vunpack.c.l.b16 %v516
      %v553 = vunpack.c.h.b16 %v516
      %v554 = vunpack.c.l.b16 %v517
      %v555 = vunpack.c.h.b16 %v517
      %v556 = vunpack.c.l.b16 %v518
      %v557 = vunpack.c.h.b16 %v518
      %v558 = vunpack.c.l.b16 %v519
      %v559 = vunpack.c.h.b16 %v519
      %v560 = vunpack.c.l.b16 %v520
      %v561 = vunpack.c.h.b16 %v520
      %v562 = vunpack.c.l.b16 %v521
      %v563 = vunpack.c.h.b16 %v521
      %v564 = vunpack.c.l.b16 %v522
      %v565 = vunpack.c.h.b16 %v522
      %v566 = vunpack.c.l.b16 %v523
      %v567 = vunpack.c.h.b16 %v523
      %v568 = vunpack.c.l.b16 %v524
      %v569 = vunpack.c.h.b16 %v524
      %v570 = vunpack.c.l.b16 %v525
      %v571 = vunpack.c.h.b16 %v525
      %v572 = vunpack.c.l.b16 %v526
      %v573 = vunpack.c.h.b16 %v526
      %v574 = vunpack.c.l.b16 %v527
      %v575 = vunpack.c.h.b16 %v527
      %v576 = vpack.c.b16 %v544, %v544
      %v577 = vpack.c.b16 %v545, %v545
      %v578 = vpack.c.b16 %v546, %v546
      %v579 = vpack.c.b16 %v547, %v547
      %v580 = vpack.c.b16 %v548, %v548
      %v581 = vpack.c.b16 %v549, %v549
      %v582 = vpack.c.b16 %v550, %v550
      %v583 = vpack.c.b16 %v551, %v551
      %v584 = vpack.c.b16 %v552, %v552
      %v585 = vpack.c.b16 %v553, %v553
      %v586 = vpack.c.b16 %v554, %v554
      %v587 = vpack.c.b16 %v555, %v555
      %v588 = vpack.c.b16 %v556, %v556
      %v589 = vpack.c.b16 %v557, %v557
      %v590 = vpack.c.b16 %v558, %v558
      %v591 = vpack.c.b16 %v559, %v559
      %v592 = vpack.c.b16 %v560, %v560
      %v593 = vpack.c.b16 %v561, %v561
      %v594 = vpack.c.b16 %v562, %v562
      %v595 = vpack.c.b16 %v563, %v563
      %v596 = vpack.c.b16 %v564, %v564
      %v597 = vpack.c.b16 %v565, %v565
      %v598 = vpack.c.b16 %v566, %v566
      %v599 = vpack.c.b16 %v567, %v567
      %v600 = vpack.c.b16 %v568, %v568
      %v601 = vpack.c.b16 %v569, %v569
      %v602 = vpack.c.b16 %v570, %v570
      %v603 = vpack.c.b16 %v571, %v571
      %v604 = vpack.c.b16 %v572, %v572
      %v605 = vpack.c.b16 %v573, %v573
      %v606 = vpack.c.b16 %v574, %v574
      %v607 = vpack.c.b16 %v575, %v575
      %640 = vst [vmem:[%s182] sm:$0xf] %v576
      %641 = vst [vmem:[%s182 + $0x4] sm:$0xf] %v577
      %642 = vst [vmem:[%s182 + $0x8] sm:$0xf] %v578
      %643 = vst [vmem:[%s182 + $0xc] sm:$0xf] %v579
      %644 = vst [vmem:[%s182 + $0x10] sm:$0xf] %v580
      %645 = vst [vmem:[%s182 + $0x14] sm:$0xf] %v581
      %646 = vst [vmem:[%s182 + $0x18] sm:$0xf] %v582
      %647 = vst [vmem:[%s182 + $0x1c] sm:$0xf] %v583
      %648 = vst [vmem:[%s182 + $0x20] sm:$0xf] %v584
      %649 = vst [vmem:[%s182 + $0x24] sm:$0xf] %v585
      %650 = vst [vmem:[%s182 + $0x28] sm:$0xf] %v586
      %651 = vst [vmem:[%s182 + $0x2c] sm:$0xf] %v587
      %652 = vst [vmem:[%s182 + $0x30] sm:$0xf] %v588
      %653 = vst [vmem:[%s182 + $0x34] sm:$0xf] %v589
      %654 = vst [vmem:[%s182 + $0x38] sm:$0xf] %v590
      %655 = vst [vmem:[%s182 + $0x3c] sm:$0xf] %v591
      %656 = vst [vmem:[%s182 + $0x40] sm:$0xf] %v592
      %657 = vst [vmem:[%s182 + $0x44] sm:$0xf] %v593
      %658 = vst [vmem:[%s182 + $0x48] sm:$0xf] %v594
      %659 = vst [vmem:[%s182 + $0x4c] sm:$0xf] %v595
      %660 = vst [vmem:[%s182 + $0x50] sm:$0xf] %v596
      %661 = vst [vmem:[%s182 + $0x54] sm:$0xf] %v597
      %662 = vst [vmem:[%s182 + $0x58] sm:$0xf] %v598
      %663 = vst [vmem:[%s182 + $0x5c] sm:$0xf] %v599
      %664 = vst [vmem:[%s182 + $0x60] sm:$0xf] %v600
      %665 = vst [vmem:[%s182 + $0x64] sm:$0xf] %v601
      %666 = vst [vmem:[%s182 + $0x68] sm:$0xf] %v602
      %667 = vst [vmem:[%s182 + $0x6c] sm:$0xf] %v603
      %668 = vst [vmem:[%s182 + $0x70] sm:$0xf] %v604
      %669 = vst [vmem:[%s182 + $0x74] sm:$0xf] %v605
      %670 = vst [vmem:[%s182 + $0x78] sm:$0xf] %v606
      %671 = vst [vmem:[%s182 + $0x7c] sm:$0xf] %v607
      %s672 = smul.u32 32, %s17
      %p673 = scmp.lt.s32.totalorder %s672, 63
      %s674 = scalar_select %p673, %s672, 63
      %p675 = scmp.lt.s32.totalorder %s18, 0
      %s676 = scalar_select %p675, %s18, 0
      %s677 = sadd.s32 %s676, %s674
      %s678 = smul.addr %s677, 4
      %s679 = scalar_lea.vmem %s2, %s678
      // Predicated region
      $region29: #{task_specific_discriminator_forward.7} parent=27 // pred_check
        %p680 = pneg %p97
      $region30: #{task_specific_discriminator_forward.7} parent=27 // pred_check_branch
        %682 = sbr.rel (%p680) target = $region32
      $region31: #{task_specific_discriminator_forward.7} parent=27 // pred_region
        %s683 = smul.u32 32, %s17
      $region32: #{task_specific_discriminator_forward.7} parent=27 // pred_fallthru
        _
    $region28: #{task_specific_discriminator_forward.7} parent=5 // pred_fallthru
      _
    %p684 = scmp.le.s32.totalorder 2, %s8
    // Predicated region
    $region33: #{task_specific_discriminator_forward.7} parent=5 // pred_check
      %p685 = pneg %p684
    $region34: #{task_specific_discriminator_forward.7} parent=5 // pred_check_branch
      %687 = sbr.rel (%p685) target = $region36
    $region35: #{task_specific_discriminator_forward.7} parent=5 // pred_region
      %s688 = ssub.s32 %s8, 2
      // Predicated region
      $region37: #{task_specific_discriminator_forward.7} parent=35 // pred_check
        %p689 = pneg %p103
      $region38: #{task_specific_discriminator_forward.7} parent=35 // pred_check_branch
        %691 = sbr.rel (%p689) target = $region40
      $region39: #{task_specific_discriminator_forward.7} parent=35 // pred_region
        %s692 = smul.u32 32, %s19
        %p693 = scmp.lt.s32.totalorder %s692, 63
        %s694 = scalar_select %p693, %s692, 63
        %p695 = scmp.lt.s32.totalorder %s20, 0
        %s696 = scalar_select %p695, %s20, 0
        %s697 = sadd.s32 %s696, %s694
        %s698 = smul.addr %s697, 4
        %s699 = scalar_lea.vmem %s2, %s698
      $region40: #{task_specific_discriminator_forward.7} parent=35 // pred_fallthru
        _
    $region36: #{task_specific_discriminator_forward.7} parent=5 // pred_fallthru
      _
  $region6: #{task_specific_discriminator_forward.7} parent=0 // loop_footer
    %s12 = sadd.s32 1, %s8
  $region7: #{task_specific_discriminator_forward.7} parent=0 // loop_footer_branch
    %7 = sbr.rel target = $region3
  $region8: #{task_specific_discriminator_forward.7} parent=0 // loop_exit
    _

// kernel: task_specific_discriminator_forward.8
$region0: #{task_specific_discriminator_forward.8}
  #allocation0 [shape = 'u32[]', space=smem, size = 0x4, offset = 0x4, fixed_abs, tag = 'smem constant byte address 0x4 - core index']
  #allocation1 [shape = 'u32[144,128]{1,0:T(1,128)}', space=vmem, size = 0x12000, scoped, tag = 'internal scratch']
  %s0 = inlined_call_operand.vmem [shape: bf16[128,64], index: 0, kind: input, shape index: {}]
  %s1 = inlined_call_operand.vmem [shape: bf16[64,128], index: 1, kind: input, shape index: {}]
  %s2 = inlined_call_operand.vmem [shape: f32[1,128], index: 2, kind: input, shape index: {}]
  %s3 = inlined_call_operand.vmem [shape: bf16[128,128], index: 3, kind: output, shape index: {}]
  %s4 = sld [smem:[#allocation0]]
  $region45: #{task_specific_discriminator_forward.8} parent=0
    _
  %s6 = ssub.s32 1, %s4
  %s7 = scalar_select 0, %s6, %s4
  loop: start=0, step=1, limit=4
  $region2: #{task_specific_discriminator_forward.8} parent=0 // loop_pre_header
    _
  $region3: #{task_specific_discriminator_forward.8} parent=0 // loop_header
    %s9 = sphi 0, %s13
    %p10 = scmp.ge.s32.totalorder %s9, 4
    %s16 = sphi 0, %s28
    %s17 = sphi 0, %s24
    %s18 = sphi 0, %s16
    %s19 = sphi 0, %s17
    %s20 = sphi 0, %s18
    %s21 = sphi 0, %s19
    %s31 = sphi 0, %s33
    %s34 = sphi 0, %s31
    %s35 = sphi 0, %s34
    %s51 = sphi 0, %s35
    %s57 = sphi 0, %s59
    %s60 = sphi 0, %s57
    %s61 = sphi 0, %s60
    %s77 = sphi 0, %s61
    %s83 = sphi 0, %s85
    %s86 = sphi 0, %s83
    %s87 = sphi 0, %s86
    %s103 = sphi 0, %s87
    %s111 = sphi 0, %s113
    %s114 = sphi 0, %s111
    %s115 = sphi 0, %s114
    %s131 = sphi 0, %s115
  $region4: #{task_specific_discriminator_forward.8} parent=0 // loop_header_branch
    %12 = sbr.rel (%p10) target = $region8
  $region5: #{task_specific_discriminator_forward.8} parent=0 // loop_body
    %s14 = ssub.s32 %s9, 1
    %s15 = ssub.s32 %s9, 2
    %s22 = sadd.s32 1, %s17
    %p23 = scmp.ge.s32.totalorder %s22, 1
    %s24 = scalar_select %p23, 0, %s22
    %s25 = sadd.s32 1, %s16
    %s26 = scalar_select %p23, %s25, %s16
    %p27 = scmp.ge.s32.totalorder %s26, 2
    %s28 = scalar_select %p27, 0, %s26
    %s29 = ssub.s32 %s16, %s28
    %p30 = scmp.eq.s32.totalorder %s29, 0
    %s32 = sadd.s32 %s31, 1
    %s33 = scalar_select %p30, %s31, %s32
    %p36 = pneg %p30
    %p37 = scmp.eq.s32.totalorder %s9, 1
    %p38 = por %p36, %p37
    %p39 = scmp.ne.s32.totalorder %s31, %s34
    %p40 = scmp.eq.s32.totalorder %s9, 0
    %p41 = por %p39, %p40
    %p42 = scmp.ne.s32.totalorder %s31, %s34
    %p43 = scmp.eq.s32.totalorder %s14, 1
    %p44 = por %p42, %p43
    %p45 = scmp.ne.s32.totalorder %s34, %s35
    %p46 = scmp.eq.s32.totalorder %s14, 0
    %p47 = por %p45, %p46
    %p48 = scmp.ne.s32.totalorder %s34, %s35
    %p49 = scmp.eq.s32.totalorder %s15, 1
    %p50 = por %p48, %p49
    %p52 = scmp.ne.s32.totalorder %s35, %s51
    %p53 = scmp.eq.s32.totalorder %s15, 0
    %p54 = por %p52, %p53
    %s55 = ssub.s32 %s17, %s24
    %p56 = scmp.eq.s32.totalorder %s55, 0
    %s58 = sadd.s32 %s57, 1
    %s59 = scalar_select %p56, %s57, %s58
    %p62 = pneg %p56
    %p63 = scmp.eq.s32.totalorder %s9, 1
    %p64 = por %p62, %p63
    %p65 = scmp.ne.s32.totalorder %s57, %s60
    %p66 = scmp.eq.s32.totalorder %s9, 0
    %p67 = por %p65, %p66
    %p68 = scmp.ne.s32.totalorder %s57, %s60
    %p69 = scmp.eq.s32.totalorder %s14, 1
    %p70 = por %p68, %p69
    %p71 = scmp.ne.s32.totalorder %s60, %s61
    %p72 = scmp.eq.s32.totalorder %s14, 0
    %p73 = por %p71, %p72
    %p74 = scmp.ne.s32.totalorder %s60, %s61
    %p75 = scmp.eq.s32.totalorder %s15, 1
    %p76 = por %p74, %p75
    %p78 = scmp.ne.s32.totalorder %s61, %s77
    %p79 = scmp.eq.s32.totalorder %s15, 0
    %p80 = por %p78, %p79
    %s81 = ssub.s32 %s17, %s24
    %p82 = scmp.eq.s32.totalorder %s81, 0
    %s84 = sadd.s32 %s83, 1
    %s85 = scalar_select %p82, %s83, %s84
    %p88 = pneg %p82
    %p89 = scmp.eq.s32.totalorder %s9, 1
    %p90 = por %p88, %p89
    %p91 = scmp.ne.s32.totalorder %s83, %s86
    %p92 = scmp.eq.s32.totalorder %s9, 0
    %p93 = por %p91, %p92
    %p94 = scmp.ne.s32.totalorder %s83, %s86
    %p95 = scmp.eq.s32.totalorder %s14, 1
    %p96 = por %p94, %p95
    %p97 = scmp.ne.s32.totalorder %s86, %s87
    %p98 = scmp.eq.s32.totalorder %s14, 0
    %p99 = por %p97, %p98
    %p100 = scmp.ne.s32.totalorder %s86, %s87
    %p101 = scmp.eq.s32.totalorder %s15, 1
    %p102 = por %p100, %p101
    %p104 = scmp.ne.s32.totalorder %s87, %s103
    %p105 = scmp.eq.s32.totalorder %s15, 0
    %p106 = por %p104, %p105
    %s107 = ssub.s32 %s16, %s28
    %s108 = ssub.s32 %s17, %s24
    %s109 = sor.u32 %s107, %s108
    %p110 = scmp.eq.s32.totalorder %s109, 0
    %s112 = sadd.s32 %s111, 1
    %s113 = scalar_select %p110, %s111, %s112
    %p116 = pneg %p110
    %p117 = scmp.eq.s32.totalorder %s9, 1
    %p118 = por %p116, %p117
    %p119 = scmp.ne.s32.totalorder %s111, %s114
    %p120 = scmp.eq.s32.totalorder %s9, 0
    %p121 = por %p119, %p120
    %p122 = scmp.ne.s32.totalorder %s111, %s114
    %p123 = scmp.eq.s32.totalorder %s14, 1
    %p124 = por %p122, %p123
    %p125 = scmp.ne.s32.totalorder %s114, %s115
    %p126 = scmp.eq.s32.totalorder %s14, 0
    %p127 = por %p125, %p126
    %p128 = scmp.ne.s32.totalorder %s114, %s115
    %p129 = scmp.eq.s32.totalorder %s15, 1
    %p130 = por %p128, %p129
    %p132 = scmp.ne.s32.totalorder %s115, %s131
    %p133 = scmp.eq.s32.totalorder %s15, 0
    %p134 = por %p132, %p133
    %p135 = scmp.le.s32.totalorder 1, %s9
    %p136 = scmp.lt.s32.totalorder %s9, 3
    %p137 = pnand %p135, %p136
    %p138 = pneg %p137
    // Predicated region
    $region9: #{task_specific_discriminator_forward.8} parent=5 // pred_check
      _
    $region10: #{task_specific_discriminator_forward.8} parent=5 // pred_check_branch
      %140 = sbr.rel (%p137) target = $region12
    $region11: #{task_specific_discriminator_forward.8} parent=5 // pred_region
      %s141 = ssub.s32 %s9, 1
      // Predicated region
      $region13: #{task_specific_discriminator_forward.8} parent=11 // pred_check
        %p142 = pneg %p73
      $region14: #{task_specific_discriminator_forward.8} parent=11 // pred_check_branch
        %144 = sbr.rel (%p142) target = $region16
      $region15: #{task_specific_discriminator_forward.8} parent=11 // pred_region
        %p145 = scmp.lt.s32.totalorder %s19, 0
        %s146 = scalar_select %p145, %s19, 0
        %s147 = smul.addr %s146, 4
        %s148 = scalar_lea.vmem %s1, %s147
      $region16: #{task_specific_discriminator_forward.8} parent=11 // pred_fallthru
        _
      // Predicated region
      $region17: #{task_specific_discriminator_forward.8} parent=11 // pred_check
        %p149 = pneg %p99
      $region18: #{task_specific_discriminator_forward.8} parent=11 // pred_check_branch
        %151 = sbr.rel (%p149) target = $region20
      $region19: #{task_specific_discriminator_forward.8} parent=11 // pred_region
        %p152 = scmp.lt.s32.totalorder %s19, 0
        %s153 = scalar_select %p152, %s19, 0
        %s154 = scalar_lea.vmem %s2, %s153
      $region20: #{task_specific_discriminator_forward.8} parent=11 // pred_fallthru
        _
    $region12: #{task_specific_discriminator_forward.8} parent=5 // pred_fallthru
      _
    %p155 = scmp.lt.s32.totalorder %s9, 2
    // Predicated region
    $region21: #{task_specific_discriminator_forward.8} parent=5 // pred_check
      %p156 = pneg %p155
    $region22: #{task_specific_discriminator_forward.8} parent=5 // pred_check_branch
      %158 = sbr.rel (%p156) target = $region24
    $region23: #{task_specific_discriminator_forward.8} parent=5 // pred_region
      // Predicated region
      $region25: #{task_specific_discriminator_forward.8} parent=23 // pred_check
        %p159 = pneg %p41
      $region26: #{task_specific_discriminator_forward.8} parent=23 // pred_check_branch
        %161 = sbr.rel (%p159) target = $region28
      $region27: #{task_specific_discriminator_forward.8} parent=23 // pred_region
        %s162 = smul.u32 8, %s16
        %p163 = scmp.lt.s32.totalorder %s162, 15
        %s164 = scalar_select %p163, %s162, 15
        %s165 = smul.addr %s164, 4
        %s166 = scalar_lea.vmem %s0, %s165
        %s167 = smul.u32 8, %s16
      $region28: #{task_specific_discriminator_forward.8} parent=23 // pred_fallthru
        _
    $region24: #{task_specific_discriminator_forward.8} parent=5 // pred_fallthru
      _
    %p168 = scmp.le.s32.totalorder 1, %s9
    %p169 = scmp.lt.s32.totalorder %s9, 3
    %p170 = pnand %p168, %p169
    %p171 = pneg %p170
    // Predicated region
    $region29: #{task_specific_discriminator_forward.8} parent=5 // pred_check
      _
    $region30: #{task_specific_discriminator_forward.8} parent=5 // pred_check_branch
      %173 = sbr.rel (%p170) target = $region32
    $region31: #{task_specific_discriminator_forward.8} parent=5 // pred_region
      %s174 = ssub.s32 %s9, 1
      %s175 = smul.u32 8, %s18
      %p176 = scmp.lt.s32.totalorder %s175, 15
      %s177 = scalar_select %p176, %s175, 15
      %s178 = smul.addr %s177, 4
      %s179 = scalar_lea.vmem %s0, %s178
      %p180 = pneg %p47
      %p181 = pneg %p44
      %p182 = scmp.lt.s32.totalorder %s19, 0
      %s183 = scalar_select %p182, %s19, 0
      %s184 = smul.addr %s183, 4
      %s185 = scalar_lea.vmem %s1, %s184
      %p186 = pneg %p73
      %p187 = pneg %p70
      %p188 = scmp.lt.s32.totalorder %s19, 0
      %s189 = scalar_select %p188, %s19, 0
      %s190 = scalar_lea.vmem %s2, %s189
      %p191 = pneg %p99
      %p192 = pneg %p96
      %p193 = pneg %p127
      %p194 = pneg %p124
      %s195 = smul.u32 8, %s18
      %p196 = scmp.lt.s32.totalorder %s195, 15
      %s197 = scalar_select %p196, %s195, 15
      %p198 = scmp.lt.s32.totalorder %s19, 0
      %s199 = scalar_select %p198, %s19, 0
      %s200 = sadd.s32 %s199, %s197
      %s201 = smul.addr %s200, 4
      %s202 = scalar_lea.vmem %s3, %s201
      %s203 = smul.u32 8, %s18
      %p204 = scmp.lt.s32.totalorder %s203, 15
      %s205 = scalar_select %p204, %s203, 15
      %s206 = smul.addr %s205, 4
      %s207 = scalar_lea.vmem %s0, %s206
      %s208 = smul.u32 8, %s18
      %p209 = scmp.lt.s32.totalorder %s19, 0
      %s210 = scalar_select %p209, %s19, 0
      %s211 = smul.addr %s210, 4
      %s212 = scalar_lea.vmem %s1, %s211
      %p213 = scmp.lt.s32.totalorder %s19, 0
      %s214 = scalar_select %p213, %s19, 0
      %s215 = scalar_lea.vmem %s2, %s214
      %s216 = smul.u32 8, %s18
      %p217 = scmp.lt.s32.totalorder %s216, 15
      %s218 = scalar_select %p217, %s216, 15
      %p219 = scmp.lt.s32.totalorder %s19, 0
      %s220 = scalar_select %p219, %s19, 0
      %s221 = sadd.s32 %s220, %s218
      %s222 = smul.addr %s221, 4
      %s223 = scalar_lea.vmem %s3, %s222
      %s224 = smul.u32 8, %s18
      %v226 = vld [vmem:[%s207] sm:$0xf]
      %v227 = vld [vmem:[%s207 + $0x4] sm:$0xf]
      %v228 = vld [vmem:[%s207 + $0x8] sm:$0xf]
      %v229 = vld [vmem:[%s207 + $0xc] sm:$0xf]
      %v230 = vld [vmem:[%s207 + $0x10] sm:$0xf]
      %v231 = vld [vmem:[%s207 + $0x14] sm:$0xf]
      %v232 = vld [vmem:[%s207 + $0x18] sm:$0xf]
      %v233 = vld [vmem:[%s207 + $0x1c] sm:$0xf]
      %v234 = vld [vmem:[%s212] sm:$0xf]
      %v235 = vld [vmem:[%s212 + $0x4] sm:$0xf]
      %v236 = vld [vmem:[%s212 + $0x8] sm:$0xf]
      %v237 = vld [vmem:[%s212 + $0xc] sm:$0xf]
      %v238 = vld [vmem:[%s212 + $0x10] sm:$0xf]
      %v239 = vld [vmem:[%s212 + $0x14] sm:$0xf]
      %v240 = vld [vmem:[%s212 + $0x18] sm:$0xf]
      %v241 = vld [vmem:[%s212 + $0x1c] sm:$0xf]
      %v242 = vld [vmem:[%s215] sm:$0x1]
      %v244 = vlaneseq
      %v245 = vshrl.u32 %v244, 7
      %v246 = vsub.s32 0, %v245
      %v247 = vrot.slane %v242, %v246
      %v257 = vunpack.c.l.b16 %v226
      %v258 = vunpack.c.l.b16 %v227
      %v259 = vunpack.c.l.b16 %v228
      %v260 = vunpack.c.l.b16 %v229
      %v261 = vunpack.c.l.b16 %v230
      %v262 = vunpack.c.l.b16 %v231
      %v263 = vunpack.c.l.b16 %v232
      %v264 = vunpack.c.l.b16 %v233
      %v265 = vpack.c.b16 %v258, %v257
      %v266 = vpack.c.b16 %v260, %v259
      %v267 = vpack.c.b16 %v262, %v261
      %v268 = vpack.c.b16 %v264, %v263
      %v277 = vunpack.c.l.b16 %v234
      %v278 = vunpack.c.l.b16 %v235
      %v279 = vunpack.c.l.b16 %v236
      %v280 = vunpack.c.l.b16 %v237
      %v281 = vunpack.c.l.b16 %v238
      %v282 = vunpack.c.l.b16 %v239
      %v283 = vunpack.c.l.b16 %v240
      %v284 = vunpack.c.l.b16 %v241
      %v285 = vpack.c.b16 %v278, %v277
      %v286 = vpack.c.b16 %v280, %v279
      %v287 = vpack.c.b16 %v282, %v281
      %v288 = vpack.c.b16 %v284, %v283
      %vm293 = vcmask 523264
      %v295 = vsel %vm293, %v265, 0
      %v298 = vsel %vm293, %v266, 0
      %v301 = vsel %vm293, %v267, 0
      %v304 = vsel %vm293, %v268, 0
      %306 = vmatprep.subr.bf16.mxu0 0
      %307 = vmatpush1.bf16.msra.mxu0 %v285
      %308 = vmatprep.subr.bf16.mxu0 0
      %309 = vmatpush1.bf16.msra.mxu0 %v286
      %310 = vmatprep.subr.bf16.mxu0 0
      %311 = vmatpush1.bf16.msra.mxu0 %v287
      %312 = vmatprep.subr.bf16.mxu0 0
      %313 = vmatpush1.bf16.msra.mxu0 %v288
      %314 = vmatprep.subr.bf16.mxu0 0
      %315 = vmatpush1.bf16.msra.mxu0 0
      %316 = vmatprep.subr.bf16.mxu0 0
      %317 = vmatpush1.bf16.msra.mxu0 0
      %318 = vmatprep.subr.bf16.mxu0 0
      %319 = vmatpush1.bf16.msra.mxu0 0
      %320 = vmatprep.subr.bf16.mxu0 0
      %321 = vmatpush1.bf16.msra.mxu0 0
      %322 = vmatprep.subr.bf16.mxu0 0
      %323 = vmatpush1.bf16.msra.mxu0 0
      %324 = vmatprep.subr.bf16.mxu0 0
      %325 = vmatpush1.bf16.msra.mxu0 0
      %326 = vmatprep.subr.bf16.mxu0 0
      %327 = vmatpush1.bf16.msra.mxu0 0
      %328 = vmatprep.subr.bf16.mxu0 0
      %329 = vmatpush1.bf16.msra.mxu0 0
      %330 = vmatprep.subr.bf16.mxu0 0
      %331 = vmatpush1.bf16.msra.mxu0 0
      %332 = vmatprep.subr.bf16.mxu0 0
      %333 = vmatpush1.bf16.msra.mxu0 0
      %334 = vmatprep.subr.bf16.mxu0 0
      %335 = vmatpush1.bf16.msra.mxu0 0
      %336 = vmatprep.subr.bf16.mxu0 0
      %337 = vmatpush1.bf16.msra.mxu0 0
      %338 = vmatprep.mubr.bf16.mxu0 0
      %339 = vmatmul.mubr.bf16.gmra.mrb[0].mxu0 %v295
      %v340 = vpop.f32.mrb[0].mxu0
      %v341 = vadd.f32 %v247, %v340
      %v342 = vpop.f32.mrb[0].mxu0
      %v343 = vpop.f32.mrb[0].mxu0
      %v344 = vadd.f32 %v247, %v343
      %v345 = vpop.f32.mrb[0].mxu0
      %346 = vmatprep.mubr.bf16.mxu0 0
      %347 = vmatmul.mubr.bf16.gmra.mrb[0].mxu0 %v298
      %v348 = vpop.f32.mrb[0].mxu0
      %v349 = vadd.f32 %v247, %v348
      %v350 = vpop.f32.mrb[0].mxu0
      %v351 = vpop.f32.mrb[0].mxu0
      %v352 = vadd.f32 %v247, %v351
      %v353 = vpop.f32.mrb[0].mxu0
      %354 = vmatprep.mubr.bf16.mxu0 0
      %355 = vmatmul.mubr.bf16.gmra.mrb[0].mxu0 %v301
      %v356 = vpop.f32.mrb[0].mxu0
      %v357 = vadd.f32 %v247, %v356
      %v358 = vpop.f32.mrb[0].mxu0
      %v359 = vpop.f32.mrb[0].mxu0
      %v360 = vadd.f32 %v247, %v359
      %v361 = vpop.f32.mrb[0].mxu0
      %362 = vmatprep.mubr.bf16.mxu0 0
      %363 = vmatmul.mubr.bf16.gmra.mrb[0].mxu0 %v304
      %v364 = vpop.f32.mrb[0].mxu0
      %v365 = vadd.f32 %v247, %v364
      %v366 = vpop.f32.mrb[0].mxu0
      %v367 = vpop.f32.mrb[0].mxu0
      %v368 = vadd.f32 %v247, %v367
      %v369 = vpop.f32.mrb[0].mxu0
      %370 = vdwg.mxu0
      %vm371 = vcmp.ge.f32.partialorder %v341, 0.0
      %vm372 = vcmp.ge.f32.partialorder %v344, 0.0
      %vm373 = vcmp.ge.f32.partialorder %v349, 0.0
      %vm374 = vcmp.ge.f32.partialorder %v352, 0.0
      %vm375 = vcmp.ge.f32.partialorder %v357, 0.0
      %vm376 = vcmp.ge.f32.partialorder %v360, 0.0
      %vm377 = vcmp.ge.f32.partialorder %v365, 0.0
      %vm378 = vcmp.ge.f32.partialorder %v368, 0.0
      %v379 = vmul.f32 %v341, 0.2
      %v380 = vmul.f32 %v344, 0.2
      %v381 = vmul.f32 %v349, 0.2
      %v382 = vmul.f32 %v352, 0.2
      %v383 = vmul.f32 %v357, 0.2
      %v384 = vmul.f32 %v360, 0.2
      %v385 = vmul.f32 %v365, 0.2
      %v386 = vmul.f32 %v368, 0.2
      %v387 = vsel %vm371, %v341, %v379
      %v388 = vsel %vm372, %v344, %v380
      %v389 = vsel %vm373, %v349, %v381
      %v390 = vsel %vm374, %v352, %v382
      %v391 = vsel %vm375, %v357, %v383
      %v392 = vsel %vm376, %v360, %v384
      %v393 = vsel %vm377, %v365, %v385
      %v394 = vsel %vm378, %v368, %v386
      %v395 = vpack.c.bf16 %v388, %v387
      %v396 = vpack.c.bf16 %v390, %v389
      %v397 = vpack.c.bf16 %v392, %v391
      %v398 = vpack.c.bf16 %v394, %v393
      %v403 = vunpack.c.l.b16 %v395
      %v404 = vunpack.c.h.b16 %v395
      %v405 = vunpack.c.l.b16 %v396
      %v406 = vunpack.c.h.b16 %v396
      %v407 = vunpack.c.l.b16 %v397
      %v408 = vunpack.c.h.b16 %v397
      %v409 = vunpack.c.l.b16 %v398
      %v410 = vunpack.c.h.b16 %v398
      %v411 = vpack.c.b16 %v403, %v403
      %v412 = vpack.c.b16 %v404, %v404
      %v413 = vpack.c.b16 %v405, %v405
      %v414 = vpack.c.b16 %v406, %v406
      %v415 = vpack.c.b16 %v407, %v407
      %v416 = vpack.c.b16 %v408, %v408
      %v417 = vpack.c.b16 %v409, %v409
      %v418 = vpack.c.b16 %v410, %v410
      %427 = vst [vmem:[%s223] sm:$0xf] %v411
      %428 = vst [vmem:[%s223 + $0x4] sm:$0xf] %v412
      %429 = vst [vmem:[%s223 + $0x8] sm:$0xf] %v413
      %430 = vst [vmem:[%s223 + $0xc] sm:$0xf] %v414
      %431 = vst [vmem:[%s223 + $0x10] sm:$0xf] %v415
      %432 = vst [vmem:[%s223 + $0x14] sm:$0xf] %v416
      %433 = vst [vmem:[%s223 + $0x18] sm:$0xf] %v417
      %434 = vst [vmem:[%s223 + $0x1c] sm:$0xf] %v418
      %s435 = smul.u32 8, %s18
      %p436 = scmp.lt.s32.totalorder %s435, 15
      %s437 = scalar_select %p436, %s435, 15
      %p438 = scmp.lt.s32.totalorder %s19, 0
      %s439 = scalar_select %p438, %s19, 0
      %s440 = sadd.s32 %s439, %s437
      %s441 = smul.addr %s440, 4
      %s442 = scalar_lea.vmem %s3, %s441
      // Predicated region
      $region33: #{task_specific_discriminator_forward.8} parent=31 // pred_check
        %p443 = pneg %p124
      $region34: #{task_specific_discriminator_forward.8} parent=31 // pred_check_branch
        %445 = sbr.rel (%p443) target = $region36
      $region35: #{task_specific_discriminator_forward.8} parent=31 // pred_region
        %s446 = smul.u32 8, %s18
      $region36: #{task_specific_discriminator_forward.8} parent=31 // pred_fallthru
        _
    $region32: #{task_specific_discriminator_forward.8} parent=5 // pred_fallthru
      _
    %p447 = scmp.le.s32.totalorder 2, %s9
    // Predicated region
    $region37: #{task_specific_discriminator_forward.8} parent=5 // pred_check
      %p448 = pneg %p447
    $region38: #{task_specific_discriminator_forward.8} parent=5 // pred_check_branch
      %450 = sbr.rel (%p448) target = $region40
    $region39: #{task_specific_discriminator_forward.8} parent=5 // pred_region
      %s451 = ssub.s32 %s9, 2
      // Predicated region
      $region41: #{task_specific_discriminator_forward.8} parent=39 // pred_check
        %p452 = pneg %p130
      $region42: #{task_specific_discriminator_forward.8} parent=39 // pred_check_branch
        %454 = sbr.rel (%p452) target = $region44
      $region43: #{task_specific_discriminator_forward.8} parent=39 // pred_region
        %s455 = smul.u32 8, %s20
        %p456 = scmp.lt.s32.totalorder %s455, 15
        %s457 = scalar_select %p456, %s455, 15
        %p458 = scmp.lt.s32.totalorder %s21, 0
        %s459 = scalar_select %p458, %s21, 0
        %s460 = sadd.s32 %s459, %s457
        %s461 = smul.addr %s460, 4
        %s462 = scalar_lea.vmem %s3, %s461
      $region44: #{task_specific_discriminator_forward.8} parent=39 // pred_fallthru
        _
    $region40: #{task_specific_discriminator_forward.8} parent=5 // pred_fallthru
      _
  $region6: #{task_specific_discriminator_forward.8} parent=0 // loop_footer
    %s13 = sadd.s32 1, %s9
  $region7: #{task_specific_discriminator_forward.8} parent=0 // loop_footer_branch
    %8 = sbr.rel target = $region3
  $region8: #{task_specific_discriminator_forward.8} parent=0 // loop_exit
    _

// kernel: task_specific_discriminator_forward.10
$region0: #{task_specific_discriminator_forward.10}
  #allocation0 [shape = 'u32[]', space=smem, size = 0x4, offset = 0x4, fixed_abs, tag = 'smem constant byte address 0x4 - core index']
  #allocation1 [shape = 'u32[144,128]{1,0:T(1,128)}', space=vmem, size = 0x12000, scoped, tag = 'internal scratch']
  %s0 = inlined_call_operand.vmem [shape: bf16[2,16,128], index: 0, kind: input, shape index: {}]
  %s1 = inlined_call_operand.vmem [shape: bf16[2,16,128], index: 1, kind: output, shape index: {}]
  %s2 = sld [smem:[#allocation0]]
  $region37: #{task_specific_discriminator_forward.10} parent=0
    _
  %s4 = ssub.s32 1, %s2
  %s5 = scalar_select 0, %s4, %s2
  loop: start=0, step=1, limit=4
  $region2: #{task_specific_discriminator_forward.10} parent=0 // loop_pre_header
    _
  $region3: #{task_specific_discriminator_forward.10} parent=0 // loop_header
    %s7 = sphi 0, %s11
    %p8 = scmp.ge.s32.totalorder %s7, 4
    %s14 = sphi 0, %s26
    %s15 = sphi 0, %s22
    %s16 = sphi 0, %s14
    %s17 = sphi 0, %s15
    %s18 = sphi 0, %s16
    %s19 = sphi 0, %s17
    %s31 = sphi 0, %s33
    %s34 = sphi 0, %s31
    %s35 = sphi 0, %s34
    %s51 = sphi 0, %s35
    %s59 = sphi 0, %s61
    %s62 = sphi 0, %s59
    %s63 = sphi 0, %s62
    %s79 = sphi 0, %s63
  $region4: #{task_specific_discriminator_forward.10} parent=0 // loop_header_branch
    %10 = sbr.rel (%p8) target = $region8
  $region5: #{task_specific_discriminator_forward.10} parent=0 // loop_body
    %s12 = ssub.s32 %s7, 1
    %s13 = ssub.s32 %s7, 2
    %s20 = sadd.s32 1, %s15
    %p21 = scmp.ge.s32.totalorder %s20, 1
    %s22 = scalar_select %p21, 0, %s20
    %s23 = sadd.s32 1, %s14
    %s24 = scalar_select %p21, %s23, %s14
    %p25 = scmp.ge.s32.totalorder %s24, 2
    %s26 = scalar_select %p25, 0, %s24
    %s27 = ssub.s32 %s14, %s26
    %s28 = ssub.s32 %s15, %s22
    %s29 = sor.u32 %s27, %s28
    %p30 = scmp.eq.s32.totalorder %s29, 0
    %s32 = sadd.s32 %s31, 1
    %s33 = scalar_select %p30, %s31, %s32
    %p36 = pneg %p30
    %p37 = scmp.eq.s32.totalorder %s7, 1
    %p38 = por %p36, %p37
    %p39 = scmp.ne.s32.totalorder %s31, %s34
    %p40 = scmp.eq.s32.totalorder %s7, 0
    %p41 = por %p39, %p40
    %p42 = scmp.ne.s32.totalorder %s31, %s34
    %p43 = scmp.eq.s32.totalorder %s12, 1
    %p44 = por %p42, %p43
    %p45 = scmp.ne.s32.totalorder %s34, %s35
    %p46 = scmp.eq.s32.totalorder %s12, 0
    %p47 = por %p45, %p46
    %p48 = scmp.ne.s32.totalorder %s34, %s35
    %p49 = scmp.eq.s32.totalorder %s13, 1
    %p50 = por %p48, %p49
    %p52 = scmp.ne.s32.totalorder %s35, %s51
    %p53 = scmp.eq.s32.totalorder %s13, 0
    %p54 = por %p52, %p53
    %s55 = ssub.s32 %s14, %s26
    %s56 = ssub.s32 %s15, %s22
    %s57 = sor.u32 %s55, %s56
    %p58 = scmp.eq.s32.totalorder %s57, 0
    %s60 = sadd.s32 %s59, 1
    %s61 = scalar_select %p58, %s59, %s60
    %p64 = pneg %p58
    %p65 = scmp.eq.s32.totalorder %s7, 1
    %p66 = por %p64, %p65
    %p67 = scmp.ne.s32.totalorder %s59, %s62
    %p68 = scmp.eq.s32.totalorder %s7, 0
    %p69 = por %p67, %p68
    %p70 = scmp.ne.s32.totalorder %s59, %s62
    %p71 = scmp.eq.s32.totalorder %s12, 1
    %p72 = por %p70, %p71
    %p73 = scmp.ne.s32.totalorder %s62, %s63
    %p74 = scmp.eq.s32.totalorder %s12, 0
    %p75 = por %p73, %p74
    %p76 = scmp.ne.s32.totalorder %s62, %s63
    %p77 = scmp.eq.s32.totalorder %s13, 1
    %p78 = por %p76, %p77
    %p80 = scmp.ne.s32.totalorder %s63, %s79
    %p81 = scmp.eq.s32.totalorder %s13, 0
    %p82 = por %p80, %p81
    %p83 = scmp.le.s32.totalorder 1, %s7
    %p84 = scmp.lt.s32.totalorder %s7, 3
    %p85 = pnand %p83, %p84
    %p86 = pneg %p85
    // Predicated region
    $region9: #{task_specific_discriminator_forward.10} parent=5 // pred_check
      _
    $region10: #{task_specific_discriminator_forward.10} parent=5 // pred_check_branch
      %88 = sbr.rel (%p85) target = $region12
    $region11: #{task_specific_discriminator_forward.10} parent=5 // pred_region
      %s89 = ssub.s32 %s7, 1
    $region12: #{task_specific_discriminator_forward.10} parent=5 // pred_fallthru
      _
    %p90 = scmp.lt.s32.totalorder %s7, 2
    // Predicated region
    $region13: #{task_specific_discriminator_forward.10} parent=5 // pred_check
      %p91 = pneg %p90
    $region14: #{task_specific_discriminator_forward.10} parent=5 // pred_check_branch
      %93 = sbr.rel (%p91) target = $region16
    $region15: #{task_specific_discriminator_forward.10} parent=5 // pred_region
      // Predicated region
      $region17: #{task_specific_discriminator_forward.10} parent=15 // pred_check
        %p94 = pneg %p41
      $region18: #{task_specific_discriminator_forward.10} parent=15 // pred_check_branch
        %96 = sbr.rel (%p94) target = $region20
      $region19: #{task_specific_discriminator_forward.10} parent=15 // pred_region
        %p97 = scmp.lt.s32.totalorder %s14, 1
        %s98 = scalar_select %p97, %s14, 1
        %p99 = scmp.lt.s32.totalorder %s15, 0
        %s100 = scalar_select %p99, %s15, 0
        %s101 = smul.addr %s98, 2
        %s102 = sadd.s32 %s100, %s101
        %s103 = smul.addr %s102, 4
        %s104 = scalar_lea.vmem %s0, %s103
      $region20: #{task_specific_discriminator_forward.10} parent=15 // pred_fallthru
        _
    $region16: #{task_specific_discriminator_forward.10} parent=5 // pred_fallthru
      _
    %p105 = scmp.le.s32.totalorder 1, %s7
    %p106 = scmp.lt.s32.totalorder %s7, 3
    %p107 = pnand %p105, %p106
    %p108 = pneg %p107
    // Predicated region
    $region21: #{task_specific_discriminator_forward.10} parent=5 // pred_check
      _
    $region22: #{task_specific_discriminator_forward.10} parent=5 // pred_check_branch
      %110 = sbr.rel (%p107) target = $region24
    $region23: #{task_specific_discriminator_forward.10} parent=5 // pred_region
      %s111 = ssub.s32 %s7, 1
      %p112 = scmp.lt.s32.totalorder %s16, 1
      %s113 = scalar_select %p112, %s16, 1
      %p114 = scmp.lt.s32.totalorder %s17, 0
      %s115 = scalar_select %p114, %s17, 0
      %s116 = smul.addr %s113, 2
      %s117 = sadd.s32 %s115, %s116
      %s118 = smul.addr %s117, 4
      %s119 = scalar_lea.vmem %s0, %s118
      %p120 = pneg %p47
      %p121 = pneg %p44
      %p122 = pneg %p75
      %p123 = pneg %p72
      %p124 = scmp.lt.s32.totalorder %s16, 1
      %s125 = scalar_select %p124, %s16, 1
      %p126 = scmp.lt.s32.totalorder %s17, 0
      %s127 = scalar_select %p126, %s17, 0
      %s128 = smul.addr %s125, 2
      %s129 = sadd.s32 %s127, %s128
      %s130 = smul.addr %s129, 4
      %s131 = scalar_lea.vmem %s1, %s130
      %p132 = scmp.lt.s32.totalorder %s16, 1
      %s133 = scalar_select %p132, %s16, 1
      %p134 = scmp.lt.s32.totalorder %s17, 0
      %s135 = scalar_select %p134, %s17, 0
      %s136 = smul.addr %s133, 2
      %s137 = sadd.s32 %s135, %s136
      %s138 = smul.addr %s137, 4
      %s139 = scalar_lea.vmem %s0, %s138
      %p140 = scmp.lt.s32.totalorder %s16, 1
      %s141 = scalar_select %p140, %s16, 1
      %p142 = scmp.lt.s32.totalorder %s17, 0
      %s143 = scalar_select %p142, %s17, 0
      %s144 = smul.addr %s141, 2
      %s145 = sadd.s32 %s143, %s144
      %s146 = smul.addr %s145, 4
      %s147 = scalar_lea.vmem %s1, %s146
      %v148 = vld [vmem:[%s139] sm:$0xf]
      %v149 = vld [vmem:[%s139 + $0x4] sm:$0xf]
      %v150 = vunpack.c.l.bf16 %v148
      %v151 = vunpack.c.l.bf16 %v149
      %v152 = vadd.f32 %v150, %v151
      %v153 = vrot.slane %v152, 4
      %v154 = vadd.f32 %v152, %v153
      %v155 = vrot.slane %v154, 2
      %v156 = vadd.f32 %v154, %v155
      %v157 = vrot.slane %v156, 1
      %v158 = vadd.f32 %v156, %v157
      %v159 = vmul.f32 %v150, %v150
      %v160 = vmul.f32 %v151, %v151
      %v161 = vadd.f32 %v159, %v160
      %v162 = vrot.slane %v161, 4
      %v163 = vadd.f32 %v161, %v162
      %v164 = vrot.slane %v163, 2
      %v165 = vadd.f32 %v163, %v164
      %v166 = vrot.slane %v165, 1
      %v167 = vadd.f32 %v165, %v166
      %v168 = vmul.f32 %v158, 0.0625
      %v169 = vmul.f32 %v167, 0.0625
      %v170 = vmul.f32 %v168, %v168
      %v171 = vsub.f32 %v169, %v170
      %v172 = vmax.f32 %v171, 0.0
      %v173 = vadd.f32 %v172, 1e-05
      %v174 = vrsqrt.pop %v173
      %v175 = vsub.f32 %v150, %v168
      %v176 = vsub.f32 %v151, %v168
      %v177 = vmul.f32 %v175, %v174
      %v178 = vmul.f32 %v176, %v174
      %vm179 = vcmp.ge.f32.partialorder %v177, 0.0
      %vm180 = vcmp.ge.f32.partialorder %v178, 0.0
      %v181 = vmul.f32 %v177, 0.2
      %v182 = vmul.f32 %v178, 0.2
      %v183 = vsel %vm179, %v177, %v181
      %v184 = vsel %vm180, %v178, %v182
      %v185 = vpack.c.bf16 %v184, %v183
      %v187 = vunpack.c.l.b16 %v185
      %v188 = vunpack.c.h.b16 %v185
      %v189 = vpack.c.b16 %v187, %v187
      %v190 = vpack.c.b16 %v188, %v188
      %193 = vst [vmem:[%s147] sm:$0xf] %v189
      %194 = vst [vmem:[%s147 + $0x4] sm:$0xf] %v190
      %p195 = scmp.lt.s32.totalorder %s16, 1
      %s196 = scalar_select %p195, %s16, 1
      %p197 = scmp.lt.s32.totalorder %s17, 0
      %s198 = scalar_select %p197, %s17, 0
      %s199 = smul.addr %s196, 2
      %s200 = sadd.s32 %s198, %s199
      %s201 = smul.addr %s200, 4
      %s202 = scalar_lea.vmem %s1, %s201
      // Predicated region
      $region25: #{task_specific_discriminator_forward.10} parent=23 // pred_check
        %p203 = pneg %p72
      $region26: #{task_specific_discriminator_forward.10} parent=23 // pred_check_branch
        %205 = sbr.rel (%p203) target = $region28
      $region27: #{task_specific_discriminator_forward.10} parent=23 // pred_region
        _
      $region28: #{task_specific_discriminator_forward.10} parent=23 // pred_fallthru
        _
    $region24: #{task_specific_discriminator_forward.10} parent=5 // pred_fallthru
      _
    %p206 = scmp.le.s32.totalorder 2, %s7
    // Predicated region
    $region29: #{task_specific_discriminator_forward.10} parent=5 // pred_check
      %p207 = pneg %p206
    $region30: #{task_specific_discriminator_forward.10} parent=5 // pred_check_branch
      %209 = sbr.rel (%p207) target = $region32
    $region31: #{task_specific_discriminator_forward.10} parent=5 // pred_region
      %s210 = ssub.s32 %s7, 2
      // Predicated region
      $region33: #{task_specific_discriminator_forward.10} parent=31 // pred_check
        %p211 = pneg %p78
      $region34: #{task_specific_discriminator_forward.10} parent=31 // pred_check_branch
        %213 = sbr.rel (%p211) target = $region36
      $region35: #{task_specific_discriminator_forward.10} parent=31 // pred_region
        %p214 = scmp.lt.s32.totalorder %s18, 1
        %s215 = scalar_select %p214, %s18, 1
        %p216 = scmp.lt.s32.totalorder %s19, 0
        %s217 = scalar_select %p216, %s19, 0
        %s218 = smul.addr %s215, 2
        %s219 = sadd.s32 %s217, %s218
        %s220 = smul.addr %s219, 4
        %s221 = scalar_lea.vmem %s1, %s220
      $region36: #{task_specific_discriminator_forward.10} parent=31 // pred_fallthru
        _
    $region32: #{task_specific_discriminator_forward.10} parent=5 // pred_fallthru
      _
  $region6: #{task_specific_discriminator_forward.10} parent=0 // loop_footer
    %s11 = sadd.s32 1, %s7
  $region7: #{task_specific_discriminator_forward.10} parent=0 // loop_footer_branch
    %6 = sbr.rel target = $region3
  $region8: #{task_specific_discriminator_forward.10} parent=0 // loop_exit
    _

// kernel: task_specific_discriminator_forward.9
$region0: #{task_specific_discriminator_forward.9}
  #allocation0 [shape = 'u32[]', space=smem, size = 0x4, offset = 0x4, fixed_abs, tag = 'smem constant byte address 0x4 - core index']
  #allocation1 [shape = 'u32[144,128]{1,0:T(1,128)}', space=vmem, size = 0x12000, scoped, tag = 'internal scratch']
  %s0 = inlined_call_operand.vmem [shape: bf16[32,1024], index: 0, kind: input, shape index: {}]
  %s1 = inlined_call_operand.vmem [shape: bf16[1024,128], index: 1, kind: input, shape index: {}]
  %s2 = inlined_call_operand.vmem [shape: f32[1,128], index: 2, kind: input, shape index: {}]
  %s3 = inlined_call_operand.vmem [shape: bf16[32,128], index: 3, kind: output, shape index: {}]
  %s4 = sld [smem:[#allocation0]]
  $region22: #{task_specific_discriminator_forward.9} parent=0
    _
  %s6 = ssub.s32 1, %s4
  %s7 = scalar_select 0, %s6, %s4
  // Predicated region
  $region2: #{task_specific_discriminator_forward.9} parent=0 // pred_check
    _
  $region3: #{task_specific_discriminator_forward.9} parent=0 // pred_check_branch
    %9 = sbr.rel (0) target = $region5
  $region4: #{task_specific_discriminator_forward.9} parent=0 // pred_region
    _
  $region5: #{task_specific_discriminator_forward.9} parent=0 // pred_fallthru
    _
  // Predicated region
  $region6: #{task_specific_discriminator_forward.9} parent=0 // pred_check
    _
  $region7: #{task_specific_discriminator_forward.9} parent=0 // pred_check_branch
    %11 = sbr.rel (0) target = $region9
  $region8: #{task_specific_discriminator_forward.9} parent=0 // pred_region
    _
  $region9: #{task_specific_discriminator_forward.9} parent=0 // pred_fallthru
    _
  // Predicated region
  $region10: #{task_specific_discriminator_forward.9} parent=0 // pred_check
    _
  $region11: #{task_specific_discriminator_forward.9} parent=0 // pred_check_branch
    %13 = sbr.rel (0) target = $region13
  $region12: #{task_specific_discriminator_forward.9} parent=0 // pred_region
    _
  $region13: #{task_specific_discriminator_forward.9} parent=0 // pred_fallthru
    _
  %v15 = vld [vmem:[%s0] sm:$0xff]
  %v16 = vld [vmem:[%s0 + $0x8] sm:$0xff]
  %v17 = vld [vmem:[%s0 + $0x10] sm:$0xff]
  %v18 = vld [vmem:[%s0 + $0x18] sm:$0xff]
  %v19 = vld [vmem:[%s0 + $0x20] sm:$0xff]
  %v20 = vld [vmem:[%s0 + $0x28] sm:$0xff]
  %v21 = vld [vmem:[%s0 + $0x30] sm:$0xff]
  %v22 = vld [vmem:[%s0 + $0x38] sm:$0xff]
  %v23 = vld [vmem:[%s0 + $0x40] sm:$0xff]
  %v24 = vld [vmem:[%s0 + $0x48] sm:$0xff]
  %v25 = vld [vmem:[%s0 + $0x50] sm:$0xff]
  %v26 = vld [vmem:[%s0 + $0x58] sm:$0xff]
  %v27 = vld [vmem:[%s0 + $0x60] sm:$0xff]
  %v28 = vld [vmem:[%s0 + $0x68] sm:$0xff]
  %v29 = vld [vmem:[%s0 + $0x70] sm:$0xff]
  %v30 = vld [vmem:[%s0 + $0x78] sm:$0xff]
  %v31 = vld [vmem:[%s1] sm:$0xf]
  %v32 = vld [vmem:[%s1 + $0x4] sm:$0xf]
  %v33 = vld [vmem:[%s1 + $0x8] sm:$0xf]
  %v34 = vld [vmem:[%s1 + $0xc] sm:$0xf]
  %v35 = vld [vmem:[%s1 + $0x10] sm:$0xf]
  %v36 = vld [vmem:[%s1 + $0x14] sm:$0xf]
  %v37 = vld [vmem:[%s1 + $0x18] sm:$0xf]
  %v38 = vld [vmem:[%s1 + $0x1c] sm:$0xf]
  %v39 = vld [vmem:[%s1 + $0x20] sm:$0xf]
  %v40 = vld [vmem:[%s1 + $0x24] sm:$0xf]
  %v41 = vld [vmem:[%s1 + $0x28] sm:$0xf]
  %v42 = vld [vmem:[%s1 + $0x2c] sm:$0xf]
  %v43 = vld [vmem:[%s1 + $0x30] sm:$0xf]
  %v44 = vld [vmem:[%s1 + $0x34] sm:$0xf]
  %v45 = vld [vmem:[%s1 + $0x38] sm:$0xf]
  %v46 = vld [vmem:[%s1 + $0x3c] sm:$0xf]
  %v47 = vld [vmem:[%s1 + $0x40] sm:$0xf]
  %v48 = vld [vmem:[%s1 + $0x44] sm:$0xf]
  %v49 = vld [vmem:[%s1 + $0x48] sm:$0xf]
  %v50 = vld [vmem:[%s1 + $0x4c] sm:$0xf]
  %v51 = vld [vmem:[%s1 + $0x50] sm:$0xf]
  %v52 = vld [vmem:[%s1 + $0x54] sm:$0xf]
  %v53 = vld [vmem:[%s1 + $0x58] sm:$0xf]
  %v54 = vld [vmem:[%s1 + $0x5c] sm:$0xf]
  %v55 = vld [vmem:[%s1 + $0x60] sm:$0xf]
  %v56 = vld [vmem:[%s1 + $0x64] sm:$0xf]
  %v57 = vld [vmem:[%s1 + $0x68] sm:$0xf]
  %v58 = vld [vmem:[%s1 + $0x6c] sm:$0xf]
  %v59 = vld [vmem:[%s1 + $0x70] sm:$0xf]
  %v60 = vld [vmem:[%s1 + $0x74] sm:$0xf]
  %v61 = vld [vmem:[%s1 + $0x78] sm:$0xf]
  %v62 = vld [vmem:[%s1 + $0x7c] sm:$0xf]
  %v63 = vld [vmem:[%s1 + $0x80] sm:$0xf]
  %v64 = vld [vmem:[%s1 + $0x84] sm:$0xf]
  %v65 = vld [vmem:[%s1 + $0x88] sm:$0xf]
  %v66 = vld [vmem:[%s1 + $0x8c] sm:$0xf]
  %v67 = vld [vmem:[%s1 + $0x90] sm:$0xf]
  %v68 = vld [vmem:[%s1 + $0x94] sm:$0xf]
  %v69 = vld [vmem:[%s1 + $0x98] sm:$0xf]
  %v70 = vld [vmem:[%s1 + $0x9c] sm:$0xf]
  %v71 = vld [vmem:[%s1 + $0xa0] sm:$0xf]
  %v72 = vld [vmem:[%s1 + $0xa4] sm:$0xf]
  %v73 = vld [vmem:[%s1 + $0xa8] sm:$0xf]
  %v74 = vld [vmem:[%s1 + $0xac] sm:$0xf]
  %v75 = vld [vmem:[%s1 + $0xb0] sm:$0xf]
  %v76 = vld [vmem:[%s1 + $0xb4] sm:$0xf]
  %v77 = vld [vmem:[%s1 + $0xb8] sm:$0xf]
  %v78 = vld [vmem:[%s1 + $0xbc] sm:$0xf]
  %v79 = vld [vmem:[%s1 + $0xc0] sm:$0xf]
  %v80 = vld [vmem:[%s1 + $0xc4] sm:$0xf]
  %v81 = vld [vmem:[%s1 + $0xc8] sm:$0xf]
  %v82 = vld [vmem:[%s1 + $0xcc] sm:$0xf]
  %v83 = vld [vmem:[%s1 + $0xd0] sm:$0xf]
  %v84 = vld [vmem:[%s1 + $0xd4] sm:$0xf]
  %v85 = vld [vmem:[%s1 + $0xd8] sm:$0xf]
  %v86 = vld [vmem:[%s1 + $0xdc] sm:$0xf]
  %v87 = vld [vmem:[%s1 + $0xe0] sm:$0xf]
  %v88 = vld [vmem:[%s1 + $0xe4] sm:$0xf]
  %v89 = vld [vmem:[%s1 + $0xe8] sm:$0xf]
  %v90 = vld [vmem:[%s1 + $0xec] sm:$0xf]
  %v91 = vld [vmem:[%s1 + $0xf0] sm:$0xf]
  %v92 = vld [vmem:[%s1 + $0xf4] sm:$0xf]
  %v93 = vld [vmem:[%s1 + $0xf8] sm:$0xf]
  %v94 = vld [vmem:[%s1 + $0xfc] sm:$0xf]
  %v95 = vld [vmem:[%s1 + $0x100] sm:$0xf]
  %v96 = vld [vmem:[%s1 + $0x104] sm:$0xf]
  %v97 = vld [vmem:[%s1 + $0x108] sm:$0xf]
  %v98 = vld [vmem:[%s1 + $0x10c] sm:$0xf]
  %v99 = vld [vmem:[%s1 + $0x110] sm:$0xf]
  %v100 = vld [vmem:[%s1 + $0x114] sm:$0xf]
  %v101 = vld [vmem:[%s1 + $0x118] sm:$0xf]
  %v102 = vld [vmem:[%s1 + $0x11c] sm:$0xf]
  %v103 = vld [vmem:[%s1 + $0x120] sm:$0xf]
  %v104 = vld [vmem:[%s1 + $0x124] sm:$0xf]
  %v105 = vld [vmem:[%s1 + $0x128] sm:$0xf]
  %v106 = vld [vmem:[%s1 + $0x12c] sm:$0xf]
  %v107 = vld [vmem:[%s1 + $0x130] sm:$0xf]
  %v108 = vld [vmem:[%s1 + $0x134] sm:$0xf]
  %v109 = vld [vmem:[%s1 + $0x138] sm:$0xf]
  %v110 = vld [vmem:[%s1 + $0x13c] sm:$0xf]
  %v111 = vld [vmem:[%s1 + $0x140] sm:$0xf]
  %v112 = vld [vmem:[%s1 + $0x144] sm:$0xf]
  %v113 = vld [vmem:[%s1 + $0x148] sm:$0xf]
  %v114 = vld [vmem:[%s1 + $0x14c] sm:$0xf]
  %v115 = vld [vmem:[%s1 + $0x150] sm:$0xf]
  %v116 = vld [vmem:[%s1 + $0x154] sm:$0xf]
  %v117 = vld [vmem:[%s1 + $0x158] sm:$0xf]
  %v118 = vld [vmem:[%s1 + $0x15c] sm:$0xf]
  %v119 = vld [vmem:[%s1 + $0x160] sm:$0xf]
  %v120 = vld [vmem:[%s1 + $0x164] sm:$0xf]
  %v121 = vld [vmem:[%s1 + $0x168] sm:$0xf]
  %v122 = vld [vmem:[%s1 + $0x16c] sm:$0xf]
  %v123 = vld [vmem:[%s1 + $0x170] sm:$0xf]
  %v124 = vld [vmem:[%s1 + $0x174] sm:$0xf]
  %v125 = vld [vmem:[%s1 + $0x178] sm:$0xf]
  %v126 = vld [vmem:[%s1 + $0x17c] sm:$0xf]
  %v127 = vld [vmem:[%s1 + $0x180] sm:$0xf]
  %v128 = vld [vmem:[%s1 + $0x184] sm:$0xf]
  %v129 = vld [vmem:[%s1 + $0x188] sm:$0xf]
  %v130 = vld [vmem:[%s1 + $0x18c] sm:$0xf]
  %v131 = vld [vmem:[%s1 + $0x190] sm:$0xf]
  %v132 = vld [vmem:[%s1 + $0x194] sm:$0xf]
  %v133 = vld [vmem:[%s1 + $0x198] sm:$0xf]
  %v134 = vld [vmem:[%s1 + $0x19c] sm:$0xf]
  %v135 = vld [vmem:[%s1 + $0x1a0] sm:$0xf]
  %v136 = vld [vmem:[%s1 + $0x1a4] sm:$0xf]
  %v137 = vld [vmem:[%s1 + $0x1a8] sm:$0xf]
  %v138 = vld [vmem:[%s1 + $0x1ac] sm:$0xf]
  %v139 = vld [vmem:[%s1 + $0x1b0] sm:$0xf]
  %v140 = vld [vmem:[%s1 + $0x1b4] sm:$0xf]
  %v141 = vld [vmem:[%s1 + $0x1b8] sm:$0xf]
  %v142 = vld [vmem:[%s1 + $0x1bc] sm:$0xf]
  %v143 = vld [vmem:[%s1 + $0x1c0] sm:$0xf]
  %v144 = vld [vmem:[%s1 + $0x1c4] sm:$0xf]
  %v145 = vld [vmem:[%s1 + $0x1c8] sm:$0xf]
  %v146 = vld [vmem:[%s1 + $0x1cc] sm:$0xf]
  %v147 = vld [vmem:[%s1 + $0x1d0] sm:$0xf]
  %v148 = vld [vmem:[%s1 + $0x1d4] sm:$0xf]
  %v149 = vld [vmem:[%s1 + $0x1d8] sm:$0xf]
  %v150 = vld [vmem:[%s1 + $0x1dc] sm:$0xf]
  %v151 = vld [vmem:[%s1 + $0x1e0] sm:$0xf]
  %v152 = vld [vmem:[%s1 + $0x1e4] sm:$0xf]
  %v153 = vld [vmem:[%s1 + $0x1e8] sm:$0xf]
  %v154 = vld [vmem:[%s1 + $0x1ec] sm:$0xf]
  %v155 = vld [vmem:[%s1 + $0x1f0] sm:$0xf]
  %v156 = vld [vmem:[%s1 + $0x1f4] sm:$0xf]
  %v157 = vld [vmem:[%s1 + $0x1f8] sm:$0xf]
  %v158 = vld [vmem:[%s1 + $0x1fc] sm:$0xf]
  %v159 = vld [vmem:[%s2] sm:$0x1]
  %v161 = vlaneseq
  %v162 = vshrl.u32 %v161, 7
  %v163 = vsub.s32 0, %v162
  %v164 = vrot.slane %v159, %v163
  %v182 = vunpack.c.l.b16 %v15
  %v183 = vunpack.c.h.b16 %v15
  %v184 = vunpack.c.l.b16 %v16
  %v185 = vunpack.c.h.b16 %v16
  %v186 = vunpack.c.l.b16 %v17
  %v187 = vunpack.c.h.b16 %v17
  %v188 = vunpack.c.l.b16 %v18
  %v189 = vunpack.c.h.b16 %v18
  %v190 = vunpack.c.l.b16 %v19
  %v191 = vunpack.c.h.b16 %v19
  %v192 = vunpack.c.l.b16 %v20
  %v193 = vunpack.c.h.b16 %v20
  %v194 = vunpack.c.l.b16 %v21
  %v195 = vunpack.c.h.b16 %v21
  %v196 = vunpack.c.l.b16 %v22
  %v197 = vunpack.c.h.b16 %v22
  %v198 = vunpack.c.l.b16 %v23
  %v199 = vunpack.c.h.b16 %v23
  %v200 = vunpack.c.l.b16 %v24
  %v201 = vunpack.c.h.b16 %v24
  %v202 = vunpack.c.l.b16 %v25
  %v203 = vunpack.c.h.b16 %v25
  %v204 = vunpack.c.l.b16 %v26
  %v205 = vunpack.c.h.b16 %v26
  %v206 = vunpack.c.l.b16 %v27
  %v207 = vunpack.c.h.b16 %v27
  %v208 = vunpack.c.l.b16 %v28
  %v209 = vunpack.c.h.b16 %v28
  %v210 = vunpack.c.l.b16 %v29
  %v211 = vunpack.c.h.b16 %v29
  %v212 = vunpack.c.l.b16 %v30
  %v213 = vunpack.c.h.b16 %v30
  %v214 = vpack.c.b16 %v190, %v182
  %v215 = vpack.c.b16 %v191, %v183
  %v216 = vpack.c.b16 %v192, %v184
  %v217 = vpack.c.b16 %v193, %v185
  %v218 = vpack.c.b16 %v194, %v186
  %v219 = vpack.c.b16 %v195, %v187
  %v220 = vpack.c.b16 %v196, %v188
  %v221 = vpack.c.b16 %v197, %v189
  %v222 = vpack.c.b16 %v206, %v198
  %v223 = vpack.c.b16 %v207, %v199
  %v224 = vpack.c.b16 %v208, %v200
  %v225 = vpack.c.b16 %v209, %v201
  %v226 = vpack.c.b16 %v210, %v202
  %v227 = vpack.c.b16 %v211, %v203
  %v228 = vpack.c.b16 %v212, %v204
  %v229 = vpack.c.b16 %v213, %v205
  %v374 = vunpack.c.l.b16 %v31
  %v375 = vunpack.c.l.b16 %v32
  %v376 = vunpack.c.l.b16 %v33
  %v377 = vunpack.c.l.b16 %v34
  %v378 = vunpack.c.l.b16 %v35
  %v379 = vunpack.c.l.b16 %v36
  %v380 = vunpack.c.l.b16 %v37
  %v381 = vunpack.c.l.b16 %v38
  %v382 = vunpack.c.l.b16 %v39
  %v383 = vunpack.c.l.b16 %v40
  %v384 = vunpack.c.l.b16 %v41
  %v385 = vunpack.c.l.b16 %v42
  %v386 = vunpack.c.l.b16 %v43
  %v387 = vunpack.c.l.b16 %v44
  %v388 = vunpack.c.l.b16 %v45
  %v389 = vunpack.c.l.b16 %v46
  %v390 = vunpack.c.l.b16 %v47
  %v391 = vunpack.c.l.b16 %v48
  %v392 = vunpack.c.l.b16 %v49
  %v393 = vunpack.c.l.b16 %v50
  %v394 = vunpack.c.l.b16 %v51
  %v395 = vunpack.c.l.b16 %v52
  %v396 = vunpack.c.l.b16 %v53
  %v397 = vunpack.c.l.b16 %v54
  %v398 = vunpack.c.l.b16 %v55
  %v399 = vunpack.c.l.b16 %v56
  %v400 = vunpack.c.l.b16 %v57
  %v401 = vunpack.c.l.b16 %v58
  %v402 = vunpack.c.l.b16 %v59
  %v403 = vunpack.c.l.b16 %v60
  %v404 = vunpack.c.l.b16 %v61
  %v405 = vunpack.c.l.b16 %v62
  %v406 = vunpack.c.l.b16 %v63
  %v407 = vunpack.c.l.b16 %v64
  %v408 = vunpack.c.l.b16 %v65
  %v409 = vunpack.c.l.b16 %v66
  %v410 = vunpack.c.l.b16 %v67
  %v411 = vunpack.c.l.b16 %v68
  %v412 = vunpack.c.l.b16 %v69
  %v413 = vunpack.c.l.b16 %v70
  %v414 = vunpack.c.l.b16 %v71
  %v415 = vunpack.c.l.b16 %v72
  %v416 = vunpack.c.l.b16 %v73
  %v417 = vunpack.c.l.b16 %v74
  %v418 = vunpack.c.l.b16 %v75
  %v419 = vunpack.c.l.b16 %v76
  %v420 = vunpack.c.l.b16 %v77
  %v421 = vunpack.c.l.b16 %v78
  %v422 = vunpack.c.l.b16 %v79
  %v423 = vunpack.c.l.b16 %v80
  %v424 = vunpack.c.l.b16 %v81
  %v425 = vunpack.c.l.b16 %v82
  %v426 = vunpack.c.l.b16 %v83
  %v427 = vunpack.c.l.b16 %v84
  %v428 = vunpack.c.l.b16 %v85
  %v429 = vunpack.c.l.b16 %v86
  %v430 = vunpack.c.l.b16 %v87
  %v431 = vunpack.c.l.b16 %v88
  %v432 = vunpack.c.l.b16 %v89
  %v433 = vunpack.c.l.b16 %v90
  %v434 = vunpack.c.l.b16 %v91
  %v435 = vunpack.c.l.b16 %v92
  %v436 = vunpack.c.l.b16 %v93
  %v437 = vunpack.c.l.b16 %v94
  %v438 = vunpack.c.l.b16 %v95
  %v439 = vunpack.c.l.b16 %v96
  %v440 = vunpack.c.l.b16 %v97
  %v441 = vunpack.c.l.b16 %v98
  %v442 = vunpack.c.l.b16 %v99
  %v443 = vunpack.c.l.b16 %v100
  %v444 = vunpack.c.l.b16 %v101
  %v445 = vunpack.c.l.b16 %v102
  %v446 = vunpack.c.l.b16 %v103
  %v447 = vunpack.c.l.b16 %v104
  %v448 = vunpack.c.l.b16 %v105
  %v449 = vunpack.c.l.b16 %v106
  %v450 = vunpack.c.l.b16 %v107
  %v451 = vunpack.c.l.b16 %v108
  %v452 = vunpack.c.l.b16 %v109
  %v453 = vunpack.c.l.b16 %v110
  %v454 = vunpack.c.l.b16 %v111
  %v455 = vunpack.c.l.b16 %v112
  %v456 = vunpack.c.l.b16 %v113
  %v457 = vunpack.c.l.b16 %v114
  %v458 = vunpack.c.l.b16 %v115
  %v459 = vunpack.c.l.b16 %v116
  %v460 = vunpack.c.l.b16 %v117
  %v461 = vunpack.c.l.b16 %v118
  %v462 = vunpack.c.l.b16 %v119
  %v463 = vunpack.c.l.b16 %v120
  %v464 = vunpack.c.l.b16 %v121
  %v465 = vunpack.c.l.b16 %v122
  %v466 = vunpack.c.l.b16 %v123
  %v467 = vunpack.c.l.b16 %v124
  %v468 = vunpack.c.l.b16 %v125
  %v469 = vunpack.c.l.b16 %v126
  %v470 = vunpack.c.l.b16 %v127
  %v471 = vunpack.c.l.b16 %v128
  %v472 = vunpack.c.l.b16 %v129
  %v473 = vunpack.c.l.b16 %v130
  %v474 = vunpack.c.l.b16 %v131
  %v475 = vunpack.c.l.b16 %v132
  %v476 = vunpack.c.l.b16 %v133
  %v477 = vunpack.c.l.b16 %v134
  %v478 = vunpack.c.l.b16 %v135
  %v479 = vunpack.c.l.b16 %v136
  %v480 = vunpack.c.l.b16 %v137
  %v481 = vunpack.c.l.b16 %v138
  %v482 = vunpack.c.l.b16 %v139
  %v483 = vunpack.c.l.b16 %v140
  %v484 = vunpack.c.l.b16 %v141
  %v485 = vunpack.c.l.b16 %v142
  %v486 = vunpack.c.l.b16 %v143
  %v487 = vunpack.c.l.b16 %v144
  %v488 = vunpack.c.l.b16 %v145
  %v489 = vunpack.c.l.b16 %v146
  %v490 = vunpack.c.l.b16 %v147
  %v491 = vunpack.c.l.b16 %v148
  %v492 = vunpack.c.l.b16 %v149
  %v493 = vunpack.c.l.b16 %v150
  %v494 = vunpack.c.l.b16 %v151
  %v495 = vunpack.c.l.b16 %v152
  %v496 = vunpack.c.l.b16 %v153
  %v497 = vunpack.c.l.b16 %v154
  %v498 = vunpack.c.l.b16 %v155
  %v499 = vunpack.c.l.b16 %v156
  %v500 = vunpack.c.l.b16 %v157
  %v501 = vunpack.c.l.b16 %v158
  %v502 = vpack.c.b16 %v375, %v374
  %v503 = vpack.c.b16 %v377, %v376
  %v504 = vpack.c.b16 %v379, %v378
  %v505 = vpack.c.b16 %v381, %v380
  %v506 = vpack.c.b16 %v383, %v382
  %v507 = vpack.c.b16 %v385, %v384
  %v508 = vpack.c.b16 %v387, %v386
  %v509 = vpack.c.b16 %v389, %v388
  %v510 = vpack.c.b16 %v391, %v390
  %v511 = vpack.c.b16 %v393, %v392
  %v512 = vpack.c.b16 %v395, %v394
  %v513 = vpack.c.b16 %v397, %v396
  %v514 = vpack.c.b16 %v399, %v398
  %v515 = vpack.c.b16 %v401, %v400
  %v516 = vpack.c.b16 %v403, %v402
  %v517 = vpack.c.b16 %v405, %v404
  %v518 = vpack.c.b16 %v407, %v406
  %v519 = vpack.c.b16 %v409, %v408
  %v520 = vpack.c.b16 %v411, %v410
  %v521 = vpack.c.b16 %v413, %v412
  %v522 = vpack.c.b16 %v415, %v414
  %v523 = vpack.c.b16 %v417, %v416
  %v524 = vpack.c.b16 %v419, %v418
  %v525 = vpack.c.b16 %v421, %v420
  %v526 = vpack.c.b16 %v423, %v422
  %v527 = vpack.c.b16 %v425, %v424
  %v528 = vpack.c.b16 %v427, %v426
  %v529 = vpack.c.b16 %v429, %v428
  %v530 = vpack.c.b16 %v431, %v430
  %v531 = vpack.c.b16 %v433, %v432
  %v532 = vpack.c.b16 %v435, %v434
  %v533 = vpack.c.b16 %v437, %v436
  %v534 = vpack.c.b16 %v439, %v438
  %v535 = vpack.c.b16 %v441, %v440
  %v536 = vpack.c.b16 %v443, %v442
  %v537 = vpack.c.b16 %v445, %v444
  %v538 = vpack.c.b16 %v447, %v446
  %v539 = vpack.c.b16 %v449, %v448
  %v540 = vpack.c.b16 %v451, %v450
  %v541 = vpack.c.b16 %v453, %v452
  %v542 = vpack.c.b16 %v455, %v454
  %v543 = vpack.c.b16 %v457, %v456
  %v544 = vpack.c.b16 %v459, %v458
  %v545 = vpack.c.b16 %v461, %v460
  %v546 = vpack.c.b16 %v463, %v462
  %v547 = vpack.c.b16 %v465, %v464
  %v548 = vpack.c.b16 %v467, %v466
  %v549 = vpack.c.b16 %v469, %v468
  %v550 = vpack.c.b16 %v471, %v470
  %v551 = vpack.c.b16 %v473, %v472
  %v552 = vpack.c.b16 %v475, %v474
  %v553 = vpack.c.b16 %v477, %v476
  %v554 = vpack.c.b16 %v479, %v478
  %v555 = vpack.c.b16 %v481, %v480
  %v556 = vpack.c.b16 %v483, %v482
  %v557 = vpack.c.b16 %v485, %v484
  %v558 = vpack.c.b16 %v487, %v486
  %v559 = vpack.c.b16 %v489, %v488
  %v560 = vpack.c.b16 %v491, %v490
  %v561 = vpack.c.b16 %v493, %v492
  %v562 = vpack.c.b16 %v495, %v494
  %v563 = vpack.c.b16 %v497, %v496
  %v564 = vpack.c.b16 %v499, %v498
  %v565 = vpack.c.b16 %v501, %v500
  %630 = vmatprep.subr.bf16.mxu0 0
  %631 = vmatpush1.bf16.msra.mxu0 %v502
  %632 = vmatprep.subr.bf16.mxu0 0
  %633 = vmatpush1.bf16.msra.mxu0 %v503
  %634 = vmatprep.subr.bf16.mxu0 0
  %635 = vmatpush1.bf16.msra.mxu0 %v504
  %636 = vmatprep.subr.bf16.mxu0 0
  %637 = vmatpush1.bf16.msra.mxu0 %v505
  %638 = vmatprep.subr.bf16.mxu0 0
  %639 = vmatpush1.bf16.msra.mxu0 %v506
  %640 = vmatprep.subr.bf16.mxu0 0
  %641 = vmatpush1.bf16.msra.mxu0 %v507
  %642 = vmatprep.subr.bf16.mxu0 0
  %643 = vmatpush1.bf16.msra.mxu0 %v508
  %644 = vmatprep.subr.bf16.mxu0 0
  %645 = vmatpush1.bf16.msra.mxu0 %v509
  %646 = vmatprep.subr.bf16.mxu0 0
  %647 = vmatpush1.bf16.msra.mxu0 %v510
  %648 = vmatprep.subr.bf16.mxu0 0
  %649 = vmatpush1.bf16.msra.mxu0 %v511
  %650 = vmatprep.subr.bf16.mxu0 0
  %651 = vmatpush1.bf16.msra.mxu0 %v512
  %652 = vmatprep.subr.bf16.mxu0 0
  %653 = vmatpush1.bf16.msra.mxu0 %v513
  %654 = vmatprep.subr.bf16.mxu0 0
  %655 = vmatpush1.bf16.msra.mxu0 %v514
  %656 = vmatprep.subr.bf16.mxu0 0
  %657 = vmatpush1.bf16.msra.mxu0 %v515
  %658 = vmatprep.subr.bf16.mxu0 0
  %659 = vmatpush1.bf16.msra.mxu0 %v516
  %660 = vmatprep.subr.bf16.mxu0 0
  %661 = vmatpush1.bf16.msra.mxu0 %v517
  %662 = vmatprep.mubr.bf16.mxu0 %v215
  %663 = vmatmul.mubr.bf16.gmra.mrb[0].mxu0 %v214
  %v664 = vpop.f32.mrb[0].mxu0
  %v665 = vadd.f32 %v164, %v664
  %v666 = vpop.f32.mrb[0].mxu0
  %v667 = vpop.f32.mrb[0].mxu0
  %v668 = vadd.f32 %v164, %v667
  %v669 = vpop.f32.mrb[0].mxu0
  %670 = vmatprep.mubr.bf16.mxu0 %v223
  %671 = vmatmul.mubr.bf16.gmra.mrb[0].mxu0 %v222
  %v672 = vpop.f32.mrb[0].mxu0
  %v673 = vadd.f32 %v164, %v672
  %v674 = vpop.f32.mrb[0].mxu0
  %v675 = vpop.f32.mrb[0].mxu0
  %v676 = vadd.f32 %v164, %v675
  %v677 = vpop.f32.mrb[0].mxu0
  %678 = vdwg.mxu0
  %679 = vmatprep.subr.bf16.mxu0 0
  %680 = vmatpush1.bf16.msra.mxu0 %v518
  %681 = vmatprep.subr.bf16.mxu0 0
  %682 = vmatpush1.bf16.msra.mxu0 %v519
  %683 = vmatprep.subr.bf16.mxu0 0
  %684 = vmatpush1.bf16.msra.mxu0 %v520
  %685 = vmatprep.subr.bf16.mxu0 0
  %686 = vmatpush1.bf16.msra.mxu0 %v521
  %687 = vmatprep.subr.bf16.mxu0 0
  %688 = vmatpush1.bf16.msra.mxu0 %v522
  %689 = vmatprep.subr.bf16.mxu0 0
  %690 = vmatpush1.bf16.msra.mxu0 %v523
  %691 = vmatprep.subr.bf16.mxu0 0
  %692 = vmatpush1.bf16.msra.mxu0 %v524
  %693 = vmatprep.subr.bf16.mxu0 0
  %694 = vmatpush1.bf16.msra.mxu0 %v525
  %695 = vmatprep.subr.bf16.mxu0 0
  %696 = vmatpush1.bf16.msra.mxu0 %v526
  %697 = vmatprep.subr.bf16.mxu0 0
  %698 = vmatpush1.bf16.msra.mxu0 %v527
  %699 = vmatprep.subr.bf16.mxu0 0
  %700 = vmatpush1.bf16.msra.mxu0 %v528
  %701 = vmatprep.subr.bf16.mxu0 0
  %702 = vmatpush1.bf16.msra.mxu0 %v529
  %703 = vmatprep.subr.bf16.mxu0 0
  %704 = vmatpush1.bf16.msra.mxu0 %v530
  %705 = vmatprep.subr.bf16.mxu0 0
  %706 = vmatpush1.bf16.msra.mxu0 %v531
  %707 = vmatprep.subr.bf16.mxu0 0
  %708 = vmatpush1.bf16.msra.mxu0 %v532
  %709 = vmatprep.subr.bf16.mxu0 0
  %710 = vmatpush1.bf16.msra.mxu0 %v533
  %711 = vmatprep.mubr.bf16.mxu0 %v217
  %712 = vmatmul.mubr.bf16.gmra.mrb[0].mxu0 %v216
  %v713 = vpop.f32.mrb[0].mxu0
  %v714 = vadd.f32 %v665, %v713
  %v715 = vpop.f32.mrb[0].mxu0
  %v716 = vpop.f32.mrb[0].mxu0
  %v717 = vadd.f32 %v668, %v716
  %v718 = vpop.f32.mrb[0].mxu0
  %719 = vmatprep.mubr.bf16.mxu0 %v225
  %720 = vmatmul.mubr.bf16.gmra.mrb[0].mxu0 %v224
  %v721 = vpop.f32.mrb[0].mxu0
  %v722 = vadd.f32 %v673, %v721
  %v723 = vpop.f32.mrb[0].mxu0
  %v724 = vpop.f32.mrb[0].mxu0
  %v725 = vadd.f32 %v676, %v724
  %v726 = vpop.f32.mrb[0].mxu0
  %727 = vdwg.mxu0
  %728 = vmatprep.subr.bf16.mxu0 0
  %729 = vmatpush1.bf16.msra.mxu0 %v534
  %730 = vmatprep.subr.bf16.mxu0 0
  %731 = vmatpush1.bf16.msra.mxu0 %v535
  %732 = vmatprep.subr.bf16.mxu0 0
  %733 = vmatpush1.bf16.msra.mxu0 %v536
  %734 = vmatprep.subr.bf16.mxu0 0
  %735 = vmatpush1.bf16.msra.mxu0 %v537
  %736 = vmatprep.subr.bf16.mxu0 0
  %737 = vmatpush1.bf16.msra.mxu0 %v538
  %738 = vmatprep.subr.bf16.mxu0 0
  %739 = vmatpush1.bf16.msra.mxu0 %v539
  %740 = vmatprep.subr.bf16.mxu0 0
  %741 = vmatpush1.bf16.msra.mxu0 %v540
  %742 = vmatprep.subr.bf16.mxu0 0
  %743 = vmatpush1.bf16.msra.mxu0 %v541
  %744 = vmatprep.subr.bf16.mxu0 0
  %745 = vmatpush1.bf16.msra.mxu0 %v542
  %746 = vmatprep.subr.bf16.mxu0 0
  %747 = vmatpush1.bf16.msra.mxu0 %v543
  %748 = vmatprep.subr.bf16.mxu0 0
  %749 = vmatpush1.bf16.msra.mxu0 %v544
  %750 = vmatprep.subr.bf16.mxu0 0
  %751 = vmatpush1.bf16.msra.mxu0 %v545
  %752 = vmatprep.subr.bf16.mxu0 0
  %753 = vmatpush1.bf16.msra.mxu0 %v546
  %754 = vmatprep.subr.bf16.mxu0 0
  %755 = vmatpush1.bf16.msra.mxu0 %v547
  %756 = vmatprep.subr.bf16.mxu0 0
  %757 = vmatpush1.bf16.msra.mxu0 %v548
  %758 = vmatprep.subr.bf16.mxu0 0
  %759 = vmatpush1.bf16.msra.mxu0 %v549
  %760 = vmatprep.mubr.bf16.mxu0 %v219
  %761 = vmatmul.mubr.bf16.gmra.mrb[0].mxu0 %v218
  %v762 = vpop.f32.mrb[0].mxu0
  %v763 = vadd.f32 %v714, %v762
  %v764 = vpop.f32.mrb[0].mxu0
  %v765 = vpop.f32.mrb[0].mxu0
  %v766 = vadd.f32 %v717, %v765
  %v767 = vpop.f32.mrb[0].mxu0
  %768 = vmatprep.mubr.bf16.mxu0 %v227
  %769 = vmatmul.mubr.bf16.gmra.mrb[0].mxu0 %v226
  %v770 = vpop.f32.mrb[0].mxu0
  %v771 = vadd.f32 %v722, %v770
  %v772 = vpop.f32.mrb[0].mxu0
  %v773 = vpop.f32.mrb[0].mxu0
  %v774 = vadd.f32 %v725, %v773
  %v775 = vpop.f32.mrb[0].mxu0
  %776 = vdwg.mxu0
  %777 = vmatprep.subr.bf16.mxu0 0
  %778 = vmatpush1.bf16.msra.mxu0 %v550
  %779 = vmatprep.subr.bf16.mxu0 0
  %780 = vmatpush1.bf16.msra.mxu0 %v551
  %781 = vmatprep.subr.bf16.mxu0 0
  %782 = vmatpush1.bf16.msra.mxu0 %v552
  %783 = vmatprep.subr.bf16.mxu0 0
  %784 = vmatpush1.bf16.msra.mxu0 %v553
  %785 = vmatprep.subr.bf16.mxu0 0
  %786 = vmatpush1.bf16.msra.mxu0 %v554
  %787 = vmatprep.subr.bf16.mxu0 0
  %788 = vmatpush1.bf16.msra.mxu0 %v555
  %789 = vmatprep.subr.bf16.mxu0 0
  %790 = vmatpush1.bf16.msra.mxu0 %v556
  %791 = vmatprep.subr.bf16.mxu0 0
  %792 = vmatpush1.bf16.msra.mxu0 %v557
  %793 = vmatprep.subr.bf16.mxu0 0
  %794 = vmatpush1.bf16.msra.mxu0 %v558
  %795 = vmatprep.subr.bf16.mxu0 0
  %796 = vmatpush1.bf16.msra.mxu0 %v559
  %797 = vmatprep.subr.bf16.mxu0 0
  %798 = vmatpush1.bf16.msra.mxu0 %v560
  %799 = vmatprep.subr.bf16.mxu0 0
  %800 = vmatpush1.bf16.msra.mxu0 %v561
  %801 = vmatprep.subr.bf16.mxu0 0
  %802 = vmatpush1.bf16.msra.mxu0 %v562
  %803 = vmatprep.subr.bf16.mxu0 0
  %804 = vmatpush1.bf16.msra.mxu0 %v563
  %805 = vmatprep.subr.bf16.mxu0 0
  %806 = vmatpush1.bf16.msra.mxu0 %v564
  %807 = vmatprep.subr.bf16.mxu0 0
  %808 = vmatpush1.bf16.msra.mxu0 %v565
  %809 = vmatprep.mubr.bf16.mxu0 %v221
  %810 = vmatmul.mubr.bf16.gmra.mrb[0].mxu0 %v220
  %v811 = vpop.f32.mrb[0].mxu0
  %v812 = vadd.f32 %v763, %v811
  %v813 = vpop.f32.mrb[0].mxu0
  %v814 = vpop.f32.mrb[0].mxu0
  %v815 = vadd.f32 %v766, %v814
  %v816 = vpop.f32.mrb[0].mxu0
  %817 = vmatprep.mubr.bf16.mxu0 %v229
  %818 = vmatmul.mubr.bf16.gmra.mrb[0].mxu0 %v228
  %v819 = vpop.f32.mrb[0].mxu0
  %v820 = vadd.f32 %v771, %v819
  %v821 = vpop.f32.mrb[0].mxu0
  %v822 = vpop.f32.mrb[0].mxu0
  %v823 = vadd.f32 %v774, %v822
  %v824 = vpop.f32.mrb[0].mxu0
  %825 = vdwg.mxu0
  %v826 = vpack.c.bf16 %v815, %v812
  %v827 = vpack.c.bf16 %v823, %v820
  %v830 = vunpack.c.l.b16 %v826
  %v831 = vunpack.c.h.b16 %v826
  %v832 = vunpack.c.l.b16 %v827
  %v833 = vunpack.c.h.b16 %v827
  %v834 = vpack.c.b16 %v830, %v830
  %v835 = vpack.c.b16 %v831, %v831
  %v836 = vpack.c.b16 %v832, %v832
  %v837 = vpack.c.b16 %v833, %v833
  %842 = vst [vmem:[%s3] sm:$0xf] %v834
  %843 = vst [vmem:[%s3 + $0x4] sm:$0xf] %v835
  %844 = vst [vmem:[%s3 + $0x8] sm:$0xf] %v836
  %845 = vst [vmem:[%s3 + $0xc] sm:$0xf] %v837
  // Predicated region
  $region14: #{task_specific_discriminator_forward.9} parent=0 // pred_check
    _
  $region15: #{task_specific_discriminator_forward.9} parent=0 // pred_check_branch
    %847 = sbr.rel (0) target = $region17
  $region16: #{task_specific_discriminator_forward.9} parent=0 // pred_region
    _
  $region17: #{task_specific_discriminator_forward.9} parent=0 // pred_fallthru
    _
  // Predicated region
  $region18: #{task_specific_discriminator_forward.9} parent=0 // pred_check
    _
  $region19: #{task_specific_discriminator_forward.9} parent=0 // pred_check_branch
    %849 = sbr.rel (0) target = $region21
  $region20: #{task_specific_discriminator_forward.9} parent=0 // pred_region
    _
  $region21: #{task_specific_discriminator_forward.9} parent=0 // pred_fallthru
    _

// kernel: task_specific_discriminator_forward.12
$region0: #{task_specific_discriminator_forward.12}
  #allocation0 [shape = 'u32[]', space=smem, size = 0x4, offset = 0x4, fixed_abs, tag = 'smem constant byte address 0x4 - core index']
  #allocation1 [shape = 'u32[144,128]{1,0:T(1,128)}', space=vmem, size = 0x12000, scoped, tag = 'internal scratch']
  %s0 = inlined_call_operand.vmem [shape: bf16[2,4,256], index: 0, kind: input, shape index: {}]
  %s1 = inlined_call_operand.vmem [shape: bf16[2,4,256], index: 1, kind: output, shape index: {}]
  %s2 = sld [smem:[#allocation0]]
  $region37: #{task_specific_discriminator_forward.12} parent=0
    _
  %s4 = ssub.s32 1, %s2
  %s5 = scalar_select 0, %s4, %s2
  loop: start=0, step=1, limit=6
  $region2: #{task_specific_discriminator_forward.12} parent=0 // loop_pre_header
    _
  $region3: #{task_specific_discriminator_forward.12} parent=0 // loop_header
    %s7 = sphi 0, %s11
    %p8 = scmp.ge.s32.totalorder %s7, 6
    %s14 = sphi 0, %s26
    %s15 = sphi 0, %s22
    %s16 = sphi 0, %s14
    %s17 = sphi 0, %s15
    %s18 = sphi 0, %s16
    %s19 = sphi 0, %s17
    %s31 = sphi 0, %s33
    %s34 = sphi 0, %s31
    %s35 = sphi 0, %s34
    %s51 = sphi 0, %s35
    %s59 = sphi 0, %s61
    %s62 = sphi 0, %s59
    %s63 = sphi 0, %s62
    %s79 = sphi 0, %s63
  $region4: #{task_specific_discriminator_forward.12} parent=0 // loop_header_branch
    %10 = sbr.rel (%p8) target = $region8
  $region5: #{task_specific_discriminator_forward.12} parent=0 // loop_body
    %s12 = ssub.s32 %s7, 1
    %s13 = ssub.s32 %s7, 2
    %s20 = sadd.s32 1, %s15
    %p21 = scmp.ge.s32.totalorder %s20, 2
    %s22 = scalar_select %p21, 0, %s20
    %s23 = sadd.s32 1, %s14
    %s24 = scalar_select %p21, %s23, %s14
    %p25 = scmp.ge.s32.totalorder %s24, 2
    %s26 = scalar_select %p25, 0, %s24
    %s27 = ssub.s32 %s14, %s26
    %s28 = ssub.s32 %s15, %s22
    %s29 = sor.u32 %s27, %s28
    %p30 = scmp.eq.s32.totalorder %s29, 0
    %s32 = sadd.s32 %s31, 1
    %s33 = scalar_select %p30, %s31, %s32
    %p36 = pneg %p30
    %p37 = scmp.eq.s32.totalorder %s7, 3
    %p38 = por %p36, %p37
    %p39 = scmp.ne.s32.totalorder %s31, %s34
    %p40 = scmp.eq.s32.totalorder %s7, 0
    %p41 = por %p39, %p40
    %p42 = scmp.ne.s32.totalorder %s31, %s34
    %p43 = scmp.eq.s32.totalorder %s12, 3
    %p44 = por %p42, %p43
    %p45 = scmp.ne.s32.totalorder %s34, %s35
    %p46 = scmp.eq.s32.totalorder %s12, 0
    %p47 = por %p45, %p46
    %p48 = scmp.ne.s32.totalorder %s34, %s35
    %p49 = scmp.eq.s32.totalorder %s13, 3
    %p50 = por %p48, %p49
    %p52 = scmp.ne.s32.totalorder %s35, %s51
    %p53 = scmp.eq.s32.totalorder %s13, 0
    %p54 = por %p52, %p53
    %s55 = ssub.s32 %s14, %s26
    %s56 = ssub.s32 %s15, %s22
    %s57 = sor.u32 %s55, %s56
    %p58 = scmp.eq.s32.totalorder %s57, 0
    %s60 = sadd.s32 %s59, 1
    %s61 = scalar_select %p58, %s59, %s60
    %p64 = pneg %p58
    %p65 = scmp.eq.s32.totalorder %s7, 3
    %p66 = por %p64, %p65
    %p67 = scmp.ne.s32.totalorder %s59, %s62
    %p68 = scmp.eq.s32.totalorder %s7, 0
    %p69 = por %p67, %p68
    %p70 = scmp.ne.s32.totalorder %s59, %s62
    %p71 = scmp.eq.s32.totalorder %s12, 3
    %p72 = por %p70, %p71
    %p73 = scmp.ne.s32.totalorder %s62, %s63
    %p74 = scmp.eq.s32.totalorder %s12, 0
    %p75 = por %p73, %p74
    %p76 = scmp.ne.s32.totalorder %s62, %s63
    %p77 = scmp.eq.s32.totalorder %s13, 3
    %p78 = por %p76, %p77
    %p80 = scmp.ne.s32.totalorder %s63, %s79
    %p81 = scmp.eq.s32.totalorder %s13, 0
    %p82 = por %p80, %p81
    %p83 = scmp.le.s32.totalorder 1, %s7
    %p84 = scmp.lt.s32.totalorder %s7, 5
    %p85 = pnand %p83, %p84
    %p86 = pneg %p85
    // Predicated region
    $region9: #{task_specific_discriminator_forward.12} parent=5 // pred_check
      _
    $region10: #{task_specific_discriminator_forward.12} parent=5 // pred_check_branch
      %88 = sbr.rel (%p85) target = $region12
    $region11: #{task_specific_discriminator_forward.12} parent=5 // pred_region
      %s89 = ssub.s32 %s7, 1
    $region12: #{task_specific_discriminator_forward.12} parent=5 // pred_fallthru
      _
    %p90 = scmp.lt.s32.totalorder %s7, 4
    // Predicated region
    $region13: #{task_specific_discriminator_forward.12} parent=5 // pred_check
      %p91 = pneg %p90
    $region14: #{task_specific_discriminator_forward.12} parent=5 // pred_check_branch
      %93 = sbr.rel (%p91) target = $region16
    $region15: #{task_specific_discriminator_forward.12} parent=5 // pred_region
      // Predicated region
      $region17: #{task_specific_discriminator_forward.12} parent=15 // pred_check
        %p94 = pneg %p41
      $region18: #{task_specific_discriminator_forward.12} parent=15 // pred_check_branch
        %96 = sbr.rel (%p94) target = $region20
      $region19: #{task_specific_discriminator_forward.12} parent=15 // pred_region
        %p97 = scmp.lt.s32.totalorder %s14, 1
        %s98 = scalar_select %p97, %s14, 1
        %p99 = scmp.lt.s32.totalorder %s15, 1
        %s100 = scalar_select %p99, %s15, 1
        %s101 = smul.addr %s98, 2
        %s102 = sadd.s32 %s100, %s101
        %s103 = smul.addr %s102, 2
        %s104 = scalar_lea.vmem %s0, %s103
      $region20: #{task_specific_discriminator_forward.12} parent=15 // pred_fallthru
        _
    $region16: #{task_specific_discriminator_forward.12} parent=5 // pred_fallthru
      _
    %p105 = scmp.le.s32.totalorder 1, %s7
    %p106 = scmp.lt.s32.totalorder %s7, 5
    %p107 = pnand %p105, %p106
    %p108 = pneg %p107
    // Predicated region
    $region21: #{task_specific_discriminator_forward.12} parent=5 // pred_check
      _
    $region22: #{task_specific_discriminator_forward.12} parent=5 // pred_check_branch
      %110 = sbr.rel (%p107) target = $region24
    $region23: #{task_specific_discriminator_forward.12} parent=5 // pred_region
      %s111 = ssub.s32 %s7, 1
      %p112 = scmp.lt.s32.totalorder %s16, 1
      %s113 = scalar_select %p112, %s16, 1
      %p114 = scmp.lt.s32.totalorder %s17, 1
      %s115 = scalar_select %p114, %s17, 1
      %s116 = smul.addr %s113, 2
      %s117 = sadd.s32 %s115, %s116
      %s118 = smul.addr %s117, 2
      %s119 = scalar_lea.vmem %s0, %s118
      %p120 = pneg %p47
      %p121 = pneg %p44
      %p122 = pneg %p75
      %p123 = pneg %p72
      %p124 = scmp.lt.s32.totalorder %s16, 1
      %s125 = scalar_select %p124, %s16, 1
      %p126 = scmp.lt.s32.totalorder %s17, 1
      %s127 = scalar_select %p126, %s17, 1
      %s128 = smul.addr %s125, 2
      %s129 = sadd.s32 %s127, %s128
      %s130 = smul.addr %s129, 2
      %s131 = scalar_lea.vmem %s1, %s130
      %p132 = scmp.lt.s32.totalorder %s16, 1
      %s133 = scalar_select %p132, %s16, 1
      %p134 = scmp.lt.s32.totalorder %s17, 1
      %s135 = scalar_select %p134, %s17, 1
      %s136 = smul.addr %s133, 2
      %s137 = sadd.s32 %s135, %s136
      %s138 = smul.addr %s137, 2
      %s139 = scalar_lea.vmem %s0, %s138
      %p140 = scmp.lt.s32.totalorder %s16, 1
      %s141 = scalar_select %p140, %s16, 1
      %p142 = scmp.lt.s32.totalorder %s17, 1
      %s143 = scalar_select %p142, %s17, 1
      %s144 = smul.addr %s141, 2
      %s145 = sadd.s32 %s143, %s144
      %s146 = smul.addr %s145, 2
      %s147 = scalar_lea.vmem %s1, %s146
      %v148 = vld [vmem:[%s139] sm:$0x3]
      %v149 = vunpack.c.l.bf16 %v148
      %vm150 = vcmask 1043456
      %v151 = vsel %vm150, %v149, 0.0
      %v152 = vrot.slane %v151, 4
      %v153 = vadd.f32 %v151, %v152
      %v154 = vrot.slane %v153, 2
      %v155 = vadd.f32 %v153, %v154
      %v156 = vrot.slane %v155, 1
      %v157 = vadd.f32 %v155, %v156
      %v158 = vmul.f32 %v149, %v149
      %v159 = vsel %vm150, %v158, 0.0
      %v160 = vrot.slane %v159, 4
      %v161 = vadd.f32 %v159, %v160
      %v162 = vrot.slane %v161, 2
      %v163 = vadd.f32 %v161, %v162
      %v164 = vrot.slane %v163, 1
      %v165 = vadd.f32 %v163, %v164
      %v166 = vmul.f32 %v157, 0.25
      %v167 = vmul.f32 %v165, 0.25
      %v168 = vmul.f32 %v166, %v166
      %v169 = vsub.f32 %v167, %v168
      %v170 = vmax.f32 %v169, 0.0
      %v171 = vadd.f32 %v170, 1e-05
      %v172 = vrsqrt.pop %v171
      %v173 = vsub.f32 %v149, %v166
      %v174 = vmul.f32 %v173, %v172
      %vm175 = vcmp.ge.f32.partialorder %v174, 0.0
      %v176 = vmul.f32 %v174, 0.2
      %v177 = vsel %vm175, %v174, %v176
      %v178 = vpack.c.bf16 %v177, %v177
      %179 = vst [vmem:[%s147] sm:$0x3] %v178
      %p180 = scmp.lt.s32.totalorder %s16, 1
      %s181 = scalar_select %p180, %s16, 1
      %p182 = scmp.lt.s32.totalorder %s17, 1
      %s183 = scalar_select %p182, %s17, 1
      %s184 = smul.addr %s181, 2
      %s185 = sadd.s32 %s183, %s184
      %s186 = smul.addr %s185, 2
      %s187 = scalar_lea.vmem %s1, %s186
      // Predicated region
      $region25: #{task_specific_discriminator_forward.12} parent=23 // pred_check
        %p188 = pneg %p72
      $region26: #{task_specific_discriminator_forward.12} parent=23 // pred_check_branch
        %190 = sbr.rel (%p188) target = $region28
      $region27: #{task_specific_discriminator_forward.12} parent=23 // pred_region
        _
      $region28: #{task_specific_discriminator_forward.12} parent=23 // pred_fallthru
        _
    $region24: #{task_specific_discriminator_forward.12} parent=5 // pred_fallthru
      _
    %p191 = scmp.le.s32.totalorder 2, %s7
    // Predicated region
    $region29: #{task_specific_discriminator_forward.12} parent=5 // pred_check
      %p192 = pneg %p191
    $region30: #{task_specific_discriminator_forward.12} parent=5 // pred_check_branch
      %194 = sbr.rel (%p192) target = $region32
    $region31: #{task_specific_discriminator_forward.12} parent=5 // pred_region
      %s195 = ssub.s32 %s7, 2
      // Predicated region
      $region33: #{task_specific_discriminator_forward.12} parent=31 // pred_check
        %p196 = pneg %p78
      $region34: #{task_specific_discriminator_forward.12} parent=31 // pred_check_branch
        %198 = sbr.rel (%p196) target = $region36
      $region35: #{task_specific_discriminator_forward.12} parent=31 // pred_region
        %p199 = scmp.lt.s32.totalorder %s18, 1
        %s200 = scalar_select %p199, %s18, 1
        %p201 = scmp.lt.s32.totalorder %s19, 1
        %s202 = scalar_select %p201, %s19, 1
        %s203 = smul.addr %s200, 2
        %s204 = sadd.s32 %s202, %s203
        %s205 = smul.addr %s204, 2
        %s206 = scalar_lea.vmem %s1, %s205
      $region36: #{task_specific_discriminator_forward.12} parent=31 // pred_fallthru
        _
    $region32: #{task_specific_discriminator_forward.12} parent=5 // pred_fallthru
      _
  $region6: #{task_specific_discriminator_forward.12} parent=0 // loop_footer
    %s11 = sadd.s32 1, %s7
  $region7: #{task_specific_discriminator_forward.12} parent=0 // loop_footer_branch
    %6 = sbr.rel target = $region3
  $region8: #{task_specific_discriminator_forward.12} parent=0 // loop_exit
    _

// kernel: task_specific_discriminator_forward.11
$region0: #{task_specific_discriminator_forward.11}
  #allocation0 [shape = 'u32[]', space=smem, size = 0x4, offset = 0x4, fixed_abs, tag = 'smem constant byte address 0x4 - core index']
  #allocation1 [shape = 'u32[144,128]{1,0:T(1,128)}', space=vmem, size = 0x12000, scoped, tag = 'internal scratch']
  %s0 = inlined_call_operand.vmem [shape: bf16[16,2048], index: 0, kind: input, shape index: {}]
  %s1 = inlined_call_operand.vmem [shape: bf16[2048,256], index: 1, kind: input, shape index: {}]
  %s2 = inlined_call_operand.vmem [shape: f32[1,256], index: 2, kind: input, shape index: {}]
  %s3 = inlined_call_operand.vmem [shape: bf16[16,256], index: 3, kind: output, shape index: {}]
  %s4 = sld [smem:[#allocation0]]
  $region123: #{task_specific_discriminator_forward.11} parent=0
    _
  %s6 = ssub.s32 1, %s4
  %s7 = scalar_select 0, %s6, %s4
  $region1: #{task_specific_discriminator_forward.11} parent=0
    #allocation2 [shape = 'u8[1048576]{0}', space=vmem, size = 0x100000, scoped, tag = 'input window, operand 1']
    #allocation3 [shape = 'u8[8192]{0}', space=vmem, size = 0x2000, scoped, tag = 'output window, operand 0']
    loop: start=0, step=1, limit=4
    $region2: #{task_specific_discriminator_forward.11} parent=1 // loop_pre_header
      _
    $region3: #{task_specific_discriminator_forward.11} parent=1 // loop_header
      %s9 = sphi 0, %s13
      %p10 = scmp.ge.s32.totalorder %s9, 4
      %s16 = sphi 0, %s28
      %s17 = sphi 0, %s24
      %s18 = sphi 0, %s16
      %s19 = sphi 0, %s17
      %s20 = sphi 0, %s18
      %s21 = sphi 0, %s19
      %s31 = sphi 0, %s33
      %s34 = sphi 0, %s31
      %s35 = sphi 0, %s34
      %s51 = sphi 0, %s35
      %s57 = sphi 0, %s59
      %s60 = sphi 0, %s57
      %s61 = sphi 0, %s60
      %s77 = sphi 0, %s61
      %s83 = sphi 0, %s85
      %s86 = sphi 0, %s83
      %s87 = sphi 0, %s86
      %s103 = sphi 0, %s87
      %s111 = sphi 0, %s113
      %s114 = sphi 0, %s111
      %s115 = sphi 0, %s114
      %s131 = sphi 0, %s115
    $region4: #{task_specific_discriminator_forward.11} parent=1 // loop_header_branch
      %12 = sbr.rel (%p10) target = $region8
    $region5: #{task_specific_discriminator_forward.11} parent=1 // loop_body
      %s14 = ssub.s32 %s9, 1
      %s15 = ssub.s32 %s9, 2
      %s22 = sadd.s32 1, %s17
      %p23 = scmp.ge.s32.totalorder %s22, 2
      %s24 = scalar_select %p23, 0, %s22
      %s25 = sadd.s32 1, %s16
      %s26 = scalar_select %p23, %s25, %s16
      %p27 = scmp.ge.s32.totalorder %s26, 1
      %s28 = scalar_select %p27, 0, %s26
      %s29 = ssub.s32 %s16, %s28
      %p30 = scmp.eq.s32.totalorder %s29, 0
      %s32 = sadd.s32 %s31, 1
      %s33 = scalar_select %p30, %s31, %s32
      %p36 = pneg %p30
      %p37 = scmp.eq.s32.totalorder %s9, 1
      %p38 = por %p36, %p37
      %p39 = scmp.ne.s32.totalorder %s31, %s34
      %p40 = scmp.eq.s32.totalorder %s9, 0
      %p41 = por %p39, %p40
      %p42 = scmp.ne.s32.totalorder %s31, %s34
      %p43 = scmp.eq.s32.totalorder %s14, 1
      %p44 = por %p42, %p43
      %p45 = scmp.ne.s32.totalorder %s34, %s35
      %p46 = scmp.eq.s32.totalorder %s14, 0
      %p47 = por %p45, %p46
      %p48 = scmp.ne.s32.totalorder %s34, %s35
      %p49 = scmp.eq.s32.totalorder %s15, 1
      %p50 = por %p48, %p49
      %p52 = scmp.ne.s32.totalorder %s35, %s51
      %p53 = scmp.eq.s32.totalorder %s15, 0
      %p54 = por %p52, %p53
      %s55 = ssub.s32 %s17, %s24
      %p56 = scmp.eq.s32.totalorder %s55, 0
      %s58 = sadd.s32 %s57, 1
      %s59 = scalar_select %p56, %s57, %s58
      %p62 = pneg %p56
      %p63 = scmp.eq.s32.totalorder %s9, 1
      %p64 = por %p62, %p63
      %p65 = scmp.ne.s32.totalorder %s57, %s60
      %p66 = scmp.eq.s32.totalorder %s9, 0
      %p67 = por %p65, %p66
      %p68 = scmp.ne.s32.totalorder %s57, %s60
      %p69 = scmp.eq.s32.totalorder %s14, 1
      %p70 = por %p68, %p69
      %p71 = scmp.ne.s32.totalorder %s60, %s61
      %p72 = scmp.eq.s32.totalorder %s14, 0
      %p73 = por %p71, %p72
      %p74 = scmp.ne.s32.totalorder %s60, %s61
      %p75 = scmp.eq.s32.totalorder %s15, 1
      %p76 = por %p74, %p75
      %p78 = scmp.ne.s32.totalorder %s61, %s77
      %p79 = scmp.eq.s32.totalorder %s15, 0
      %p80 = por %p78, %p79
      %s81 = ssub.s32 %s17, %s24
      %p82 = scmp.eq.s32.totalorder %s81, 0
      %s84 = sadd.s32 %s83, 1
      %s85 = scalar_select %p82, %s83, %s84
      %p88 = pneg %p82
      %p89 = scmp.eq.s32.totalorder %s9, 1
      %p90 = por %p88, %p89
      %p91 = scmp.ne.s32.totalorder %s83, %s86
      %p92 = scmp.eq.s32.totalorder %s9, 0
      %p93 = por %p91, %p92
      %p94 = scmp.ne.s32.totalorder %s83, %s86
      %p95 = scmp.eq.s32.totalorder %s14, 1
      %p96 = por %p94, %p95
      %p97 = scmp.ne.s32.totalorder %s86, %s87
      %p98 = scmp.eq.s32.totalorder %s14, 0
      %p99 = por %p97, %p98
      %p100 = scmp.ne.s32.totalorder %s86, %s87
      %p101 = scmp.eq.s32.totalorder %s15, 1
      %p102 = por %p100, %p101
      %p104 = scmp.ne.s32.totalorder %s87, %s103
      %p105 = scmp.eq.s32.totalorder %s15, 0
      %p106 = por %p104, %p105
      %s107 = ssub.s32 %s16, %s28
      %s108 = ssub.s32 %s17, %s24
      %s109 = sor.u32 %s107, %s108
      %p110 = scmp.eq.s32.totalorder %s109, 0
      %s112 = sadd.s32 %s111, 1
      %s113 = scalar_select %p110, %s111, %s112
      %p116 = pneg %p110
      %p117 = scmp.eq.s32.totalorder %s9, 1
      %p118 = por %p116, %p117
      %p119 = scmp.ne.s32.totalorder %s111, %s114
      %p120 = scmp.eq.s32.totalorder %s9, 0
      %p121 = por %p119, %p120
      %p122 = scmp.ne.s32.totalorder %s111, %s114
      %p123 = scmp.eq.s32.totalorder %s14, 1
      %p124 = por %p122, %p123
      %p125 = scmp.ne.s32.totalorder %s114, %s115
      %p126 = scmp.eq.s32.totalorder %s14, 0
      %p127 = por %p125, %p126
      %p128 = scmp.ne.s32.totalorder %s114, %s115
      %p129 = scmp.eq.s32.totalorder %s15, 1
      %p130 = por %p128, %p129
      %p132 = scmp.ne.s32.totalorder %s115, %s131
      %p133 = scmp.eq.s32.totalorder %s15, 0
      %p134 = por %p132, %p133
      %p135 = scmp.le.s32.totalorder 1, %s9
      %p136 = scmp.lt.s32.totalorder %s9, 3
      %p137 = pnand %p135, %p136
      %p138 = pneg %p137
      // Predicated region
      $region9: #{task_specific_discriminator_forward.11} parent=5 // pred_check
        _
      $region10: #{task_specific_discriminator_forward.11} parent=5 // pred_check_branch
        %140 = sbr.rel (%p137) target = $region12
      $region11: #{task_specific_discriminator_forward.11} parent=5 // pred_region
        %s141 = ssub.s32 %s9, 1
        // Predicated region
        $region13: #{task_specific_discriminator_forward.11} parent=11 // pred_check
          %p142 = pneg %p47
        $region14: #{task_specific_discriminator_forward.11} parent=11 // pred_check_branch
          %144 = sbr.rel (%p142) target = $region16
        $region15: #{task_specific_discriminator_forward.11} parent=11 // pred_region
          %s145 = smul.u32 2, %s18
          %p146 = scmp.lt.s32.totalorder %s145, 1
          %s147 = scalar_select %p146, %s145, 1
          %s148 = smul.addr %s147, 16
          %s149 = smul.addr %s148, 4
          %s150 = scalar_lea.vmem %s0, %s149
          %s151 = smul.u32 2, %s18
        $region16: #{task_specific_discriminator_forward.11} parent=11 // pred_fallthru
          _
      $region12: #{task_specific_discriminator_forward.11} parent=5 // pred_fallthru
        _
      %p152 = scmp.lt.s32.totalorder %s9, 2
      // Predicated region
      $region17: #{task_specific_discriminator_forward.11} parent=5 // pred_check
        %p153 = pneg %p152
      $region18: #{task_specific_discriminator_forward.11} parent=5 // pred_check_branch
        %155 = sbr.rel (%p153) target = $region20
      $region19: #{task_specific_discriminator_forward.11} parent=5 // pred_region
        // Predicated region
        $region21: #{task_specific_discriminator_forward.11} parent=19 // pred_check
          %p156 = pneg %p67
        $region22: #{task_specific_discriminator_forward.11} parent=19 // pred_check_branch
          %158 = sbr.rel (%p156) target = $region24
        $region23: #{task_specific_discriminator_forward.11} parent=19 // pred_region
          %s159 = sand.u32 %s57, 1
          %s160 = sand.u32 %s57, 1
          %s161 = smul.addr %s160, 1024
          %s162 = scalar_lea.vmem [#allocation2], %s161
          %s163 = smul.addr %s17, 4
          %s164 = scalar_lea.vmem %s1, %s163
          // Predicated region
          $region25: #{task_specific_discriminator_forward.11} parent=23 // pred_check
            _
          $region26: #{task_specific_discriminator_forward.11} parent=23 // pred_check_branch
            %166 = sbr.rel (0) target = $region28
          $region27: #{task_specific_discriminator_forward.11} parent=23 // pred_region
            // Predicated region
            $region29: #{task_specific_discriminator_forward.11} parent=27 // pred_check
              _
            $region30: #{task_specific_discriminator_forward.11} parent=27 // pred_check_branch
              %168 = sbr.rel target = $region32
            $region31: #{task_specific_discriminator_forward.11} parent=27 // pred_region
              // Predicated region
              $region44: #{task_specific_discriminator_forward.11} parent=31 // pred_check
                _
              $region45: #{task_specific_discriminator_forward.11} parent=31 // pred_check_branch
                %693 = sbr.rel (0) target = $region47
              $region46: #{task_specific_discriminator_forward.11} parent=31 // pred_region
                loop: start=0, step=1, limit=1
                $region48: #{task_specific_discriminator_forward.11} parent=46 // loop_pre_header
                  _
                $region49: #{task_specific_discriminator_forward.11} parent=46 // loop_header
                  %s695 = sphi 0, %s699
                  %p696 = scmp.ge.s32.totalorder %s695, 1
                  %s700 = sphi %s164, %s164
                  %s701 = sphi %s162, %s162
                $region50: #{task_specific_discriminator_forward.11} parent=46 // loop_header_branch
                  %698 = sbr.rel (%p696) target = $region54
                $region51: #{task_specific_discriminator_forward.11} parent=46 // loop_body
                  _
                $region52: #{task_specific_discriminator_forward.11} parent=46 // loop_footer
                  %s699 = sadd.s32 1, %s695
                $region53: #{task_specific_discriminator_forward.11} parent=46 // loop_footer_branch
                  %694 = sbr.rel target = $region49
                $region54: #{task_specific_discriminator_forward.11} parent=46 // loop_exit
                  _
                loop: start=0, step=1, limit=1
                $region55: #{task_specific_discriminator_forward.11} parent=46 // loop_pre_header
                  _
                $region56: #{task_specific_discriminator_forward.11} parent=46 // loop_header
                  %s704 = sphi 0, %s708
                  %p705 = scmp.ge.s32.totalorder %s704, 1
                  %s709 = sphi %s164, %s164
                  %s710 = sphi %s162, %s162
                $region57: #{task_specific_discriminator_forward.11} parent=46 // loop_header_branch
                  %707 = sbr.rel (%p705) target = $region61
                $region58: #{task_specific_discriminator_forward.11} parent=46 // loop_body
                  %v711 = vld [vmem:[%s709] sm:$0xf]
                  %712 = vst [vmem:[%s710] sm:$0xf] %v711
                  %v713 = vld [vmem:[%s709 + $0x8] sm:$0xf]
                  %714 = vst [vmem:[%s710 + $0x4] sm:$0xf] %v713
                  %v715 = vld [vmem:[%s709 + $0x10] sm:$0xf]
                  %716 = vst [vmem:[%s710 + $0x8] sm:$0xf] %v715
                  %v717 = vld [vmem:[%s709 + $0x18] sm:$0xf]
                  %718 = vst [vmem:[%s710 + $0xc] sm:$0xf] %v717
                  %v719 = vld [vmem:[%s709 + $0x20] sm:$0xf]
                  %720 = vst [vmem:[%s710 + $0x10] sm:$0xf] %v719
                  %v721 = vld [vmem:[%s709 + $0x28] sm:$0xf]
                  %722 = vst [vmem:[%s710 + $0x14] sm:$0xf] %v721
                  %v723 = vld [vmem:[%s709 + $0x30] sm:$0xf]
                  %724 = vst [vmem:[%s710 + $0x18] sm:$0xf] %v723
                  %v725 = vld [vmem:[%s709 + $0x38] sm:$0xf]
                  %726 = vst [vmem:[%s710 + $0x1c] sm:$0xf] %v725
                  %v727 = vld [vmem:[%s709 + $0x40] sm:$0xf]
                  %728 = vst [vmem:[%s710 + $0x20] sm:$0xf] %v727
                  %v729 = vld [vmem:[%s709 + $0x48] sm:$0xf]
                  %730 = vst [vmem:[%s710 + $0x24] sm:$0xf] %v729
                  %v731 = vld [vmem:[%s709 + $0x50] sm:$0xf]
                  %732 = vst [vmem:[%s710 + $0x28] sm:$0xf] %v731
                  %v733 = vld [vmem:[%s709 + $0x58] sm:$0xf]
                  %734 = vst [vmem:[%s710 + $0x2c] sm:$0xf] %v733
                  %v735 = vld [vmem:[%s709 + $0x60] sm:$0xf]
                  %736 = vst [vmem:[%s710 + $0x30] sm:$0xf] %v735
                  %v737 = vld [vmem:[%s709 + $0x68] sm:$0xf]
                  %738 = vst [vmem:[%s710 + $0x34] sm:$0xf] %v737
                  %v739 = vld [vmem:[%s709 + $0x70] sm:$0xf]
                  %740 = vst [vmem:[%s710 + $0x38] sm:$0xf] %v739
                  %v741 = vld [vmem:[%s709 + $0x78] sm:$0xf]
                  %742 = vst [vmem:[%s710 + $0x3c] sm:$0xf] %v741
                  %v743 = vld [vmem:[%s709 + $0x80] sm:$0xf]
                  %744 = vst [vmem:[%s710 + $0x40] sm:$0xf] %v743
                  %v745 = vld [vmem:[%s709 + $0x88] sm:$0xf]
                  %746 = vst [vmem:[%s710 + $0x44] sm:$0xf] %v745
                  %v747 = vld [vmem:[%s709 + $0x90] sm:$0xf]
                  %748 = vst [vmem:[%s710 + $0x48] sm:$0xf] %v747
                  %v749 = vld [vmem:[%s709 + $0x98] sm:$0xf]
                  %750 = vst [vmem:[%s710 + $0x4c] sm:$0xf] %v749
                  %v751 = vld [vmem:[%s709 + $0xa0] sm:$0xf]
                  %752 = vst [vmem:[%s710 + $0x50] sm:$0xf] %v751
                  %v753 = vld [vmem:[%s709 + $0xa8] sm:$0xf]
                  %754 = vst [vmem:[%s710 + $0x54] sm:$0xf] %v753
                  %v755 = vld [vmem:[%s709 + $0xb0] sm:$0xf]
                  %756 = vst [vmem:[%s710 + $0x58] sm:$0xf] %v755
                  %v757 = vld [vmem:[%s709 + $0xb8] sm:$0xf]
                  %758 = vst [vmem:[%s710 + $0x5c] sm:$0xf] %v757
                  %v759 = vld [vmem:[%s709 + $0xc0] sm:$0xf]
                  %760 = vst [vmem:[%s710 + $0x60] sm:$0xf] %v759
                  %v761 = vld [vmem:[%s709 + $0xc8] sm:$0xf]
                  %762 = vst [vmem:[%s710 + $0x64] sm:$0xf] %v761
                  %v763 = vld [vmem:[%s709 + $0xd0] sm:$0xf]
                  %764 = vst [vmem:[%s710 + $0x68] sm:$0xf] %v763
                  %v765 = vld [vmem:[%s709 + $0xd8] sm:$0xf]
                  %766 = vst [vmem:[%s710 + $0x6c] sm:$0xf] %v765
                  %v767 = vld [vmem:[%s709 + $0xe0] sm:$0xf]
                  %768 = vst [vmem:[%s710 + $0x70] sm:$0xf] %v767
                  %v769 = vld [vmem:[%s709 + $0xe8] sm:$0xf]
                  %770 = vst [vmem:[%s710 + $0x74] sm:$0xf] %v769
                  %v771 = vld [vmem:[%s709 + $0xf0] sm:$0xf]
                  %772 = vst [vmem:[%s710 + $0x78] sm:$0xf] %v771
                  %v773 = vld [vmem:[%s709 + $0xf8] sm:$0xf]
                  %774 = vst [vmem:[%s710 + $0x7c] sm:$0xf] %v773
                  %v775 = vld [vmem:[%s709 + $0x100] sm:$0xf]
                  %776 = vst [vmem:[%s710 + $0x80] sm:$0xf] %v775
                  %v777 = vld [vmem:[%s709 + $0x108] sm:$0xf]
                  %778 = vst [vmem:[%s710 + $0x84] sm:$0xf] %v777
                  %v779 = vld [vmem:[%s709 + $0x110] sm:$0xf]
                  %780 = vst [vmem:[%s710 + $0x88] sm:$0xf] %v779
                  %v781 = vld [vmem:[%s709 + $0x118] sm:$0xf]
                  %782 = vst [vmem:[%s710 + $0x8c] sm:$0xf] %v781
                  %v783 = vld [vmem:[%s709 + $0x120] sm:$0xf]
                  %784 = vst [vmem:[%s710 + $0x90] sm:$0xf] %v783
                  %v785 = vld [vmem:[%s709 + $0x128] sm:$0xf]
                  %786 = vst [vmem:[%s710 + $0x94] sm:$0xf] %v785
                  %v787 = vld [vmem:[%s709 + $0x130] sm:$0xf]
                  %788 = vst [vmem:[%s710 + $0x98] sm:$0xf] %v787
                  %v789 = vld [vmem:[%s709 + $0x138] sm:$0xf]
                  %790 = vst [vmem:[%s710 + $0x9c] sm:$0xf] %v789
                  %v791 = vld [vmem:[%s709 + $0x140] sm:$0xf]
                  %792 = vst [vmem:[%s710 + $0xa0] sm:$0xf] %v791
                  %v793 = vld [vmem:[%s709 + $0x148] sm:$0xf]
                  %794 = vst [vmem:[%s710 + $0xa4] sm:$0xf] %v793
                  %v795 = vld [vmem:[%s709 + $0x150] sm:$0xf]
                  %796 = vst [vmem:[%s710 + $0xa8] sm:$0xf] %v795
                  %v797 = vld [vmem:[%s709 + $0x158] sm:$0xf]
                  %798 = vst [vmem:[%s710 + $0xac] sm:$0xf] %v797
                  %v799 = vld [vmem:[%s709 + $0x160] sm:$0xf]
                  %800 = vst [vmem:[%s710 + $0xb0] sm:$0xf] %v799
                  %v801 = vld [vmem:[%s709 + $0x168] sm:$0xf]
                  %802 = vst [vmem:[%s710 + $0xb4] sm:$0xf] %v801
                  %v803 = vld [vmem:[%s709 + $0x170] sm:$0xf]
                  %804 = vst [vmem:[%s710 + $0xb8] sm:$0xf] %v803
                  %v805 = vld [vmem:[%s709 + $0x178] sm:$0xf]
                  %806 = vst [vmem:[%s710 + $0xbc] sm:$0xf] %v805
                  %v807 = vld [vmem:[%s709 + $0x180] sm:$0xf]
                  %808 = vst [vmem:[%s710 + $0xc0] sm:$0xf] %v807
                  %v809 = vld [vmem:[%s709 + $0x188] sm:$0xf]
                  %810 = vst [vmem:[%s710 + $0xc4] sm:$0xf] %v809
                  %v811 = vld [vmem:[%s709 + $0x190] sm:$0xf]
                  %812 = vst [vmem:[%s710 + $0xc8] sm:$0xf] %v811
                  %v813 = vld [vmem:[%s709 + $0x198] sm:$0xf]
                  %814 = vst [vmem:[%s710 + $0xcc] sm:$0xf] %v813
                  %v815 = vld [vmem:[%s709 + $0x1a0] sm:$0xf]
                  %816 = vst [vmem:[%s710 + $0xd0] sm:$0xf] %v815
                  %v817 = vld [vmem:[%s709 + $0x1a8] sm:$0xf]
                  %818 = vst [vmem:[%s710 + $0xd4] sm:$0xf] %v817
                  %v819 = vld [vmem:[%s709 + $0x1b0] sm:$0xf]
                  %820 = vst [vmem:[%s710 + $0xd8] sm:$0xf] %v819
                  %v821 = vld [vmem:[%s709 + $0x1b8] sm:$0xf]
                  %822 = vst [vmem:[%s710 + $0xdc] sm:$0xf] %v821
                  %v823 = vld [vmem:[%s709 + $0x1c0] sm:$0xf]
                  %824 = vst [vmem:[%s710 + $0xe0] sm:$0xf] %v823
                  %v825 = vld [vmem:[%s709 + $0x1c8] sm:$0xf]
                  %826 = vst [vmem:[%s710 + $0xe4] sm:$0xf] %v825
                  %v827 = vld [vmem:[%s709 + $0x1d0] sm:$0xf]
                  %828 = vst [vmem:[%s710 + $0xe8] sm:$0xf] %v827
                  %v829 = vld [vmem:[%s709 + $0x1d8] sm:$0xf]
                  %830 = vst [vmem:[%s710 + $0xec] sm:$0xf] %v829
                  %v831 = vld [vmem:[%s709 + $0x1e0] sm:$0xf]
                  %832 = vst [vmem:[%s710 + $0xf0] sm:$0xf] %v831
                  %v833 = vld [vmem:[%s709 + $0x1e8] sm:$0xf]
                  %834 = vst [vmem:[%s710 + $0xf4] sm:$0xf] %v833
                  %v835 = vld [vmem:[%s709 + $0x1f0] sm:$0xf]
                  %836 = vst [vmem:[%s710 + $0xf8] sm:$0xf] %v835
                  %v837 = vld [vmem:[%s709 + $0x1f8] sm:$0xf]
                  %838 = vst [vmem:[%s710 + $0xfc] sm:$0xf] %v837
                  %v839 = vld [vmem:[%s709 + $0x200] sm:$0xf]
                  %840 = vst [vmem:[%s710 + $0x100] sm:$0xf] %v839
                  %v841 = vld [vmem:[%s709 + $0x208] sm:$0xf]
                  %842 = vst [vmem:[%s710 + $0x104] sm:$0xf] %v841
                  %v843 = vld [vmem:[%s709 + $0x210] sm:$0xf]
                  %844 = vst [vmem:[%s710 + $0x108] sm:$0xf] %v843
                  %v845 = vld [vmem:[%s709 + $0x218] sm:$0xf]
                  %846 = vst [vmem:[%s710 + $0x10c] sm:$0xf] %v845
                  %v847 = vld [vmem:[%s709 + $0x220] sm:$0xf]
                  %848 = vst [vmem:[%s710 + $0x110] sm:$0xf] %v847
                  %v849 = vld [vmem:[%s709 + $0x228] sm:$0xf]
                  %850 = vst [vmem:[%s710 + $0x114] sm:$0xf] %v849
                  %v851 = vld [vmem:[%s709 + $0x230] sm:$0xf]
                  %852 = vst [vmem:[%s710 + $0x118] sm:$0xf] %v851
                  %v853 = vld [vmem:[%s709 + $0x238] sm:$0xf]
                  %854 = vst [vmem:[%s710 + $0x11c] sm:$0xf] %v853
                  %v855 = vld [vmem:[%s709 + $0x240] sm:$0xf]
                  %856 = vst [vmem:[%s710 + $0x120] sm:$0xf] %v855
                  %v857 = vld [vmem:[%s709 + $0x248] sm:$0xf]
                  %858 = vst [vmem:[%s710 + $0x124] sm:$0xf] %v857
                  %v859 = vld [vmem:[%s709 + $0x250] sm:$0xf]
                  %860 = vst [vmem:[%s710 + $0x128] sm:$0xf] %v859
                  %v861 = vld [vmem:[%s709 + $0x258] sm:$0xf]
                  %862 = vst [vmem:[%s710 + $0x12c] sm:$0xf] %v861
                  %v863 = vld [vmem:[%s709 + $0x260] sm:$0xf]
                  %864 = vst [vmem:[%s710 + $0x130] sm:$0xf] %v863
                  %v865 = vld [vmem:[%s709 + $0x268] sm:$0xf]
                  %866 = vst [vmem:[%s710 + $0x134] sm:$0xf] %v865
                  %v867 = vld [vmem:[%s709 + $0x270] sm:$0xf]
                  %868 = vst [vmem:[%s710 + $0x138] sm:$0xf] %v867
                  %v869 = vld [vmem:[%s709 + $0x278] sm:$0xf]
                  %870 = vst [vmem:[%s710 + $0x13c] sm:$0xf] %v869
                  %v871 = vld [vmem:[%s709 + $0x280] sm:$0xf]
                  %872 = vst [vmem:[%s710 + $0x140] sm:$0xf] %v871
                  %v873 = vld [vmem:[%s709 + $0x288] sm:$0xf]
                  %874 = vst [vmem:[%s710 + $0x144] sm:$0xf] %v873
                  %v875 = vld [vmem:[%s709 + $0x290] sm:$0xf]
                  %876 = vst [vmem:[%s710 + $0x148] sm:$0xf] %v875
                  %v877 = vld [vmem:[%s709 + $0x298] sm:$0xf]
                  %878 = vst [vmem:[%s710 + $0x14c] sm:$0xf] %v877
                  %v879 = vld [vmem:[%s709 + $0x2a0] sm:$0xf]
                  %880 = vst [vmem:[%s710 + $0x150] sm:$0xf] %v879
                  %v881 = vld [vmem:[%s709 + $0x2a8] sm:$0xf]
                  %882 = vst [vmem:[%s710 + $0x154] sm:$0xf] %v881
                  %v883 = vld [vmem:[%s709 + $0x2b0] sm:$0xf]
                  %884 = vst [vmem:[%s710 + $0x158] sm:$0xf] %v883
                  %v885 = vld [vmem:[%s709 + $0x2b8] sm:$0xf]
                  %886 = vst [vmem:[%s710 + $0x15c] sm:$0xf] %v885
                  %v887 = vld [vmem:[%s709 + $0x2c0] sm:$0xf]
                  %888 = vst [vmem:[%s710 + $0x160] sm:$0xf] %v887
                  %v889 = vld [vmem:[%s709 + $0x2c8] sm:$0xf]
                  %890 = vst [vmem:[%s710 + $0x164] sm:$0xf] %v889
                  %v891 = vld [vmem:[%s709 + $0x2d0] sm:$0xf]
                  %892 = vst [vmem:[%s710 + $0x168] sm:$0xf] %v891
                  %v893 = vld [vmem:[%s709 + $0x2d8] sm:$0xf]
                  %894 = vst [vmem:[%s710 + $0x16c] sm:$0xf] %v893
                  %v895 = vld [vmem:[%s709 + $0x2e0] sm:$0xf]
                  %896 = vst [vmem:[%s710 + $0x170] sm:$0xf] %v895
                  %v897 = vld [vmem:[%s709 + $0x2e8] sm:$0xf]
                  %898 = vst [vmem:[%s710 + $0x174] sm:$0xf] %v897
                  %v899 = vld [vmem:[%s709 + $0x2f0] sm:$0xf]
                  %900 = vst [vmem:[%s710 + $0x178] sm:$0xf] %v899
                  %v901 = vld [vmem:[%s709 + $0x2f8] sm:$0xf]
                  %902 = vst [vmem:[%s710 + $0x17c] sm:$0xf] %v901
                  %v903 = vld [vmem:[%s709 + $0x300] sm:$0xf]
                  %904 = vst [vmem:[%s710 + $0x180] sm:$0xf] %v903
                  %v905 = vld [vmem:[%s709 + $0x308] sm:$0xf]
                  %906 = vst [vmem:[%s710 + $0x184] sm:$0xf] %v905
                  %v907 = vld [vmem:[%s709 + $0x310] sm:$0xf]
                  %908 = vst [vmem:[%s710 + $0x188] sm:$0xf] %v907
                  %v909 = vld [vmem:[%s709 + $0x318] sm:$0xf]
                  %910 = vst [vmem:[%s710 + $0x18c] sm:$0xf] %v909
                  %v911 = vld [vmem:[%s709 + $0x320] sm:$0xf]
                  %912 = vst [vmem:[%s710 + $0x190] sm:$0xf] %v911
                  %v913 = vld [vmem:[%s709 + $0x328] sm:$0xf]
                  %914 = vst [vmem:[%s710 + $0x194] sm:$0xf] %v913
                  %v915 = vld [vmem:[%s709 + $0x330] sm:$0xf]
                  %916 = vst [vmem:[%s710 + $0x198] sm:$0xf] %v915
                  %v917 = vld [vmem:[%s709 + $0x338] sm:$0xf]
                  %918 = vst [vmem:[%s710 + $0x19c] sm:$0xf] %v917
                  %v919 = vld [vmem:[%s709 + $0x340] sm:$0xf]
                  %920 = vst [vmem:[%s710 + $0x1a0] sm:$0xf] %v919
                  %v921 = vld [vmem:[%s709 + $0x348] sm:$0xf]
                  %922 = vst [vmem:[%s710 + $0x1a4] sm:$0xf] %v921
                  %v923 = vld [vmem:[%s709 + $0x350] sm:$0xf]
                  %924 = vst [vmem:[%s710 + $0x1a8] sm:$0xf] %v923
                  %v925 = vld [vmem:[%s709 + $0x358] sm:$0xf]
                  %926 = vst [vmem:[%s710 + $0x1ac] sm:$0xf] %v925
                  %v927 = vld [vmem:[%s709 + $0x360] sm:$0xf]
                  %928 = vst [vmem:[%s710 + $0x1b0] sm:$0xf] %v927
                  %v929 = vld [vmem:[%s709 + $0x368] sm:$0xf]
                  %930 = vst [vmem:[%s710 + $0x1b4] sm:$0xf] %v929
                  %v931 = vld [vmem:[%s709 + $0x370] sm:$0xf]
                  %932 = vst [vmem:[%s710 + $0x1b8] sm:$0xf] %v931
                  %v933 = vld [vmem:[%s709 + $0x378] sm:$0xf]
                  %934 = vst [vmem:[%s710 + $0x1bc] sm:$0xf] %v933
                  %v935 = vld [vmem:[%s709 + $0x380] sm:$0xf]
                  %936 = vst [vmem:[%s710 + $0x1c0] sm:$0xf] %v935
                  %v937 = vld [vmem:[%s709 + $0x388] sm:$0xf]
                  %938 = vst [vmem:[%s710 + $0x1c4] sm:$0xf] %v937
                  %v939 = vld [vmem:[%s709 + $0x390] sm:$0xf]
                  %940 = vst [vmem:[%s710 + $0x1c8] sm:$0xf] %v939
                  %v941 = vld [vmem:[%s709 + $0x398] sm:$0xf]
                  %942 = vst [vmem:[%s710 + $0x1cc] sm:$0xf] %v941
                  %v943 = vld [vmem:[%s709 + $0x3a0] sm:$0xf]
                  %944 = vst [vmem:[%s710 + $0x1d0] sm:$0xf] %v943
                  %v945 = vld [vmem:[%s709 + $0x3a8] sm:$0xf]
                  %946 = vst [vmem:[%s710 + $0x1d4] sm:$0xf] %v945
                  %v947 = vld [vmem:[%s709 + $0x3b0] sm:$0xf]
                  %948 = vst [vmem:[%s710 + $0x1d8] sm:$0xf] %v947
                  %v949 = vld [vmem:[%s709 + $0x3b8] sm:$0xf]
                  %950 = vst [vmem:[%s710 + $0x1dc] sm:$0xf] %v949
                  %v951 = vld [vmem:[%s709 + $0x3c0] sm:$0xf]
                  %952 = vst [vmem:[%s710 + $0x1e0] sm:$0xf] %v951
                  %v953 = vld [vmem:[%s709 + $0x3c8] sm:$0xf]
                  %954 = vst [vmem:[%s710 + $0x1e4] sm:$0xf] %v953
                  %v955 = vld [vmem:[%s709 + $0x3d0] sm:$0xf]
                  %956 = vst [vmem:[%s710 + $0x1e8] sm:$0xf] %v955
                  %v957 = vld [vmem:[%s709 + $0x3d8] sm:$0xf]
                  %958 = vst [vmem:[%s710 + $0x1ec] sm:$0xf] %v957
                  %v959 = vld [vmem:[%s709 + $0x3e0] sm:$0xf]
                  %960 = vst [vmem:[%s710 + $0x1f0] sm:$0xf] %v959
                  %v961 = vld [vmem:[%s709 + $0x3e8] sm:$0xf]
                  %962 = vst [vmem:[%s710 + $0x1f4] sm:$0xf] %v961
                  %v963 = vld [vmem:[%s709 + $0x3f0] sm:$0xf]
                  %964 = vst [vmem:[%s710 + $0x1f8] sm:$0xf] %v963
                  %v965 = vld [vmem:[%s709 + $0x3f8] sm:$0xf]
                  %966 = vst [vmem:[%s710 + $0x1fc] sm:$0xf] %v965
                  %v967 = vld [vmem:[%s709 + $0x400] sm:$0xf]
                  %968 = vst [vmem:[%s710 + $0x200] sm:$0xf] %v967
                  %v969 = vld [vmem:[%s709 + $0x408] sm:$0xf]
                  %970 = vst [vmem:[%s710 + $0x204] sm:$0xf] %v969
                  %v971 = vld [vmem:[%s709 + $0x410] sm:$0xf]
                  %972 = vst [vmem:[%s710 + $0x208] sm:$0xf] %v971
                  %v973 = vld [vmem:[%s709 + $0x418] sm:$0xf]
                  %974 = vst [vmem:[%s710 + $0x20c] sm:$0xf] %v973
                  %v975 = vld [vmem:[%s709 + $0x420] sm:$0xf]
                  %976 = vst [vmem:[%s710 + $0x210] sm:$0xf] %v975
                  %v977 = vld [vmem:[%s709 + $0x428] sm:$0xf]
                  %978 = vst [vmem:[%s710 + $0x214] sm:$0xf] %v977
                  %v979 = vld [vmem:[%s709 + $0x430] sm:$0xf]
                  %980 = vst [vmem:[%s710 + $0x218] sm:$0xf] %v979
                  %v981 = vld [vmem:[%s709 + $0x438] sm:$0xf]
                  %982 = vst [vmem:[%s710 + $0x21c] sm:$0xf] %v981
                  %v983 = vld [vmem:[%s709 + $0x440] sm:$0xf]
                  %984 = vst [vmem:[%s710 + $0x220] sm:$0xf] %v983
                  %v985 = vld [vmem:[%s709 + $0x448] sm:$0xf]
                  %986 = vst [vmem:[%s710 + $0x224] sm:$0xf] %v985
                  %v987 = vld [vmem:[%s709 + $0x450] sm:$0xf]
                  %988 = vst [vmem:[%s710 + $0x228] sm:$0xf] %v987
                  %v989 = vld [vmem:[%s709 + $0x458] sm:$0xf]
                  %990 = vst [vmem:[%s710 + $0x22c] sm:$0xf] %v989
                  %v991 = vld [vmem:[%s709 + $0x460] sm:$0xf]
                  %992 = vst [vmem:[%s710 + $0x230] sm:$0xf] %v991
                  %v993 = vld [vmem:[%s709 + $0x468] sm:$0xf]
                  %994 = vst [vmem:[%s710 + $0x234] sm:$0xf] %v993
                  %v995 = vld [vmem:[%s709 + $0x470] sm:$0xf]
                  %996 = vst [vmem:[%s710 + $0x238] sm:$0xf] %v995
                  %v997 = vld [vmem:[%s709 + $0x478] sm:$0xf]
                  %998 = vst [vmem:[%s710 + $0x23c] sm:$0xf] %v997
                  %v999 = vld [vmem:[%s709 + $0x480] sm:$0xf]
                  %1000 = vst [vmem:[%s710 + $0x240] sm:$0xf] %v999
                  %v1001 = vld [vmem:[%s709 + $0x488] sm:$0xf]
                  %1002 = vst [vmem:[%s710 + $0x244] sm:$0xf] %v1001
                  %v1003 = vld [vmem:[%s709 + $0x490] sm:$0xf]
                  %1004 = vst [vmem:[%s710 + $0x248] sm:$0xf] %v1003
                  %v1005 = vld [vmem:[%s709 + $0x498] sm:$0xf]
                  %1006 = vst [vmem:[%s710 + $0x24c] sm:$0xf] %v1005
                  %v1007 = vld [vmem:[%s709 + $0x4a0] sm:$0xf]
                  %1008 = vst [vmem:[%s710 + $0x250] sm:$0xf] %v1007
                  %v1009 = vld [vmem:[%s709 + $0x4a8] sm:$0xf]
                  %1010 = vst [vmem:[%s710 + $0x254] sm:$0xf] %v1009
                  %v1011 = vld [vmem:[%s709 + $0x4b0] sm:$0xf]
                  %1012 = vst [vmem:[%s710 + $0x258] sm:$0xf] %v1011
                  %v1013 = vld [vmem:[%s709 + $0x4b8] sm:$0xf]
                  %1014 = vst [vmem:[%s710 + $0x25c] sm:$0xf] %v1013
                  %v1015 = vld [vmem:[%s709 + $0x4c0] sm:$0xf]
                  %1016 = vst [vmem:[%s710 + $0x260] sm:$0xf] %v1015
                  %v1017 = vld [vmem:[%s709 + $0x4c8] sm:$0xf]
                  %1018 = vst [vmem:[%s710 + $0x264] sm:$0xf] %v1017
                  %v1019 = vld [vmem:[%s709 + $0x4d0] sm:$0xf]
                  %1020 = vst [vmem:[%s710 + $0x268] sm:$0xf] %v1019
                  %v1021 = vld [vmem:[%s709 + $0x4d8] sm:$0xf]
                  %1022 = vst [vmem:[%s710 + $0x26c] sm:$0xf] %v1021
                  %v1023 = vld [vmem:[%s709 + $0x4e0] sm:$0xf]
                  %1024 = vst [vmem:[%s710 + $0x270] sm:$0xf] %v1023
                  %v1025 = vld [vmem:[%s709 + $0x4e8] sm:$0xf]
                  %1026 = vst [vmem:[%s710 + $0x274] sm:$0xf] %v1025
                  %v1027 = vld [vmem:[%s709 + $0x4f0] sm:$0xf]
                  %1028 = vst [vmem:[%s710 + $0x278] sm:$0xf] %v1027
                  %v1029 = vld [vmem:[%s709 + $0x4f8] sm:$0xf]
                  %1030 = vst [vmem:[%s710 + $0x27c] sm:$0xf] %v1029
                  %v1031 = vld [vmem:[%s709 + $0x500] sm:$0xf]
                  %1032 = vst [vmem:[%s710 + $0x280] sm:$0xf] %v1031
                  %v1033 = vld [vmem:[%s709 + $0x508] sm:$0xf]
                  %1034 = vst [vmem:[%s710 + $0x284] sm:$0xf] %v1033
                  %v1035 = vld [vmem:[%s709 + $0x510] sm:$0xf]
                  %1036 = vst [vmem:[%s710 + $0x288] sm:$0xf] %v1035
                  %v1037 = vld [vmem:[%s709 + $0x518] sm:$0xf]
                  %1038 = vst [vmem:[%s710 + $0x28c] sm:$0xf] %v1037
                  %v1039 = vld [vmem:[%s709 + $0x520] sm:$0xf]
                  %1040 = vst [vmem:[%s710 + $0x290] sm:$0xf] %v1039
                  %v1041 = vld [vmem:[%s709 + $0x528] sm:$0xf]
                  %1042 = vst [vmem:[%s710 + $0x294] sm:$0xf] %v1041
                  %v1043 = vld [vmem:[%s709 + $0x530] sm:$0xf]
                  %1044 = vst [vmem:[%s710 + $0x298] sm:$0xf] %v1043
                  %v1045 = vld [vmem:[%s709 + $0x538] sm:$0xf]
                  %1046 = vst [vmem:[%s710 + $0x29c] sm:$0xf] %v1045
                  %v1047 = vld [vmem:[%s709 + $0x540] sm:$0xf]
                  %1048 = vst [vmem:[%s710 + $0x2a0] sm:$0xf] %v1047
                  %v1049 = vld [vmem:[%s709 + $0x548] sm:$0xf]
                  %1050 = vst [vmem:[%s710 + $0x2a4] sm:$0xf] %v1049
                  %v1051 = vld [vmem:[%s709 + $0x550] sm:$0xf]
                  %1052 = vst [vmem:[%s710 + $0x2a8] sm:$0xf] %v1051
                  %v1053 = vld [vmem:[%s709 + $0x558] sm:$0xf]
                  %1054 = vst [vmem:[%s710 + $0x2ac] sm:$0xf] %v1053
                  %v1055 = vld [vmem:[%s709 + $0x560] sm:$0xf]
                  %1056 = vst [vmem:[%s710 + $0x2b0] sm:$0xf] %v1055
                  %v1057 = vld [vmem:[%s709 + $0x568] sm:$0xf]
                  %1058 = vst [vmem:[%s710 + $0x2b4] sm:$0xf] %v1057
                  %v1059 = vld [vmem:[%s709 + $0x570] sm:$0xf]
                  %1060 = vst [vmem:[%s710 + $0x2b8] sm:$0xf] %v1059
                  %v1061 = vld [vmem:[%s709 + $0x578] sm:$0xf]
                  %1062 = vst [vmem:[%s710 + $0x2bc] sm:$0xf] %v1061
                  %v1063 = vld [vmem:[%s709 + $0x580] sm:$0xf]
                  %1064 = vst [vmem:[%s710 + $0x2c0] sm:$0xf] %v1063
                  %v1065 = vld [vmem:[%s709 + $0x588] sm:$0xf]
                  %1066 = vst [vmem:[%s710 + $0x2c4] sm:$0xf] %v1065
                  %v1067 = vld [vmem:[%s709 + $0x590] sm:$0xf]
                  %1068 = vst [vmem:[%s710 + $0x2c8] sm:$0xf] %v1067
                  %v1069 = vld [vmem:[%s709 + $0x598] sm:$0xf]
                  %1070 = vst [vmem:[%s710 + $0x2cc] sm:$0xf] %v1069
                  %v1071 = vld [vmem:[%s709 + $0x5a0] sm:$0xf]
                  %1072 = vst [vmem:[%s710 + $0x2d0] sm:$0xf] %v1071
                  %v1073 = vld [vmem:[%s709 + $0x5a8] sm:$0xf]
                  %1074 = vst [vmem:[%s710 + $0x2d4] sm:$0xf] %v1073
                  %v1075 = vld [vmem:[%s709 + $0x5b0] sm:$0xf]
                  %1076 = vst [vmem:[%s710 + $0x2d8] sm:$0xf] %v1075
                  %v1077 = vld [vmem:[%s709 + $0x5b8] sm:$0xf]
                  %1078 = vst [vmem:[%s710 + $0x2dc] sm:$0xf] %v1077
                  %v1079 = vld [vmem:[%s709 + $0x5c0] sm:$0xf]
                  %1080 = vst [vmem:[%s710 + $0x2e0] sm:$0xf] %v1079
                  %v1081 = vld [vmem:[%s709 + $0x5c8] sm:$0xf]
                  %1082 = vst [vmem:[%s710 + $0x2e4] sm:$0xf] %v1081
                  %v1083 = vld [vmem:[%s709 + $0x5d0] sm:$0xf]
                  %1084 = vst [vmem:[%s710 + $0x2e8] sm:$0xf] %v1083
                  %v1085 = vld [vmem:[%s709 + $0x5d8] sm:$0xf]
                  %1086 = vst [vmem:[%s710 + $0x2ec] sm:$0xf] %v1085
                  %v1087 = vld [vmem:[%s709 + $0x5e0] sm:$0xf]
                  %1088 = vst [vmem:[%s710 + $0x2f0] sm:$0xf] %v1087
                  %v1089 = vld [vmem:[%s709 + $0x5e8] sm:$0xf]
                  %1090 = vst [vmem:[%s710 + $0x2f4] sm:$0xf] %v1089
                  %v1091 = vld [vmem:[%s709 + $0x5f0] sm:$0xf]
                  %1092 = vst [vmem:[%s710 + $0x2f8] sm:$0xf] %v1091
                  %v1093 = vld [vmem:[%s709 + $0x5f8] sm:$0xf]
                  %1094 = vst [vmem:[%s710 + $0x2fc] sm:$0xf] %v1093
                  %v1095 = vld [vmem:[%s709 + $0x600] sm:$0xf]
                  %1096 = vst [vmem:[%s710 + $0x300] sm:$0xf] %v1095
                  %v1097 = vld [vmem:[%s709 + $0x608] sm:$0xf]
                  %1098 = vst [vmem:[%s710 + $0x304] sm:$0xf] %v1097
                  %v1099 = vld [vmem:[%s709 + $0x610] sm:$0xf]
                  %1100 = vst [vmem:[%s710 + $0x308] sm:$0xf] %v1099
                  %v1101 = vld [vmem:[%s709 + $0x618] sm:$0xf]
                  %1102 = vst [vmem:[%s710 + $0x30c] sm:$0xf] %v1101
                  %v1103 = vld [vmem:[%s709 + $0x620] sm:$0xf]
                  %1104 = vst [vmem:[%s710 + $0x310] sm:$0xf] %v1103
                  %v1105 = vld [vmem:[%s709 + $0x628] sm:$0xf]
                  %1106 = vst [vmem:[%s710 + $0x314] sm:$0xf] %v1105
                  %v1107 = vld [vmem:[%s709 + $0x630] sm:$0xf]
                  %1108 = vst [vmem:[%s710 + $0x318] sm:$0xf] %v1107
                  %v1109 = vld [vmem:[%s709 + $0x638] sm:$0xf]
                  %1110 = vst [vmem:[%s710 + $0x31c] sm:$0xf] %v1109
                  %v1111 = vld [vmem:[%s709 + $0x640] sm:$0xf]
                  %1112 = vst [vmem:[%s710 + $0x320] sm:$0xf] %v1111
                  %v1113 = vld [vmem:[%s709 + $0x648] sm:$0xf]
                  %1114 = vst [vmem:[%s710 + $0x324] sm:$0xf] %v1113
                  %v1115 = vld [vmem:[%s709 + $0x650] sm:$0xf]
                  %1116 = vst [vmem:[%s710 + $0x328] sm:$0xf] %v1115
                  %v1117 = vld [vmem:[%s709 + $0x658] sm:$0xf]
                  %1118 = vst [vmem:[%s710 + $0x32c] sm:$0xf] %v1117
                  %v1119 = vld [vmem:[%s709 + $0x660] sm:$0xf]
                  %1120 = vst [vmem:[%s710 + $0x330] sm:$0xf] %v1119
                  %v1121 = vld [vmem:[%s709 + $0x668] sm:$0xf]
                  %1122 = vst [vmem:[%s710 + $0x334] sm:$0xf] %v1121
                  %v1123 = vld [vmem:[%s709 + $0x670] sm:$0xf]
                  %1124 = vst [vmem:[%s710 + $0x338] sm:$0xf] %v1123
                  %v1125 = vld [vmem:[%s709 + $0x678] sm:$0xf]
                  %1126 = vst [vmem:[%s710 + $0x33c] sm:$0xf] %v1125
                  %v1127 = vld [vmem:[%s709 + $0x680] sm:$0xf]
                  %1128 = vst [vmem:[%s710 + $0x340] sm:$0xf] %v1127
                  %v1129 = vld [vmem:[%s709 + $0x688] sm:$0xf]
                  %1130 = vst [vmem:[%s710 + $0x344] sm:$0xf] %v1129
                  %v1131 = vld [vmem:[%s709 + $0x690] sm:$0xf]
                  %1132 = vst [vmem:[%s710 + $0x348] sm:$0xf] %v1131
                  %v1133 = vld [vmem:[%s709 + $0x698] sm:$0xf]
                  %1134 = vst [vmem:[%s710 + $0x34c] sm:$0xf] %v1133
                  %v1135 = vld [vmem:[%s709 + $0x6a0] sm:$0xf]
                  %1136 = vst [vmem:[%s710 + $0x350] sm:$0xf] %v1135
                  %v1137 = vld [vmem:[%s709 + $0x6a8] sm:$0xf]
                  %1138 = vst [vmem:[%s710 + $0x354] sm:$0xf] %v1137
                  %v1139 = vld [vmem:[%s709 + $0x6b0] sm:$0xf]
                  %1140 = vst [vmem:[%s710 + $0x358] sm:$0xf] %v1139
                  %v1141 = vld [vmem:[%s709 + $0x6b8] sm:$0xf]
                  %1142 = vst [vmem:[%s710 + $0x35c] sm:$0xf] %v1141
                  %v1143 = vld [vmem:[%s709 + $0x6c0] sm:$0xf]
                  %1144 = vst [vmem:[%s710 + $0x360] sm:$0xf] %v1143
                  %v1145 = vld [vmem:[%s709 + $0x6c8] sm:$0xf]
                  %1146 = vst [vmem:[%s710 + $0x364] sm:$0xf] %v1145
                  %v1147 = vld [vmem:[%s709 + $0x6d0] sm:$0xf]
                  %1148 = vst [vmem:[%s710 + $0x368] sm:$0xf] %v1147
                  %v1149 = vld [vmem:[%s709 + $0x6d8] sm:$0xf]
                  %1150 = vst [vmem:[%s710 + $0x36c] sm:$0xf] %v1149
                  %v1151 = vld [vmem:[%s709 + $0x6e0] sm:$0xf]
                  %1152 = vst [vmem:[%s710 + $0x370] sm:$0xf] %v1151
                  %v1153 = vld [vmem:[%s709 + $0x6e8] sm:$0xf]
                  %1154 = vst [vmem:[%s710 + $0x374] sm:$0xf] %v1153
                  %v1155 = vld [vmem:[%s709 + $0x6f0] sm:$0xf]
                  %1156 = vst [vmem:[%s710 + $0x378] sm:$0xf] %v1155
                  %v1157 = vld [vmem:[%s709 + $0x6f8] sm:$0xf]
                  %1158 = vst [vmem:[%s710 + $0x37c] sm:$0xf] %v1157
                  %v1159 = vld [vmem:[%s709 + $0x700] sm:$0xf]
                  %1160 = vst [vmem:[%s710 + $0x380] sm:$0xf] %v1159
                  %v1161 = vld [vmem:[%s709 + $0x708] sm:$0xf]
                  %1162 = vst [vmem:[%s710 + $0x384] sm:$0xf] %v1161
                  %v1163 = vld [vmem:[%s709 + $0x710] sm:$0xf]
                  %1164 = vst [vmem:[%s710 + $0x388] sm:$0xf] %v1163
                  %v1165 = vld [vmem:[%s709 + $0x718] sm:$0xf]
                  %1166 = vst [vmem:[%s710 + $0x38c] sm:$0xf] %v1165
                  %v1167 = vld [vmem:[%s709 + $0x720] sm:$0xf]
                  %1168 = vst [vmem:[%s710 + $0x390] sm:$0xf] %v1167
                  %v1169 = vld [vmem:[%s709 + $0x728] sm:$0xf]
                  %1170 = vst [vmem:[%s710 + $0x394] sm:$0xf] %v1169
                  %v1171 = vld [vmem:[%s709 + $0x730] sm:$0xf]
                  %1172 = vst [vmem:[%s710 + $0x398] sm:$0xf] %v1171
                  %v1173 = vld [vmem:[%s709 + $0x738] sm:$0xf]
                  %1174 = vst [vmem:[%s710 + $0x39c] sm:$0xf] %v1173
                  %v1175 = vld [vmem:[%s709 + $0x740] sm:$0xf]
                  %1176 = vst [vmem:[%s710 + $0x3a0] sm:$0xf] %v1175
                  %v1177 = vld [vmem:[%s709 + $0x748] sm:$0xf]
                  %1178 = vst [vmem:[%s710 + $0x3a4] sm:$0xf] %v1177
                  %v1179 = vld [vmem:[%s709 + $0x750] sm:$0xf]
                  %1180 = vst [vmem:[%s710 + $0x3a8] sm:$0xf] %v1179
                  %v1181 = vld [vmem:[%s709 + $0x758] sm:$0xf]
                  %1182 = vst [vmem:[%s710 + $0x3ac] sm:$0xf] %v1181
                  %v1183 = vld [vmem:[%s709 + $0x760] sm:$0xf]
                  %1184 = vst [vmem:[%s710 + $0x3b0] sm:$0xf] %v1183
                  %v1185 = vld [vmem:[%s709 + $0x768] sm:$0xf]
                  %1186 = vst [vmem:[%s710 + $0x3b4] sm:$0xf] %v1185
                  %v1187 = vld [vmem:[%s709 + $0x770] sm:$0xf]
                  %1188 = vst [vmem:[%s710 + $0x3b8] sm:$0xf] %v1187
                  %v1189 = vld [vmem:[%s709 + $0x778] sm:$0xf]
                  %1190 = vst [vmem:[%s710 + $0x3bc] sm:$0xf] %v1189
                  %v1191 = vld [vmem:[%s709 + $0x780] sm:$0xf]
                  %1192 = vst [vmem:[%s710 + $0x3c0] sm:$0xf] %v1191
                  %v1193 = vld [vmem:[%s709 + $0x788] sm:$0xf]
                  %1194 = vst [vmem:[%s710 + $0x3c4] sm:$0xf] %v1193
                  %v1195 = vld [vmem:[%s709 + $0x790] sm:$0xf]
                  %1196 = vst [vmem:[%s710 + $0x3c8] sm:$0xf] %v1195
                  %v1197 = vld [vmem:[%s709 + $0x798] sm:$0xf]
                  %1198 = vst [vmem:[%s710 + $0x3cc] sm:$0xf] %v1197
                  %v1199 = vld [vmem:[%s709 + $0x7a0] sm:$0xf]
                  %1200 = vst [vmem:[%s710 + $0x3d0] sm:$0xf] %v1199
                  %v1201 = vld [vmem:[%s709 + $0x7a8] sm:$0xf]
                  %1202 = vst [vmem:[%s710 + $0x3d4] sm:$0xf] %v1201
                  %v1203 = vld [vmem:[%s709 + $0x7b0] sm:$0xf]
                  %1204 = vst [vmem:[%s710 + $0x3d8] sm:$0xf] %v1203
                  %v1205 = vld [vmem:[%s709 + $0x7b8] sm:$0xf]
                  %1206 = vst [vmem:[%s710 + $0x3dc] sm:$0xf] %v1205
                  %v1207 = vld [vmem:[%s709 + $0x7c0] sm:$0xf]
                  %1208 = vst [vmem:[%s710 + $0x3e0] sm:$0xf] %v1207
                  %v1209 = vld [vmem:[%s709 + $0x7c8] sm:$0xf]
                  %1210 = vst [vmem:[%s710 + $0x3e4] sm:$0xf] %v1209
                  %v1211 = vld [vmem:[%s709 + $0x7d0] sm:$0xf]
                  %1212 = vst [vmem:[%s710 + $0x3e8] sm:$0xf] %v1211
                  %v1213 = vld [vmem:[%s709 + $0x7d8] sm:$0xf]
                  %1214 = vst [vmem:[%s710 + $0x3ec] sm:$0xf] %v1213
                  %v1215 = vld [vmem:[%s709 + $0x7e0] sm:$0xf]
                  %1216 = vst [vmem:[%s710 + $0x3f0] sm:$0xf] %v1215
                  %v1217 = vld [vmem:[%s709 + $0x7e8] sm:$0xf]
                  %1218 = vst [vmem:[%s710 + $0x3f4] sm:$0xf] %v1217
                  %v1219 = vld [vmem:[%s709 + $0x7f0] sm:$0xf]
                  %1220 = vst [vmem:[%s710 + $0x3f8] sm:$0xf] %v1219
                  %v1221 = vld [vmem:[%s709 + $0x7f8] sm:$0xf]
                  %1222 = vst [vmem:[%s710 + $0x3fc] sm:$0xf] %v1221
                $region59: #{task_specific_discriminator_forward.11} parent=46 // loop_footer
                  %s708 = sadd.s32 1, %s704
                $region60: #{task_specific_discriminator_forward.11} parent=46 // loop_footer_branch
                  %703 = sbr.rel target = $region56
                $region61: #{task_specific_discriminator_forward.11} parent=46 // loop_exit
                  _
              $region47: #{task_specific_discriminator_forward.11} parent=31 // pred_fallthru
                _
            $region32: #{task_specific_discriminator_forward.11} parent=27 // pred_fallthru
              _
            // Predicated region
            $region33: #{task_specific_discriminator_forward.11} parent=27 // pred_check
              _
            $region34: #{task_specific_discriminator_forward.11} parent=27 // pred_check_branch
              %170 = sbr.rel (0) target = $region36
            $region35: #{task_specific_discriminator_forward.11} parent=27 // pred_region
              loop: start=0, step=1, limit=1
              $region37: #{task_specific_discriminator_forward.11} parent=35 // loop_pre_header
                _
              $region38: #{task_specific_discriminator_forward.11} parent=35 // loop_header
                %s173 = sphi 0, %s177
                %p174 = scmp.ge.s32.totalorder %s173, 1
                %s178 = sphi %s164, %s164
                %s179 = sphi %s162, %s162
              $region39: #{task_specific_discriminator_forward.11} parent=35 // loop_header_branch
                %176 = sbr.rel (%p174) target = $region43
              $region40: #{task_specific_discriminator_forward.11} parent=35 // loop_body
                %v180 = vld [vmem:[%s178] sm:$0xf]
                %181 = vst [vmem:[%s179] sm:$0xf] %v180
                %v182 = vld [vmem:[%s178 + $0x8] sm:$0xf]
                %183 = vst [vmem:[%s179 + $0x4] sm:$0xf] %v182
                %v184 = vld [vmem:[%s178 + $0x10] sm:$0xf]
                %185 = vst [vmem:[%s179 + $0x8] sm:$0xf] %v184
                %v186 = vld [vmem:[%s178 + $0x18] sm:$0xf]
                %187 = vst [vmem:[%s179 + $0xc] sm:$0xf] %v186
                %v188 = vld [vmem:[%s178 + $0x20] sm:$0xf]
                %189 = vst [vmem:[%s179 + $0x10] sm:$0xf] %v188
                %v190 = vld [vmem:[%s178 + $0x28] sm:$0xf]
                %191 = vst [vmem:[%s179 + $0x14] sm:$0xf] %v190
                %v192 = vld [vmem:[%s178 + $0x30] sm:$0xf]
                %193 = vst [vmem:[%s179 + $0x18] sm:$0xf] %v192
                %v194 = vld [vmem:[%s178 + $0x38] sm:$0xf]
                %195 = vst [vmem:[%s179 + $0x1c] sm:$0xf] %v194
                %v196 = vld [vmem:[%s178 + $0x40] sm:$0xf]
                %197 = vst [vmem:[%s179 + $0x20] sm:$0xf] %v196
                %v198 = vld [vmem:[%s178 + $0x48] sm:$0xf]
                %199 = vst [vmem:[%s179 + $0x24] sm:$0xf] %v198
                %v200 = vld [vmem:[%s178 + $0x50] sm:$0xf]
                %201 = vst [vmem:[%s179 + $0x28] sm:$0xf] %v200
                %v202 = vld [vmem:[%s178 + $0x58] sm:$0xf]
                %203 = vst [vmem:[%s179 + $0x2c] sm:$0xf] %v202
                %v204 = vld [vmem:[%s178 + $0x60] sm:$0xf]
                %205 = vst [vmem:[%s179 + $0x30] sm:$0xf] %v204
                %v206 = vld [vmem:[%s178 + $0x68] sm:$0xf]
                %207 = vst [vmem:[%s179 + $0x34] sm:$0xf] %v206
                %v208 = vld [vmem:[%s178 + $0x70] sm:$0xf]
                %209 = vst [vmem:[%s179 + $0x38] sm:$0xf] %v208
                %v210 = vld [vmem:[%s178 + $0x78] sm:$0xf]
                %211 = vst [vmem:[%s179 + $0x3c] sm:$0xf] %v210
                %v212 = vld [vmem:[%s178 + $0x80] sm:$0xf]
                %213 = vst [vmem:[%s179 + $0x40] sm:$0xf] %v212
                %v214 = vld [vmem:[%s178 + $0x88] sm:$0xf]
                %215 = vst [vmem:[%s179 + $0x44] sm:$0xf] %v214
                %v216 = vld [vmem:[%s178 + $0x90] sm:$0xf]
                %217 = vst [vmem:[%s179 + $0x48] sm:$0xf] %v216
                %v218 = vld [vmem:[%s178 + $0x98] sm:$0xf]
                %219 = vst [vmem:[%s179 + $0x4c] sm:$0xf] %v218
                %v220 = vld [vmem:[%s178 + $0xa0] sm:$0xf]
                %221 = vst [vmem:[%s179 + $0x50] sm:$0xf] %v220
                %v222 = vld [vmem:[%s178 + $0xa8] sm:$0xf]
                %223 = vst [vmem:[%s179 + $0x54] sm:$0xf] %v222
                %v224 = vld [vmem:[%s178 + $0xb0] sm:$0xf]
                %225 = vst [vmem:[%s179 + $0x58] sm:$0xf] %v224
                %v226 = vld [vmem:[%s178 + $0xb8] sm:$0xf]
                %227 = vst [vmem:[%s179 + $0x5c] sm:$0xf] %v226
                %v228 = vld [vmem:[%s178 + $0xc0] sm:$0xf]
                %229 = vst [vmem:[%s179 + $0x60] sm:$0xf] %v228
                %v230 = vld [vmem:[%s178 + $0xc8] sm:$0xf]
                %231 = vst [vmem:[%s179 + $0x64] sm:$0xf] %v230
                %v232 = vld [vmem:[%s178 + $0xd0] sm:$0xf]
                %233 = vst [vmem:[%s179 + $0x68] sm:$0xf] %v232
                %v234 = vld [vmem:[%s178 + $0xd8] sm:$0xf]
                %235 = vst [vmem:[%s179 + $0x6c] sm:$0xf] %v234
                %v236 = vld [vmem:[%s178 + $0xe0] sm:$0xf]
                %237 = vst [vmem:[%s179 + $0x70] sm:$0xf] %v236
                %v238 = vld [vmem:[%s178 + $0xe8] sm:$0xf]
                %239 = vst [vmem:[%s179 + $0x74] sm:$0xf] %v238
                %v240 = vld [vmem:[%s178 + $0xf0] sm:$0xf]
                %241 = vst [vmem:[%s179 + $0x78] sm:$0xf] %v240
                %v242 = vld [vmem:[%s178 + $0xf8] sm:$0xf]
                %243 = vst [vmem:[%s179 + $0x7c] sm:$0xf] %v242
                %v244 = vld [vmem:[%s178 + $0x100] sm:$0xf]
                %245 = vst [vmem:[%s179 + $0x80] sm:$0xf] %v244
                %v246 = vld [vmem:[%s178 + $0x108] sm:$0xf]
                %247 = vst [vmem:[%s179 + $0x84] sm:$0xf] %v246
                %v248 = vld [vmem:[%s178 + $0x110] sm:$0xf]
                %249 = vst [vmem:[%s179 + $0x88] sm:$0xf] %v248
                %v250 = vld [vmem:[%s178 + $0x118] sm:$0xf]
                %251 = vst [vmem:[%s179 + $0x8c] sm:$0xf] %v250
                %v252 = vld [vmem:[%s178 + $0x120] sm:$0xf]
                %253 = vst [vmem:[%s179 + $0x90] sm:$0xf] %v252
                %v254 = vld [vmem:[%s178 + $0x128] sm:$0xf]
                %255 = vst [vmem:[%s179 + $0x94] sm:$0xf] %v254
                %v256 = vld [vmem:[%s178 + $0x130] sm:$0xf]
                %257 = vst [vmem:[%s179 + $0x98] sm:$0xf] %v256
                %v258 = vld [vmem:[%s178 + $0x138] sm:$0xf]
                %259 = vst [vmem:[%s179 + $0x9c] sm:$0xf] %v258
                %v260 = vld [vmem:[%s178 + $0x140] sm:$0xf]
                %261 = vst [vmem:[%s179 + $0xa0] sm:$0xf] %v260
                %v262 = vld [vmem:[%s178 + $0x148] sm:$0xf]
                %263 = vst [vmem:[%s179 + $0xa4] sm:$0xf] %v262
                %v264 = vld [vmem:[%s178 + $0x150] sm:$0xf]
                %265 = vst [vmem:[%s179 + $0xa8] sm:$0xf] %v264
                %v266 = vld [vmem:[%s178 + $0x158] sm:$0xf]
                %267 = vst [vmem:[%s179 + $0xac] sm:$0xf] %v266
                %v268 = vld [vmem:[%s178 + $0x160] sm:$0xf]
                %269 = vst [vmem:[%s179 + $0xb0] sm:$0xf] %v268
                %v270 = vld [vmem:[%s178 + $0x168] sm:$0xf]
                %271 = vst [vmem:[%s179 + $0xb4] sm:$0xf] %v270
                %v272 = vld [vmem:[%s178 + $0x170] sm:$0xf]
                %273 = vst [vmem:[%s179 + $0xb8] sm:$0xf] %v272
                %v274 = vld [vmem:[%s178 + $0x178] sm:$0xf]
                %275 = vst [vmem:[%s179 + $0xbc] sm:$0xf] %v274
                %v276 = vld [vmem:[%s178 + $0x180] sm:$0xf]
                %277 = vst [vmem:[%s179 + $0xc0] sm:$0xf] %v276
                %v278 = vld [vmem:[%s178 + $0x188] sm:$0xf]
                %279 = vst [vmem:[%s179 + $0xc4] sm:$0xf] %v278
                %v280 = vld [vmem:[%s178 + $0x190] sm:$0xf]
                %281 = vst [vmem:[%s179 + $0xc8] sm:$0xf] %v280
                %v282 = vld [vmem:[%s178 + $0x198] sm:$0xf]
                %283 = vst [vmem:[%s179 + $0xcc] sm:$0xf] %v282
                %v284 = vld [vmem:[%s178 + $0x1a0] sm:$0xf]
                %285 = vst [vmem:[%s179 + $0xd0] sm:$0xf] %v284
                %v286 = vld [vmem:[%s178 + $0x1a8] sm:$0xf]
                %287 = vst [vmem:[%s179 + $0xd4] sm:$0xf] %v286
                %v288 = vld [vmem:[%s178 + $0x1b0] sm:$0xf]
                %289 = vst [vmem:[%s179 + $0xd8] sm:$0xf] %v288
                %v290 = vld [vmem:[%s178 + $0x1b8] sm:$0xf]
                %291 = vst [vmem:[%s179 + $0xdc] sm:$0xf] %v290
                %v292 = vld [vmem:[%s178 + $0x1c0] sm:$0xf]
                %293 = vst [vmem:[%s179 + $0xe0] sm:$0xf] %v292
                %v294 = vld [vmem:[%s178 + $0x1c8] sm:$0xf]
                %295 = vst [vmem:[%s179 + $0xe4] sm:$0xf] %v294
                %v296 = vld [vmem:[%s178 + $0x1d0] sm:$0xf]
                %297 = vst [vmem:[%s179 + $0xe8] sm:$0xf] %v296
                %v298 = vld [vmem:[%s178 + $0x1d8] sm:$0xf]
                %299 = vst [vmem:[%s179 + $0xec] sm:$0xf] %v298
                %v300 = vld [vmem:[%s178 + $0x1e0] sm:$0xf]
                %301 = vst [vmem:[%s179 + $0xf0] sm:$0xf] %v300
                %v302 = vld [vmem:[%s178 + $0x1e8] sm:$0xf]
                %303 = vst [vmem:[%s179 + $0xf4] sm:$0xf] %v302
                %v304 = vld [vmem:[%s178 + $0x1f0] sm:$0xf]
                %305 = vst [vmem:[%s179 + $0xf8] sm:$0xf] %v304
                %v306 = vld [vmem:[%s178 + $0x1f8] sm:$0xf]
                %307 = vst [vmem:[%s179 + $0xfc] sm:$0xf] %v306
                %v308 = vld [vmem:[%s178 + $0x200] sm:$0xf]
                %309 = vst [vmem:[%s179 + $0x100] sm:$0xf] %v308
                %v310 = vld [vmem:[%s178 + $0x208] sm:$0xf]
                %311 = vst [vmem:[%s179 + $0x104] sm:$0xf] %v310
                %v312 = vld [vmem:[%s178 + $0x210] sm:$0xf]
                %313 = vst [vmem:[%s179 + $0x108] sm:$0xf] %v312
                %v314 = vld [vmem:[%s178 + $0x218] sm:$0xf]
                %315 = vst [vmem:[%s179 + $0x10c] sm:$0xf] %v314
                %v316 = vld [vmem:[%s178 + $0x220] sm:$0xf]
                %317 = vst [vmem:[%s179 + $0x110] sm:$0xf] %v316
                %v318 = vld [vmem:[%s178 + $0x228] sm:$0xf]
                %319 = vst [vmem:[%s179 + $0x114] sm:$0xf] %v318
                %v320 = vld [vmem:[%s178 + $0x230] sm:$0xf]
                %321 = vst [vmem:[%s179 + $0x118] sm:$0xf] %v320
                %v322 = vld [vmem:[%s178 + $0x238] sm:$0xf]
                %323 = vst [vmem:[%s179 + $0x11c] sm:$0xf] %v322
                %v324 = vld [vmem:[%s178 + $0x240] sm:$0xf]
                %325 = vst [vmem:[%s179 + $0x120] sm:$0xf] %v324
                %v326 = vld [vmem:[%s178 + $0x248] sm:$0xf]
                %327 = vst [vmem:[%s179 + $0x124] sm:$0xf] %v326
                %v328 = vld [vmem:[%s178 + $0x250] sm:$0xf]
                %329 = vst [vmem:[%s179 + $0x128] sm:$0xf] %v328
                %v330 = vld [vmem:[%s178 + $0x258] sm:$0xf]
                %331 = vst [vmem:[%s179 + $0x12c] sm:$0xf] %v330
                %v332 = vld [vmem:[%s178 + $0x260] sm:$0xf]
                %333 = vst [vmem:[%s179 + $0x130] sm:$0xf] %v332
                %v334 = vld [vmem:[%s178 + $0x268] sm:$0xf]
                %335 = vst [vmem:[%s179 + $0x134] sm:$0xf] %v334
                %v336 = vld [vmem:[%s178 + $0x270] sm:$0xf]
                %337 = vst [vmem:[%s179 + $0x138] sm:$0xf] %v336
                %v338 = vld [vmem:[%s178 + $0x278] sm:$0xf]
                %339 = vst [vmem:[%s179 + $0x13c] sm:$0xf] %v338
                %v340 = vld [vmem:[%s178 + $0x280] sm:$0xf]
                %341 = vst [vmem:[%s179 + $0x140] sm:$0xf] %v340
                %v342 = vld [vmem:[%s178 + $0x288] sm:$0xf]
                %343 = vst [vmem:[%s179 + $0x144] sm:$0xf] %v342
                %v344 = vld [vmem:[%s178 + $0x290] sm:$0xf]
                %345 = vst [vmem:[%s179 + $0x148] sm:$0xf] %v344
                %v346 = vld [vmem:[%s178 + $0x298] sm:$0xf]
                %347 = vst [vmem:[%s179 + $0x14c] sm:$0xf] %v346
                %v348 = vld [vmem:[%s178 + $0x2a0] sm:$0xf]
                %349 = vst [vmem:[%s179 + $0x150] sm:$0xf] %v348
                %v350 = vld [vmem:[%s178 + $0x2a8] sm:$0xf]
                %351 = vst [vmem:[%s179 + $0x154] sm:$0xf] %v350
                %v352 = vld [vmem:[%s178 + $0x2b0] sm:$0xf]
                %353 = vst [vmem:[%s179 + $0x158] sm:$0xf] %v352
                %v354 = vld [vmem:[%s178 + $0x2b8] sm:$0xf]
                %355 = vst [vmem:[%s179 + $0x15c] sm:$0xf] %v354
                %v356 = vld [vmem:[%s178 + $0x2c0] sm:$0xf]
                %357 = vst [vmem:[%s179 + $0x160] sm:$0xf] %v356
                %v358 = vld [vmem:[%s178 + $0x2c8] sm:$0xf]
                %359 = vst [vmem:[%s179 + $0x164] sm:$0xf] %v358
                %v360 = vld [vmem:[%s178 + $0x2d0] sm:$0xf]
                %361 = vst [vmem:[%s179 + $0x168] sm:$0xf] %v360
                %v362 = vld [vmem:[%s178 + $0x2d8] sm:$0xf]
                %363 = vst [vmem:[%s179 + $0x16c] sm:$0xf] %v362
                %v364 = vld [vmem:[%s178 + $0x2e0] sm:$0xf]
                %365 = vst [vmem:[%s179 + $0x170] sm:$0xf] %v364
                %v366 = vld [vmem:[%s178 + $0x2e8] sm:$0xf]
                %367 = vst [vmem:[%s179 + $0x174] sm:$0xf] %v366
                %v368 = vld [vmem:[%s178 + $0x2f0] sm:$0xf]
                %369 = vst [vmem:[%s179 + $0x178] sm:$0xf] %v368
                %v370 = vld [vmem:[%s178 + $0x2f8] sm:$0xf]
                %371 = vst [vmem:[%s179 + $0x17c] sm:$0xf] %v370
                %v372 = vld [vmem:[%s178 + $0x300] sm:$0xf]
                %373 = vst [vmem:[%s179 + $0x180] sm:$0xf] %v372
                %v374 = vld [vmem:[%s178 + $0x308] sm:$0xf]
                %375 = vst [vmem:[%s179 + $0x184] sm:$0xf] %v374
                %v376 = vld [vmem:[%s178 + $0x310] sm:$0xf]
                %377 = vst [vmem:[%s179 + $0x188] sm:$0xf] %v376
                %v378 = vld [vmem:[%s178 + $0x318] sm:$0xf]
                %379 = vst [vmem:[%s179 + $0x18c] sm:$0xf] %v378
                %v380 = vld [vmem:[%s178 + $0x320] sm:$0xf]
                %381 = vst [vmem:[%s179 + $0x190] sm:$0xf] %v380
                %v382 = vld [vmem:[%s178 + $0x328] sm:$0xf]
                %383 = vst [vmem:[%s179 + $0x194] sm:$0xf] %v382
                %v384 = vld [vmem:[%s178 + $0x330] sm:$0xf]
                %385 = vst [vmem:[%s179 + $0x198] sm:$0xf] %v384
                %v386 = vld [vmem:[%s178 + $0x338] sm:$0xf]
                %387 = vst [vmem:[%s179 + $0x19c] sm:$0xf] %v386
                %v388 = vld [vmem:[%s178 + $0x340] sm:$0xf]
                %389 = vst [vmem:[%s179 + $0x1a0] sm:$0xf] %v388
                %v390 = vld [vmem:[%s178 + $0x348] sm:$0xf]
                %391 = vst [vmem:[%s179 + $0x1a4] sm:$0xf] %v390
                %v392 = vld [vmem:[%s178 + $0x350] sm:$0xf]
                %393 = vst [vmem:[%s179 + $0x1a8] sm:$0xf] %v392
                %v394 = vld [vmem:[%s178 + $0x358] sm:$0xf]
                %395 = vst [vmem:[%s179 + $0x1ac] sm:$0xf] %v394
                %v396 = vld [vmem:[%s178 + $0x360] sm:$0xf]
                %397 = vst [vmem:[%s179 + $0x1b0] sm:$0xf] %v396
                %v398 = vld [vmem:[%s178 + $0x368] sm:$0xf]
                %399 = vst [vmem:[%s179 + $0x1b4] sm:$0xf] %v398
                %v400 = vld [vmem:[%s178 + $0x370] sm:$0xf]
                %401 = vst [vmem:[%s179 + $0x1b8] sm:$0xf] %v400
                %v402 = vld [vmem:[%s178 + $0x378] sm:$0xf]
                %403 = vst [vmem:[%s179 + $0x1bc] sm:$0xf] %v402
                %v404 = vld [vmem:[%s178 + $0x380] sm:$0xf]
                %405 = vst [vmem:[%s179 + $0x1c0] sm:$0xf] %v404
                %v406 = vld [vmem:[%s178 + $0x388] sm:$0xf]
                %407 = vst [vmem:[%s179 + $0x1c4] sm:$0xf] %v406
                %v408 = vld [vmem:[%s178 + $0x390] sm:$0xf]
                %409 = vst [vmem:[%s179 + $0x1c8] sm:$0xf] %v408
                %v410 = vld [vmem:[%s178 + $0x398] sm:$0xf]
                %411 = vst [vmem:[%s179 + $0x1cc] sm:$0xf] %v410
                %v412 = vld [vmem:[%s178 + $0x3a0] sm:$0xf]
                %413 = vst [vmem:[%s179 + $0x1d0] sm:$0xf] %v412
                %v414 = vld [vmem:[%s178 + $0x3a8] sm:$0xf]
                %415 = vst [vmem:[%s179 + $0x1d4] sm:$0xf] %v414
                %v416 = vld [vmem:[%s178 + $0x3b0] sm:$0xf]
                %417 = vst [vmem:[%s179 + $0x1d8] sm:$0xf] %v416
                %v418 = vld [vmem:[%s178 + $0x3b8] sm:$0xf]
                %419 = vst [vmem:[%s179 + $0x1dc] sm:$0xf] %v418
                %v420 = vld [vmem:[%s178 + $0x3c0] sm:$0xf]
                %421 = vst [vmem:[%s179 + $0x1e0] sm:$0xf] %v420
                %v422 = vld [vmem:[%s178 + $0x3c8] sm:$0xf]
                %423 = vst [vmem:[%s179 + $0x1e4] sm:$0xf] %v422
                %v424 = vld [vmem:[%s178 + $0x3d0] sm:$0xf]
                %425 = vst [vmem:[%s179 + $0x1e8] sm:$0xf] %v424
                %v426 = vld [vmem:[%s178 + $0x3d8] sm:$0xf]
                %427 = vst [vmem:[%s179 + $0x1ec] sm:$0xf] %v426
                %v428 = vld [vmem:[%s178 + $0x3e0] sm:$0xf]
                %429 = vst [vmem:[%s179 + $0x1f0] sm:$0xf] %v428
                %v430 = vld [vmem:[%s178 + $0x3e8] sm:$0xf]
                %431 = vst [vmem:[%s179 + $0x1f4] sm:$0xf] %v430
                %v432 = vld [vmem:[%s178 + $0x3f0] sm:$0xf]
                %433 = vst [vmem:[%s179 + $0x1f8] sm:$0xf] %v432
                %v434 = vld [vmem:[%s178 + $0x3f8] sm:$0xf]
                %435 = vst [vmem:[%s179 + $0x1fc] sm:$0xf] %v434
                %v436 = vld [vmem:[%s178 + $0x400] sm:$0xf]
                %437 = vst [vmem:[%s179 + $0x200] sm:$0xf] %v436
                %v438 = vld [vmem:[%s178 + $0x408] sm:$0xf]
                %439 = vst [vmem:[%s179 + $0x204] sm:$0xf] %v438
                %v440 = vld [vmem:[%s178 + $0x410] sm:$0xf]
                %441 = vst [vmem:[%s179 + $0x208] sm:$0xf] %v440
                %v442 = vld [vmem:[%s178 + $0x418] sm:$0xf]
                %443 = vst [vmem:[%s179 + $0x20c] sm:$0xf] %v442
                %v444 = vld [vmem:[%s178 + $0x420] sm:$0xf]
                %445 = vst [vmem:[%s179 + $0x210] sm:$0xf] %v444
                %v446 = vld [vmem:[%s178 + $0x428] sm:$0xf]
                %447 = vst [vmem:[%s179 + $0x214] sm:$0xf] %v446
                %v448 = vld [vmem:[%s178 + $0x430] sm:$0xf]
                %449 = vst [vmem:[%s179 + $0x218] sm:$0xf] %v448
                %v450 = vld [vmem:[%s178 + $0x438] sm:$0xf]
                %451 = vst [vmem:[%s179 + $0x21c] sm:$0xf] %v450
                %v452 = vld [vmem:[%s178 + $0x440] sm:$0xf]
                %453 = vst [vmem:[%s179 + $0x220] sm:$0xf] %v452
                %v454 = vld [vmem:[%s178 + $0x448] sm:$0xf]
                %455 = vst [vmem:[%s179 + $0x224] sm:$0xf] %v454
                %v456 = vld [vmem:[%s178 + $0x450] sm:$0xf]
                %457 = vst [vmem:[%s179 + $0x228] sm:$0xf] %v456
                %v458 = vld [vmem:[%s178 + $0x458] sm:$0xf]
                %459 = vst [vmem:[%s179 + $0x22c] sm:$0xf] %v458
                %v460 = vld [vmem:[%s178 + $0x460] sm:$0xf]
                %461 = vst [vmem:[%s179 + $0x230] sm:$0xf] %v460
                %v462 = vld [vmem:[%s178 + $0x468] sm:$0xf]
                %463 = vst [vmem:[%s179 + $0x234] sm:$0xf] %v462
                %v464 = vld [vmem:[%s178 + $0x470] sm:$0xf]
                %465 = vst [vmem:[%s179 + $0x238] sm:$0xf] %v464
                %v466 = vld [vmem:[%s178 + $0x478] sm:$0xf]
                %467 = vst [vmem:[%s179 + $0x23c] sm:$0xf] %v466
                %v468 = vld [vmem:[%s178 + $0x480] sm:$0xf]
                %469 = vst [vmem:[%s179 + $0x240] sm:$0xf] %v468
                %v470 = vld [vmem:[%s178 + $0x488] sm:$0xf]
                %471 = vst [vmem:[%s179 + $0x244] sm:$0xf] %v470
                %v472 = vld [vmem:[%s178 + $0x490] sm:$0xf]
                %473 = vst [vmem:[%s179 + $0x248] sm:$0xf] %v472
                %v474 = vld [vmem:[%s178 + $0x498] sm:$0xf]
                %475 = vst [vmem:[%s179 + $0x24c] sm:$0xf] %v474
                %v476 = vld [vmem:[%s178 + $0x4a0] sm:$0xf]
                %477 = vst [vmem:[%s179 + $0x250] sm:$0xf] %v476
                %v478 = vld [vmem:[%s178 + $0x4a8] sm:$0xf]
                %479 = vst [vmem:[%s179 + $0x254] sm:$0xf] %v478
                %v480 = vld [vmem:[%s178 + $0x4b0] sm:$0xf]
                %481 = vst [vmem:[%s179 + $0x258] sm:$0xf] %v480
                %v482 = vld [vmem:[%s178 + $0x4b8] sm:$0xf]
                %483 = vst [vmem:[%s179 + $0x25c] sm:$0xf] %v482
                %v484 = vld [vmem:[%s178 + $0x4c0] sm:$0xf]
                %485 = vst [vmem:[%s179 + $0x260] sm:$0xf] %v484
                %v486 = vld [vmem:[%s178 + $0x4c8] sm:$0xf]
                %487 = vst [vmem:[%s179 + $0x264] sm:$0xf] %v486
                %v488 = vld [vmem:[%s178 + $0x4d0] sm:$0xf]
                %489 = vst [vmem:[%s179 + $0x268] sm:$0xf] %v488
                %v490 = vld [vmem:[%s178 + $0x4d8] sm:$0xf]
                %491 = vst [vmem:[%s179 + $0x26c] sm:$0xf] %v490
                %v492 = vld [vmem:[%s178 + $0x4e0] sm:$0xf]
                %493 = vst [vmem:[%s179 + $0x270] sm:$0xf] %v492
                %v494 = vld [vmem:[%s178 + $0x4e8] sm:$0xf]
                %495 = vst [vmem:[%s179 + $0x274] sm:$0xf] %v494
                %v496 = vld [vmem:[%s178 + $0x4f0] sm:$0xf]
                %497 = vst [vmem:[%s179 + $0x278] sm:$0xf] %v496
                %v498 = vld [vmem:[%s178 + $0x4f8] sm:$0xf]
                %499 = vst [vmem:[%s179 + $0x27c] sm:$0xf] %v498
                %v500 = vld [vmem:[%s178 + $0x500] sm:$0xf]
                %501 = vst [vmem:[%s179 + $0x280] sm:$0xf] %v500
                %v502 = vld [vmem:[%s178 + $0x508] sm:$0xf]
                %503 = vst [vmem:[%s179 + $0x284] sm:$0xf] %v502
                %v504 = vld [vmem:[%s178 + $0x510] sm:$0xf]
                %505 = vst [vmem:[%s179 + $0x288] sm:$0xf] %v504
                %v506 = vld [vmem:[%s178 + $0x518] sm:$0xf]
                %507 = vst [vmem:[%s179 + $0x28c] sm:$0xf] %v506
                %v508 = vld [vmem:[%s178 + $0x520] sm:$0xf]
                %509 = vst [vmem:[%s179 + $0x290] sm:$0xf] %v508
                %v510 = vld [vmem:[%s178 + $0x528] sm:$0xf]
                %511 = vst [vmem:[%s179 + $0x294] sm:$0xf] %v510
                %v512 = vld [vmem:[%s178 + $0x530] sm:$0xf]
                %513 = vst [vmem:[%s179 + $0x298] sm:$0xf] %v512
                %v514 = vld [vmem:[%s178 + $0x538] sm:$0xf]
                %515 = vst [vmem:[%s179 + $0x29c] sm:$0xf] %v514
                %v516 = vld [vmem:[%s178 + $0x540] sm:$0xf]
                %517 = vst [vmem:[%s179 + $0x2a0] sm:$0xf] %v516
                %v518 = vld [vmem:[%s178 + $0x548] sm:$0xf]
                %519 = vst [vmem:[%s179 + $0x2a4] sm:$0xf] %v518
                %v520 = vld [vmem:[%s178 + $0x550] sm:$0xf]
                %521 = vst [vmem:[%s179 + $0x2a8] sm:$0xf] %v520
                %v522 = vld [vmem:[%s178 + $0x558] sm:$0xf]
                %523 = vst [vmem:[%s179 + $0x2ac] sm:$0xf] %v522
                %v524 = vld [vmem:[%s178 + $0x560] sm:$0xf]
                %525 = vst [vmem:[%s179 + $0x2b0] sm:$0xf] %v524
                %v526 = vld [vmem:[%s178 + $0x568] sm:$0xf]
                %527 = vst [vmem:[%s179 + $0x2b4] sm:$0xf] %v526
                %v528 = vld [vmem:[%s178 + $0x570] sm:$0xf]
                %529 = vst [vmem:[%s179 + $0x2b8] sm:$0xf] %v528
                %v530 = vld [vmem:[%s178 + $0x578] sm:$0xf]
                %531 = vst [vmem:[%s179 + $0x2bc] sm:$0xf] %v530
                %v532 = vld [vmem:[%s178 + $0x580] sm:$0xf]
                %533 = vst [vmem:[%s179 + $0x2c0] sm:$0xf] %v532
                %v534 = vld [vmem:[%s178 + $0x588] sm:$0xf]
                %535 = vst [vmem:[%s179 + $0x2c4] sm:$0xf] %v534
                %v536 = vld [vmem:[%s178 + $0x590] sm:$0xf]
                %537 = vst [vmem:[%s179 + $0x2c8] sm:$0xf] %v536
                %v538 = vld [vmem:[%s178 + $0x598] sm:$0xf]
                %539 = vst [vmem:[%s179 + $0x2cc] sm:$0xf] %v538
                %v540 = vld [vmem:[%s178 + $0x5a0] sm:$0xf]
                %541 = vst [vmem:[%s179 + $0x2d0] sm:$0xf] %v540
                %v542 = vld [vmem:[%s178 + $0x5a8] sm:$0xf]
                %543 = vst [vmem:[%s179 + $0x2d4] sm:$0xf] %v542
                %v544 = vld [vmem:[%s178 + $0x5b0] sm:$0xf]
                %545 = vst [vmem:[%s179 + $0x2d8] sm:$0xf] %v544
                %v546 = vld [vmem:[%s178 + $0x5b8] sm:$0xf]
                %547 = vst [vmem:[%s179 + $0x2dc] sm:$0xf] %v546
                %v548 = vld [vmem:[%s178 + $0x5c0] sm:$0xf]
                %549 = vst [vmem:[%s179 + $0x2e0] sm:$0xf] %v548
                %v550 = vld [vmem:[%s178 + $0x5c8] sm:$0xf]
                %551 = vst [vmem:[%s179 + $0x2e4] sm:$0xf] %v550
                %v552 = vld [vmem:[%s178 + $0x5d0] sm:$0xf]
                %553 = vst [vmem:[%s179 + $0x2e8] sm:$0xf] %v552
                %v554 = vld [vmem:[%s178 + $0x5d8] sm:$0xf]
                %555 = vst [vmem:[%s179 + $0x2ec] sm:$0xf] %v554
                %v556 = vld [vmem:[%s178 + $0x5e0] sm:$0xf]
                %557 = vst [vmem:[%s179 + $0x2f0] sm:$0xf] %v556
                %v558 = vld [vmem:[%s178 + $0x5e8] sm:$0xf]
                %559 = vst [vmem:[%s179 + $0x2f4] sm:$0xf] %v558
                %v560 = vld [vmem:[%s178 + $0x5f0] sm:$0xf]
                %561 = vst [vmem:[%s179 + $0x2f8] sm:$0xf] %v560
                %v562 = vld [vmem:[%s178 + $0x5f8] sm:$0xf]
                %563 = vst [vmem:[%s179 + $0x2fc] sm:$0xf] %v562
                %v564 = vld [vmem:[%s178 + $0x600] sm:$0xf]
                %565 = vst [vmem:[%s179 + $0x300] sm:$0xf] %v564
                %v566 = vld [vmem:[%s178 + $0x608] sm:$0xf]
                %567 = vst [vmem:[%s179 + $0x304] sm:$0xf] %v566
                %v568 = vld [vmem:[%s178 + $0x610] sm:$0xf]
                %569 = vst [vmem:[%s179 + $0x308] sm:$0xf] %v568
                %v570 = vld [vmem:[%s178 + $0x618] sm:$0xf]
                %571 = vst [vmem:[%s179 + $0x30c] sm:$0xf] %v570
                %v572 = vld [vmem:[%s178 + $0x620] sm:$0xf]
                %573 = vst [vmem:[%s179 + $0x310] sm:$0xf] %v572
                %v574 = vld [vmem:[%s178 + $0x628] sm:$0xf]
                %575 = vst [vmem:[%s179 + $0x314] sm:$0xf] %v574
                %v576 = vld [vmem:[%s178 + $0x630] sm:$0xf]
                %577 = vst [vmem:[%s179 + $0x318] sm:$0xf] %v576
                %v578 = vld [vmem:[%s178 + $0x638] sm:$0xf]
                %579 = vst [vmem:[%s179 + $0x31c] sm:$0xf] %v578
                %v580 = vld [vmem:[%s178 + $0x640] sm:$0xf]
                %581 = vst [vmem:[%s179 + $0x320] sm:$0xf] %v580
                %v582 = vld [vmem:[%s178 + $0x648] sm:$0xf]
                %583 = vst [vmem:[%s179 + $0x324] sm:$0xf] %v582
                %v584 = vld [vmem:[%s178 + $0x650] sm:$0xf]
                %585 = vst [vmem:[%s179 + $0x328] sm:$0xf] %v584
                %v586 = vld [vmem:[%s178 + $0x658] sm:$0xf]
                %587 = vst [vmem:[%s179 + $0x32c] sm:$0xf] %v586
                %v588 = vld [vmem:[%s178 + $0x660] sm:$0xf]
                %589 = vst [vmem:[%s179 + $0x330] sm:$0xf] %v588
                %v590 = vld [vmem:[%s178 + $0x668] sm:$0xf]
                %591 = vst [vmem:[%s179 + $0x334] sm:$0xf] %v590
                %v592 = vld [vmem:[%s178 + $0x670] sm:$0xf]
                %593 = vst [vmem:[%s179 + $0x338] sm:$0xf] %v592
                %v594 = vld [vmem:[%s178 + $0x678] sm:$0xf]
                %595 = vst [vmem:[%s179 + $0x33c] sm:$0xf] %v594
                %v596 = vld [vmem:[%s178 + $0x680] sm:$0xf]
                %597 = vst [vmem:[%s179 + $0x340] sm:$0xf] %v596
                %v598 = vld [vmem:[%s178 + $0x688] sm:$0xf]
                %599 = vst [vmem:[%s179 + $0x344] sm:$0xf] %v598
                %v600 = vld [vmem:[%s178 + $0x690] sm:$0xf]
                %601 = vst [vmem:[%s179 + $0x348] sm:$0xf] %v600
                %v602 = vld [vmem:[%s178 + $0x698] sm:$0xf]
                %603 = vst [vmem:[%s179 + $0x34c] sm:$0xf] %v602
                %v604 = vld [vmem:[%s178 + $0x6a0] sm:$0xf]
                %605 = vst [vmem:[%s179 + $0x350] sm:$0xf] %v604
                %v606 = vld [vmem:[%s178 + $0x6a8] sm:$0xf]
                %607 = vst [vmem:[%s179 + $0x354] sm:$0xf] %v606
                %v608 = vld [vmem:[%s178 + $0x6b0] sm:$0xf]
                %609 = vst [vmem:[%s179 + $0x358] sm:$0xf] %v608
                %v610 = vld [vmem:[%s178 + $0x6b8] sm:$0xf]
                %611 = vst [vmem:[%s179 + $0x35c] sm:$0xf] %v610
                %v612 = vld [vmem:[%s178 + $0x6c0] sm:$0xf]
                %613 = vst [vmem:[%s179 + $0x360] sm:$0xf] %v612
                %v614 = vld [vmem:[%s178 + $0x6c8] sm:$0xf]
                %615 = vst [vmem:[%s179 + $0x364] sm:$0xf] %v614
                %v616 = vld [vmem:[%s178 + $0x6d0] sm:$0xf]
                %617 = vst [vmem:[%s179 + $0x368] sm:$0xf] %v616
                %v618 = vld [vmem:[%s178 + $0x6d8] sm:$0xf]
                %619 = vst [vmem:[%s179 + $0x36c] sm:$0xf] %v618
                %v620 = vld [vmem:[%s178 + $0x6e0] sm:$0xf]
                %621 = vst [vmem:[%s179 + $0x370] sm:$0xf] %v620
                %v622 = vld [vmem:[%s178 + $0x6e8] sm:$0xf]
                %623 = vst [vmem:[%s179 + $0x374] sm:$0xf] %v622
                %v624 = vld [vmem:[%s178 + $0x6f0] sm:$0xf]
                %625 = vst [vmem:[%s179 + $0x378] sm:$0xf] %v624
                %v626 = vld [vmem:[%s178 + $0x6f8] sm:$0xf]
                %627 = vst [vmem:[%s179 + $0x37c] sm:$0xf] %v626
                %v628 = vld [vmem:[%s178 + $0x700] sm:$0xf]
                %629 = vst [vmem:[%s179 + $0x380] sm:$0xf] %v628
                %v630 = vld [vmem:[%s178 + $0x708] sm:$0xf]
                %631 = vst [vmem:[%s179 + $0x384] sm:$0xf] %v630
                %v632 = vld [vmem:[%s178 + $0x710] sm:$0xf]
                %633 = vst [vmem:[%s179 + $0x388] sm:$0xf] %v632
                %v634 = vld [vmem:[%s178 + $0x718] sm:$0xf]
                %635 = vst [vmem:[%s179 + $0x38c] sm:$0xf] %v634
                %v636 = vld [vmem:[%s178 + $0x720] sm:$0xf]
                %637 = vst [vmem:[%s179 + $0x390] sm:$0xf] %v636
                %v638 = vld [vmem:[%s178 + $0x728] sm:$0xf]
                %639 = vst [vmem:[%s179 + $0x394] sm:$0xf] %v638
                %v640 = vld [vmem:[%s178 + $0x730] sm:$0xf]
                %641 = vst [vmem:[%s179 + $0x398] sm:$0xf] %v640
                %v642 = vld [vmem:[%s178 + $0x738] sm:$0xf]
                %643 = vst [vmem:[%s179 + $0x39c] sm:$0xf] %v642
                %v644 = vld [vmem:[%s178 + $0x740] sm:$0xf]
                %645 = vst [vmem:[%s179 + $0x3a0] sm:$0xf] %v644
                %v646 = vld [vmem:[%s178 + $0x748] sm:$0xf]
                %647 = vst [vmem:[%s179 + $0x3a4] sm:$0xf] %v646
                %v648 = vld [vmem:[%s178 + $0x750] sm:$0xf]
                %649 = vst [vmem:[%s179 + $0x3a8] sm:$0xf] %v648
                %v650 = vld [vmem:[%s178 + $0x758] sm:$0xf]
                %651 = vst [vmem:[%s179 + $0x3ac] sm:$0xf] %v650
                %v652 = vld [vmem:[%s178 + $0x760] sm:$0xf]
                %653 = vst [vmem:[%s179 + $0x3b0] sm:$0xf] %v652
                %v654 = vld [vmem:[%s178 + $0x768] sm:$0xf]
                %655 = vst [vmem:[%s179 + $0x3b4] sm:$0xf] %v654
                %v656 = vld [vmem:[%s178 + $0x770] sm:$0xf]
                %657 = vst [vmem:[%s179 + $0x3b8] sm:$0xf] %v656
                %v658 = vld [vmem:[%s178 + $0x778] sm:$0xf]
                %659 = vst [vmem:[%s179 + $0x3bc] sm:$0xf] %v658
                %v660 = vld [vmem:[%s178 + $0x780] sm:$0xf]
                %661 = vst [vmem:[%s179 + $0x3c0] sm:$0xf] %v660
                %v662 = vld [vmem:[%s178 + $0x788] sm:$0xf]
                %663 = vst [vmem:[%s179 + $0x3c4] sm:$0xf] %v662
                %v664 = vld [vmem:[%s178 + $0x790] sm:$0xf]
                %665 = vst [vmem:[%s179 + $0x3c8] sm:$0xf] %v664
                %v666 = vld [vmem:[%s178 + $0x798] sm:$0xf]
                %667 = vst [vmem:[%s179 + $0x3cc] sm:$0xf] %v666
                %v668 = vld [vmem:[%s178 + $0x7a0] sm:$0xf]
                %669 = vst [vmem:[%s179 + $0x3d0] sm:$0xf] %v668
                %v670 = vld [vmem:[%s178 + $0x7a8] sm:$0xf]
                %671 = vst [vmem:[%s179 + $0x3d4] sm:$0xf] %v670
                %v672 = vld [vmem:[%s178 + $0x7b0] sm:$0xf]
                %673 = vst [vmem:[%s179 + $0x3d8] sm:$0xf] %v672
                %v674 = vld [vmem:[%s178 + $0x7b8] sm:$0xf]
                %675 = vst [vmem:[%s179 + $0x3dc] sm:$0xf] %v674
                %v676 = vld [vmem:[%s178 + $0x7c0] sm:$0xf]
                %677 = vst [vmem:[%s179 + $0x3e0] sm:$0xf] %v676
                %v678 = vld [vmem:[%s178 + $0x7c8] sm:$0xf]
                %679 = vst [vmem:[%s179 + $0x3e4] sm:$0xf] %v678
                %v680 = vld [vmem:[%s178 + $0x7d0] sm:$0xf]
                %681 = vst [vmem:[%s179 + $0x3e8] sm:$0xf] %v680
                %v682 = vld [vmem:[%s178 + $0x7d8] sm:$0xf]
                %683 = vst [vmem:[%s179 + $0x3ec] sm:$0xf] %v682
                %v684 = vld [vmem:[%s178 + $0x7e0] sm:$0xf]
                %685 = vst [vmem:[%s179 + $0x3f0] sm:$0xf] %v684
                %v686 = vld [vmem:[%s178 + $0x7e8] sm:$0xf]
                %687 = vst [vmem:[%s179 + $0x3f4] sm:$0xf] %v686
                %v688 = vld [vmem:[%s178 + $0x7f0] sm:$0xf]
                %689 = vst [vmem:[%s179 + $0x3f8] sm:$0xf] %v688
                %v690 = vld [vmem:[%s178 + $0x7f8] sm:$0xf]
                %691 = vst [vmem:[%s179 + $0x3fc] sm:$0xf] %v690
              $region41: #{task_specific_discriminator_forward.11} parent=35 // loop_footer
                %s177 = sadd.s32 1, %s173
              $region42: #{task_specific_discriminator_forward.11} parent=35 // loop_footer_branch
                %172 = sbr.rel target = $region38
              $region43: #{task_specific_discriminator_forward.11} parent=35 // loop_exit
                _
            $region36: #{task_specific_discriminator_forward.11} parent=27 // pred_fallthru
              _
          $region28: #{task_specific_discriminator_forward.11} parent=23 // pred_fallthru
            _
          %1223 = vnop
        $region24: #{task_specific_discriminator_forward.11} parent=19 // pred_fallthru
          _
        // Predicated region
        $region62: #{task_specific_discriminator_forward.11} parent=19 // pred_check
          %p1224 = pneg %p93
        $region63: #{task_specific_discriminator_forward.11} parent=19 // pred_check_branch
          %1226 = sbr.rel (%p1224) target = $region65
        $region64: #{task_specific_discriminator_forward.11} parent=19 // pred_region
          %p1227 = scmp.lt.s32.totalorder %s17, 1
          %s1228 = scalar_select %p1227, %s17, 1
          %s1229 = scalar_lea.vmem %s2, %s1228
        $region65: #{task_specific_discriminator_forward.11} parent=19 // pred_fallthru
          _
      $region20: #{task_specific_discriminator_forward.11} parent=5 // pred_fallthru
        _
      %p1230 = scmp.le.s32.totalorder 1, %s9
      %p1231 = scmp.lt.s32.totalorder %s9, 3
      %p1232 = pnand %p1230, %p1231
      %p1233 = pneg %p1232
      // Predicated region
      $region66: #{task_specific_discriminator_forward.11} parent=5 // pred_check
        _
      $region67: #{task_specific_discriminator_forward.11} parent=5 // pred_check_branch
        %1235 = sbr.rel (%p1232) target = $region69
      $region68: #{task_specific_discriminator_forward.11} parent=5 // pred_region
        %s1236 = ssub.s32 %s9, 1
        %s1237 = sand.u32 %s60, 1
        %s1238 = sand.u32 %s60, 1
        %s1239 = smul.addr %s1238, 1024
        %s1240 = scalar_lea.vmem [#allocation2], %s1239
        // Predicated region
        $region70: #{task_specific_discriminator_forward.11} parent=68 // pred_check
          %p1241 = pneg %p73
        $region71: #{task_specific_discriminator_forward.11} parent=68 // pred_check_branch
          %1243 = sbr.rel (%p1241) target = $region73
        $region72: #{task_specific_discriminator_forward.11} parent=68 // pred_region
          _
        $region73: #{task_specific_discriminator_forward.11} parent=68 // pred_fallthru
          _
        %s1244 = smul.u32 2, %s18
        %p1245 = scmp.lt.s32.totalorder %s1244, 1
        %s1246 = scalar_select %p1245, %s1244, 1
        %s1247 = smul.addr %s1246, 16
        %s1248 = smul.addr %s1247, 4
        %s1249 = scalar_lea.vmem %s0, %s1248
        %p1250 = pneg %p47
        %p1251 = pneg %p44
        %s1252 = sand.u32 %s60, 1
        %s1253 = sand.u32 %s60, 1
        %s1254 = smul.addr %s1253, 1024
        %s1255 = scalar_lea.vmem [#allocation2], %s1254
        %p1256 = pneg %p73
        %p1257 = pneg %p70
        %p1258 = scmp.lt.s32.totalorder %s19, 1
        %s1259 = scalar_select %p1258, %s19, 1
        %s1260 = scalar_lea.vmem %s2, %s1259
        %p1261 = pneg %p99
        %p1262 = pneg %p96
        %p1263 = pneg %p127
        %p1264 = pneg %p124
        %s1265 = sand.u32 %s114, 1
        %s1266 = sand.u32 %s114, 1
        %s1267 = smul.addr %s1266, 8
        %s1268 = scalar_lea.vmem [#allocation3], %s1267
        %s1269 = smul.u32 2, %s18
        %p1270 = scmp.lt.s32.totalorder %s1269, 1
        %s1271 = scalar_select %p1270, %s1269, 1
        %s1272 = smul.addr %s1271, 16
        %s1273 = smul.addr %s1272, 4
        %s1274 = scalar_lea.vmem %s0, %s1273
        %s1275 = smul.u32 2, %s18
        %p1276 = scmp.lt.s32.totalorder %s19, 1
        %s1277 = scalar_select %p1276, %s19, 1
        %s1278 = scalar_lea.vmem %s2, %s1277
        %s1279 = smul.u32 2, %s18
        %v1281 = vld [vmem:[%s1274] sm:$0xff]
        %v1282 = vld [vmem:[%s1274 + $0x8] sm:$0xff]
        %v1283 = vld [vmem:[%s1274 + $0x10] sm:$0xff]
        %v1284 = vld [vmem:[%s1274 + $0x18] sm:$0xff]
        %v1285 = vld [vmem:[%s1274 + $0x20] sm:$0xff]
        %v1286 = vld [vmem:[%s1274 + $0x28] sm:$0xff]
        %v1287 = vld [vmem:[%s1274 + $0x30] sm:$0xff]
        %v1288 = vld [vmem:[%s1274 + $0x38] sm:$0xff]
        %v1289 = vld [vmem:[%s1274 + $0x40] sm:$0xff]
        %v1290 = vld [vmem:[%s1274 + $0x48] sm:$0xff]
        %v1291 = vld [vmem:[%s1274 + $0x50] sm:$0xff]
        %v1292 = vld [vmem:[%s1274 + $0x58] sm:$0xff]
        %v1293 = vld [vmem:[%s1274 + $0x60] sm:$0xff]
        %v1294 = vld [vmem:[%s1274 + $0x68] sm:$0xff]
        %v1295 = vld [vmem:[%s1274 + $0x70] sm:$0xff]
        %v1296 = vld [vmem:[%s1274 + $0x78] sm:$0xff]
        %v1297 = vld [vmem:[%s1240] sm:$0xf]
        %v1298 = vld [vmem:[%s1240 + $0x4] sm:$0xf]
        %v1299 = vld [vmem:[%s1240 + $0x8] sm:$0xf]
        %v1300 = vld [vmem:[%s1240 + $0xc] sm:$0xf]
        %v1301 = vld [vmem:[%s1240 + $0x10] sm:$0xf]
        %v1302 = vld [vmem:[%s1240 + $0x14] sm:$0xf]
        %v1303 = vld [vmem:[%s1240 + $0x18] sm:$0xf]
        %v1304 = vld [vmem:[%s1240 + $0x1c] sm:$0xf]
        %v1305 = vld [vmem:[%s1240 + $0x20] sm:$0xf]
        %v1306 = vld [vmem:[%s1240 + $0x24] sm:$0xf]
        %v1307 = vld [vmem:[%s1240 + $0x28] sm:$0xf]
        %v1308 = vld [vmem:[%s1240 + $0x2c] sm:$0xf]
        %v1309 = vld [vmem:[%s1240 + $0x30] sm:$0xf]
        %v1310 = vld [vmem:[%s1240 + $0x34] sm:$0xf]
        %v1311 = vld [vmem:[%s1240 + $0x38] sm:$0xf]
        %v1312 = vld [vmem:[%s1240 + $0x3c] sm:$0xf]
        %v1313 = vld [vmem:[%s1240 + $0x40] sm:$0xf]
        %v1314 = vld [vmem:[%s1240 + $0x44] sm:$0xf]
        %v1315 = vld [vmem:[%s1240 + $0x48] sm:$0xf]
        %v1316 = vld [vmem:[%s1240 + $0x4c] sm:$0xf]
        %v1317 = vld [vmem:[%s1240 + $0x50] sm:$0xf]
        %v1318 = vld [vmem:[%s1240 + $0x54] sm:$0xf]
        %v1319 = vld [vmem:[%s1240 + $0x58] sm:$0xf]
        %v1320 = vld [vmem:[%s1240 + $0x5c] sm:$0xf]
        %v1321 = vld [vmem:[%s1240 + $0x60] sm:$0xf]
        %v1322 = vld [vmem:[%s1240 + $0x64] sm:$0xf]
        %v1323 = vld [vmem:[%s1240 + $0x68] sm:$0xf]
        %v1324 = vld [vmem:[%s1240 + $0x6c] sm:$0xf]
        %v1325 = vld [vmem:[%s1240 + $0x70] sm:$0xf]
        %v1326 = vld [vmem:[%s1240 + $0x74] sm:$0xf]
        %v1327 = vld [vmem:[%s1240 + $0x78] sm:$0xf]
        %v1328 = vld [vmem:[%s1240 + $0x7c] sm:$0xf]
        %v1329 = vld [vmem:[%s1240 + $0x80] sm:$0xf]
        %v1330 = vld [vmem:[%s1240 + $0x84] sm:$0xf]
        %v1331 = vld [vmem:[%s1240 + $0x88] sm:$0xf]
        %v1332 = vld [vmem:[%s1240 + $0x8c] sm:$0xf]
        %v1333 = vld [vmem:[%s1240 + $0x90] sm:$0xf]
        %v1334 = vld [vmem:[%s1240 + $0x94] sm:$0xf]
        %v1335 = vld [vmem:[%s1240 + $0x98] sm:$0xf]
        %v1336 = vld [vmem:[%s1240 + $0x9c] sm:$0xf]
        %v1337 = vld [vmem:[%s1240 + $0xa0] sm:$0xf]
        %v1338 = vld [vmem:[%s1240 + $0xa4] sm:$0xf]
        %v1339 = vld [vmem:[%s1240 + $0xa8] sm:$0xf]
        %v1340 = vld [vmem:[%s1240 + $0xac] sm:$0xf]
        %v1341 = vld [vmem:[%s1240 + $0xb0] sm:$0xf]
        %v1342 = vld [vmem:[%s1240 + $0xb4] sm:$0xf]
        %v1343 = vld [vmem:[%s1240 + $0xb8] sm:$0xf]
        %v1344 = vld [vmem:[%s1240 + $0xbc] sm:$0xf]
        %v1345 = vld [vmem:[%s1240 + $0xc0] sm:$0xf]
        %v1346 = vld [vmem:[%s1240 + $0xc4] sm:$0xf]
        %v1347 = vld [vmem:[%s1240 + $0xc8] sm:$0xf]
        %v1348 = vld [vmem:[%s1240 + $0xcc] sm:$0xf]
        %v1349 = vld [vmem:[%s1240 + $0xd0] sm:$0xf]
        %v1350 = vld [vmem:[%s1240 + $0xd4] sm:$0xf]
        %v1351 = vld [vmem:[%s1240 + $0xd8] sm:$0xf]
        %v1352 = vld [vmem:[%s1240 + $0xdc] sm:$0xf]
        %v1353 = vld [vmem:[%s1240 + $0xe0] sm:$0xf]
        %v1354 = vld [vmem:[%s1240 + $0xe4] sm:$0xf]
        %v1355 = vld [vmem:[%s1240 + $0xe8] sm:$0xf]
        %v1356 = vld [vmem:[%s1240 + $0xec] sm:$0xf]
        %v1357 = vld [vmem:[%s1240 + $0xf0] sm:$0xf]
        %v1358 = vld [vmem:[%s1240 + $0xf4] sm:$0xf]
        %v1359 = vld [vmem:[%s1240 + $0xf8] sm:$0xf]
        %v1360 = vld [vmem:[%s1240 + $0xfc] sm:$0xf]
        %v1361 = vld [vmem:[%s1240 + $0x100] sm:$0xf]
        %v1362 = vld [vmem:[%s1240 + $0x104] sm:$0xf]
        %v1363 = vld [vmem:[%s1240 + $0x108] sm:$0xf]
        %v1364 = vld [vmem:[%s1240 + $0x10c] sm:$0xf]
        %v1365 = vld [vmem:[%s1240 + $0x110] sm:$0xf]
        %v1366 = vld [vmem:[%s1240 + $0x114] sm:$0xf]
        %v1367 = vld [vmem:[%s1240 + $0x118] sm:$0xf]
        %v1368 = vld [vmem:[%s1240 + $0x11c] sm:$0xf]
        %v1369 = vld [vmem:[%s1240 + $0x120] sm:$0xf]
        %v1370 = vld [vmem:[%s1240 + $0x124] sm:$0xf]
        %v1371 = vld [vmem:[%s1240 + $0x128] sm:$0xf]
        %v1372 = vld [vmem:[%s1240 + $0x12c] sm:$0xf]
        %v1373 = vld [vmem:[%s1240 + $0x130] sm:$0xf]
        %v1374 = vld [vmem:[%s1240 + $0x134] sm:$0xf]
        %v1375 = vld [vmem:[%s1240 + $0x138] sm:$0xf]
        %v1376 = vld [vmem:[%s1240 + $0x13c] sm:$0xf]
        %v1377 = vld [vmem:[%s1240 + $0x140] sm:$0xf]
        %v1378 = vld [vmem:[%s1240 + $0x144] sm:$0xf]
        %v1379 = vld [vmem:[%s1240 + $0x148] sm:$0xf]
        %v1380 = vld [vmem:[%s1240 + $0x14c] sm:$0xf]
        %v1381 = vld [vmem:[%s1240 + $0x150] sm:$0xf]
        %v1382 = vld [vmem:[%s1240 + $0x154] sm:$0xf]
        %v1383 = vld [vmem:[%s1240 + $0x158] sm:$0xf]
        %v1384 = vld [vmem:[%s1240 + $0x15c] sm:$0xf]
        %v1385 = vld [vmem:[%s1240 + $0x160] sm:$0xf]
        %v1386 = vld [vmem:[%s1240 + $0x164] sm:$0xf]
        %v1387 = vld [vmem:[%s1240 + $0x168] sm:$0xf]
        %v1388 = vld [vmem:[%s1240 + $0x16c] sm:$0xf]
        %v1389 = vld [vmem:[%s1240 + $0x170] sm:$0xf]
        %v1390 = vld [vmem:[%s1240 + $0x174] sm:$0xf]
        %v1391 = vld [vmem:[%s1240 + $0x178] sm:$0xf]
        %v1392 = vld [vmem:[%s1240 + $0x17c] sm:$0xf]
        %v1393 = vld [vmem:[%s1240 + $0x180] sm:$0xf]
        %v1394 = vld [vmem:[%s1240 + $0x184] sm:$0xf]
        %v1395 = vld [vmem:[%s1240 + $0x188] sm:$0xf]
        %v1396 = vld [vmem:[%s1240 + $0x18c] sm:$0xf]
        %v1397 = vld [vmem:[%s1240 + $0x190] sm:$0xf]
        %v1398 = vld [vmem:[%s1240 + $0x194] sm:$0xf]
        %v1399 = vld [vmem:[%s1240 + $0x198] sm:$0xf]
        %v1400 = vld [vmem:[%s1240 + $0x19c] sm:$0xf]
        %v1401 = vld [vmem:[%s1240 + $0x1a0] sm:$0xf]
        %v1402 = vld [vmem:[%s1240 + $0x1a4] sm:$0xf]
        %v1403 = vld [vmem:[%s1240 + $0x1a8] sm:$0xf]
        %v1404 = vld [vmem:[%s1240 + $0x1ac] sm:$0xf]
        %v1405 = vld [vmem:[%s1240 + $0x1b0] sm:$0xf]
        %v1406 = vld [vmem:[%s1240 + $0x1b4] sm:$0xf]
        %v1407 = vld [vmem:[%s1240 + $0x1b8] sm:$0xf]
        %v1408 = vld [vmem:[%s1240 + $0x1bc] sm:$0xf]
        %v1409 = vld [vmem:[%s1240 + $0x1c0] sm:$0xf]
        %v1410 = vld [vmem:[%s1240 + $0x1c4] sm:$0xf]
        %v1411 = vld [vmem:[%s1240 + $0x1c8] sm:$0xf]
        %v1412 = vld [vmem:[%s1240 + $0x1cc] sm:$0xf]
        %v1413 = vld [vmem:[%s1240 + $0x1d0] sm:$0xf]
        %v1414 = vld [vmem:[%s1240 + $0x1d4] sm:$0xf]
        %v1415 = vld [vmem:[%s1240 + $0x1d8] sm:$0xf]
        %v1416 = vld [vmem:[%s1240 + $0x1dc] sm:$0xf]
        %v1417 = vld [vmem:[%s1240 + $0x1e0] sm:$0xf]
        %v1418 = vld [vmem:[%s1240 + $0x1e4] sm:$0xf]
        %v1419 = vld [vmem:[%s1240 + $0x1e8] sm:$0xf]
        %v1420 = vld [vmem:[%s1240 + $0x1ec] sm:$0xf]
        %v1421 = vld [vmem:[%s1240 + $0x1f0] sm:$0xf]
        %v1422 = vld [vmem:[%s1240 + $0x1f4] sm:$0xf]
        %v1423 = vld [vmem:[%s1240 + $0x1f8] sm:$0xf]
        %v1424 = vld [vmem:[%s1240 + $0x1fc] sm:$0xf]
        %v1425 = vld [vmem:[%s1240 + $0x200] sm:$0xf]
        %v1426 = vld [vmem:[%s1240 + $0x204] sm:$0xf]
        %v1427 = vld [vmem:[%s1240 + $0x208] sm:$0xf]
        %v1428 = vld [vmem:[%s1240 + $0x20c] sm:$0xf]
        %v1429 = vld [vmem:[%s1240 + $0x210] sm:$0xf]
        %v1430 = vld [vmem:[%s1240 + $0x214] sm:$0xf]
        %v1431 = vld [vmem:[%s1240 + $0x218] sm:$0xf]
        %v1432 = vld [vmem:[%s1240 + $0x21c] sm:$0xf]
        %v1433 = vld [vmem:[%s1240 + $0x220] sm:$0xf]
        %v1434 = vld [vmem:[%s1240 + $0x224] sm:$0xf]
        %v1435 = vld [vmem:[%s1240 + $0x228] sm:$0xf]
        %v1436 = vld [vmem:[%s1240 + $0x22c] sm:$0xf]
        %v1437 = vld [vmem:[%s1240 + $0x230] sm:$0xf]
        %v1438 = vld [vmem:[%s1240 + $0x234] sm:$0xf]
        %v1439 = vld [vmem:[%s1240 + $0x238] sm:$0xf]
        %v1440 = vld [vmem:[%s1240 + $0x23c] sm:$0xf]
        %v1441 = vld [vmem:[%s1240 + $0x240] sm:$0xf]
        %v1442 = vld [vmem:[%s1240 + $0x244] sm:$0xf]
        %v1443 = vld [vmem:[%s1240 + $0x248] sm:$0xf]
        %v1444 = vld [vmem:[%s1240 + $0x24c] sm:$0xf]
        %v1445 = vld [vmem:[%s1240 + $0x250] sm:$0xf]
        %v1446 = vld [vmem:[%s1240 + $0x254] sm:$0xf]
        %v1447 = vld [vmem:[%s1240 + $0x258] sm:$0xf]
        %v1448 = vld [vmem:[%s1240 + $0x25c] sm:$0xf]
        %v1449 = vld [vmem:[%s1240 + $0x260] sm:$0xf]
        %v1450 = vld [vmem:[%s1240 + $0x264] sm:$0xf]
        %v1451 = vld [vmem:[%s1240 + $0x268] sm:$0xf]
        %v1452 = vld [vmem:[%s1240 + $0x26c] sm:$0xf]
        %v1453 = vld [vmem:[%s1240 + $0x270] sm:$0xf]
        %v1454 = vld [vmem:[%s1240 + $0x274] sm:$0xf]
        %v1455 = vld [vmem:[%s1240 + $0x278] sm:$0xf]
        %v1456 = vld [vmem:[%s1240 + $0x27c] sm:$0xf]
        %v1457 = vld [vmem:[%s1240 + $0x280] sm:$0xf]
        %v1458 = vld [vmem:[%s1240 + $0x284] sm:$0xf]
        %v1459 = vld [vmem:[%s1240 + $0x288] sm:$0xf]
        %v1460 = vld [vmem:[%s1240 + $0x28c] sm:$0xf]
        %v1461 = vld [vmem:[%s1240 + $0x290] sm:$0xf]
        %v1462 = vld [vmem:[%s1240 + $0x294] sm:$0xf]
        %v1463 = vld [vmem:[%s1240 + $0x298] sm:$0xf]
        %v1464 = vld [vmem:[%s1240 + $0x29c] sm:$0xf]
        %v1465 = vld [vmem:[%s1240 + $0x2a0] sm:$0xf]
        %v1466 = vld [vmem:[%s1240 + $0x2a4] sm:$0xf]
        %v1467 = vld [vmem:[%s1240 + $0x2a8] sm:$0xf]
        %v1468 = vld [vmem:[%s1240 + $0x2ac] sm:$0xf]
        %v1469 = vld [vmem:[%s1240 + $0x2b0] sm:$0xf]
        %v1470 = vld [vmem:[%s1240 + $0x2b4] sm:$0xf]
        %v1471 = vld [vmem:[%s1240 + $0x2b8] sm:$0xf]
        %v1472 = vld [vmem:[%s1240 + $0x2bc] sm:$0xf]
        %v1473 = vld [vmem:[%s1240 + $0x2c0] sm:$0xf]
        %v1474 = vld [vmem:[%s1240 + $0x2c4] sm:$0xf]
        %v1475 = vld [vmem:[%s1240 + $0x2c8] sm:$0xf]
        %v1476 = vld [vmem:[%s1240 + $0x2cc] sm:$0xf]
        %v1477 = vld [vmem:[%s1240 + $0x2d0] sm:$0xf]
        %v1478 = vld [vmem:[%s1240 + $0x2d4] sm:$0xf]
        %v1479 = vld [vmem:[%s1240 + $0x2d8] sm:$0xf]
        %v1480 = vld [vmem:[%s1240 + $0x2dc] sm:$0xf]
        %v1481 = vld [vmem:[%s1240 + $0x2e0] sm:$0xf]
        %v1482 = vld [vmem:[%s1240 + $0x2e4] sm:$0xf]
        %v1483 = vld [vmem:[%s1240 + $0x2e8] sm:$0xf]
        %v1484 = vld [vmem:[%s1240 + $0x2ec] sm:$0xf]
        %v1485 = vld [vmem:[%s1240 + $0x2f0] sm:$0xf]
        %v1486 = vld [vmem:[%s1240 + $0x2f4] sm:$0xf]
        %v1487 = vld [vmem:[%s1240 + $0x2f8] sm:$0xf]
        %v1488 = vld [vmem:[%s1240 + $0x2fc] sm:$0xf]
        %v1489 = vld [vmem:[%s1240 + $0x300] sm:$0xf]
        %v1490 = vld [vmem:[%s1240 + $0x304] sm:$0xf]
        %v1491 = vld [vmem:[%s1240 + $0x308] sm:$0xf]
        %v1492 = vld [vmem:[%s1240 + $0x30c] sm:$0xf]
        %v1493 = vld [vmem:[%s1240 + $0x310] sm:$0xf]
        %v1494 = vld [vmem:[%s1240 + $0x314] sm:$0xf]
        %v1495 = vld [vmem:[%s1240 + $0x318] sm:$0xf]
        %v1496 = vld [vmem:[%s1240 + $0x31c] sm:$0xf]
        %v1497 = vld [vmem:[%s1240 + $0x320] sm:$0xf]
        %v1498 = vld [vmem:[%s1240 + $0x324] sm:$0xf]
        %v1499 = vld [vmem:[%s1240 + $0x328] sm:$0xf]
        %v1500 = vld [vmem:[%s1240 + $0x32c] sm:$0xf]
        %v1501 = vld [vmem:[%s1240 + $0x330] sm:$0xf]
        %v1502 = vld [vmem:[%s1240 + $0x334] sm:$0xf]
        %v1503 = vld [vmem:[%s1240 + $0x338] sm:$0xf]
        %v1504 = vld [vmem:[%s1240 + $0x33c] sm:$0xf]
        %v1505 = vld [vmem:[%s1240 + $0x340] sm:$0xf]
        %v1506 = vld [vmem:[%s1240 + $0x344] sm:$0xf]
        %v1507 = vld [vmem:[%s1240 + $0x348] sm:$0xf]
        %v1508 = vld [vmem:[%s1240 + $0x34c] sm:$0xf]
        %v1509 = vld [vmem:[%s1240 + $0x350] sm:$0xf]
        %v1510 = vld [vmem:[%s1240 + $0x354] sm:$0xf]
        %v1511 = vld [vmem:[%s1240 + $0x358] sm:$0xf]
        %v1512 = vld [vmem:[%s1240 + $0x35c] sm:$0xf]
        %v1513 = vld [vmem:[%s1240 + $0x360] sm:$0xf]
        %v1514 = vld [vmem:[%s1240 + $0x364] sm:$0xf]
        %v1515 = vld [vmem:[%s1240 + $0x368] sm:$0xf]
        %v1516 = vld [vmem:[%s1240 + $0x36c] sm:$0xf]
        %v1517 = vld [vmem:[%s1240 + $0x370] sm:$0xf]
        %v1518 = vld [vmem:[%s1240 + $0x374] sm:$0xf]
        %v1519 = vld [vmem:[%s1240 + $0x378] sm:$0xf]
        %v1520 = vld [vmem:[%s1240 + $0x37c] sm:$0xf]
        %v1521 = vld [vmem:[%s1240 + $0x380] sm:$0xf]
        %v1522 = vld [vmem:[%s1240 + $0x384] sm:$0xf]
        %v1523 = vld [vmem:[%s1240 + $0x388] sm:$0xf]
        %v1524 = vld [vmem:[%s1240 + $0x38c] sm:$0xf]
        %v1525 = vld [vmem:[%s1240 + $0x390] sm:$0xf]
        %v1526 = vld [vmem:[%s1240 + $0x394] sm:$0xf]
        %v1527 = vld [vmem:[%s1240 + $0x398] sm:$0xf]
        %v1528 = vld [vmem:[%s1240 + $0x39c] sm:$0xf]
        %v1529 = vld [vmem:[%s1240 + $0x3a0] sm:$0xf]
        %v1530 = vld [vmem:[%s1240 + $0x3a4] sm:$0xf]
        %v1531 = vld [vmem:[%s1240 + $0x3a8] sm:$0xf]
        %v1532 = vld [vmem:[%s1240 + $0x3ac] sm:$0xf]
        %v1533 = vld [vmem:[%s1240 + $0x3b0] sm:$0xf]
        %v1534 = vld [vmem:[%s1240 + $0x3b4] sm:$0xf]
        %v1535 = vld [vmem:[%s1240 + $0x3b8] sm:$0xf]
        %v1536 = vld [vmem:[%s1240 + $0x3bc] sm:$0xf]
        %v1537 = vld [vmem:[%s1240 + $0x3c0] sm:$0xf]
        %v1538 = vld [vmem:[%s1240 + $0x3c4] sm:$0xf]
        %v1539 = vld [vmem:[%s1240 + $0x3c8] sm:$0xf]
        %v1540 = vld [vmem:[%s1240 + $0x3cc] sm:$0xf]
        %v1541 = vld [vmem:[%s1240 + $0x3d0] sm:$0xf]
        %v1542 = vld [vmem:[%s1240 + $0x3d4] sm:$0xf]
        %v1543 = vld [vmem:[%s1240 + $0x3d8] sm:$0xf]
        %v1544 = vld [vmem:[%s1240 + $0x3dc] sm:$0xf]
        %v1545 = vld [vmem:[%s1240 + $0x3e0] sm:$0xf]
        %v1546 = vld [vmem:[%s1240 + $0x3e4] sm:$0xf]
        %v1547 = vld [vmem:[%s1240 + $0x3e8] sm:$0xf]
        %v1548 = vld [vmem:[%s1240 + $0x3ec] sm:$0xf]
        %v1549 = vld [vmem:[%s1240 + $0x3f0] sm:$0xf]
        %v1550 = vld [vmem:[%s1240 + $0x3f4] sm:$0xf]
        %v1551 = vld [vmem:[%s1240 + $0x3f8] sm:$0xf]
        %v1552 = vld [vmem:[%s1240 + $0x3fc] sm:$0xf]
        %v1553 = vld [vmem:[%s1278] sm:$0x1]
        %v1555 = vlaneseq
        %v1556 = vshrl.u32 %v1555, 7
        %v1557 = vsub.s32 0, %v1556
        %v1558 = vrot.slane %v1553, %v1557
        %v1576 = vunpack.c.l.b16 %v1281
        %v1577 = vunpack.c.h.b16 %v1281
        %v1578 = vunpack.c.l.b16 %v1282
        %v1579 = vunpack.c.h.b16 %v1282
        %v1580 = vunpack.c.l.b16 %v1283
        %v1581 = vunpack.c.h.b16 %v1283
        %v1582 = vunpack.c.l.b16 %v1284
        %v1583 = vunpack.c.h.b16 %v1284
        %v1584 = vunpack.c.l.b16 %v1285
        %v1585 = vunpack.c.h.b16 %v1285
        %v1586 = vunpack.c.l.b16 %v1286
        %v1587 = vunpack.c.h.b16 %v1286
        %v1588 = vunpack.c.l.b16 %v1287
        %v1589 = vunpack.c.h.b16 %v1287
        %v1590 = vunpack.c.l.b16 %v1288
        %v1591 = vunpack.c.h.b16 %v1288
        %v1592 = vunpack.c.l.b16 %v1289
        %v1593 = vunpack.c.h.b16 %v1289
        %v1594 = vunpack.c.l.b16 %v1290
        %v1595 = vunpack.c.h.b16 %v1290
        %v1596 = vunpack.c.l.b16 %v1291
        %v1597 = vunpack.c.h.b16 %v1291
        %v1598 = vunpack.c.l.b16 %v1292
        %v1599 = vunpack.c.h.b16 %v1292
        %v1600 = vunpack.c.l.b16 %v1293
        %v1601 = vunpack.c.h.b16 %v1293
        %v1602 = vunpack.c.l.b16 %v1294
        %v1603 = vunpack.c.h.b16 %v1294
        %v1604 = vunpack.c.l.b16 %v1295
        %v1605 = vunpack.c.h.b16 %v1295
        %v1606 = vunpack.c.l.b16 %v1296
        %v1607 = vunpack.c.h.b16 %v1296
        %v1608 = vpack.c.b16 %v1592, %v1576
        %v1609 = vpack.c.b16 %v1593, %v1577
        %v1610 = vpack.c.b16 %v1594, %v1578
        %v1611 = vpack.c.b16 %v1595, %v1579
        %v1612 = vpack.c.b16 %v1596, %v1580
        %v1613 = vpack.c.b16 %v1597, %v1581
        %v1614 = vpack.c.b16 %v1598, %v1582
        %v1615 = vpack.c.b16 %v1599, %v1583
        %v1616 = vpack.c.b16 %v1600, %v1584
        %v1617 = vpack.c.b16 %v1601, %v1585
        %v1618 = vpack.c.b16 %v1602, %v1586
        %v1619 = vpack.c.b16 %v1603, %v1587
        %v1620 = vpack.c.b16 %v1604, %v1588
        %v1621 = vpack.c.b16 %v1605, %v1589
        %v1622 = vpack.c.b16 %v1606, %v1590
        %v1623 = vpack.c.b16 %v1607, %v1591
        %v1896 = vunpack.c.l.b16 %v1297
        %v1897 = vunpack.c.l.b16 %v1298
        %v1898 = vunpack.c.l.b16 %v1299
        %v1899 = vunpack.c.l.b16 %v1300
        %v1900 = vunpack.c.l.b16 %v1301
        %v1901 = vunpack.c.l.b16 %v1302
        %v1902 = vunpack.c.l.b16 %v1303
        %v1903 = vunpack.c.l.b16 %v1304
        %v1904 = vunpack.c.l.b16 %v1305
        %v1905 = vunpack.c.l.b16 %v1306
        %v1906 = vunpack.c.l.b16 %v1307
        %v1907 = vunpack.c.l.b16 %v1308
        %v1908 = vunpack.c.l.b16 %v1309
        %v1909 = vunpack.c.l.b16 %v1310
        %v1910 = vunpack.c.l.b16 %v1311
        %v1911 = vunpack.c.l.b16 %v1312
        %v1912 = vunpack.c.l.b16 %v1313
        %v1913 = vunpack.c.l.b16 %v1314
        %v1914 = vunpack.c.l.b16 %v1315
        %v1915 = vunpack.c.l.b16 %v1316
        %v1916 = vunpack.c.l.b16 %v1317
        %v1917 = vunpack.c.l.b16 %v1318
        %v1918 = vunpack.c.l.b16 %v1319
        %v1919 = vunpack.c.l.b16 %v1320
        %v1920 = vunpack.c.l.b16 %v1321
        %v1921 = vunpack.c.l.b16 %v1322
        %v1922 = vunpack.c.l.b16 %v1323
        %v1923 = vunpack.c.l.b16 %v1324
        %v1924 = vunpack.c.l.b16 %v1325
        %v1925 = vunpack.c.l.b16 %v1326
        %v1926 = vunpack.c.l.b16 %v1327
        %v1927 = vunpack.c.l.b16 %v1328
        %v1928 = vunpack.c.l.b16 %v1329
        %v1929 = vunpack.c.l.b16 %v1330
        %v1930 = vunpack.c.l.b16 %v1331
        %v1931 = vunpack.c.l.b16 %v1332
        %v1932 = vunpack.c.l.b16 %v1333
        %v1933 = vunpack.c.l.b16 %v1334
        %v1934 = vunpack.c.l.b16 %v1335
        %v1935 = vunpack.c.l.b16 %v1336
        %v1936 = vunpack.c.l.b16 %v1337
        %v1937 = vunpack.c.l.b16 %v1338
        %v1938 = vunpack.c.l.b16 %v1339
        %v1939 = vunpack.c.l.b16 %v1340
        %v1940 = vunpack.c.l.b16 %v1341
        %v1941 = vunpack.c.l.b16 %v1342
        %v1942 = vunpack.c.l.b16 %v1343
        %v1943 = vunpack.c.l.b16 %v1344
        %v1944 = vunpack.c.l.b16 %v1345
        %v1945 = vunpack.c.l.b16 %v1346
        %v1946 = vunpack.c.l.b16 %v1347
        %v1947 = vunpack.c.l.b16 %v1348
        %v1948 = vunpack.c.l.b16 %v1349
        %v1949 = vunpack.c.l.b16 %v1350
        %v1950 = vunpack.c.l.b16 %v1351
        %v1951 = vunpack.c.l.b16 %v1352
        %v1952 = vunpack.c.l.b16 %v1353
        %v1953 = vunpack.c.l.b16 %v1354
        %v1954 = vunpack.c.l.b16 %v1355
        %v1955 = vunpack.c.l.b16 %v1356
        %v1956 = vunpack.c.l.b16 %v1357
        %v1957 = vunpack.c.l.b16 %v1358
        %v1958 = vunpack.c.l.b16 %v1359
        %v1959 = vunpack.c.l.b16 %v1360
        %v1960 = vunpack.c.l.b16 %v1361
        %v1961 = vunpack.c.l.b16 %v1362
        %v1962 = vunpack.c.l.b16 %v1363
        %v1963 = vunpack.c.l.b16 %v1364
        %v1964 = vunpack.c.l.b16 %v1365
        %v1965 = vunpack.c.l.b16 %v1366
        %v1966 = vunpack.c.l.b16 %v1367
        %v1967 = vunpack.c.l.b16 %v1368
        %v1968 = vunpack.c.l.b16 %v1369
        %v1969 = vunpack.c.l.b16 %v1370
        %v1970 = vunpack.c.l.b16 %v1371
        %v1971 = vunpack.c.l.b16 %v1372
        %v1972 = vunpack.c.l.b16 %v1373
        %v1973 = vunpack.c.l.b16 %v1374
        %v1974 = vunpack.c.l.b16 %v1375
        %v1975 = vunpack.c.l.b16 %v1376
        %v1976 = vunpack.c.l.b16 %v1377
        %v1977 = vunpack.c.l.b16 %v1378
        %v1978 = vunpack.c.l.b16 %v1379
        %v1979 = vunpack.c.l.b16 %v1380
        %v1980 = vunpack.c.l.b16 %v1381
        %v1981 = vunpack.c.l.b16 %v1382
        %v1982 = vunpack.c.l.b16 %v1383
        %v1983 = vunpack.c.l.b16 %v1384
        %v1984 = vunpack.c.l.b16 %v1385
        %v1985 = vunpack.c.l.b16 %v1386
        %v1986 = vunpack.c.l.b16 %v1387
        %v1987 = vunpack.c.l.b16 %v1388
        %v1988 = vunpack.c.l.b16 %v1389
        %v1989 = vunpack.c.l.b16 %v1390
        %v1990 = vunpack.c.l.b16 %v1391
        %v1991 = vunpack.c.l.b16 %v1392
        %v1992 = vunpack.c.l.b16 %v1393
        %v1993 = vunpack.c.l.b16 %v1394
        %v1994 = vunpack.c.l.b16 %v1395
        %v1995 = vunpack.c.l.b16 %v1396
        %v1996 = vunpack.c.l.b16 %v1397
        %v1997 = vunpack.c.l.b16 %v1398
        %v1998 = vunpack.c.l.b16 %v1399
        %v1999 = vunpack.c.l.b16 %v1400
        %v2000 = vunpack.c.l.b16 %v1401
        %v2001 = vunpack.c.l.b16 %v1402
        %v2002 = vunpack.c.l.b16 %v1403
        %v2003 = vunpack.c.l.b16 %v1404
        %v2004 = vunpack.c.l.b16 %v1405
        %v2005 = vunpack.c.l.b16 %v1406
        %v2006 = vunpack.c.l.b16 %v1407
        %v2007 = vunpack.c.l.b16 %v1408
        %v2008 = vunpack.c.l.b16 %v1409
        %v2009 = vunpack.c.l.b16 %v1410
        %v2010 = vunpack.c.l.b16 %v1411
        %v2011 = vunpack.c.l.b16 %v1412
        %v2012 = vunpack.c.l.b16 %v1413
        %v2013 = vunpack.c.l.b16 %v1414
        %v2014 = vunpack.c.l.b16 %v1415
        %v2015 = vunpack.c.l.b16 %v1416
        %v2016 = vunpack.c.l.b16 %v1417
        %v2017 = vunpack.c.l.b16 %v1418
        %v2018 = vunpack.c.l.b16 %v1419
        %v2019 = vunpack.c.l.b16 %v1420
        %v2020 = vunpack.c.l.b16 %v1421
        %v2021 = vunpack.c.l.b16 %v1422
        %v2022 = vunpack.c.l.b16 %v1423
        %v2023 = vunpack.c.l.b16 %v1424
        %v2024 = vunpack.c.l.b16 %v1425
        %v2025 = vunpack.c.l.b16 %v1426
        %v2026 = vunpack.c.l.b16 %v1427
        %v2027 = vunpack.c.l.b16 %v1428
        %v2028 = vunpack.c.l.b16 %v1429
        %v2029 = vunpack.c.l.b16 %v1430
        %v2030 = vunpack.c.l.b16 %v1431
        %v2031 = vunpack.c.l.b16 %v1432
        %v2032 = vunpack.c.l.b16 %v1433
        %v2033 = vunpack.c.l.b16 %v1434
        %v2034 = vunpack.c.l.b16 %v1435
        %v2035 = vunpack.c.l.b16 %v1436
        %v2036 = vunpack.c.l.b16 %v1437
        %v2037 = vunpack.c.l.b16 %v1438
        %v2038 = vunpack.c.l.b16 %v1439
        %v2039 = vunpack.c.l.b16 %v1440
        %v2040 = vunpack.c.l.b16 %v1441
        %v2041 = vunpack.c.l.b16 %v1442
        %v2042 = vunpack.c.l.b16 %v1443
        %v2043 = vunpack.c.l.b16 %v1444
        %v2044 = vunpack.c.l.b16 %v1445
        %v2045 = vunpack.c.l.b16 %v1446
        %v2046 = vunpack.c.l.b16 %v1447
        %v2047 = vunpack.c.l.b16 %v1448
        %v2048 = vunpack.c.l.b16 %v1449
        %v2049 = vunpack.c.l.b16 %v1450
        %v2050 = vunpack.c.l.b16 %v1451
        %v2051 = vunpack.c.l.b16 %v1452
        %v2052 = vunpack.c.l.b16 %v1453
        %v2053 = vunpack.c.l.b16 %v1454
        %v2054 = vunpack.c.l.b16 %v1455
        %v2055 = vunpack.c.l.b16 %v1456
        %v2056 = vunpack.c.l.b16 %v1457
        %v2057 = vunpack.c.l.b16 %v1458
        %v2058 = vunpack.c.l.b16 %v1459
        %v2059 = vunpack.c.l.b16 %v1460
        %v2060 = vunpack.c.l.b16 %v1461
        %v2061 = vunpack.c.l.b16 %v1462
        %v2062 = vunpack.c.l.b16 %v1463
        %v2063 = vunpack.c.l.b16 %v1464
        %v2064 = vunpack.c.l.b16 %v1465
        %v2065 = vunpack.c.l.b16 %v1466
        %v2066 = vunpack.c.l.b16 %v1467
        %v2067 = vunpack.c.l.b16 %v1468
        %v2068 = vunpack.c.l.b16 %v1469
        %v2069 = vunpack.c.l.b16 %v1470
        %v2070 = vunpack.c.l.b16 %v1471
        %v2071 = vunpack.c.l.b16 %v1472
        %v2072 = vunpack.c.l.b16 %v1473
        %v2073 = vunpack.c.l.b16 %v1474
        %v2074 = vunpack.c.l.b16 %v1475
        %v2075 = vunpack.c.l.b16 %v1476
        %v2076 = vunpack.c.l.b16 %v1477
        %v2077 = vunpack.c.l.b16 %v1478
        %v2078 = vunpack.c.l.b16 %v1479
        %v2079 = vunpack.c.l.b16 %v1480
        %v2080 = vunpack.c.l.b16 %v1481
        %v2081 = vunpack.c.l.b16 %v1482
        %v2082 = vunpack.c.l.b16 %v1483
        %v2083 = vunpack.c.l.b16 %v1484
        %v2084 = vunpack.c.l.b16 %v1485
        %v2085 = vunpack.c.l.b16 %v1486
        %v2086 = vunpack.c.l.b16 %v1487
        %v2087 = vunpack.c.l.b16 %v1488
        %v2088 = vunpack.c.l.b16 %v1489
        %v2089 = vunpack.c.l.b16 %v1490
        %v2090 = vunpack.c.l.b16 %v1491
        %v2091 = vunpack.c.l.b16 %v1492
        %v2092 = vunpack.c.l.b16 %v1493
        %v2093 = vunpack.c.l.b16 %v1494
        %v2094 = vunpack.c.l.b16 %v1495
        %v2095 = vunpack.c.l.b16 %v1496
        %v2096 = vunpack.c.l.b16 %v1497
        %v2097 = vunpack.c.l.b16 %v1498
        %v2098 = vunpack.c.l.b16 %v1499
        %v2099 = vunpack.c.l.b16 %v1500
        %v2100 = vunpack.c.l.b16 %v1501
        %v2101 = vunpack.c.l.b16 %v1502
        %v2102 = vunpack.c.l.b16 %v1503
        %v2103 = vunpack.c.l.b16 %v1504
        %v2104 = vunpack.c.l.b16 %v1505
        %v2105 = vunpack.c.l.b16 %v1506
        %v2106 = vunpack.c.l.b16 %v1507
        %v2107 = vunpack.c.l.b16 %v1508
        %v2108 = vunpack.c.l.b16 %v1509
        %v2109 = vunpack.c.l.b16 %v1510
        %v2110 = vunpack.c.l.b16 %v1511
        %v2111 = vunpack.c.l.b16 %v1512
        %v2112 = vunpack.c.l.b16 %v1513
        %v2113 = vunpack.c.l.b16 %v1514
        %v2114 = vunpack.c.l.b16 %v1515
        %v2115 = vunpack.c.l.b16 %v1516
        %v2116 = vunpack.c.l.b16 %v1517
        %v2117 = vunpack.c.l.b16 %v1518
        %v2118 = vunpack.c.l.b16 %v1519
        %v2119 = vunpack.c.l.b16 %v1520
        %v2120 = vunpack.c.l.b16 %v1521
        %v2121 = vunpack.c.l.b16 %v1522
        %v2122 = vunpack.c.l.b16 %v1523
        %v2123 = vunpack.c.l.b16 %v1524
        %v2124 = vunpack.c.l.b16 %v1525
        %v2125 = vunpack.c.l.b16 %v1526
        %v2126 = vunpack.c.l.b16 %v1527
        %v2127 = vunpack.c.l.b16 %v1528
        %v2128 = vunpack.c.l.b16 %v1529
        %v2129 = vunpack.c.l.b16 %v1530
        %v2130 = vunpack.c.l.b16 %v1531
        %v2131 = vunpack.c.l.b16 %v1532
        %v2132 = vunpack.c.l.b16 %v1533
        %v2133 = vunpack.c.l.b16 %v1534
        %v2134 = vunpack.c.l.b16 %v1535
        %v2135 = vunpack.c.l.b16 %v1536
        %v2136 = vunpack.c.l.b16 %v1537
        %v2137 = vunpack.c.l.b16 %v1538
        %v2138 = vunpack.c.l.b16 %v1539
        %v2139 = vunpack.c.l.b16 %v1540
        %v2140 = vunpack.c.l.b16 %v1541
        %v2141 = vunpack.c.l.b16 %v1542
        %v2142 = vunpack.c.l.b16 %v1543
        %v2143 = vunpack.c.l.b16 %v1544
        %v2144 = vunpack.c.l.b16 %v1545
        %v2145 = vunpack.c.l.b16 %v1546
        %v2146 = vunpack.c.l.b16 %v1547
        %v2147 = vunpack.c.l.b16 %v1548
        %v2148 = vunpack.c.l.b16 %v1549
        %v2149 = vunpack.c.l.b16 %v1550
        %v2150 = vunpack.c.l.b16 %v1551
        %v2151 = vunpack.c.l.b16 %v1552
        %v2152 = vpack.c.b16 %v1897, %v1896
        %v2153 = vpack.c.b16 %v1899, %v1898
        %v2154 = vpack.c.b16 %v1901, %v1900
        %v2155 = vpack.c.b16 %v1903, %v1902
        %v2156 = vpack.c.b16 %v1905, %v1904
        %v2157 = vpack.c.b16 %v1907, %v1906
        %v2158 = vpack.c.b16 %v1909, %v1908
        %v2159 = vpack.c.b16 %v1911, %v1910
        %v2160 = vpack.c.b16 %v1913, %v1912
        %v2161 = vpack.c.b16 %v1915, %v1914
        %v2162 = vpack.c.b16 %v1917, %v1916
        %v2163 = vpack.c.b16 %v1919, %v1918
        %v2164 = vpack.c.b16 %v1921, %v1920
        %v2165 = vpack.c.b16 %v1923, %v1922
        %v2166 = vpack.c.b16 %v1925, %v1924
        %v2167 = vpack.c.b16 %v1927, %v1926
        %v2168 = vpack.c.b16 %v1929, %v1928
        %v2169 = vpack.c.b16 %v1931, %v1930
        %v2170 = vpack.c.b16 %v1933, %v1932
        %v2171 = vpack.c.b16 %v1935, %v1934
        %v2172 = vpack.c.b16 %v1937, %v1936
        %v2173 = vpack.c.b16 %v1939, %v1938
        %v2174 = vpack.c.b16 %v1941, %v1940
        %v2175 = vpack.c.b16 %v1943, %v1942
        %v2176 = vpack.c.b16 %v1945, %v1944
        %v2177 = vpack.c.b16 %v1947, %v1946
        %v2178 = vpack.c.b16 %v1949, %v1948
        %v2179 = vpack.c.b16 %v1951, %v1950
        %v2180 = vpack.c.b16 %v1953, %v1952
        %v2181 = vpack.c.b16 %v1955, %v1954
        %v2182 = vpack.c.b16 %v1957, %v1956
        %v2183 = vpack.c.b16 %v1959, %v1958
        %v2184 = vpack.c.b16 %v1961, %v1960
        %v2185 = vpack.c.b16 %v1963, %v1962
        %v2186 = vpack.c.b16 %v1965, %v1964
        %v2187 = vpack.c.b16 %v1967, %v1966
        %v2188 = vpack.c.b16 %v1969, %v1968
        %v2189 = vpack.c.b16 %v1971, %v1970
        %v2190 = vpack.c.b16 %v1973, %v1972
        %v2191 = vpack.c.b16 %v1975, %v1974
        %v2192 = vpack.c.b16 %v1977, %v1976
        %v2193 = vpack.c.b16 %v1979, %v1978
        %v2194 = vpack.c.b16 %v1981, %v1980
        %v2195 = vpack.c.b16 %v1983, %v1982
        %v2196 = vpack.c.b16 %v1985, %v1984
        %v2197 = vpack.c.b16 %v1987, %v1986
        %v2198 = vpack.c.b16 %v1989, %v1988
        %v2199 = vpack.c.b16 %v1991, %v1990
        %v2200 = vpack.c.b16 %v1993, %v1992
        %v2201 = vpack.c.b16 %v1995, %v1994
        %v2202 = vpack.c.b16 %v1997, %v1996
        %v2203 = vpack.c.b16 %v1999, %v1998
        %v2204 = vpack.c.b16 %v2001, %v2000
        %v2205 = vpack.c.b16 %v2003, %v2002
        %v2206 = vpack.c.b16 %v2005, %v2004
        %v2207 = vpack.c.b16 %v2007, %v2006
        %v2208 = vpack.c.b16 %v2009, %v2008
        %v2209 = vpack.c.b16 %v2011, %v2010
        %v2210 = vpack.c.b16 %v2013, %v2012
        %v2211 = vpack.c.b16 %v2015, %v2014
        %v2212 = vpack.c.b16 %v2017, %v2016
        %v2213 = vpack.c.b16 %v2019, %v2018
        %v2214 = vpack.c.b16 %v2021, %v2020
        %v2215 = vpack.c.b16 %v2023, %v2022
        %v2216 = vpack.c.b16 %v2025, %v2024
        %v2217 = vpack.c.b16 %v2027, %v2026
        %v2218 = vpack.c.b16 %v2029, %v2028
        %v2219 = vpack.c.b16 %v2031, %v2030
        %v2220 = vpack.c.b16 %v2033, %v2032
        %v2221 = vpack.c.b16 %v2035, %v2034
        %v2222 = vpack.c.b16 %v2037, %v2036
        %v2223 = vpack.c.b16 %v2039, %v2038
        %v2224 = vpack.c.b16 %v2041, %v2040
        %v2225 = vpack.c.b16 %v2043, %v2042
        %v2226 = vpack.c.b16 %v2045, %v2044
        %v2227 = vpack.c.b16 %v2047, %v2046
        %v2228 = vpack.c.b16 %v2049, %v2048
        %v2229 = vpack.c.b16 %v2051, %v2050
        %v2230 = vpack.c.b16 %v2053, %v2052
        %v2231 = vpack.c.b16 %v2055, %v2054
        %v2232 = vpack.c.b16 %v2057, %v2056
        %v2233 = vpack.c.b16 %v2059, %v2058
        %v2234 = vpack.c.b16 %v2061, %v2060
        %v2235 = vpack.c.b16 %v2063, %v2062
        %v2236 = vpack.c.b16 %v2065, %v2064
        %v2237 = vpack.c.b16 %v2067, %v2066
        %v2238 = vpack.c.b16 %v2069, %v2068
        %v2239 = vpack.c.b16 %v2071, %v2070
        %v2240 = vpack.c.b16 %v2073, %v2072
        %v2241 = vpack.c.b16 %v2075, %v2074
        %v2242 = vpack.c.b16 %v2077, %v2076
        %v2243 = vpack.c.b16 %v2079, %v2078
        %v2244 = vpack.c.b16 %v2081, %v2080
        %v2245 = vpack.c.b16 %v2083, %v2082
        %v2246 = vpack.c.b16 %v2085, %v2084
        %v2247 = vpack.c.b16 %v2087, %v2086
        %v2248 = vpack.c.b16 %v2089, %v2088
        %v2249 = vpack.c.b16 %v2091, %v2090
        %v2250 = vpack.c.b16 %v2093, %v2092
        %v2251 = vpack.c.b16 %v2095, %v2094
        %v2252 = vpack.c.b16 %v2097, %v2096
        %v2253 = vpack.c.b16 %v2099, %v2098
        %v2254 = vpack.c.b16 %v2101, %v2100
        %v2255 = vpack.c.b16 %v2103, %v2102
        %v2256 = vpack.c.b16 %v2105, %v2104
        %v2257 = vpack.c.b16 %v2107, %v2106
        %v2258 = vpack.c.b16 %v2109, %v2108
        %v2259 = vpack.c.b16 %v2111, %v2110
        %v2260 = vpack.c.b16 %v2113, %v2112
        %v2261 = vpack.c.b16 %v2115, %v2114
        %v2262 = vpack.c.b16 %v2117, %v2116
        %v2263 = vpack.c.b16 %v2119, %v2118
        %v2264 = vpack.c.b16 %v2121, %v2120
        %v2265 = vpack.c.b16 %v2123, %v2122
        %v2266 = vpack.c.b16 %v2125, %v2124
        %v2267 = vpack.c.b16 %v2127, %v2126
        %v2268 = vpack.c.b16 %v2129, %v2128
        %v2269 = vpack.c.b16 %v2131, %v2130
        %v2270 = vpack.c.b16 %v2133, %v2132
        %v2271 = vpack.c.b16 %v2135, %v2134
        %v2272 = vpack.c.b16 %v2137, %v2136
        %v2273 = vpack.c.b16 %v2139, %v2138
        %v2274 = vpack.c.b16 %v2141, %v2140
        %v2275 = vpack.c.b16 %v2143, %v2142
        %v2276 = vpack.c.b16 %v2145, %v2144
        %v2277 = vpack.c.b16 %v2147, %v2146
        %v2278 = vpack.c.b16 %v2149, %v2148
        %v2279 = vpack.c.b16 %v2151, %v2150
        %2408 = vmatprep.subr.bf16.mxu0 0
        %2409 = vmatpush1.bf16.msra.mxu0 %v2152
        %2410 = vmatprep.subr.bf16.mxu0 0
        %2411 = vmatpush1.bf16.msra.mxu0 %v2153
        %2412 = vmatprep.subr.bf16.mxu0 0
        %2413 = vmatpush1.bf16.msra.mxu0 %v2154
        %2414 = vmatprep.subr.bf16.mxu0 0
        %2415 = vmatpush1.bf16.msra.mxu0 %v2155
        %2416 = vmatprep.subr.bf16.mxu0 0
        %2417 = vmatpush1.bf16.msra.mxu0 %v2156
        %2418 = vmatprep.subr.bf16.mxu0 0
        %2419 = vmatpush1.bf16.msra.mxu0 %v2157
        %2420 = vmatprep.subr.bf16.mxu0 0
        %2421 = vmatpush1.bf16.msra.mxu0 %v2158
        %2422 = vmatprep.subr.bf16.mxu0 0
        %2423 = vmatpush1.bf16.msra.mxu0 %v2159
        %2424 = vmatprep.subr.bf16.mxu0 0
        %2425 = vmatpush1.bf16.msra.mxu0 %v2160
        %2426 = vmatprep.subr.bf16.mxu0 0
        %2427 = vmatpush1.bf16.msra.mxu0 %v2161
        %2428 = vmatprep.subr.bf16.mxu0 0
        %2429 = vmatpush1.bf16.msra.mxu0 %v2162
        %2430 = vmatprep.subr.bf16.mxu0 0
        %2431 = vmatpush1.bf16.msra.mxu0 %v2163
        %2432 = vmatprep.subr.bf16.mxu0 0
        %2433 = vmatpush1.bf16.msra.mxu0 %v2164
        %2434 = vmatprep.subr.bf16.mxu0 0
        %2435 = vmatpush1.bf16.msra.mxu0 %v2165
        %2436 = vmatprep.subr.bf16.mxu0 0
        %2437 = vmatpush1.bf16.msra.mxu0 %v2166
        %2438 = vmatprep.subr.bf16.mxu0 0
        %2439 = vmatpush1.bf16.msra.mxu0 %v2167
        %2440 = vmatprep.mubr.bf16.mxu0 %v1609
        %2441 = vmatmul.mubr.bf16.gmra.mrb[0].mxu0 %v1608
        %v2442 = vpop.f32.mrb[0].mxu0
        %v2443 = vadd.f32 %v1558, %v2442
        %v2444 = vpop.f32.mrb[0].mxu0
        %v2445 = vpop.f32.mrb[0].mxu0
        %v2446 = vadd.f32 %v1558, %v2445
        %v2447 = vpop.f32.mrb[0].mxu0
        %2448 = vdwg.mxu0
        %2449 = vmatprep.subr.bf16.mxu0 0
        %2450 = vmatpush1.bf16.msra.mxu0 %v2168
        %2451 = vmatprep.subr.bf16.mxu0 0
        %2452 = vmatpush1.bf16.msra.mxu0 %v2169
        %2453 = vmatprep.subr.bf16.mxu0 0
        %2454 = vmatpush1.bf16.msra.mxu0 %v2170
        %2455 = vmatprep.subr.bf16.mxu0 0
        %2456 = vmatpush1.bf16.msra.mxu0 %v2171
        %2457 = vmatprep.subr.bf16.mxu0 0
        %2458 = vmatpush1.bf16.msra.mxu0 %v2172
        %2459 = vmatprep.subr.bf16.mxu0 0
        %2460 = vmatpush1.bf16.msra.mxu0 %v2173
        %2461 = vmatprep.subr.bf16.mxu0 0
        %2462 = vmatpush1.bf16.msra.mxu0 %v2174
        %2463 = vmatprep.subr.bf16.mxu0 0
        %2464 = vmatpush1.bf16.msra.mxu0 %v2175
        %2465 = vmatprep.subr.bf16.mxu0 0
        %2466 = vmatpush1.bf16.msra.mxu0 %v2176
        %2467 = vmatprep.subr.bf16.mxu0 0
        %2468 = vmatpush1.bf16.msra.mxu0 %v2177
        %2469 = vmatprep.subr.bf16.mxu0 0
        %2470 = vmatpush1.bf16.msra.mxu0 %v2178
        %2471 = vmatprep.subr.bf16.mxu0 0
        %2472 = vmatpush1.bf16.msra.mxu0 %v2179
        %2473 = vmatprep.subr.bf16.mxu0 0
        %2474 = vmatpush1.bf16.msra.mxu0 %v2180
        %2475 = vmatprep.subr.bf16.mxu0 0
        %2476 = vmatpush1.bf16.msra.mxu0 %v2181
        %2477 = vmatprep.subr.bf16.mxu0 0
        %2478 = vmatpush1.bf16.msra.mxu0 %v2182
        %2479 = vmatprep.subr.bf16.mxu0 0
        %2480 = vmatpush1.bf16.msra.mxu0 %v2183
        %2481 = vmatprep.mubr.bf16.mxu0 %v1611
        %2482 = vmatmul.mubr.bf16.gmra.mrb[0].mxu0 %v1610
        %v2483 = vpop.f32.mrb[0].mxu0
        %v2484 = vadd.f32 %v2443, %v2483
        %v2485 = vpop.f32.mrb[0].mxu0
        %v2486 = vpop.f32.mrb[0].mxu0
        %v2487 = vadd.f32 %v2446, %v2486
        %v2488 = vpop.f32.mrb[0].mxu0
        %2489 = vdwg.mxu0
        %2490 = vmatprep.subr.bf16.mxu0 0
        %2491 = vmatpush1.bf16.msra.mxu0 %v2184
        %2492 = vmatprep.subr.bf16.mxu0 0
        %2493 = vmatpush1.bf16.msra.mxu0 %v2185
        %2494 = vmatprep.subr.bf16.mxu0 0
        %2495 = vmatpush1.bf16.msra.mxu0 %v2186
        %2496 = vmatprep.subr.bf16.mxu0 0
        %2497 = vmatpush1.bf16.msra.mxu0 %v2187
        %2498 = vmatprep.subr.bf16.mxu0 0
        %2499 = vmatpush1.bf16.msra.mxu0 %v2188
        %2500 = vmatprep.subr.bf16.mxu0 0
        %2501 = vmatpush1.bf16.msra.mxu0 %v2189
        %2502 = vmatprep.subr.bf16.mxu0 0
        %2503 = vmatpush1.bf16.msra.mxu0 %v2190
        %2504 = vmatprep.subr.bf16.mxu0 0
        %2505 = vmatpush1.bf16.msra.mxu0 %v2191
        %2506 = vmatprep.subr.bf16.mxu0 0
        %2507 = vmatpush1.bf16.msra.mxu0 %v2192
        %2508 = vmatprep.subr.bf16.mxu0 0
        %2509 = vmatpush1.bf16.msra.mxu0 %v2193
        %2510 = vmatprep.subr.bf16.mxu0 0
        %2511 = vmatpush1.bf16.msra.mxu0 %v2194
        %2512 = vmatprep.subr.bf16.mxu0 0
        %2513 = vmatpush1.bf16.msra.mxu0 %v2195
        %2514 = vmatprep.subr.bf16.mxu0 0
        %2515 = vmatpush1.bf16.msra.mxu0 %v2196
        %2516 = vmatprep.subr.bf16.mxu0 0
        %2517 = vmatpush1.bf16.msra.mxu0 %v2197
        %2518 = vmatprep.subr.bf16.mxu0 0
        %2519 = vmatpush1.bf16.msra.mxu0 %v2198
        %2520 = vmatprep.subr.bf16.mxu0 0
        %2521 = vmatpush1.bf16.msra.mxu0 %v2199
        %2522 = vmatprep.mubr.bf16.mxu0 %v1613
        %2523 = vmatmul.mubr.bf16.gmra.mrb[0].mxu0 %v1612
        %v2524 = vpop.f32.mrb[0].mxu0
        %v2525 = vadd.f32 %v2484, %v2524
        %v2526 = vpop.f32.mrb[0].mxu0
        %v2527 = vpop.f32.mrb[0].mxu0
        %v2528 = vadd.f32 %v2487, %v2527
        %v2529 = vpop.f32.mrb[0].mxu0
        %2530 = vdwg.mxu0
        %2531 = vmatprep.subr.bf16.mxu0 0
        %2532 = vmatpush1.bf16.msra.mxu0 %v2200
        %2533 = vmatprep.subr.bf16.mxu0 0
        %2534 = vmatpush1.bf16.msra.mxu0 %v2201
        %2535 = vmatprep.subr.bf16.mxu0 0
        %2536 = vmatpush1.bf16.msra.mxu0 %v2202
        %2537 = vmatprep.subr.bf16.mxu0 0
        %2538 = vmatpush1.bf16.msra.mxu0 %v2203
        %2539 = vmatprep.subr.bf16.mxu0 0
        %2540 = vmatpush1.bf16.msra.mxu0 %v2204
        %2541 = vmatprep.subr.bf16.mxu0 0
        %2542 = vmatpush1.bf16.msra.mxu0 %v2205
        %2543 = vmatprep.subr.bf16.mxu0 0
        %2544 = vmatpush1.bf16.msra.mxu0 %v2206
        %2545 = vmatprep.subr.bf16.mxu0 0
        %2546 = vmatpush1.bf16.msra.mxu0 %v2207
        %2547 = vmatprep.subr.bf16.mxu0 0
        %2548 = vmatpush1.bf16.msra.mxu0 %v2208
        %2549 = vmatprep.subr.bf16.mxu0 0
        %2550 = vmatpush1.bf16.msra.mxu0 %v2209
        %2551 = vmatprep.subr.bf16.mxu0 0
        %2552 = vmatpush1.bf16.msra.mxu0 %v2210
        %2553 = vmatprep.subr.bf16.mxu0 0
        %2554 = vmatpush1.bf16.msra.mxu0 %v2211
        %2555 = vmatprep.subr.bf16.mxu0 0
        %2556 = vmatpush1.bf16.msra.mxu0 %v2212
        %2557 = vmatprep.subr.bf16.mxu0 0
        %2558 = vmatpush1.bf16.msra.mxu0 %v2213
        %2559 = vmatprep.subr.bf16.mxu0 0
        %2560 = vmatpush1.bf16.msra.mxu0 %v2214
        %2561 = vmatprep.subr.bf16.mxu0 0
        %2562 = vmatpush1.bf16.msra.mxu0 %v2215
        %2563 = vmatprep.mubr.bf16.mxu0 %v1615
        %2564 = vmatmul.mubr.bf16.gmra.mrb[0].mxu0 %v1614
        %v2565 = vpop.f32.mrb[0].mxu0
        %v2566 = vadd.f32 %v2525, %v2565
        %v2567 = vpop.f32.mrb[0].mxu0
        %v2568 = vpop.f32.mrb[0].mxu0
        %v2569 = vadd.f32 %v2528, %v2568
        %v2570 = vpop.f32.mrb[0].mxu0
        %2571 = vdwg.mxu0
        %2572 = vmatprep.subr.bf16.mxu0 0
        %2573 = vmatpush1.bf16.msra.mxu0 %v2216
        %2574 = vmatprep.subr.bf16.mxu0 0
        %2575 = vmatpush1.bf16.msra.mxu0 %v2217
        %2576 = vmatprep.subr.bf16.mxu0 0
        %2577 = vmatpush1.bf16.msra.mxu0 %v2218
        %2578 = vmatprep.subr.bf16.mxu0 0
        %2579 = vmatpush1.bf16.msra.mxu0 %v2219
        %2580 = vmatprep.subr.bf16.mxu0 0
        %2581 = vmatpush1.bf16.msra.mxu0 %v2220
        %2582 = vmatprep.subr.bf16.mxu0 0
        %2583 = vmatpush1.bf16.msra.mxu0 %v2221
        %2584 = vmatprep.subr.bf16.mxu0 0
        %2585 = vmatpush1.bf16.msra.mxu0 %v2222
        %2586 = vmatprep.subr.bf16.mxu0 0
        %2587 = vmatpush1.bf16.msra.mxu0 %v2223
        %2588 = vmatprep.subr.bf16.mxu0 0
        %2589 = vmatpush1.bf16.msra.mxu0 %v2224
        %2590 = vmatprep.subr.bf16.mxu0 0
        %2591 = vmatpush1.bf16.msra.mxu0 %v2225
        %2592 = vmatprep.subr.bf16.mxu0 0
        %2593 = vmatpush1.bf16.msra.mxu0 %v2226
        %2594 = vmatprep.subr.bf16.mxu0 0
        %2595 = vmatpush1.bf16.msra.mxu0 %v2227
        %2596 = vmatprep.subr.bf16.mxu0 0
        %2597 = vmatpush1.bf16.msra.mxu0 %v2228
        %2598 = vmatprep.subr.bf16.mxu0 0
        %2599 = vmatpush1.bf16.msra.mxu0 %v2229
        %2600 = vmatprep.subr.bf16.mxu0 0
        %2601 = vmatpush1.bf16.msra.mxu0 %v2230
        %2602 = vmatprep.subr.bf16.mxu0 0
        %2603 = vmatpush1.bf16.msra.mxu0 %v2231
        %2604 = vmatprep.mubr.bf16.mxu0 %v1617
        %2605 = vmatmul.mubr.bf16.gmra.mrb[0].mxu0 %v1616
        %v2606 = vpop.f32.mrb[0].mxu0
        %v2607 = vadd.f32 %v2566, %v2606
        %v2608 = vpop.f32.mrb[0].mxu0
        %v2609 = vpop.f32.mrb[0].mxu0
        %v2610 = vadd.f32 %v2569, %v2609
        %v2611 = vpop.f32.mrb[0].mxu0
        %2612 = vdwg.mxu0
        %2613 = vmatprep.subr.bf16.mxu0 0
        %2614 = vmatpush1.bf16.msra.mxu0 %v2232
        %2615 = vmatprep.subr.bf16.mxu0 0
        %2616 = vmatpush1.bf16.msra.mxu0 %v2233
        %2617 = vmatprep.subr.bf16.mxu0 0
        %2618 = vmatpush1.bf16.msra.mxu0 %v2234
        %2619 = vmatprep.subr.bf16.mxu0 0
        %2620 = vmatpush1.bf16.msra.mxu0 %v2235
        %2621 = vmatprep.subr.bf16.mxu0 0
        %2622 = vmatpush1.bf16.msra.mxu0 %v2236
        %2623 = vmatprep.subr.bf16.mxu0 0
        %2624 = vmatpush1.bf16.msra.mxu0 %v2237
        %2625 = vmatprep.subr.bf16.mxu0 0
        %2626 = vmatpush1.bf16.msra.mxu0 %v2238
        %2627 = vmatprep.subr.bf16.mxu0 0
        %2628 = vmatpush1.bf16.msra.mxu0 %v2239
        %2629 = vmatprep.subr.bf16.mxu0 0
        %2630 = vmatpush1.bf16.msra.mxu0 %v2240
        %2631 = vmatprep.subr.bf16.mxu0 0
        %2632 = vmatpush1.bf16.msra.mxu0 %v2241
        %2633 = vmatprep.subr.bf16.mxu0 0
        %2634 = vmatpush1.bf16.msra.mxu0 %v2242
        %2635 = vmatprep.subr.bf16.mxu0 0
        %2636 = vmatpush1.bf16.msra.mxu0 %v2243
        %2637 = vmatprep.subr.bf16.mxu0 0
        %2638 = vmatpush1.bf16.msra.mxu0 %v2244
        %2639 = vmatprep.subr.bf16.mxu0 0
        %2640 = vmatpush1.bf16.msra.mxu0 %v2245
        %2641 = vmatprep.subr.bf16.mxu0 0
        %2642 = vmatpush1.bf16.msra.mxu0 %v2246
        %2643 = vmatprep.subr.bf16.mxu0 0
        %2644 = vmatpush1.bf16.msra.mxu0 %v2247
        %2645 = vmatprep.mubr.bf16.mxu0 %v1619
        %2646 = vmatmul.mubr.bf16.gmra.mrb[0].mxu0 %v1618
        %v2647 = vpop.f32.mrb[0].mxu0
        %v2648 = vadd.f32 %v2607, %v2647
        %v2649 = vpop.f32.mrb[0].mxu0
        %v2650 = vpop.f32.mrb[0].mxu0
        %v2651 = vadd.f32 %v2610, %v2650
        %v2652 = vpop.f32.mrb[0].mxu0
        %2653 = vdwg.mxu0
        %2654 = vmatprep.subr.bf16.mxu0 0
        %2655 = vmatpush1.bf16.msra.mxu0 %v2248
        %2656 = vmatprep.subr.bf16.mxu0 0
        %2657 = vmatpush1.bf16.msra.mxu0 %v2249
        %2658 = vmatprep.subr.bf16.mxu0 0
        %2659 = vmatpush1.bf16.msra.mxu0 %v2250
        %2660 = vmatprep.subr.bf16.mxu0 0
        %2661 = vmatpush1.bf16.msra.mxu0 %v2251
        %2662 = vmatprep.subr.bf16.mxu0 0
        %2663 = vmatpush1.bf16.msra.mxu0 %v2252
        %2664 = vmatprep.subr.bf16.mxu0 0
        %2665 = vmatpush1.bf16.msra.mxu0 %v2253
        %2666 = vmatprep.subr.bf16.mxu0 0
        %2667 = vmatpush1.bf16.msra.mxu0 %v2254
        %2668 = vmatprep.subr.bf16.mxu0 0
        %2669 = vmatpush1.bf16.msra.mxu0 %v2255
        %2670 = vmatprep.subr.bf16.mxu0 0
        %2671 = vmatpush1.bf16.msra.mxu0 %v2256
        %2672 = vmatprep.subr.bf16.mxu0 0
        %2673 = vmatpush1.bf16.msra.mxu0 %v2257
        %2674 = vmatprep.subr.bf16.mxu0 0
        %2675 = vmatpush1.bf16.msra.mxu0 %v2258
        %2676 = vmatprep.subr.bf16.mxu0 0
        %2677 = vmatpush1.bf16.msra.mxu0 %v2259
        %2678 = vmatprep.subr.bf16.mxu0 0
        %2679 = vmatpush1.bf16.msra.mxu0 %v2260
        %2680 = vmatprep.subr.bf16.mxu0 0
        %2681 = vmatpush1.bf16.msra.mxu0 %v2261
        %2682 = vmatprep.subr.bf16.mxu0 0
        %2683 = vmatpush1.bf16.msra.mxu0 %v2262
        %2684 = vmatprep.subr.bf16.mxu0 0
        %2685 = vmatpush1.bf16.msra.mxu0 %v2263
        %2686 = vmatprep.mubr.bf16.mxu0 %v1621
        %2687 = vmatmul.mubr.bf16.gmra.mrb[0].mxu0 %v1620
        %v2688 = vpop.f32.mrb[0].mxu0
        %v2689 = vadd.f32 %v2648, %v2688
        %v2690 = vpop.f32.mrb[0].mxu0
        %v2691 = vpop.f32.mrb[0].mxu0
        %v2692 = vadd.f32 %v2651, %v2691
        %v2693 = vpop.f32.mrb[0].mxu0
        %2694 = vdwg.mxu0
        %2695 = vmatprep.subr.bf16.mxu0 0
        %2696 = vmatpush1.bf16.msra.mxu0 %v2264
        %2697 = vmatprep.subr.bf16.mxu0 0
        %2698 = vmatpush1.bf16.msra.mxu0 %v2265
        %2699 = vmatprep.subr.bf16.mxu0 0
        %2700 = vmatpush1.bf16.msra.mxu0 %v2266
        %2701 = vmatprep.subr.bf16.mxu0 0
        %2702 = vmatpush1.bf16.msra.mxu0 %v2267
        %2703 = vmatprep.subr.bf16.mxu0 0
        %2704 = vmatpush1.bf16.msra.mxu0 %v2268
        %2705 = vmatprep.subr.bf16.mxu0 0
        %2706 = vmatpush1.bf16.msra.mxu0 %v2269
        %2707 = vmatprep.subr.bf16.mxu0 0
        %2708 = vmatpush1.bf16.msra.mxu0 %v2270
        %2709 = vmatprep.subr.bf16.mxu0 0
        %2710 = vmatpush1.bf16.msra.mxu0 %v2271
        %2711 = vmatprep.subr.bf16.mxu0 0
        %2712 = vmatpush1.bf16.msra.mxu0 %v2272
        %2713 = vmatprep.subr.bf16.mxu0 0
        %2714 = vmatpush1.bf16.msra.mxu0 %v2273
        %2715 = vmatprep.subr.bf16.mxu0 0
        %2716 = vmatpush1.bf16.msra.mxu0 %v2274
        %2717 = vmatprep.subr.bf16.mxu0 0
        %2718 = vmatpush1.bf16.msra.mxu0 %v2275
        %2719 = vmatprep.subr.bf16.mxu0 0
        %2720 = vmatpush1.bf16.msra.mxu0 %v2276
        %2721 = vmatprep.subr.bf16.mxu0 0
        %2722 = vmatpush1.bf16.msra.mxu0 %v2277
        %2723 = vmatprep.subr.bf16.mxu0 0
        %2724 = vmatpush1.bf16.msra.mxu0 %v2278
        %2725 = vmatprep.subr.bf16.mxu0 0
        %2726 = vmatpush1.bf16.msra.mxu0 %v2279
        %2727 = vmatprep.mubr.bf16.mxu0 %v1623
        %2728 = vmatmul.mubr.bf16.gmra.mrb[0].mxu0 %v1622
        %v2729 = vpop.f32.mrb[0].mxu0
        %v2730 = vadd.f32 %v2689, %v2729
        %v2731 = vpop.f32.mrb[0].mxu0
        %v2732 = vpop.f32.mrb[0].mxu0
        %v2733 = vadd.f32 %v2692, %v2732
        %v2734 = vpop.f32.mrb[0].mxu0
        %2735 = vdwg.mxu0
        %v2736 = vpack.c.bf16 %v2733, %v2730
        %v2738 = vunpack.c.l.b16 %v2736
        %v2739 = vunpack.c.h.b16 %v2736
        %v2740 = vpack.c.b16 %v2738, %v2738
        %v2741 = vpack.c.b16 %v2739, %v2739
        %2744 = vst [vmem:[%s1268] sm:$0xf] %v2740
        %2745 = vst [vmem:[%s1268 + $0x4] sm:$0xf] %v2741
        %s2746 = sand.u32 %s114, 1
        %s2747 = sand.u32 %s114, 1
        %s2748 = smul.addr %s2747, 8
        %s2749 = scalar_lea.vmem [#allocation3], %s2748
        // Predicated region
        $region74: #{task_specific_discriminator_forward.11} parent=68 // pred_check
          %p2750 = pneg %p124
        $region75: #{task_specific_discriminator_forward.11} parent=68 // pred_check_branch
          %2752 = sbr.rel (%p2750) target = $region77
        $region76: #{task_specific_discriminator_forward.11} parent=68 // pred_region
          %s2753 = smul.u32 2, %s18
          %s2754 = smul.addr %s2753, 2
          %s2755 = sadd.s32 %s19, %s2754
          %s2756 = smul.addr %s2755, 4
          %s2757 = scalar_lea.vmem %s3, %s2756
          // Predicated region
          $region78: #{task_specific_discriminator_forward.11} parent=76 // pred_check
            _
          $region79: #{task_specific_discriminator_forward.11} parent=76 // pred_check_branch
            %2759 = sbr.rel (0) target = $region81
          $region80: #{task_specific_discriminator_forward.11} parent=76 // pred_region
            // Predicated region
            $region82: #{task_specific_discriminator_forward.11} parent=80 // pred_check
              _
            $region83: #{task_specific_discriminator_forward.11} parent=80 // pred_check_branch
              %2761 = sbr.rel target = $region85
            $region84: #{task_specific_discriminator_forward.11} parent=80 // pred_region
              // Predicated region
              $region97: #{task_specific_discriminator_forward.11} parent=84 // pred_check
                _
              $region98: #{task_specific_discriminator_forward.11} parent=84 // pred_check_branch
                %2778 = sbr.rel (0) target = $region100
              $region99: #{task_specific_discriminator_forward.11} parent=84 // pred_region
                loop: start=0, step=1, limit=1
                $region101: #{task_specific_discriminator_forward.11} parent=99 // loop_pre_header
                  _
                $region102: #{task_specific_discriminator_forward.11} parent=99 // loop_header
                  %s2780 = sphi 0, %s2784
                  %p2781 = scmp.ge.s32.totalorder %s2780, 1
                  %s2785 = sphi %s2749, %s2749
                  %s2786 = sphi %s2757, %s2757
                $region103: #{task_specific_discriminator_forward.11} parent=99 // loop_header_branch
                  %2783 = sbr.rel (%p2781) target = $region107
                $region104: #{task_specific_discriminator_forward.11} parent=99 // loop_body
                  _
                $region105: #{task_specific_discriminator_forward.11} parent=99 // loop_footer
                  %s2784 = sadd.s32 1, %s2780
                $region106: #{task_specific_discriminator_forward.11} parent=99 // loop_footer_branch
                  %2779 = sbr.rel target = $region102
                $region107: #{task_specific_discriminator_forward.11} parent=99 // loop_exit
                  _
                loop: start=0, step=1, limit=1
                $region108: #{task_specific_discriminator_forward.11} parent=99 // loop_pre_header
                  _
                $region109: #{task_specific_discriminator_forward.11} parent=99 // loop_header
                  %s2789 = sphi 0, %s2793
                  %p2790 = scmp.ge.s32.totalorder %s2789, 1
                  %s2794 = sphi %s2749, %s2749
                  %s2795 = sphi %s2757, %s2757
                $region110: #{task_specific_discriminator_forward.11} parent=99 // loop_header_branch
                  %2792 = sbr.rel (%p2790) target = $region114
                $region111: #{task_specific_discriminator_forward.11} parent=99 // loop_body
                  %v2796 = vld [vmem:[%s2794] sm:$0xf]
                  %2797 = vst [vmem:[%s2795] sm:$0xf] %v2796
                  %v2798 = vld [vmem:[%s2794 + $0x4] sm:$0xf]
                  %2799 = vst [vmem:[%s2795 + $0x8] sm:$0xf] %v2798
                $region112: #{task_specific_discriminator_forward.11} parent=99 // loop_footer
                  %s2793 = sadd.s32 1, %s2789
                $region113: #{task_specific_discriminator_forward.11} parent=99 // loop_footer_branch
                  %2788 = sbr.rel target = $region109
                $region114: #{task_specific_discriminator_forward.11} parent=99 // loop_exit
                  _
              $region100: #{task_specific_discriminator_forward.11} parent=84 // pred_fallthru
                _
            $region85: #{task_specific_discriminator_forward.11} parent=80 // pred_fallthru
              _
            // Predicated region
            $region86: #{task_specific_discriminator_forward.11} parent=80 // pred_check
              _
            $region87: #{task_specific_discriminator_forward.11} parent=80 // pred_check_branch
              %2763 = sbr.rel (0) target = $region89
            $region88: #{task_specific_discriminator_forward.11} parent=80 // pred_region
              loop: start=0, step=1, limit=1
              $region90: #{task_specific_discriminator_forward.11} parent=88 // loop_pre_header
                _
              $region91: #{task_specific_discriminator_forward.11} parent=88 // loop_header
                %s2766 = sphi 0, %s2770
                %p2767 = scmp.ge.s32.totalorder %s2766, 1
                %s2771 = sphi %s2749, %s2749
                %s2772 = sphi %s2757, %s2757
              $region92: #{task_specific_discriminator_forward.11} parent=88 // loop_header_branch
                %2769 = sbr.rel (%p2767) target = $region96
              $region93: #{task_specific_discriminator_forward.11} parent=88 // loop_body
                %v2773 = vld [vmem:[%s2771] sm:$0xf]
                %2774 = vst [vmem:[%s2772] sm:$0xf] %v2773
                %v2775 = vld [vmem:[%s2771 + $0x4] sm:$0xf]
                %2776 = vst [vmem:[%s2772 + $0x8] sm:$0xf] %v2775
              $region94: #{task_specific_discriminator_forward.11} parent=88 // loop_footer
                %s2770 = sadd.s32 1, %s2766
              $region95: #{task_specific_discriminator_forward.11} parent=88 // loop_footer_branch
                %2765 = sbr.rel target = $region91
              $region96: #{task_specific_discriminator_forward.11} parent=88 // loop_exit
                _
            $region89: #{task_specific_discriminator_forward.11} parent=80 // pred_fallthru
              _
          $region81: #{task_specific_discriminator_forward.11} parent=76 // pred_fallthru
            _
          %2800 = vnop
        $region77: #{task_specific_discriminator_forward.11} parent=68 // pred_fallthru
          _
      $region69: #{task_specific_discriminator_forward.11} parent=5 // pred_fallthru
        _
      %p2801 = scmp.le.s32.totalorder 2, %s9
      // Predicated region
      $region115: #{task_specific_discriminator_forward.11} parent=5 // pred_check
        %p2802 = pneg %p2801
      $region116: #{task_specific_discriminator_forward.11} parent=5 // pred_check_branch
        %2804 = sbr.rel (%p2802) target = $region118
      $region117: #{task_specific_discriminator_forward.11} parent=5 // pred_region
        %s2805 = ssub.s32 %s9, 2
        // Predicated region
        $region119: #{task_specific_discriminator_forward.11} parent=117 // pred_check
          %p2806 = pneg %p130
        $region120: #{task_specific_discriminator_forward.11} parent=117 // pred_check_branch
          %2808 = sbr.rel (%p2806) target = $region122
        $region121: #{task_specific_discriminator_forward.11} parent=117 // pred_region
          %s2809 = sand.u32 %s115, 1
          %s2810 = sand.u32 %s115, 1
          %s2811 = smul.addr %s2810, 8
          %s2812 = scalar_lea.vmem [#allocation3], %s2811
        $region122: #{task_specific_discriminator_forward.11} parent=117 // pred_fallthru
          _
      $region118: #{task_specific_discriminator_forward.11} parent=5 // pred_fallthru
        _
    $region6: #{task_specific_discriminator_forward.11} parent=1 // loop_footer
      %s13 = sadd.s32 1, %s9
    $region7: #{task_specific_discriminator_forward.11} parent=1 // loop_footer_branch
      %8 = sbr.rel target = $region3
    $region8: #{task_specific_discriminator_forward.11} parent=1 // loop_exit
      _

// kernel: task_specific_discriminator_forward.13
$region0: #{task_specific_discriminator_forward.13}
  #allocation0 [shape = 'u32[]', space=smem, size = 0x4, offset = 0x4, fixed_abs, tag = 'smem constant byte address 0x4 - core index']
  #allocation1 [shape = 'u32[144,128]{1,0:T(1,128)}', space=vmem, size = 0x12000, scoped, tag = 'internal scratch']
  %s0 = inlined_call_operand.vmem [shape: bf16[16,4096], index: 0, kind: input, shape index: {}]
  %s1 = inlined_call_operand.vmem [shape: bf16[4096,128], index: 1, kind: input, shape index: {}]
  %s2 = inlined_call_operand.vmem [shape: f32[1,128], index: 2, kind: input, shape index: {}]
  %s3 = inlined_call_operand.vmem [shape: f32[16,128], index: 3, kind: output, shape index: {}]
  %s4 = sld [smem:[#allocation0]]
  $region22: #{task_specific_discriminator_forward.13} parent=0
    _
  %s6 = ssub.s32 1, %s4
  %s7 = scalar_select 0, %s6, %s4
  // Predicated region
  $region2: #{task_specific_discriminator_forward.13} parent=0 // pred_check
    _
  $region3: #{task_specific_discriminator_forward.13} parent=0 // pred_check_branch
    %9 = sbr.rel (0) target = $region5
  $region4: #{task_specific_discriminator_forward.13} parent=0 // pred_region
    _
  $region5: #{task_specific_discriminator_forward.13} parent=0 // pred_fallthru
    _
  // Predicated region
  $region6: #{task_specific_discriminator_forward.13} parent=0 // pred_check
    _
  $region7: #{task_specific_discriminator_forward.13} parent=0 // pred_check_branch
    %11 = sbr.rel (0) target = $region9
  $region8: #{task_specific_discriminator_forward.13} parent=0 // pred_region
    _
  $region9: #{task_specific_discriminator_forward.13} parent=0 // pred_fallthru
    _
  // Predicated region
  $region10: #{task_specific_discriminator_forward.13} parent=0 // pred_check
    _
  $region11: #{task_specific_discriminator_forward.13} parent=0 // pred_check_branch
    %13 = sbr.rel (0) target = $region13
  $region12: #{task_specific_discriminator_forward.13} parent=0 // pred_region
    _
  $region13: #{task_specific_discriminator_forward.13} parent=0 // pred_fallthru
    _
  %v15 = vld [vmem:[%s0] sm:$0xff]
  %v16 = vld [vmem:[%s0 + $0x8] sm:$0xff]
  %v17 = vld [vmem:[%s0 + $0x10] sm:$0xff]
  %v18 = vld [vmem:[%s0 + $0x18] sm:$0xff]
  %v19 = vld [vmem:[%s0 + $0x20] sm:$0xff]
  %v20 = vld [vmem:[%s0 + $0x28] sm:$0xff]
  %v21 = vld [vmem:[%s0 + $0x30] sm:$0xff]
  %v22 = vld [vmem:[%s0 + $0x38] sm:$0xff]
  %v23 = vld [vmem:[%s0 + $0x40] sm:$0xff]
  %v24 = vld [vmem:[%s0 + $0x48] sm:$0xff]
  %v25 = vld [vmem:[%s0 + $0x50] sm:$0xff]
  %v26 = vld [vmem:[%s0 + $0x58] sm:$0xff]
  %v27 = vld [vmem:[%s0 + $0x60] sm:$0xff]
  %v28 = vld [vmem:[%s0 + $0x68] sm:$0xff]
  %v29 = vld [vmem:[%s0 + $0x70] sm:$0xff]
  %v30 = vld [vmem:[%s0 + $0x78] sm:$0xff]
  %v31 = vld [vmem:[%s0 + $0x80] sm:$0xff]
  %v32 = vld [vmem:[%s0 + $0x88] sm:$0xff]
  %v33 = vld [vmem:[%s0 + $0x90] sm:$0xff]
  %v34 = vld [vmem:[%s0 + $0x98] sm:$0xff]
  %v35 = vld [vmem:[%s0 + $0xa0] sm:$0xff]
  %v36 = vld [vmem:[%s0 + $0xa8] sm:$0xff]
  %v37 = vld [vmem:[%s0 + $0xb0] sm:$0xff]
  %v38 = vld [vmem:[%s0 + $0xb8] sm:$0xff]
  %v39 = vld [vmem:[%s0 + $0xc0] sm:$0xff]
  %v40 = vld [vmem:[%s0 + $0xc8] sm:$0xff]
  %v41 = vld [vmem:[%s0 + $0xd0] sm:$0xff]
  %v42 = vld [vmem:[%s0 + $0xd8] sm:$0xff]
  %v43 = vld [vmem:[%s0 + $0xe0] sm:$0xff]
  %v44 = vld [vmem:[%s0 + $0xe8] sm:$0xff]
  %v45 = vld [vmem:[%s0 + $0xf0] sm:$0xff]
  %v46 = vld [vmem:[%s0 + $0xf8] sm:$0xff]
  %v47 = vld [vmem:[%s1] sm:$0xf]
  %v48 = vld [vmem:[%s1 + $0x4] sm:$0xf]
  %v49 = vld [vmem:[%s1 + $0x8] sm:$0xf]
  %v50 = vld [vmem:[%s1 + $0xc] sm:$0xf]
  %v51 = vld [vmem:[%s1 + $0x10] sm:$0xf]
  %v52 = vld [vmem:[%s1 + $0x14] sm:$0xf]
  %v53 = vld [vmem:[%s1 + $0x18] sm:$0xf]
  %v54 = vld [vmem:[%s1 + $0x1c] sm:$0xf]
  %v55 = vld [vmem:[%s1 + $0x20] sm:$0xf]
  %v56 = vld [vmem:[%s1 + $0x24] sm:$0xf]
  %v57 = vld [vmem:[%s1 + $0x28] sm:$0xf]
  %v58 = vld [vmem:[%s1 + $0x2c] sm:$0xf]
  %v59 = vld [vmem:[%s1 + $0x30] sm:$0xf]
  %v60 = vld [vmem:[%s1 + $0x34] sm:$0xf]
  %v61 = vld [vmem:[%s1 + $0x38] sm:$0xf]
  %v62 = vld [vmem:[%s1 + $0x3c] sm:$0xf]
  %v63 = vld [vmem:[%s1 + $0x40] sm:$0xf]
  %v64 = vld [vmem:[%s1 + $0x44] sm:$0xf]
  %v65 = vld [vmem:[%s1 + $0x48] sm:$0xf]
  %v66 = vld [vmem:[%s1 + $0x4c] sm:$0xf]
  %v67 = vld [vmem:[%s1 + $0x50] sm:$0xf]
  %v68 = vld [vmem:[%s1 + $0x54] sm:$0xf]
  %v69 = vld [vmem:[%s1 + $0x58] sm:$0xf]
  %v70 = vld [vmem:[%s1 + $0x5c] sm:$0xf]
  %v71 = vld [vmem:[%s1 + $0x60] sm:$0xf]
  %v72 = vld [vmem:[%s1 + $0x64] sm:$0xf]
  %v73 = vld [vmem:[%s1 + $0x68] sm:$0xf]
  %v74 = vld [vmem:[%s1 + $0x6c] sm:$0xf]
  %v75 = vld [vmem:[%s1 + $0x70] sm:$0xf]
  %v76 = vld [vmem:[%s1 + $0x74] sm:$0xf]
  %v77 = vld [vmem:[%s1 + $0x78] sm:$0xf]
  %v78 = vld [vmem:[%s1 + $0x7c] sm:$0xf]
  %v79 = vld [vmem:[%s1 + $0x80] sm:$0xf]
  %v80 = vld [vmem:[%s1 + $0x84] sm:$0xf]
  %v81 = vld [vmem:[%s1 + $0x88] sm:$0xf]
  %v82 = vld [vmem:[%s1 + $0x8c] sm:$0xf]
  %v83 = vld [vmem:[%s1 + $0x90] sm:$0xf]
  %v84 = vld [vmem:[%s1 + $0x94] sm:$0xf]
  %v85 = vld [vmem:[%s1 + $0x98] sm:$0xf]
  %v86 = vld [vmem:[%s1 + $0x9c] sm:$0xf]
  %v87 = vld [vmem:[%s1 + $0xa0] sm:$0xf]
  %v88 = vld [vmem:[%s1 + $0xa4] sm:$0xf]
  %v89 = vld [vmem:[%s1 + $0xa8] sm:$0xf]
  %v90 = vld [vmem:[%s1 + $0xac] sm:$0xf]
  %v91 = vld [vmem:[%s1 + $0xb0] sm:$0xf]
  %v92 = vld [vmem:[%s1 + $0xb4] sm:$0xf]
  %v93 = vld [vmem:[%s1 + $0xb8] sm:$0xf]
  %v94 = vld [vmem:[%s1 + $0xbc] sm:$0xf]
  %v95 = vld [vmem:[%s1 + $0xc0] sm:$0xf]
  %v96 = vld [vmem:[%s1 + $0xc4] sm:$0xf]
  %v97 = vld [vmem:[%s1 + $0xc8] sm:$0xf]
  %v98 = vld [vmem:[%s1 + $0xcc] sm:$0xf]
  %v99 = vld [vmem:[%s1 + $0xd0] sm:$0xf]
  %v100 = vld [vmem:[%s1 + $0xd4] sm:$0xf]
  %v101 = vld [vmem:[%s1 + $0xd8] sm:$0xf]
  %v102 = vld [vmem:[%s1 + $0xdc] sm:$0xf]
  %v103 = vld [vmem:[%s1 + $0xe0] sm:$0xf]
  %v104 = vld [vmem:[%s1 + $0xe4] sm:$0xf]
  %v105 = vld [vmem:[%s1 + $0xe8] sm:$0xf]
  %v106 = vld [vmem:[%s1 + $0xec] sm:$0xf]
  %v107 = vld [vmem:[%s1 + $0xf0] sm:$0xf]
  %v108 = vld [vmem:[%s1 + $0xf4] sm:$0xf]
  %v109 = vld [vmem:[%s1 + $0xf8] sm:$0xf]
  %v110 = vld [vmem:[%s1 + $0xfc] sm:$0xf]
  %v111 = vld [vmem:[%s1 + $0x100] sm:$0xf]
  %v112 = vld [vmem:[%s1 + $0x104] sm:$0xf]
  %v113 = vld [vmem:[%s1 + $0x108] sm:$0xf]
  %v114 = vld [vmem:[%s1 + $0x10c] sm:$0xf]
  %v115 = vld [vmem:[%s1 + $0x110] sm:$0xf]
  %v116 = vld [vmem:[%s1 + $0x114] sm:$0xf]
  %v117 = vld [vmem:[%s1 + $0x118] sm:$0xf]
  %v118 = vld [vmem:[%s1 + $0x11c] sm:$0xf]
  %v119 = vld [vmem:[%s1 + $0x120] sm:$0xf]
  %v120 = vld [vmem:[%s1 + $0x124] sm:$0xf]
  %v121 = vld [vmem:[%s1 + $0x128] sm:$0xf]
  %v122 = vld [vmem:[%s1 + $0x12c] sm:$0xf]
  %v123 = vld [vmem:[%s1 + $0x130] sm:$0xf]
  %v124 = vld [vmem:[%s1 + $0x134] sm:$0xf]
  %v125 = vld [vmem:[%s1 + $0x138] sm:$0xf]
  %v126 = vld [vmem:[%s1 + $0x13c] sm:$0xf]
  %v127 = vld [vmem:[%s1 + $0x140] sm:$0xf]
  %v128 = vld [vmem:[%s1 + $0x144] sm:$0xf]
  %v129 = vld [vmem:[%s1 + $0x148] sm:$0xf]
  %v130 = vld [vmem:[%s1 + $0x14c] sm:$0xf]
  %v131 = vld [vmem:[%s1 + $0x150] sm:$0xf]
  %v132 = vld [vmem:[%s1 + $0x154] sm:$0xf]
  %v133 = vld [vmem:[%s1 + $0x158] sm:$0xf]
  %v134 = vld [vmem:[%s1 + $0x15c] sm:$0xf]
  %v135 = vld [vmem:[%s1 + $0x160] sm:$0xf]
  %v136 = vld [vmem:[%s1 + $0x164] sm:$0xf]
  %v137 = vld [vmem:[%s1 + $0x168] sm:$0xf]
  %v138 = vld [vmem:[%s1 + $0x16c] sm:$0xf]
  %v139 = vld [vmem:[%s1 + $0x170] sm:$0xf]
  %v140 = vld [vmem:[%s1 + $0x174] sm:$0xf]
  %v141 = vld [vmem:[%s1 + $0x178] sm:$0xf]
  %v142 = vld [vmem:[%s1 + $0x17c] sm:$0xf]
  %v143 = vld [vmem:[%s1 + $0x180] sm:$0xf]
  %v144 = vld [vmem:[%s1 + $0x184] sm:$0xf]
  %v145 = vld [vmem:[%s1 + $0x188] sm:$0xf]
  %v146 = vld [vmem:[%s1 + $0x18c] sm:$0xf]
  %v147 = vld [vmem:[%s1 + $0x190] sm:$0xf]
  %v148 = vld [vmem:[%s1 + $0x194] sm:$0xf]
  %v149 = vld [vmem:[%s1 + $0x198] sm:$0xf]
  %v150 = vld [vmem:[%s1 + $0x19c] sm:$0xf]
  %v151 = vld [vmem:[%s1 + $0x1a0] sm:$0xf]
  %v152 = vld [vmem:[%s1 + $0x1a4] sm:$0xf]
  %v153 = vld [vmem:[%s1 + $0x1a8] sm:$0xf]
  %v154 = vld [vmem:[%s1 + $0x1ac] sm:$0xf]
  %v155 = vld [vmem:[%s1 + $0x1b0] sm:$0xf]
  %v156 = vld [vmem:[%s1 + $0x1b4] sm:$0xf]
  %v157 = vld [vmem:[%s1 + $0x1b8] sm:$0xf]
  %v158 = vld [vmem:[%s1 + $0x1bc] sm:$0xf]
  %v159 = vld [vmem:[%s1 + $0x1c0] sm:$0xf]
  %v160 = vld [vmem:[%s1 + $0x1c4] sm:$0xf]
  %v161 = vld [vmem:[%s1 + $0x1c8] sm:$0xf]
  %v162 = vld [vmem:[%s1 + $0x1cc] sm:$0xf]
  %v163 = vld [vmem:[%s1 + $0x1d0] sm:$0xf]
  %v164 = vld [vmem:[%s1 + $0x1d4] sm:$0xf]
  %v165 = vld [vmem:[%s1 + $0x1d8] sm:$0xf]
  %v166 = vld [vmem:[%s1 + $0x1dc] sm:$0xf]
  %v167 = vld [vmem:[%s1 + $0x1e0] sm:$0xf]
  %v168 = vld [vmem:[%s1 + $0x1e4] sm:$0xf]
  %v169 = vld [vmem:[%s1 + $0x1e8] sm:$0xf]
  %v170 = vld [vmem:[%s1 + $0x1ec] sm:$0xf]
  %v171 = vld [vmem:[%s1 + $0x1f0] sm:$0xf]
  %v172 = vld [vmem:[%s1 + $0x1f4] sm:$0xf]
  %v173 = vld [vmem:[%s1 + $0x1f8] sm:$0xf]
  %v174 = vld [vmem:[%s1 + $0x1fc] sm:$0xf]
  %v175 = vld [vmem:[%s1 + $0x200] sm:$0xf]
  %v176 = vld [vmem:[%s1 + $0x204] sm:$0xf]
  %v177 = vld [vmem:[%s1 + $0x208] sm:$0xf]
  %v178 = vld [vmem:[%s1 + $0x20c] sm:$0xf]
  %v179 = vld [vmem:[%s1 + $0x210] sm:$0xf]
  %v180 = vld [vmem:[%s1 + $0x214] sm:$0xf]
  %v181 = vld [vmem:[%s1 + $0x218] sm:$0xf]
  %v182 = vld [vmem:[%s1 + $0x21c] sm:$0xf]
  %v183 = vld [vmem:[%s1 + $0x220] sm:$0xf]
  %v184 = vld [vmem:[%s1 + $0x224] sm:$0xf]
  %v185 = vld [vmem:[%s1 + $0x228] sm:$0xf]
  %v186 = vld [vmem:[%s1 + $0x22c] sm:$0xf]
  %v187 = vld [vmem:[%s1 + $0x230] sm:$0xf]
  %v188 = vld [vmem:[%s1 + $0x234] sm:$0xf]
  %v189 = vld [vmem:[%s1 + $0x238] sm:$0xf]
  %v190 = vld [vmem:[%s1 + $0x23c] sm:$0xf]
  %v191 = vld [vmem:[%s1 + $0x240] sm:$0xf]
  %v192 = vld [vmem:[%s1 + $0x244] sm:$0xf]
  %v193 = vld [vmem:[%s1 + $0x248] sm:$0xf]
  %v194 = vld [vmem:[%s1 + $0x24c] sm:$0xf]
  %v195 = vld [vmem:[%s1 + $0x250] sm:$0xf]
  %v196 = vld [vmem:[%s1 + $0x254] sm:$0xf]
  %v197 = vld [vmem:[%s1 + $0x258] sm:$0xf]
  %v198 = vld [vmem:[%s1 + $0x25c] sm:$0xf]
  %v199 = vld [vmem:[%s1 + $0x260] sm:$0xf]
  %v200 = vld [vmem:[%s1 + $0x264] sm:$0xf]
  %v201 = vld [vmem:[%s1 + $0x268] sm:$0xf]
  %v202 = vld [vmem:[%s1 + $0x26c] sm:$0xf]
  %v203 = vld [vmem:[%s1 + $0x270] sm:$0xf]
  %v204 = vld [vmem:[%s1 + $0x274] sm:$0xf]
  %v205 = vld [vmem:[%s1 + $0x278] sm:$0xf]
  %v206 = vld [vmem:[%s1 + $0x27c] sm:$0xf]
  %v207 = vld [vmem:[%s1 + $0x280] sm:$0xf]
  %v208 = vld [vmem:[%s1 + $0x284] sm:$0xf]
  %v209 = vld [vmem:[%s1 + $0x288] sm:$0xf]
  %v210 = vld [vmem:[%s1 + $0x28c] sm:$0xf]
  %v211 = vld [vmem:[%s1 + $0x290] sm:$0xf]
  %v212 = vld [vmem:[%s1 + $0x294] sm:$0xf]
  %v213 = vld [vmem:[%s1 + $0x298] sm:$0xf]
  %v214 = vld [vmem:[%s1 + $0x29c] sm:$0xf]
  %v215 = vld [vmem:[%s1 + $0x2a0] sm:$0xf]
  %v216 = vld [vmem:[%s1 + $0x2a4] sm:$0xf]
  %v217 = vld [vmem:[%s1 + $0x2a8] sm:$0xf]
  %v218 = vld [vmem:[%s1 + $0x2ac] sm:$0xf]
  %v219 = vld [vmem:[%s1 + $0x2b0] sm:$0xf]
  %v220 = vld [vmem:[%s1 + $0x2b4] sm:$0xf]
  %v221 = vld [vmem:[%s1 + $0x2b8] sm:$0xf]
  %v222 = vld [vmem:[%s1 + $0x2bc] sm:$0xf]
  %v223 = vld [vmem:[%s1 + $0x2c0] sm:$0xf]
  %v224 = vld [vmem:[%s1 + $0x2c4] sm:$0xf]
  %v225 = vld [vmem:[%s1 + $0x2c8] sm:$0xf]
  %v226 = vld [vmem:[%s1 + $0x2cc] sm:$0xf]
  %v227 = vld [vmem:[%s1 + $0x2d0] sm:$0xf]
  %v228 = vld [vmem:[%s1 + $0x2d4] sm:$0xf]
  %v229 = vld [vmem:[%s1 + $0x2d8] sm:$0xf]
  %v230 = vld [vmem:[%s1 + $0x2dc] sm:$0xf]
  %v231 = vld [vmem:[%s1 + $0x2e0] sm:$0xf]
  %v232 = vld [vmem:[%s1 + $0x2e4] sm:$0xf]
  %v233 = vld [vmem:[%s1 + $0x2e8] sm:$0xf]
  %v234 = vld [vmem:[%s1 + $0x2ec] sm:$0xf]
  %v235 = vld [vmem:[%s1 + $0x2f0] sm:$0xf]
  %v236 = vld [vmem:[%s1 + $0x2f4] sm:$0xf]
  %v237 = vld [vmem:[%s1 + $0x2f8] sm:$0xf]
  %v238 = vld [vmem:[%s1 + $0x2fc] sm:$0xf]
  %v239 = vld [vmem:[%s1 + $0x300] sm:$0xf]
  %v240 = vld [vmem:[%s1 + $0x304] sm:$0xf]
  %v241 = vld [vmem:[%s1 + $0x308] sm:$0xf]
  %v242 = vld [vmem:[%s1 + $0x30c] sm:$0xf]
  %v243 = vld [vmem:[%s1 + $0x310] sm:$0xf]
  %v244 = vld [vmem:[%s1 + $0x314] sm:$0xf]
  %v245 = vld [vmem:[%s1 + $0x318] sm:$0xf]
  %v246 = vld [vmem:[%s1 + $0x31c] sm:$0xf]
  %v247 = vld [vmem:[%s1 + $0x320] sm:$0xf]
  %v248 = vld [vmem:[%s1 + $0x324] sm:$0xf]
  %v249 = vld [vmem:[%s1 + $0x328] sm:$0xf]
  %v250 = vld [vmem:[%s1 + $0x32c] sm:$0xf]
  %v251 = vld [vmem:[%s1 + $0x330] sm:$0xf]
  %v252 = vld [vmem:[%s1 + $0x334] sm:$0xf]
  %v253 = vld [vmem:[%s1 + $0x338] sm:$0xf]
  %v254 = vld [vmem:[%s1 + $0x33c] sm:$0xf]
  %v255 = vld [vmem:[%s1 + $0x340] sm:$0xf]
  %v256 = vld [vmem:[%s1 + $0x344] sm:$0xf]
  %v257 = vld [vmem:[%s1 + $0x348] sm:$0xf]
  %v258 = vld [vmem:[%s1 + $0x34c] sm:$0xf]
  %v259 = vld [vmem:[%s1 + $0x350] sm:$0xf]
  %v260 = vld [vmem:[%s1 + $0x354] sm:$0xf]
  %v261 = vld [vmem:[%s1 + $0x358] sm:$0xf]
  %v262 = vld [vmem:[%s1 + $0x35c] sm:$0xf]
  %v263 = vld [vmem:[%s1 + $0x360] sm:$0xf]
  %v264 = vld [vmem:[%s1 + $0x364] sm:$0xf]
  %v265 = vld [vmem:[%s1 + $0x368] sm:$0xf]
  %v266 = vld [vmem:[%s1 + $0x36c] sm:$0xf]
  %v267 = vld [vmem:[%s1 + $0x370] sm:$0xf]
  %v268 = vld [vmem:[%s1 + $0x374] sm:$0xf]
  %v269 = vld [vmem:[%s1 + $0x378] sm:$0xf]
  %v270 = vld [vmem:[%s1 + $0x37c] sm:$0xf]
  %v271 = vld [vmem:[%s1 + $0x380] sm:$0xf]
  %v272 = vld [vmem:[%s1 + $0x384] sm:$0xf]
  %v273 = vld [vmem:[%s1 + $0x388] sm:$0xf]
  %v274 = vld [vmem:[%s1 + $0x38c] sm:$0xf]
  %v275 = vld [vmem:[%s1 + $0x390] sm:$0xf]
  %v276 = vld [vmem:[%s1 + $0x394] sm:$0xf]
  %v277 = vld [vmem:[%s1 + $0x398] sm:$0xf]
  %v278 = vld [vmem:[%s1 + $0x39c] sm:$0xf]
  %v279 = vld [vmem:[%s1 + $0x3a0] sm:$0xf]
  %v280 = vld [vmem:[%s1 + $0x3a4] sm:$0xf]
  %v281 = vld [vmem:[%s1 + $0x3a8] sm:$0xf]
  %v282 = vld [vmem:[%s1 + $0x3ac] sm:$0xf]
  %v283 = vld [vmem:[%s1 + $0x3b0] sm:$0xf]
  %v284 = vld [vmem:[%s1 + $0x3b4] sm:$0xf]
  %v285 = vld [vmem:[%s1 + $0x3b8] sm:$0xf]
  %v286 = vld [vmem:[%s1 + $0x3bc] sm:$0xf]
  %v287 = vld [vmem:[%s1 + $0x3c0] sm:$0xf]
  %v288 = vld [vmem:[%s1 + $0x3c4] sm:$0xf]
  %v289 = vld [vmem:[%s1 + $0x3c8] sm:$0xf]
  %v290 = vld [vmem:[%s1 + $0x3cc] sm:$0xf]
  %v291 = vld [vmem:[%s1 + $0x3d0] sm:$0xf]
  %v292 = vld [vmem:[%s1 + $0x3d4] sm:$0xf]
  %v293 = vld [vmem:[%s1 + $0x3d8] sm:$0xf]
  %v294 = vld [vmem:[%s1 + $0x3dc] sm:$0xf]
  %v295 = vld [vmem:[%s1 + $0x3e0] sm:$0xf]
  %v296 = vld [vmem:[%s1 + $0x3e4] sm:$0xf]
  %v297 = vld [vmem:[%s1 + $0x3e8] sm:$0xf]
  %v298 = vld [vmem:[%s1 + $0x3ec] sm:$0xf]
  %v299 = vld [vmem:[%s1 + $0x3f0] sm:$0xf]
  %v300 = vld [vmem:[%s1 + $0x3f4] sm:$0xf]
  %v301 = vld [vmem:[%s1 + $0x3f8] sm:$0xf]
  %v302 = vld [vmem:[%s1 + $0x3fc] sm:$0xf]
  %v303 = vld [vmem:[%s1 + $0x400] sm:$0xf]
  %v304 = vld [vmem:[%s1 + $0x404] sm:$0xf]
  %v305 = vld [vmem:[%s1 + $0x408] sm:$0xf]
  %v306 = vld [vmem:[%s1 + $0x40c] sm:$0xf]
  %v307 = vld [vmem:[%s1 + $0x410] sm:$0xf]
  %v308 = vld [vmem:[%s1 + $0x414] sm:$0xf]
  %v309 = vld [vmem:[%s1 + $0x418] sm:$0xf]
  %v310 = vld [vmem:[%s1 + $0x41c] sm:$0xf]
  %v311 = vld [vmem:[%s1 + $0x420] sm:$0xf]
  %v312 = vld [vmem:[%s1 + $0x424] sm:$0xf]
  %v313 = vld [vmem:[%s1 + $0x428] sm:$0xf]
  %v314 = vld [vmem:[%s1 + $0x42c] sm:$0xf]
  %v315 = vld [vmem:[%s1 + $0x430] sm:$0xf]
  %v316 = vld [vmem:[%s1 + $0x434] sm:$0xf]
  %v317 = vld [vmem:[%s1 + $0x438] sm:$0xf]
  %v318 = vld [vmem:[%s1 + $0x43c] sm:$0xf]
  %v319 = vld [vmem:[%s1 + $0x440] sm:$0xf]
  %v320 = vld [vmem:[%s1 + $0x444] sm:$0xf]
  %v321 = vld [vmem:[%s1 + $0x448] sm:$0xf]
  %v322 = vld [vmem:[%s1 + $0x44c] sm:$0xf]
  %v323 = vld [vmem:[%s1 + $0x450] sm:$0xf]
  %v324 = vld [vmem:[%s1 + $0x454] sm:$0xf]
  %v325 = vld [vmem:[%s1 + $0x458] sm:$0xf]
  %v326 = vld [vmem:[%s1 + $0x45c] sm:$0xf]
  %v327 = vld [vmem:[%s1 + $0x460] sm:$0xf]
  %v328 = vld [vmem:[%s1 + $0x464] sm:$0xf]
  %v329 = vld [vmem:[%s1 + $0x468] sm:$0xf]
  %v330 = vld [vmem:[%s1 + $0x46c] sm:$0xf]
  %v331 = vld [vmem:[%s1 + $0x470] sm:$0xf]
  %v332 = vld [vmem:[%s1 + $0x474] sm:$0xf]
  %v333 = vld [vmem:[%s1 + $0x478] sm:$0xf]
  %v334 = vld [vmem:[%s1 + $0x47c] sm:$0xf]
  %v335 = vld [vmem:[%s1 + $0x480] sm:$0xf]
  %v336 = vld [vmem:[%s1 + $0x484] sm:$0xf]
  %v337 = vld [vmem:[%s1 + $0x488] sm:$0xf]
  %v338 = vld [vmem:[%s1 + $0x48c] sm:$0xf]
  %v339 = vld [vmem:[%s1 + $0x490] sm:$0xf]
  %v340 = vld [vmem:[%s1 + $0x494] sm:$0xf]
  %v341 = vld [vmem:[%s1 + $0x498] sm:$0xf]
  %v342 = vld [vmem:[%s1 + $0x49c] sm:$0xf]
  %v343 = vld [vmem:[%s1 + $0x4a0] sm:$0xf]
  %v344 = vld [vmem:[%s1 + $0x4a4] sm:$0xf]
  %v345 = vld [vmem:[%s1 + $0x4a8] sm:$0xf]
  %v346 = vld [vmem:[%s1 + $0x4ac] sm:$0xf]
  %v347 = vld [vmem:[%s1 + $0x4b0] sm:$0xf]
  %v348 = vld [vmem:[%s1 + $0x4b4] sm:$0xf]
  %v349 = vld [vmem:[%s1 + $0x4b8] sm:$0xf]
  %v350 = vld [vmem:[%s1 + $0x4bc] sm:$0xf]
  %v351 = vld [vmem:[%s1 + $0x4c0] sm:$0xf]
  %v352 = vld [vmem:[%s1 + $0x4c4] sm:$0xf]
  %v353 = vld [vmem:[%s1 + $0x4c8] sm:$0xf]
  %v354 = vld [vmem:[%s1 + $0x4cc] sm:$0xf]
  %v355 = vld [vmem:[%s1 + $0x4d0] sm:$0xf]
  %v356 = vld [vmem:[%s1 + $0x4d4] sm:$0xf]
  %v357 = vld [vmem:[%s1 + $0x4d8] sm:$0xf]
  %v358 = vld [vmem:[%s1 + $0x4dc] sm:$0xf]
  %v359 = vld [vmem:[%s1 + $0x4e0] sm:$0xf]
  %v360 = vld [vmem:[%s1 + $0x4e4] sm:$0xf]
  %v361 = vld [vmem:[%s1 + $0x4e8] sm:$0xf]
  %v362 = vld [vmem:[%s1 + $0x4ec] sm:$0xf]
  %v363 = vld [vmem:[%s1 + $0x4f0] sm:$0xf]
  %v364 = vld [vmem:[%s1 + $0x4f4] sm:$0xf]
  %v365 = vld [vmem:[%s1 + $0x4f8] sm:$0xf]
  %v366 = vld [vmem:[%s1 + $0x4fc] sm:$0xf]
  %v367 = vld [vmem:[%s1 + $0x500] sm:$0xf]
  %v368 = vld [vmem:[%s1 + $0x504] sm:$0xf]
  %v369 = vld [vmem:[%s1 + $0x508] sm:$0xf]
  %v370 = vld [vmem:[%s1 + $0x50c] sm:$0xf]
  %v371 = vld [vmem:[%s1 + $0x510] sm:$0xf]
  %v372 = vld [vmem:[%s1 + $0x514] sm:$0xf]
  %v373 = vld [vmem:[%s1 + $0x518] sm:$0xf]
  %v374 = vld [vmem:[%s1 + $0x51c] sm:$0xf]
  %v375 = vld [vmem:[%s1 + $0x520] sm:$0xf]
  %v376 = vld [vmem:[%s1 + $0x524] sm:$0xf]
  %v377 = vld [vmem:[%s1 + $0x528] sm:$0xf]
  %v378 = vld [vmem:[%s1 + $0x52c] sm:$0xf]
  %v379 = vld [vmem:[%s1 + $0x530] sm:$0xf]
  %v380 = vld [vmem:[%s1 + $0x534] sm:$0xf]
  %v381 = vld [vmem:[%s1 + $0x538] sm:$0xf]
  %v382 = vld [vmem:[%s1 + $0x53c] sm:$0xf]
  %v383 = vld [vmem:[%s1 + $0x540] sm:$0xf]
  %v384 = vld [vmem:[%s1 + $0x544] sm:$0xf]
  %v385 = vld [vmem:[%s1 + $0x548] sm:$0xf]
  %v386 = vld [vmem:[%s1 + $0x54c] sm:$0xf]
  %v387 = vld [vmem:[%s1 + $0x550] sm:$0xf]
  %v388 = vld [vmem:[%s1 + $0x554] sm:$0xf]
  %v389 = vld [vmem:[%s1 + $0x558] sm:$0xf]
  %v390 = vld [vmem:[%s1 + $0x55c] sm:$0xf]
  %v391 = vld [vmem:[%s1 + $0x560] sm:$0xf]
  %v392 = vld [vmem:[%s1 + $0x564] sm:$0xf]
  %v393 = vld [vmem:[%s1 + $0x568] sm:$0xf]
  %v394 = vld [vmem:[%s1 + $0x56c] sm:$0xf]
  %v395 = vld [vmem:[%s1 + $0x570] sm:$0xf]
  %v396 = vld [vmem:[%s1 + $0x574] sm:$0xf]
  %v397 = vld [vmem:[%s1 + $0x578] sm:$0xf]
  %v398 = vld [vmem:[%s1 + $0x57c] sm:$0xf]
  %v399 = vld [vmem:[%s1 + $0x580] sm:$0xf]
  %v400 = vld [vmem:[%s1 + $0x584] sm:$0xf]
  %v401 = vld [vmem:[%s1 + $0x588] sm:$0xf]
  %v402 = vld [vmem:[%s1 + $0x58c] sm:$0xf]
  %v403 = vld [vmem:[%s1 + $0x590] sm:$0xf]
  %v404 = vld [vmem:[%s1 + $0x594] sm:$0xf]
  %v405 = vld [vmem:[%s1 + $0x598] sm:$0xf]
  %v406 = vld [vmem:[%s1 + $0x59c] sm:$0xf]
  %v407 = vld [vmem:[%s1 + $0x5a0] sm:$0xf]
  %v408 = vld [vmem:[%s1 + $0x5a4] sm:$0xf]
  %v409 = vld [vmem:[%s1 + $0x5a8] sm:$0xf]
  %v410 = vld [vmem:[%s1 + $0x5ac] sm:$0xf]
  %v411 = vld [vmem:[%s1 + $0x5b0] sm:$0xf]
  %v412 = vld [vmem:[%s1 + $0x5b4] sm:$0xf]
  %v413 = vld [vmem:[%s1 + $0x5b8] sm:$0xf]
  %v414 = vld [vmem:[%s1 + $0x5bc] sm:$0xf]
  %v415 = vld [vmem:[%s1 + $0x5c0] sm:$0xf]
  %v416 = vld [vmem:[%s1 + $0x5c4] sm:$0xf]
  %v417 = vld [vmem:[%s1 + $0x5c8] sm:$0xf]
  %v418 = vld [vmem:[%s1 + $0x5cc] sm:$0xf]
  %v419 = vld [vmem:[%s1 + $0x5d0] sm:$0xf]
  %v420 = vld [vmem:[%s1 + $0x5d4] sm:$0xf]
  %v421 = vld [vmem:[%s1 + $0x5d8] sm:$0xf]
  %v422 = vld [vmem:[%s1 + $0x5dc] sm:$0xf]
  %v423 = vld [vmem:[%s1 + $0x5e0] sm:$0xf]
  %v424 = vld [vmem:[%s1 + $0x5e4] sm:$0xf]
  %v425 = vld [vmem:[%s1 + $0x5e8] sm:$0xf]
  %v426 = vld [vmem:[%s1 + $0x5ec] sm:$0xf]
  %v427 = vld [vmem:[%s1 + $0x5f0] sm:$0xf]
  %v428 = vld [vmem:[%s1 + $0x5f4] sm:$0xf]
  %v429 = vld [vmem:[%s1 + $0x5f8] sm:$0xf]
  %v430 = vld [vmem:[%s1 + $0x5fc] sm:$0xf]
  %v431 = vld [vmem:[%s1 + $0x600] sm:$0xf]
  %v432 = vld [vmem:[%s1 + $0x604] sm:$0xf]
  %v433 = vld [vmem:[%s1 + $0x608] sm:$0xf]
  %v434 = vld [vmem:[%s1 + $0x60c] sm:$0xf]
  %v435 = vld [vmem:[%s1 + $0x610] sm:$0xf]
  %v436 = vld [vmem:[%s1 + $0x614] sm:$0xf]
  %v437 = vld [vmem:[%s1 + $0x618] sm:$0xf]
  %v438 = vld [vmem:[%s1 + $0x61c] sm:$0xf]
  %v439 = vld [vmem:[%s1 + $0x620] sm:$0xf]
  %v440 = vld [vmem:[%s1 + $0x624] sm:$0xf]
  %v441 = vld [vmem:[%s1 + $0x628] sm:$0xf]
  %v442 = vld [vmem:[%s1 + $0x62c] sm:$0xf]
  %v443 = vld [vmem:[%s1 + $0x630] sm:$0xf]
  %v444 = vld [vmem:[%s1 + $0x634] sm:$0xf]
  %v445 = vld [vmem:[%s1 + $0x638] sm:$0xf]
  %v446 = vld [vmem:[%s1 + $0x63c] sm:$0xf]
  %v447 = vld [vmem:[%s1 + $0x640] sm:$0xf]
  %v448 = vld [vmem:[%s1 + $0x644] sm:$0xf]
  %v449 = vld [vmem:[%s1 + $0x648] sm:$0xf]
  %v450 = vld [vmem:[%s1 + $0x64c] sm:$0xf]
  %v451 = vld [vmem:[%s1 + $0x650] sm:$0xf]
  %v452 = vld [vmem:[%s1 + $0x654] sm:$0xf]
  %v453 = vld [vmem:[%s1 + $0x658] sm:$0xf]
  %v454 = vld [vmem:[%s1 + $0x65c] sm:$0xf]
  %v455 = vld [vmem:[%s1 + $0x660] sm:$0xf]
  %v456 = vld [vmem:[%s1 + $0x664] sm:$0xf]
  %v457 = vld [vmem:[%s1 + $0x668] sm:$0xf]
  %v458 = vld [vmem:[%s1 + $0x66c] sm:$0xf]
  %v459 = vld [vmem:[%s1 + $0x670] sm:$0xf]
  %v460 = vld [vmem:[%s1 + $0x674] sm:$0xf]
  %v461 = vld [vmem:[%s1 + $0x678] sm:$0xf]
  %v462 = vld [vmem:[%s1 + $0x67c] sm:$0xf]
  %v463 = vld [vmem:[%s1 + $0x680] sm:$0xf]
  %v464 = vld [vmem:[%s1 + $0x684] sm:$0xf]
  %v465 = vld [vmem:[%s1 + $0x688] sm:$0xf]
  %v466 = vld [vmem:[%s1 + $0x68c] sm:$0xf]
  %v467 = vld [vmem:[%s1 + $0x690] sm:$0xf]
  %v468 = vld [vmem:[%s1 + $0x694] sm:$0xf]
  %v469 = vld [vmem:[%s1 + $0x698] sm:$0xf]
  %v470 = vld [vmem:[%s1 + $0x69c] sm:$0xf]
  %v471 = vld [vmem:[%s1 + $0x6a0] sm:$0xf]
  %v472 = vld [vmem:[%s1 + $0x6a4] sm:$0xf]
  %v473 = vld [vmem:[%s1 + $0x6a8] sm:$0xf]
  %v474 = vld [vmem:[%s1 + $0x6ac] sm:$0xf]
  %v475 = vld [vmem:[%s1 + $0x6b0] sm:$0xf]
  %v476 = vld [vmem:[%s1 + $0x6b4] sm:$0xf]
  %v477 = vld [vmem:[%s1 + $0x6b8] sm:$0xf]
  %v478 = vld [vmem:[%s1 + $0x6bc] sm:$0xf]
  %v479 = vld [vmem:[%s1 + $0x6c0] sm:$0xf]
  %v480 = vld [vmem:[%s1 + $0x6c4] sm:$0xf]
  %v481 = vld [vmem:[%s1 + $0x6c8] sm:$0xf]
  %v482 = vld [vmem:[%s1 + $0x6cc] sm:$0xf]
  %v483 = vld [vmem:[%s1 + $0x6d0] sm:$0xf]
  %v484 = vld [vmem:[%s1 + $0x6d4] sm:$0xf]
  %v485 = vld [vmem:[%s1 + $0x6d8] sm:$0xf]
  %v486 = vld [vmem:[%s1 + $0x6dc] sm:$0xf]
  %v487 = vld [vmem:[%s1 + $0x6e0] sm:$0xf]
  %v488 = vld [vmem:[%s1 + $0x6e4] sm:$0xf]
  %v489 = vld [vmem:[%s1 + $0x6e8] sm:$0xf]
  %v490 = vld [vmem:[%s1 + $0x6ec] sm:$0xf]
  %v491 = vld [vmem:[%s1 + $0x6f0] sm:$0xf]
  %v492 = vld [vmem:[%s1 + $0x6f4] sm:$0xf]
  %v493 = vld [vmem:[%s1 + $0x6f8] sm:$0xf]
  %v494 = vld [vmem:[%s1 + $0x6fc] sm:$0xf]
  %v495 = vld [vmem:[%s1 + $0x700] sm:$0xf]
  %v496 = vld [vmem:[%s1 + $0x704] sm:$0xf]
  %v497 = vld [vmem:[%s1 + $0x708] sm:$0xf]
  %v498 = vld [vmem:[%s1 + $0x70c] sm:$0xf]
  %v499 = vld [vmem:[%s1 + $0x710] sm:$0xf]
  %v500 = vld [vmem:[%s1 + $0x714] sm:$0xf]
  %v501 = vld [vmem:[%s1 + $0x718] sm:$0xf]
  %v502 = vld [vmem:[%s1 + $0x71c] sm:$0xf]
  %v503 = vld [vmem:[%s1 + $0x720] sm:$0xf]
  %v504 = vld [vmem:[%s1 + $0x724] sm:$0xf]
  %v505 = vld [vmem:[%s1 + $0x728] sm:$0xf]
  %v506 = vld [vmem:[%s1 + $0x72c] sm:$0xf]
  %v507 = vld [vmem:[%s1 + $0x730] sm:$0xf]
  %v508 = vld [vmem:[%s1 + $0x734] sm:$0xf]
  %v509 = vld [vmem:[%s1 + $0x738] sm:$0xf]
  %v510 = vld [vmem:[%s1 + $0x73c] sm:$0xf]
  %v511 = vld [vmem:[%s1 + $0x740] sm:$0xf]
  %v512 = vld [vmem:[%s1 + $0x744] sm:$0xf]
  %v513 = vld [vmem:[%s1 + $0x748] sm:$0xf]
  %v514 = vld [vmem:[%s1 + $0x74c] sm:$0xf]
  %v515 = vld [vmem:[%s1 + $0x750] sm:$0xf]
  %v516 = vld [vmem:[%s1 + $0x754] sm:$0xf]
  %v517 = vld [vmem:[%s1 + $0x758] sm:$0xf]
  %v518 = vld [vmem:[%s1 + $0x75c] sm:$0xf]
  %v519 = vld [vmem:[%s1 + $0x760] sm:$0xf]
  %v520 = vld [vmem:[%s1 + $0x764] sm:$0xf]
  %v521 = vld [vmem:[%s1 + $0x768] sm:$0xf]
  %v522 = vld [vmem:[%s1 + $0x76c] sm:$0xf]
  %v523 = vld [vmem:[%s1 + $0x770] sm:$0xf]
  %v524 = vld [vmem:[%s1 + $0x774] sm:$0xf]
  %v525 = vld [vmem:[%s1 + $0x778] sm:$0xf]
  %v526 = vld [vmem:[%s1 + $0x77c] sm:$0xf]
  %v527 = vld [vmem:[%s1 + $0x780] sm:$0xf]
  %v528 = vld [vmem:[%s1 + $0x784] sm:$0xf]
  %v529 = vld [vmem:[%s1 + $0x788] sm:$0xf]
  %v530 = vld [vmem:[%s1 + $0x78c] sm:$0xf]
  %v531 = vld [vmem:[%s1 + $0x790] sm:$0xf]
  %v532 = vld [vmem:[%s1 + $0x794] sm:$0xf]
  %v533 = vld [vmem:[%s1 + $0x798] sm:$0xf]
  %v534 = vld [vmem:[%s1 + $0x79c] sm:$0xf]
  %v535 = vld [vmem:[%s1 + $0x7a0] sm:$0xf]
  %v536 = vld [vmem:[%s1 + $0x7a4] sm:$0xf]
  %v537 = vld [vmem:[%s1 + $0x7a8] sm:$0xf]
  %v538 = vld [vmem:[%s1 + $0x7ac] sm:$0xf]
  %v539 = vld [vmem:[%s1 + $0x7b0] sm:$0xf]
  %v540 = vld [vmem:[%s1 + $0x7b4] sm:$0xf]
  %v541 = vld [vmem:[%s1 + $0x7b8] sm:$0xf]
  %v542 = vld [vmem:[%s1 + $0x7bc] sm:$0xf]
  %v543 = vld [vmem:[%s1 + $0x7c0] sm:$0xf]
  %v544 = vld [vmem:[%s1 + $0x7c4] sm:$0xf]
  %v545 = vld [vmem:[%s1 + $0x7c8] sm:$0xf]
  %v546 = vld [vmem:[%s1 + $0x7cc] sm:$0xf]
  %v547 = vld [vmem:[%s1 + $0x7d0] sm:$0xf]
  %v548 = vld [vmem:[%s1 + $0x7d4] sm:$0xf]
  %v549 = vld [vmem:[%s1 + $0x7d8] sm:$0xf]
  %v550 = vld [vmem:[%s1 + $0x7dc] sm:$0xf]
  %v551 = vld [vmem:[%s1 + $0x7e0] sm:$0xf]
  %v552 = vld [vmem:[%s1 + $0x7e4] sm:$0xf]
  %v553 = vld [vmem:[%s1 + $0x7e8] sm:$0xf]
  %v554 = vld [vmem:[%s1 + $0x7ec] sm:$0xf]
  %v555 = vld [vmem:[%s1 + $0x7f0] sm:$0xf]
  %v556 = vld [vmem:[%s1 + $0x7f4] sm:$0xf]
  %v557 = vld [vmem:[%s1 + $0x7f8] sm:$0xf]
  %v558 = vld [vmem:[%s1 + $0x7fc] sm:$0xf]
  %v559 = vld [vmem:[%s2] sm:$0x1]
  %v561 = vlaneseq
  %v562 = vshrl.u32 %v561, 7
  %v563 = vsub.s32 0, %v562
  %v564 = vrot.slane %v559, %v563
  %v598 = vunpack.c.l.b16 %v15
  %v599 = vunpack.c.h.b16 %v15
  %v600 = vunpack.c.l.b16 %v16
  %v601 = vunpack.c.h.b16 %v16
  %v602 = vunpack.c.l.b16 %v17
  %v603 = vunpack.c.h.b16 %v17
  %v604 = vunpack.c.l.b16 %v18
  %v605 = vunpack.c.h.b16 %v18
  %v606 = vunpack.c.l.b16 %v19
  %v607 = vunpack.c.h.b16 %v19
  %v608 = vunpack.c.l.b16 %v20
  %v609 = vunpack.c.h.b16 %v20
  %v610 = vunpack.c.l.b16 %v21
  %v611 = vunpack.c.h.b16 %v21
  %v612 = vunpack.c.l.b16 %v22
  %v613 = vunpack.c.h.b16 %v22
  %v614 = vunpack.c.l.b16 %v23
  %v615 = vunpack.c.h.b16 %v23
  %v616 = vunpack.c.l.b16 %v24
  %v617 = vunpack.c.h.b16 %v24
  %v618 = vunpack.c.l.b16 %v25
  %v619 = vunpack.c.h.b16 %v25
  %v620 = vunpack.c.l.b16 %v26
  %v621 = vunpack.c.h.b16 %v26
  %v622 = vunpack.c.l.b16 %v27
  %v623 = vunpack.c.h.b16 %v27
  %v624 = vunpack.c.l.b16 %v28
  %v625 = vunpack.c.h.b16 %v28
  %v626 = vunpack.c.l.b16 %v29
  %v627 = vunpack.c.h.b16 %v29
  %v628 = vunpack.c.l.b16 %v30
  %v629 = vunpack.c.h.b16 %v30
  %v630 = vunpack.c.l.b16 %v31
  %v631 = vunpack.c.h.b16 %v31
  %v632 = vunpack.c.l.b16 %v32
  %v633 = vunpack.c.h.b16 %v32
  %v634 = vunpack.c.l.b16 %v33
  %v635 = vunpack.c.h.b16 %v33
  %v636 = vunpack.c.l.b16 %v34
  %v637 = vunpack.c.h.b16 %v34
  %v638 = vunpack.c.l.b16 %v35
  %v639 = vunpack.c.h.b16 %v35
  %v640 = vunpack.c.l.b16 %v36
  %v641 = vunpack.c.h.b16 %v36
  %v642 = vunpack.c.l.b16 %v37
  %v643 = vunpack.c.h.b16 %v37
  %v644 = vunpack.c.l.b16 %v38
  %v645 = vunpack.c.h.b16 %v38
  %v646 = vunpack.c.l.b16 %v39
  %v647 = vunpack.c.h.b16 %v39
  %v648 = vunpack.c.l.b16 %v40
  %v649 = vunpack.c.h.b16 %v40
  %v650 = vunpack.c.l.b16 %v41
  %v651 = vunpack.c.h.b16 %v41
  %v652 = vunpack.c.l.b16 %v42
  %v653 = vunpack.c.h.b16 %v42
  %v654 = vunpack.c.l.b16 %v43
  %v655 = vunpack.c.h.b16 %v43
  %v656 = vunpack.c.l.b16 %v44
  %v657 = vunpack.c.h.b16 %v44
  %v658 = vunpack.c.l.b16 %v45
  %v659 = vunpack.c.h.b16 %v45
  %v660 = vunpack.c.l.b16 %v46
  %v661 = vunpack.c.h.b16 %v46
  %v662 = vpack.c.b16 %v630, %v598
  %v663 = vpack.c.b16 %v631, %v599
  %v664 = vpack.c.b16 %v632, %v600
  %v665 = vpack.c.b16 %v633, %v601
  %v666 = vpack.c.b16 %v634, %v602
  %v667 = vpack.c.b16 %v635, %v603
  %v668 = vpack.c.b16 %v636, %v604
  %v669 = vpack.c.b16 %v637, %v605
  %v670 = vpack.c.b16 %v638, %v606
  %v671 = vpack.c.b16 %v639, %v607
  %v672 = vpack.c.b16 %v640, %v608
  %v673 = vpack.c.b16 %v641, %v609
  %v674 = vpack.c.b16 %v642, %v610
  %v675 = vpack.c.b16 %v643, %v611
  %v676 = vpack.c.b16 %v644, %v612
  %v677 = vpack.c.b16 %v645, %v613
  %v678 = vpack.c.b16 %v646, %v614
  %v679 = vpack.c.b16 %v647, %v615
  %v680 = vpack.c.b16 %v648, %v616
  %v681 = vpack.c.b16 %v649, %v617
  %v682 = vpack.c.b16 %v650, %v618
  %v683 = vpack.c.b16 %v651, %v619
  %v684 = vpack.c.b16 %v652, %v620
  %v685 = vpack.c.b16 %v653, %v621
  %v686 = vpack.c.b16 %v654, %v622
  %v687 = vpack.c.b16 %v655, %v623
  %v688 = vpack.c.b16 %v656, %v624
  %v689 = vpack.c.b16 %v657, %v625
  %v690 = vpack.c.b16 %v658, %v626
  %v691 = vpack.c.b16 %v659, %v627
  %v692 = vpack.c.b16 %v660, %v628
  %v693 = vpack.c.b16 %v661, %v629
  %v1238 = vunpack.c.l.b16 %v47
  %v1239 = vunpack.c.l.b16 %v48
  %v1240 = vunpack.c.l.b16 %v49
  %v1241 = vunpack.c.l.b16 %v50
  %v1242 = vunpack.c.l.b16 %v51
  %v1243 = vunpack.c.l.b16 %v52
  %v1244 = vunpack.c.l.b16 %v53
  %v1245 = vunpack.c.l.b16 %v54
  %v1246 = vunpack.c.l.b16 %v55
  %v1247 = vunpack.c.l.b16 %v56
  %v1248 = vunpack.c.l.b16 %v57
  %v1249 = vunpack.c.l.b16 %v58
  %v1250 = vunpack.c.l.b16 %v59
  %v1251 = vunpack.c.l.b16 %v60
  %v1252 = vunpack.c.l.b16 %v61
  %v1253 = vunpack.c.l.b16 %v62
  %v1254 = vunpack.c.l.b16 %v63
  %v1255 = vunpack.c.l.b16 %v64
  %v1256 = vunpack.c.l.b16 %v65
  %v1257 = vunpack.c.l.b16 %v66
  %v1258 = vunpack.c.l.b16 %v67
  %v1259 = vunpack.c.l.b16 %v68
  %v1260 = vunpack.c.l.b16 %v69
  %v1261 = vunpack.c.l.b16 %v70
  %v1262 = vunpack.c.l.b16 %v71
  %v1263 = vunpack.c.l.b16 %v72
  %v1264 = vunpack.c.l.b16 %v73
  %v1265 = vunpack.c.l.b16 %v74
  %v1266 = vunpack.c.l.b16 %v75
  %v1267 = vunpack.c.l.b16 %v76
  %v1268 = vunpack.c.l.b16 %v77
  %v1269 = vunpack.c.l.b16 %v78
  %v1270 = vunpack.c.l.b16 %v79
  %v1271 = vunpack.c.l.b16 %v80
  %v1272 = vunpack.c.l.b16 %v81
  %v1273 = vunpack.c.l.b16 %v82
  %v1274 = vunpack.c.l.b16 %v83
  %v1275 = vunpack.c.l.b16 %v84
  %v1276 = vunpack.c.l.b16 %v85
  %v1277 = vunpack.c.l.b16 %v86
  %v1278 = vunpack.c.l.b16 %v87
  %v1279 = vunpack.c.l.b16 %v88
  %v1280 = vunpack.c.l.b16 %v89
  %v1281 = vunpack.c.l.b16 %v90
  %v1282 = vunpack.c.l.b16 %v91
  %v1283 = vunpack.c.l.b16 %v92
  %v1284 = vunpack.c.l.b16 %v93
  %v1285 = vunpack.c.l.b16 %v94
  %v1286 = vunpack.c.l.b16 %v95
  %v1287 = vunpack.c.l.b16 %v96
  %v1288 = vunpack.c.l.b16 %v97
  %v1289 = vunpack.c.l.b16 %v98
  %v1290 = vunpack.c.l.b16 %v99
  %v1291 = vunpack.c.l.b16 %v100
  %v1292 = vunpack.c.l.b16 %v101
  %v1293 = vunpack.c.l.b16 %v102
  %v1294 = vunpack.c.l.b16 %v103
  %v1295 = vunpack.c.l.b16 %v104
  %v1296 = vunpack.c.l.b16 %v105
  %v1297 = vunpack.c.l.b16 %v106
  %v1298 = vunpack.c.l.b16 %v107
  %v1299 = vunpack.c.l.b16 %v108
  %v1300 = vunpack.c.l.b16 %v109
  %v1301 = vunpack.c.l.b16 %v110
  %v1302 = vunpack.c.l.b16 %v111
  %v1303 = vunpack.c.l.b16 %v112
  %v1304 = vunpack.c.l.b16 %v113
  %v1305 = vunpack.c.l.b16 %v114
  %v1306 = vunpack.c.l.b16 %v115
  %v1307 = vunpack.c.l.b16 %v116
  %v1308 = vunpack.c.l.b16 %v117
  %v1309 = vunpack.c.l.b16 %v118
  %v1310 = vunpack.c.l.b16 %v119
  %v1311 = vunpack.c.l.b16 %v120
  %v1312 = vunpack.c.l.b16 %v121
  %v1313 = vunpack.c.l.b16 %v122
  %v1314 = vunpack.c.l.b16 %v123
  %v1315 = vunpack.c.l.b16 %v124
  %v1316 = vunpack.c.l.b16 %v125
  %v1317 = vunpack.c.l.b16 %v126
  %v1318 = vunpack.c.l.b16 %v127
  %v1319 = vunpack.c.l.b16 %v128
  %v1320 = vunpack.c.l.b16 %v129
  %v1321 = vunpack.c.l.b16 %v130
  %v1322 = vunpack.c.l.b16 %v131
  %v1323 = vunpack.c.l.b16 %v132
  %v1324 = vunpack.c.l.b16 %v133
  %v1325 = vunpack.c.l.b16 %v134
  %v1326 = vunpack.c.l.b16 %v135
  %v1327 = vunpack.c.l.b16 %v136
  %v1328 = vunpack.c.l.b16 %v137
  %v1329 = vunpack.c.l.b16 %v138
  %v1330 = vunpack.c.l.b16 %v139
  %v1331 = vunpack.c.l.b16 %v140
  %v1332 = vunpack.c.l.b16 %v141
  %v1333 = vunpack.c.l.b16 %v142
  %v1334 = vunpack.c.l.b16 %v143
  %v1335 = vunpack.c.l.b16 %v144
  %v1336 = vunpack.c.l.b16 %v145
  %v1337 = vunpack.c.l.b16 %v146
  %v1338 = vunpack.c.l.b16 %v147
  %v1339 = vunpack.c.l.b16 %v148
  %v1340 = vunpack.c.l.b16 %v149
  %v1341 = vunpack.c.l.b16 %v150
  %v1342 = vunpack.c.l.b16 %v151
  %v1343 = vunpack.c.l.b16 %v152
  %v1344 = vunpack.c.l.b16 %v153
  %v1345 = vunpack.c.l.b16 %v154
  %v1346 = vunpack.c.l.b16 %v155
  %v1347 = vunpack.c.l.b16 %v156
  %v1348 = vunpack.c.l.b16 %v157
  %v1349 = vunpack.c.l.b16 %v158
  %v1350 = vunpack.c.l.b16 %v159
  %v1351 = vunpack.c.l.b16 %v160
  %v1352 = vunpack.c.l.b16 %v161
  %v1353 = vunpack.c.l.b16 %v162
  %v1354 = vunpack.c.l.b16 %v163
  %v1355 = vunpack.c.l.b16 %v164
  %v1356 = vunpack.c.l.b16 %v165
  %v1357 = vunpack.c.l.b16 %v166
  %v1358 = vunpack.c.l.b16 %v167
  %v1359 = vunpack.c.l.b16 %v168
  %v1360 = vunpack.c.l.b16 %v169
  %v1361 = vunpack.c.l.b16 %v170
  %v1362 = vunpack.c.l.b16 %v171
  %v1363 = vunpack.c.l.b16 %v172
  %v1364 = vunpack.c.l.b16 %v173
  %v1365 = vunpack.c.l.b16 %v174
  %v1366 = vunpack.c.l.b16 %v175
  %v1367 = vunpack.c.l.b16 %v176
  %v1368 = vunpack.c.l.b16 %v177
  %v1369 = vunpack.c.l.b16 %v178
  %v1370 = vunpack.c.l.b16 %v179
  %v1371 = vunpack.c.l.b16 %v180
  %v1372 = vunpack.c.l.b16 %v181
  %v1373 = vunpack.c.l.b16 %v182
  %v1374 = vunpack.c.l.b16 %v183
  %v1375 = vunpack.c.l.b16 %v184
  %v1376 = vunpack.c.l.b16 %v185
  %v1377 = vunpack.c.l.b16 %v186
  %v1378 = vunpack.c.l.b16 %v187
  %v1379 = vunpack.c.l.b16 %v188
  %v1380 = vunpack.c.l.b16 %v189
  %v1381 = vunpack.c.l.b16 %v190
  %v1382 = vunpack.c.l.b16 %v191
  %v1383 = vunpack.c.l.b16 %v192
  %v1384 = vunpack.c.l.b16 %v193
  %v1385 = vunpack.c.l.b16 %v194
  %v1386 = vunpack.c.l.b16 %v195
  %v1387 = vunpack.c.l.b16 %v196
  %v1388 = vunpack.c.l.b16 %v197
  %v1389 = vunpack.c.l.b16 %v198
  %v1390 = vunpack.c.l.b16 %v199
  %v1391 = vunpack.c.l.b16 %v200
  %v1392 = vunpack.c.l.b16 %v201
  %v1393 = vunpack.c.l.b16 %v202
  %v1394 = vunpack.c.l.b16 %v203
  %v1395 = vunpack.c.l.b16 %v204
  %v1396 = vunpack.c.l.b16 %v205
  %v1397 = vunpack.c.l.b16 %v206
  %v1398 = vunpack.c.l.b16 %v207
  %v1399 = vunpack.c.l.b16 %v208
  %v1400 = vunpack.c.l.b16 %v209
  %v1401 = vunpack.c.l.b16 %v210
  %v1402 = vunpack.c.l.b16 %v211
  %v1403 = vunpack.c.l.b16 %v212
  %v1404 = vunpack.c.l.b16 %v213
  %v1405 = vunpack.c.l.b16 %v214
  %v1406 = vunpack.c.l.b16 %v215
  %v1407 = vunpack.c.l.b16 %v216
  %v1408 = vunpack.c.l.b16 %v217
  %v1409 = vunpack.c.l.b16 %v218
  %v1410 = vunpack.c.l.b16 %v219
  %v1411 = vunpack.c.l.b16 %v220
  %v1412 = vunpack.c.l.b16 %v221
  %v1413 = vunpack.c.l.b16 %v222
  %v1414 = vunpack.c.l.b16 %v223
  %v1415 = vunpack.c.l.b16 %v224
  %v1416 = vunpack.c.l.b16 %v225
  %v1417 = vunpack.c.l.b16 %v226
  %v1418 = vunpack.c.l.b16 %v227
  %v1419 = vunpack.c.l.b16 %v228
  %v1420 = vunpack.c.l.b16 %v229
  %v1421 = vunpack.c.l.b16 %v230
  %v1422 = vunpack.c.l.b16 %v231
  %v1423 = vunpack.c.l.b16 %v232
  %v1424 = vunpack.c.l.b16 %v233
  %v1425 = vunpack.c.l.b16 %v234
  %v1426 = vunpack.c.l.b16 %v235
  %v1427 = vunpack.c.l.b16 %v236
  %v1428 = vunpack.c.l.b16 %v237
  %v1429 = vunpack.c.l.b16 %v238
  %v1430 = vunpack.c.l.b16 %v239
  %v1431 = vunpack.c.l.b16 %v240
  %v1432 = vunpack.c.l.b16 %v241
  %v1433 = vunpack.c.l.b16 %v242
  %v1434 = vunpack.c.l.b16 %v243
  %v1435 = vunpack.c.l.b16 %v244
  %v1436 = vunpack.c.l.b16 %v245
  %v1437 = vunpack.c.l.b16 %v246
  %v1438 = vunpack.c.l.b16 %v247
  %v1439 = vunpack.c.l.b16 %v248
  %v1440 = vunpack.c.l.b16 %v249
  %v1441 = vunpack.c.l.b16 %v250
  %v1442 = vunpack.c.l.b16 %v251
  %v1443 = vunpack.c.l.b16 %v252
  %v1444 = vunpack.c.l.b16 %v253
  %v1445 = vunpack.c.l.b16 %v254
  %v1446 = vunpack.c.l.b16 %v255
  %v1447 = vunpack.c.l.b16 %v256
  %v1448 = vunpack.c.l.b16 %v257
  %v1449 = vunpack.c.l.b16 %v258
  %v1450 = vunpack.c.l.b16 %v259
  %v1451 = vunpack.c.l.b16 %v260
  %v1452 = vunpack.c.l.b16 %v261
  %v1453 = vunpack.c.l.b16 %v262
  %v1454 = vunpack.c.l.b16 %v263
  %v1455 = vunpack.c.l.b16 %v264
  %v1456 = vunpack.c.l.b16 %v265
  %v1457 = vunpack.c.l.b16 %v266
  %v1458 = vunpack.c.l.b16 %v267
  %v1459 = vunpack.c.l.b16 %v268
  %v1460 = vunpack.c.l.b16 %v269
  %v1461 = vunpack.c.l.b16 %v270
  %v1462 = vunpack.c.l.b16 %v271
  %v1463 = vunpack.c.l.b16 %v272
  %v1464 = vunpack.c.l.b16 %v273
  %v1465 = vunpack.c.l.b16 %v274
  %v1466 = vunpack.c.l.b16 %v275
  %v1467 = vunpack.c.l.b16 %v276
  %v1468 = vunpack.c.l.b16 %v277
  %v1469 = vunpack.c.l.b16 %v278
  %v1470 = vunpack.c.l.b16 %v279
  %v1471 = vunpack.c.l.b16 %v280
  %v1472 = vunpack.c.l.b16 %v281
  %v1473 = vunpack.c.l.b16 %v282
  %v1474 = vunpack.c.l.b16 %v283
  %v1475 = vunpack.c.l.b16 %v284
  %v1476 = vunpack.c.l.b16 %v285
  %v1477 = vunpack.c.l.b16 %v286
  %v1478 = vunpack.c.l.b16 %v287
  %v1479 = vunpack.c.l.b16 %v288
  %v1480 = vunpack.c.l.b16 %v289
  %v1481 = vunpack.c.l.b16 %v290
  %v1482 = vunpack.c.l.b16 %v291
  %v1483 = vunpack.c.l.b16 %v292
  %v1484 = vunpack.c.l.b16 %v293
  %v1485 = vunpack.c.l.b16 %v294
  %v1486 = vunpack.c.l.b16 %v295
  %v1487 = vunpack.c.l.b16 %v296
  %v1488 = vunpack.c.l.b16 %v297
  %v1489 = vunpack.c.l.b16 %v298
  %v1490 = vunpack.c.l.b16 %v299
  %v1491 = vunpack.c.l.b16 %v300
  %v1492 = vunpack.c.l.b16 %v301
  %v1493 = vunpack.c.l.b16 %v302
  %v1494 = vunpack.c.l.b16 %v303
  %v1495 = vunpack.c.l.b16 %v304
  %v1496 = vunpack.c.l.b16 %v305
  %v1497 = vunpack.c.l.b16 %v306
  %v1498 = vunpack.c.l.b16 %v307
  %v1499 = vunpack.c.l.b16 %v308
  %v1500 = vunpack.c.l.b16 %v309
  %v1501 = vunpack.c.l.b16 %v310
  %v1502 = vunpack.c.l.b16 %v311
  %v1503 = vunpack.c.l.b16 %v312
  %v1504 = vunpack.c.l.b16 %v313
  %v1505 = vunpack.c.l.b16 %v314
  %v1506 = vunpack.c.l.b16 %v315
  %v1507 = vunpack.c.l.b16 %v316
  %v1508 = vunpack.c.l.b16 %v317
  %v1509 = vunpack.c.l.b16 %v318
  %v1510 = vunpack.c.l.b16 %v319
  %v1511 = vunpack.c.l.b16 %v320
  %v1512 = vunpack.c.l.b16 %v321
  %v1513 = vunpack.c.l.b16 %v322
  %v1514 = vunpack.c.l.b16 %v323
  %v1515 = vunpack.c.l.b16 %v324
  %v1516 = vunpack.c.l.b16 %v325
  %v1517 = vunpack.c.l.b16 %v326
  %v1518 = vunpack.c.l.b16 %v327
  %v1519 = vunpack.c.l.b16 %v328
  %v1520 = vunpack.c.l.b16 %v329
  %v1521 = vunpack.c.l.b16 %v330
  %v1522 = vunpack.c.l.b16 %v331
  %v1523 = vunpack.c.l.b16 %v332
  %v1524 = vunpack.c.l.b16 %v333
  %v1525 = vunpack.c.l.b16 %v334
  %v1526 = vunpack.c.l.b16 %v335
  %v1527 = vunpack.c.l.b16 %v336
  %v1528 = vunpack.c.l.b16 %v337
  %v1529 = vunpack.c.l.b16 %v338
  %v1530 = vunpack.c.l.b16 %v339
  %v1531 = vunpack.c.l.b16 %v340
  %v1532 = vunpack.c.l.b16 %v341
  %v1533 = vunpack.c.l.b16 %v342
  %v1534 = vunpack.c.l.b16 %v343
  %v1535 = vunpack.c.l.b16 %v344
  %v1536 = vunpack.c.l.b16 %v345
  %v1537 = vunpack.c.l.b16 %v346
  %v1538 = vunpack.c.l.b16 %v347
  %v1539 = vunpack.c.l.b16 %v348
  %v1540 = vunpack.c.l.b16 %v349
  %v1541 = vunpack.c.l.b16 %v350
  %v1542 = vunpack.c.l.b16 %v351
  %v1543 = vunpack.c.l.b16 %v352
  %v1544 = vunpack.c.l.b16 %v353
  %v1545 = vunpack.c.l.b16 %v354
  %v1546 = vunpack.c.l.b16 %v355
  %v1547 = vunpack.c.l.b16 %v356
  %v1548 = vunpack.c.l.b16 %v357
  %v1549 = vunpack.c.l.b16 %v358
  %v1550 = vunpack.c.l.b16 %v359
  %v1551 = vunpack.c.l.b16 %v360
  %v1552 = vunpack.c.l.b16 %v361
  %v1553 = vunpack.c.l.b16 %v362
  %v1554 = vunpack.c.l.b16 %v363
  %v1555 = vunpack.c.l.b16 %v364
  %v1556 = vunpack.c.l.b16 %v365
  %v1557 = vunpack.c.l.b16 %v366
  %v1558 = vunpack.c.l.b16 %v367
  %v1559 = vunpack.c.l.b16 %v368
  %v1560 = vunpack.c.l.b16 %v369
  %v1561 = vunpack.c.l.b16 %v370
  %v1562 = vunpack.c.l.b16 %v371
  %v1563 = vunpack.c.l.b16 %v372
  %v1564 = vunpack.c.l.b16 %v373
  %v1565 = vunpack.c.l.b16 %v374
  %v1566 = vunpack.c.l.b16 %v375
  %v1567 = vunpack.c.l.b16 %v376
  %v1568 = vunpack.c.l.b16 %v377
  %v1569 = vunpack.c.l.b16 %v378
  %v1570 = vunpack.c.l.b16 %v379
  %v1571 = vunpack.c.l.b16 %v380
  %v1572 = vunpack.c.l.b16 %v381
  %v1573 = vunpack.c.l.b16 %v382
  %v1574 = vunpack.c.l.b16 %v383
  %v1575 = vunpack.c.l.b16 %v384
  %v1576 = vunpack.c.l.b16 %v385
  %v1577 = vunpack.c.l.b16 %v386
  %v1578 = vunpack.c.l.b16 %v387
  %v1579 = vunpack.c.l.b16 %v388
  %v1580 = vunpack.c.l.b16 %v389
  %v1581 = vunpack.c.l.b16 %v390
  %v1582 = vunpack.c.l.b16 %v391
  %v1583 = vunpack.c.l.b16 %v392
  %v1584 = vunpack.c.l.b16 %v393
  %v1585 = vunpack.c.l.b16 %v394
  %v1586 = vunpack.c.l.b16 %v395
  %v1587 = vunpack.c.l.b16 %v396
  %v1588 = vunpack.c.l.b16 %v397
  %v1589 = vunpack.c.l.b16 %v398
  %v1590 = vunpack.c.l.b16 %v399
  %v1591 = vunpack.c.l.b16 %v400
  %v1592 = vunpack.c.l.b16 %v401
  %v1593 = vunpack.c.l.b16 %v402
  %v1594 = vunpack.c.l.b16 %v403
  %v1595 = vunpack.c.l.b16 %v404
  %v1596 = vunpack.c.l.b16 %v405
  %v1597 = vunpack.c.l.b16 %v406
  %v1598 = vunpack.c.l.b16 %v407
  %v1599 = vunpack.c.l.b16 %v408
  %v1600 = vunpack.c.l.b16 %v409
  %v1601 = vunpack.c.l.b16 %v410
  %v1602 = vunpack.c.l.b16 %v411
  %v1603 = vunpack.c.l.b16 %v412
  %v1604 = vunpack.c.l.b16 %v413
  %v1605 = vunpack.c.l.b16 %v414
  %v1606 = vunpack.c.l.b16 %v415
  %v1607 = vunpack.c.l.b16 %v416
  %v1608 = vunpack.c.l.b16 %v417
  %v1609 = vunpack.c.l.b16 %v418
  %v1610 = vunpack.c.l.b16 %v419
  %v1611 = vunpack.c.l.b16 %v420
  %v1612 = vunpack.c.l.b16 %v421
  %v1613 = vunpack.c.l.b16 %v422
  %v1614 = vunpack.c.l.b16 %v423
  %v1615 = vunpack.c.l.b16 %v424
  %v1616 = vunpack.c.l.b16 %v425
  %v1617 = vunpack.c.l.b16 %v426
  %v1618 = vunpack.c.l.b16 %v427
  %v1619 = vunpack.c.l.b16 %v428
  %v1620 = vunpack.c.l.b16 %v429
  %v1621 = vunpack.c.l.b16 %v430
  %v1622 = vunpack.c.l.b16 %v431
  %v1623 = vunpack.c.l.b16 %v432
  %v1624 = vunpack.c.l.b16 %v433
  %v1625 = vunpack.c.l.b16 %v434
  %v1626 = vunpack.c.l.b16 %v435
  %v1627 = vunpack.c.l.b16 %v436
  %v1628 = vunpack.c.l.b16 %v437
  %v1629 = vunpack.c.l.b16 %v438
  %v1630 = vunpack.c.l.b16 %v439
  %v1631 = vunpack.c.l.b16 %v440
  %v1632 = vunpack.c.l.b16 %v441
  %v1633 = vunpack.c.l.b16 %v442
  %v1634 = vunpack.c.l.b16 %v443
  %v1635 = vunpack.c.l.b16 %v444
  %v1636 = vunpack.c.l.b16 %v445
  %v1637 = vunpack.c.l.b16 %v446
  %v1638 = vunpack.c.l.b16 %v447
  %v1639 = vunpack.c.l.b16 %v448
  %v1640 = vunpack.c.l.b16 %v449
  %v1641 = vunpack.c.l.b16 %v450
  %v1642 = vunpack.c.l.b16 %v451
  %v1643 = vunpack.c.l.b16 %v452
  %v1644 = vunpack.c.l.b16 %v453
  %v1645 = vunpack.c.l.b16 %v454
  %v1646 = vunpack.c.l.b16 %v455
  %v1647 = vunpack.c.l.b16 %v456
  %v1648 = vunpack.c.l.b16 %v457
  %v1649 = vunpack.c.l.b16 %v458
  %v1650 = vunpack.c.l.b16 %v459
  %v1651 = vunpack.c.l.b16 %v460
  %v1652 = vunpack.c.l.b16 %v461
  %v1653 = vunpack.c.l.b16 %v462
  %v1654 = vunpack.c.l.b16 %v463
  %v1655 = vunpack.c.l.b16 %v464
  %v1656 = vunpack.c.l.b16 %v465
  %v1657 = vunpack.c.l.b16 %v466
  %v1658 = vunpack.c.l.b16 %v467
  %v1659 = vunpack.c.l.b16 %v468
  %v1660 = vunpack.c.l.b16 %v469
  %v1661 = vunpack.c.l.b16 %v470
  %v1662 = vunpack.c.l.b16 %v471
  %v1663 = vunpack.c.l.b16 %v472
  %v1664 = vunpack.c.l.b16 %v473
  %v1665 = vunpack.c.l.b16 %v474
  %v1666 = vunpack.c.l.b16 %v475
  %v1667 = vunpack.c.l.b16 %v476
  %v1668 = vunpack.c.l.b16 %v477
  %v1669 = vunpack.c.l.b16 %v478
  %v1670 = vunpack.c.l.b16 %v479
  %v1671 = vunpack.c.l.b16 %v480
  %v1672 = vunpack.c.l.b16 %v481
  %v1673 = vunpack.c.l.b16 %v482
  %v1674 = vunpack.c.l.b16 %v483
  %v1675 = vunpack.c.l.b16 %v484
  %v1676 = vunpack.c.l.b16 %v485
  %v1677 = vunpack.c.l.b16 %v486
  %v1678 = vunpack.c.l.b16 %v487
  %v1679 = vunpack.c.l.b16 %v488
  %v1680 = vunpack.c.l.b16 %v489
  %v1681 = vunpack.c.l.b16 %v490
  %v1682 = vunpack.c.l.b16 %v491
  %v1683 = vunpack.c.l.b16 %v492
  %v1684 = vunpack.c.l.b16 %v493
  %v1685 = vunpack.c.l.b16 %v494
  %v1686 = vunpack.c.l.b16 %v495
  %v1687 = vunpack.c.l.b16 %v496
  %v1688 = vunpack.c.l.b16 %v497
  %v1689 = vunpack.c.l.b16 %v498
  %v1690 = vunpack.c.l.b16 %v499
  %v1691 = vunpack.c.l.b16 %v500
  %v1692 = vunpack.c.l.b16 %v501
  %v1693 = vunpack.c.l.b16 %v502
  %v1694 = vunpack.c.l.b16 %v503
  %v1695 = vunpack.c.l.b16 %v504
  %v1696 = vunpack.c.l.b16 %v505
  %v1697 = vunpack.c.l.b16 %v506
  %v1698 = vunpack.c.l.b16 %v507
  %v1699 = vunpack.c.l.b16 %v508
  %v1700 = vunpack.c.l.b16 %v509
  %v1701 = vunpack.c.l.b16 %v510
  %v1702 = vunpack.c.l.b16 %v511
  %v1703 = vunpack.c.l.b16 %v512
  %v1704 = vunpack.c.l.b16 %v513
  %v1705 = vunpack.c.l.b16 %v514
  %v1706 = vunpack.c.l.b16 %v515
  %v1707 = vunpack.c.l.b16 %v516
  %v1708 = vunpack.c.l.b16 %v517
  %v1709 = vunpack.c.l.b16 %v518
  %v1710 = vunpack.c.l.b16 %v519
  %v1711 = vunpack.c.l.b16 %v520
  %v1712 = vunpack.c.l.b16 %v521
  %v1713 = vunpack.c.l.b16 %v522
  %v1714 = vunpack.c.l.b16 %v523
  %v1715 = vunpack.c.l.b16 %v524
  %v1716 = vunpack.c.l.b16 %v525
  %v1717 = vunpack.c.l.b16 %v526
  %v1718 = vunpack.c.l.b16 %v527
  %v1719 = vunpack.c.l.b16 %v528
  %v1720 = vunpack.c.l.b16 %v529
  %v1721 = vunpack.c.l.b16 %v530
  %v1722 = vunpack.c.l.b16 %v531
  %v1723 = vunpack.c.l.b16 %v532
  %v1724 = vunpack.c.l.b16 %v533
  %v1725 = vunpack.c.l.b16 %v534
  %v1726 = vunpack.c.l.b16 %v535
  %v1727 = vunpack.c.l.b16 %v536
  %v1728 = vunpack.c.l.b16 %v537
  %v1729 = vunpack.c.l.b16 %v538
  %v1730 = vunpack.c.l.b16 %v539
  %v1731 = vunpack.c.l.b16 %v540
  %v1732 = vunpack.c.l.b16 %v541
  %v1733 = vunpack.c.l.b16 %v542
  %v1734 = vunpack.c.l.b16 %v543
  %v1735 = vunpack.c.l.b16 %v544
  %v1736 = vunpack.c.l.b16 %v545
  %v1737 = vunpack.c.l.b16 %v546
  %v1738 = vunpack.c.l.b16 %v547
  %v1739 = vunpack.c.l.b16 %v548
  %v1740 = vunpack.c.l.b16 %v549
  %v1741 = vunpack.c.l.b16 %v550
  %v1742 = vunpack.c.l.b16 %v551
  %v1743 = vunpack.c.l.b16 %v552
  %v1744 = vunpack.c.l.b16 %v553
  %v1745 = vunpack.c.l.b16 %v554
  %v1746 = vunpack.c.l.b16 %v555
  %v1747 = vunpack.c.l.b16 %v556
  %v1748 = vunpack.c.l.b16 %v557
  %v1749 = vunpack.c.l.b16 %v558
  %v1750 = vpack.c.b16 %v1239, %v1238
  %v1751 = vpack.c.b16 %v1241, %v1240
  %v1752 = vpack.c.b16 %v1243, %v1242
  %v1753 = vpack.c.b16 %v1245, %v1244
  %v1754 = vpack.c.b16 %v1247, %v1246
  %v1755 = vpack.c.b16 %v1249, %v1248
  %v1756 = vpack.c.b16 %v1251, %v1250
  %v1757 = vpack.c.b16 %v1253, %v1252
  %v1758 = vpack.c.b16 %v1255, %v1254
  %v1759 = vpack.c.b16 %v1257, %v1256
  %v1760 = vpack.c.b16 %v1259, %v1258
  %v1761 = vpack.c.b16 %v1261, %v1260
  %v1762 = vpack.c.b16 %v1263, %v1262
  %v1763 = vpack.c.b16 %v1265, %v1264
  %v1764 = vpack.c.b16 %v1267, %v1266
  %v1765 = vpack.c.b16 %v1269, %v1268
  %v1766 = vpack.c.b16 %v1271, %v1270
  %v1767 = vpack.c.b16 %v1273, %v1272
  %v1768 = vpack.c.b16 %v1275, %v1274
  %v1769 = vpack.c.b16 %v1277, %v1276
  %v1770 = vpack.c.b16 %v1279, %v1278
  %v1771 = vpack.c.b16 %v1281, %v1280
  %v1772 = vpack.c.b16 %v1283, %v1282
  %v1773 = vpack.c.b16 %v1285, %v1284
  %v1774 = vpack.c.b16 %v1287, %v1286
  %v1775 = vpack.c.b16 %v1289, %v1288
  %v1776 = vpack.c.b16 %v1291, %v1290
  %v1777 = vpack.c.b16 %v1293, %v1292
  %v1778 = vpack.c.b16 %v1295, %v1294
  %v1779 = vpack.c.b16 %v1297, %v1296
  %v1780 = vpack.c.b16 %v1299, %v1298
  %v1781 = vpack.c.b16 %v1301, %v1300
  %v1782 = vpack.c.b16 %v1303, %v1302
  %v1783 = vpack.c.b16 %v1305, %v1304
  %v1784 = vpack.c.b16 %v1307, %v1306
  %v1785 = vpack.c.b16 %v1309, %v1308
  %v1786 = vpack.c.b16 %v1311, %v1310
  %v1787 = vpack.c.b16 %v1313, %v1312
  %v1788 = vpack.c.b16 %v1315, %v1314
  %v1789 = vpack.c.b16 %v1317, %v1316
  %v1790 = vpack.c.b16 %v1319, %v1318
  %v1791 = vpack.c.b16 %v1321, %v1320
  %v1792 = vpack.c.b16 %v1323, %v1322
  %v1793 = vpack.c.b16 %v1325, %v1324
  %v1794 = vpack.c.b16 %v1327, %v1326
  %v1795 = vpack.c.b16 %v1329, %v1328
  %v1796 = vpack.c.b16 %v1331, %v1330
  %v1797 = vpack.c.b16 %v1333, %v1332
  %v1798 = vpack.c.b16 %v1335, %v1334
  %v1799 = vpack.c.b16 %v1337, %v1336
  %v1800 = vpack.c.b16 %v1339, %v1338
  %v1801 = vpack.c.b16 %v1341, %v1340
  %v1802 = vpack.c.b16 %v1343, %v1342
  %v1803 = vpack.c.b16 %v1345, %v1344
  %v1804 = vpack.c.b16 %v1347, %v1346
  %v1805 = vpack.c.b16 %v1349, %v1348
  %v1806 = vpack.c.b16 %v1351, %v1350
  %v1807 = vpack.c.b16 %v1353, %v1352
  %v1808 = vpack.c.b16 %v1355, %v1354
  %v1809 = vpack.c.b16 %v1357, %v1356
  %v1810 = vpack.c.b16 %v1359, %v1358
  %v1811 = vpack.c.b16 %v1361, %v1360
  %v1812 = vpack.c.b16 %v1363, %v1362
  %v1813 = vpack.c.b16 %v1365, %v1364
  %v1814 = vpack.c.b16 %v1367, %v1366
  %v1815 = vpack.c.b16 %v1369, %v1368
  %v1816 = vpack.c.b16 %v1371, %v1370
  %v1817 = vpack.c.b16 %v1373, %v1372
  %v1818 = vpack.c.b16 %v1375, %v1374
  %v1819 = vpack.c.b16 %v1377, %v1376
  %v1820 = vpack.c.b16 %v1379, %v1378
  %v1821 = vpack.c.b16 %v1381, %v1380
  %v1822 = vpack.c.b16 %v1383, %v1382
  %v1823 = vpack.c.b16 %v1385, %v1384
  %v1824 = vpack.c.b16 %v1387, %v1386
  %v1825 = vpack.c.b16 %v1389, %v1388
  %v1826 = vpack.c.b16 %v1391, %v1390
  %v1827 = vpack.c.b16 %v1393, %v1392
  %v1828 = vpack.c.b16 %v1395, %v1394
  %v1829 = vpack.c.b16 %v1397, %v1396
  %v1830 = vpack.c.b16 %v1399, %v1398
  %v1831 = vpack.c.b16 %v1401, %v1400
  %v1832 = vpack.c.b16 %v1403, %v1402
  %v1833 = vpack.c.b16 %v1405, %v1404
  %v1834 = vpack.c.b16 %v1407, %v1406
  %v1835 = vpack.c.b16 %v1409, %v1408
  %v1836 = vpack.c.b16 %v1411, %v1410
  %v1837 = vpack.c.b16 %v1413, %v1412
  %v1838 = vpack.c.b16 %v1415, %v1414
  %v1839 = vpack.c.b16 %v1417, %v1416
  %v1840 = vpack.c.b16 %v1419, %v1418
  %v1841 = vpack.c.b16 %v1421, %v1420
  %v1842 = vpack.c.b16 %v1423, %v1422
  %v1843 = vpack.c.b16 %v1425, %v1424
  %v1844 = vpack.c.b16 %v1427, %v1426
  %v1845 = vpack.c.b16 %v1429, %v1428
  %v1846 = vpack.c.b16 %v1431, %v1430
  %v1847 = vpack.c.b16 %v1433, %v1432
  %v1848 = vpack.c.b16 %v1435, %v1434
  %v1849 = vpack.c.b16 %v1437, %v1436
  %v1850 = vpack.c.b16 %v1439, %v1438
  %v1851 = vpack.c.b16 %v1441, %v1440
  %v1852 = vpack.c.b16 %v1443, %v1442
  %v1853 = vpack.c.b16 %v1445, %v1444
  %v1854 = vpack.c.b16 %v1447, %v1446
  %v1855 = vpack.c.b16 %v1449, %v1448
  %v1856 = vpack.c.b16 %v1451, %v1450
  %v1857 = vpack.c.b16 %v1453, %v1452
  %v1858 = vpack.c.b16 %v1455, %v1454
  %v1859 = vpack.c.b16 %v1457, %v1456
  %v1860 = vpack.c.b16 %v1459, %v1458
  %v1861 = vpack.c.b16 %v1461, %v1460
  %v1862 = vpack.c.b16 %v1463, %v1462
  %v1863 = vpack.c.b16 %v1465, %v1464
  %v1864 = vpack.c.b16 %v1467, %v1466
  %v1865 = vpack.c.b16 %v1469, %v1468
  %v1866 = vpack.c.b16 %v1471, %v1470
  %v1867 = vpack.c.b16 %v1473, %v1472
  %v1868 = vpack.c.b16 %v1475, %v1474
  %v1869 = vpack.c.b16 %v1477, %v1476
  %v1870 = vpack.c.b16 %v1479, %v1478
  %v1871 = vpack.c.b16 %v1481, %v1480
  %v1872 = vpack.c.b16 %v1483, %v1482
  %v1873 = vpack.c.b16 %v1485, %v1484
  %v1874 = vpack.c.b16 %v1487, %v1486
  %v1875 = vpack.c.b16 %v1489, %v1488
  %v1876 = vpack.c.b16 %v1491, %v1490
  %v1877 = vpack.c.b16 %v1493, %v1492
  %v1878 = vpack.c.b16 %v1495, %v1494
  %v1879 = vpack.c.b16 %v1497, %v1496
  %v1880 = vpack.c.b16 %v1499, %v1498
  %v1881 = vpack.c.b16 %v1501, %v1500
  %v1882 = vpack.c.b16 %v1503, %v1502
  %v1883 = vpack.c.b16 %v1505, %v1504
  %v1884 = vpack.c.b16 %v1507, %v1506
  %v1885 = vpack.c.b16 %v1509, %v1508
  %v1886 = vpack.c.b16 %v1511, %v1510
  %v1887 = vpack.c.b16 %v1513, %v1512
  %v1888 = vpack.c.b16 %v1515, %v1514
  %v1889 = vpack.c.b16 %v1517, %v1516
  %v1890 = vpack.c.b16 %v1519, %v1518
  %v1891 = vpack.c.b16 %v1521, %v1520
  %v1892 = vpack.c.b16 %v1523, %v1522
  %v1893 = vpack.c.b16 %v1525, %v1524
  %v1894 = vpack.c.b16 %v1527, %v1526
  %v1895 = vpack.c.b16 %v1529, %v1528
  %v1896 = vpack.c.b16 %v1531, %v1530
  %v1897 = vpack.c.b16 %v1533, %v1532
  %v1898 = vpack.c.b16 %v1535, %v1534
  %v1899 = vpack.c.b16 %v1537, %v1536
  %v1900 = vpack.c.b16 %v1539, %v1538
  %v1901 = vpack.c.b16 %v1541, %v1540
  %v1902 = vpack.c.b16 %v1543, %v1542
  %v1903 = vpack.c.b16 %v1545, %v1544
  %v1904 = vpack.c.b16 %v1547, %v1546
  %v1905 = vpack.c.b16 %v1549, %v1548
  %v1906 = vpack.c.b16 %v1551, %v1550
  %v1907 = vpack.c.b16 %v1553, %v1552
  %v1908 = vpack.c.b16 %v1555, %v1554
  %v1909 = vpack.c.b16 %v1557, %v1556
  %v1910 = vpack.c.b16 %v1559, %v1558
  %v1911 = vpack.c.b16 %v1561, %v1560
  %v1912 = vpack.c.b16 %v1563, %v1562
  %v1913 = vpack.c.b16 %v1565, %v1564
  %v1914 = vpack.c.b16 %v1567, %v1566
  %v1915 = vpack.c.b16 %v1569, %v1568
  %v1916 = vpack.c.b16 %v1571, %v1570
  %v1917 = vpack.c.b16 %v1573, %v1572
  %v1918 = vpack.c.b16 %v1575, %v1574
  %v1919 = vpack.c.b16 %v1577, %v1576
  %v1920 = vpack.c.b16 %v1579, %v1578
  %v1921 = vpack.c.b16 %v1581, %v1580
  %v1922 = vpack.c.b16 %v1583, %v1582
  %v1923 = vpack.c.b16 %v1585, %v1584
  %v1924 = vpack.c.b16 %v1587, %v1586
  %v1925 = vpack.c.b16 %v1589, %v1588
  %v1926 = vpack.c.b16 %v1591, %v1590
  %v1927 = vpack.c.b16 %v1593, %v1592
  %v1928 = vpack.c.b16 %v1595, %v1594
  %v1929 = vpack.c.b16 %v1597, %v1596
  %v1930 = vpack.c.b16 %v1599, %v1598
  %v1931 = vpack.c.b16 %v1601, %v1600
  %v1932 = vpack.c.b16 %v1603, %v1602
  %v1933 = vpack.c.b16 %v1605, %v1604
  %v1934 = vpack.c.b16 %v1607, %v1606
  %v1935 = vpack.c.b16 %v1609, %v1608
  %v1936 = vpack.c.b16 %v1611, %v1610
  %v1937 = vpack.c.b16 %v1613, %v1612
  %v1938 = vpack.c.b16 %v1615, %v1614
  %v1939 = vpack.c.b16 %v1617, %v1616
  %v1940 = vpack.c.b16 %v1619, %v1618
  %v1941 = vpack.c.b16 %v1621, %v1620
  %v1942 = vpack.c.b16 %v1623, %v1622
  %v1943 = vpack.c.b16 %v1625, %v1624
  %v1944 = vpack.c.b16 %v1627, %v1626
  %v1945 = vpack.c.b16 %v1629, %v1628
  %v1946 = vpack.c.b16 %v1631, %v1630
  %v1947 = vpack.c.b16 %v1633, %v1632
  %v1948 = vpack.c.b16 %v1635, %v1634
  %v1949 = vpack.c.b16 %v1637, %v1636
  %v1950 = vpack.c.b16 %v1639, %v1638
  %v1951 = vpack.c.b16 %v1641, %v1640
  %v1952 = vpack.c.b16 %v1643, %v1642
  %v1953 = vpack.c.b16 %v1645, %v1644
  %v1954 = vpack.c.b16 %v1647, %v1646
  %v1955 = vpack.c.b16 %v1649, %v1648
  %v1956 = vpack.c.b16 %v1651, %v1650
  %v1957 = vpack.c.b16 %v1653, %v1652
  %v1958 = vpack.c.b16 %v1655, %v1654
  %v1959 = vpack.c.b16 %v1657, %v1656
  %v1960 = vpack.c.b16 %v1659, %v1658
  %v1961 = vpack.c.b16 %v1661, %v1660
  %v1962 = vpack.c.b16 %v1663, %v1662
  %v1963 = vpack.c.b16 %v1665, %v1664
  %v1964 = vpack.c.b16 %v1667, %v1666
  %v1965 = vpack.c.b16 %v1669, %v1668
  %v1966 = vpack.c.b16 %v1671, %v1670
  %v1967 = vpack.c.b16 %v1673, %v1672
  %v1968 = vpack.c.b16 %v1675, %v1674
  %v1969 = vpack.c.b16 %v1677, %v1676
  %v1970 = vpack.c.b16 %v1679, %v1678
  %v1971 = vpack.c.b16 %v1681, %v1680
  %v1972 = vpack.c.b16 %v1683, %v1682
  %v1973 = vpack.c.b16 %v1685, %v1684
  %v1974 = vpack.c.b16 %v1687, %v1686
  %v1975 = vpack.c.b16 %v1689, %v1688
  %v1976 = vpack.c.b16 %v1691, %v1690
  %v1977 = vpack.c.b16 %v1693, %v1692
  %v1978 = vpack.c.b16 %v1695, %v1694
  %v1979 = vpack.c.b16 %v1697, %v1696
  %v1980 = vpack.c.b16 %v1699, %v1698
  %v1981 = vpack.c.b16 %v1701, %v1700
  %v1982 = vpack.c.b16 %v1703, %v1702
  %v1983 = vpack.c.b16 %v1705, %v1704
  %v1984 = vpack.c.b16 %v1707, %v1706
  %v1985 = vpack.c.b16 %v1709, %v1708
  %v1986 = vpack.c.b16 %v1711, %v1710
  %v1987 = vpack.c.b16 %v1713, %v1712
  %v1988 = vpack.c.b16 %v1715, %v1714
  %v1989 = vpack.c.b16 %v1717, %v1716
  %v1990 = vpack.c.b16 %v1719, %v1718
  %v1991 = vpack.c.b16 %v1721, %v1720
  %v1992 = vpack.c.b16 %v1723, %v1722
  %v1993 = vpack.c.b16 %v1725, %v1724
  %v1994 = vpack.c.b16 %v1727, %v1726
  %v1995 = vpack.c.b16 %v1729, %v1728
  %v1996 = vpack.c.b16 %v1731, %v1730
  %v1997 = vpack.c.b16 %v1733, %v1732
  %v1998 = vpack.c.b16 %v1735, %v1734
  %v1999 = vpack.c.b16 %v1737, %v1736
  %v2000 = vpack.c.b16 %v1739, %v1738
  %v2001 = vpack.c.b16 %v1741, %v1740
  %v2002 = vpack.c.b16 %v1743, %v1742
  %v2003 = vpack.c.b16 %v1745, %v1744
  %v2004 = vpack.c.b16 %v1747, %v1746
  %v2005 = vpack.c.b16 %v1749, %v1748
  %2262 = vmatprep.subr.bf16.mxu0 0
  %2263 = vmatpush1.bf16.msra.mxu0 %v1750
  %2264 = vmatprep.subr.bf16.mxu0 0
  %2265 = vmatpush1.bf16.msra.mxu0 %v1751
  %2266 = vmatprep.subr.bf16.mxu0 0
  %2267 = vmatpush1.bf16.msra.mxu0 %v1752
  %2268 = vmatprep.subr.bf16.mxu0 0
  %2269 = vmatpush1.bf16.msra.mxu0 %v1753
  %2270 = vmatprep.subr.bf16.mxu0 0
  %2271 = vmatpush1.bf16.msra.mxu0 %v1754
  %2272 = vmatprep.subr.bf16.mxu0 0
  %2273 = vmatpush1.bf16.msra.mxu0 %v1755
  %2274 = vmatprep.subr.bf16.mxu0 0
  %2275 = vmatpush1.bf16.msra.mxu0 %v1756
  %2276 = vmatprep.subr.bf16.mxu0 0
  %2277 = vmatpush1.bf16.msra.mxu0 %v1757
  %2278 = vmatprep.subr.bf16.mxu0 0
  %2279 = vmatpush1.bf16.msra.mxu0 %v1758
  %2280 = vmatprep.subr.bf16.mxu0 0
  %2281 = vmatpush1.bf16.msra.mxu0 %v1759
  %2282 = vmatprep.subr.bf16.mxu0 0
  %2283 = vmatpush1.bf16.msra.mxu0 %v1760
  %2284 = vmatprep.subr.bf16.mxu0 0
  %2285 = vmatpush1.bf16.msra.mxu0 %v1761
  %2286 = vmatprep.subr.bf16.mxu0 0
  %2287 = vmatpush1.bf16.msra.mxu0 %v1762
  %2288 = vmatprep.subr.bf16.mxu0 0
  %2289 = vmatpush1.bf16.msra.mxu0 %v1763
  %2290 = vmatprep.subr.bf16.mxu0 0
  %2291 = vmatpush1.bf16.msra.mxu0 %v1764
  %2292 = vmatprep.subr.bf16.mxu0 0
  %2293 = vmatpush1.bf16.msra.mxu0 %v1765
  %2294 = vmatprep.mubr.bf16.mxu0 %v663
  %2295 = vmatmul.mubr.bf16.gmra.mrb[0].mxu0 %v662
  %v2296 = vpop.f32.mrb[0].mxu0
  %v2297 = vadd.f32 %v564, %v2296
  %v2298 = vpop.f32.mrb[0].mxu0
  %v2299 = vpop.f32.mrb[0].mxu0
  %v2300 = vadd.f32 %v564, %v2299
  %v2301 = vpop.f32.mrb[0].mxu0
  %2302 = vdwg.mxu0
  %2303 = vmatprep.subr.bf16.mxu0 0
  %2304 = vmatpush1.bf16.msra.mxu0 %v1766
  %2305 = vmatprep.subr.bf16.mxu0 0
  %2306 = vmatpush1.bf16.msra.mxu0 %v1767
  %2307 = vmatprep.subr.bf16.mxu0 0
  %2308 = vmatpush1.bf16.msra.mxu0 %v1768
  %2309 = vmatprep.subr.bf16.mxu0 0
  %2310 = vmatpush1.bf16.msra.mxu0 %v1769
  %2311 = vmatprep.subr.bf16.mxu0 0
  %2312 = vmatpush1.bf16.msra.mxu0 %v1770
  %2313 = vmatprep.subr.bf16.mxu0 0
  %2314 = vmatpush1.bf16.msra.mxu0 %v1771
  %2315 = vmatprep.subr.bf16.mxu0 0
  %2316 = vmatpush1.bf16.msra.mxu0 %v1772
  %2317 = vmatprep.subr.bf16.mxu0 0
  %2318 = vmatpush1.bf16.msra.mxu0 %v1773
  %2319 = vmatprep.subr.bf16.mxu0 0
  %2320 = vmatpush1.bf16.msra.mxu0 %v1774
  %2321 = vmatprep.subr.bf16.mxu0 0
  %2322 = vmatpush1.bf16.msra.mxu0 %v1775
  %2323 = vmatprep.subr.bf16.mxu0 0
  %2324 = vmatpush1.bf16.msra.mxu0 %v1776
  %2325 = vmatprep.subr.bf16.mxu0 0
  %2326 = vmatpush1.bf16.msra.mxu0 %v1777
  %2327 = vmatprep.subr.bf16.mxu0 0
  %2328 = vmatpush1.bf16.msra.mxu0 %v1778
  %2329 = vmatprep.subr.bf16.mxu0 0
  %2330 = vmatpush1.bf16.msra.mxu0 %v1779
  %2331 = vmatprep.subr.bf16.mxu0 0
  %2332 = vmatpush1.bf16.msra.mxu0 %v1780
  %2333 = vmatprep.subr.bf16.mxu0 0
  %2334 = vmatpush1.bf16.msra.mxu0 %v1781
  %2335 = vmatprep.mubr.bf16.mxu0 %v665
  %2336 = vmatmul.mubr.bf16.gmra.mrb[0].mxu0 %v664
  %v2337 = vpop.f32.mrb[0].mxu0
  %v2338 = vadd.f32 %v2297, %v2337
  %v2339 = vpop.f32.mrb[0].mxu0
  %v2340 = vpop.f32.mrb[0].mxu0
  %v2341 = vadd.f32 %v2300, %v2340
  %v2342 = vpop.f32.mrb[0].mxu0
  %2343 = vdwg.mxu0
  %2344 = vmatprep.subr.bf16.mxu0 0
  %2345 = vmatpush1.bf16.msra.mxu0 %v1782
  %2346 = vmatprep.subr.bf16.mxu0 0
  %2347 = vmatpush1.bf16.msra.mxu0 %v1783
  %2348 = vmatprep.subr.bf16.mxu0 0
  %2349 = vmatpush1.bf16.msra.mxu0 %v1784
  %2350 = vmatprep.subr.bf16.mxu0 0
  %2351 = vmatpush1.bf16.msra.mxu0 %v1785
  %2352 = vmatprep.subr.bf16.mxu0 0
  %2353 = vmatpush1.bf16.msra.mxu0 %v1786
  %2354 = vmatprep.subr.bf16.mxu0 0
  %2355 = vmatpush1.bf16.msra.mxu0 %v1787
  %2356 = vmatprep.subr.bf16.mxu0 0
  %2357 = vmatpush1.bf16.msra.mxu0 %v1788
  %2358 = vmatprep.subr.bf16.mxu0 0
  %2359 = vmatpush1.bf16.msra.mxu0 %v1789
  %2360 = vmatprep.subr.bf16.mxu0 0
  %2361 = vmatpush1.bf16.msra.mxu0 %v1790
  %2362 = vmatprep.subr.bf16.mxu0 0
  %2363 = vmatpush1.bf16.msra.mxu0 %v1791
  %2364 = vmatprep.subr.bf16.mxu0 0
  %2365 = vmatpush1.bf16.msra.mxu0 %v1792
  %2366 = vmatprep.subr.bf16.mxu0 0
  %2367 = vmatpush1.bf16.msra.mxu0 %v1793
  %2368 = vmatprep.subr.bf16.mxu0 0
  %2369 = vmatpush1.bf16.msra.mxu0 %v1794
  %2370 = vmatprep.subr.bf16.mxu0 0
  %2371 = vmatpush1.bf16.msra.mxu0 %v1795
  %2372 = vmatprep.subr.bf16.mxu0 0
  %2373 = vmatpush1.bf16.msra.mxu0 %v1796
  %2374 = vmatprep.subr.bf16.mxu0 0
  %2375 = vmatpush1.bf16.msra.mxu0 %v1797
  %2376 = vmatprep.mubr.bf16.mxu0 %v667
  %2377 = vmatmul.mubr.bf16.gmra.mrb[0].mxu0 %v666
  %v2378 = vpop.f32.mrb[0].mxu0
  %v2379 = vadd.f32 %v2338, %v2378
  %v2380 = vpop.f32.mrb[0].mxu0
  %v2381 = vpop.f32.mrb[0].mxu0
  %v2382 = vadd.f32 %v2341, %v2381
  %v2383 = vpop.f32.mrb[0].mxu0
  %2384 = vdwg.mxu0
  %2385 = vmatprep.subr.bf16.mxu0 0
  %2386 = vmatpush1.bf16.msra.mxu0 %v1798
  %2387 = vmatprep.subr.bf16.mxu0 0
  %2388 = vmatpush1.bf16.msra.mxu0 %v1799
  %2389 = vmatprep.subr.bf16.mxu0 0
  %2390 = vmatpush1.bf16.msra.mxu0 %v1800
  %2391 = vmatprep.subr.bf16.mxu0 0
  %2392 = vmatpush1.bf16.msra.mxu0 %v1801
  %2393 = vmatprep.subr.bf16.mxu0 0
  %2394 = vmatpush1.bf16.msra.mxu0 %v1802
  %2395 = vmatprep.subr.bf16.mxu0 0
  %2396 = vmatpush1.bf16.msra.mxu0 %v1803
  %2397 = vmatprep.subr.bf16.mxu0 0
  %2398 = vmatpush1.bf16.msra.mxu0 %v1804
  %2399 = vmatprep.subr.bf16.mxu0 0
  %2400 = vmatpush1.bf16.msra.mxu0 %v1805
  %2401 = vmatprep.subr.bf16.mxu0 0
  %2402 = vmatpush1.bf16.msra.mxu0 %v1806
  %2403 = vmatprep.subr.bf16.mxu0 0
  %2404 = vmatpush1.bf16.msra.mxu0 %v1807
  %2405 = vmatprep.subr.bf16.mxu0 0
  %2406 = vmatpush1.bf16.msra.mxu0 %v1808
  %2407 = vmatprep.subr.bf16.mxu0 0
  %2408 = vmatpush1.bf16.msra.mxu0 %v1809
  %2409 = vmatprep.subr.bf16.mxu0 0
  %2410 = vmatpush1.bf16.msra.mxu0 %v1810
  %2411 = vmatprep.subr.bf16.mxu0 0
  %2412 = vmatpush1.bf16.msra.mxu0 %v1811
  %2413 = vmatprep.subr.bf16.mxu0 0
  %2414 = vmatpush1.bf16.msra.mxu0 %v1812
  %2415 = vmatprep.subr.bf16.mxu0 0
  %2416 = vmatpush1.bf16.msra.mxu0 %v1813
  %2417 = vmatprep.mubr.bf16.mxu0 %v669
  %2418 = vmatmul.mubr.bf16.gmra.mrb[0].mxu0 %v668
  %v2419 = vpop.f32.mrb[0].mxu0
  %v2420 = vadd.f32 %v2379, %v2419
  %v2421 = vpop.f32.mrb[0].mxu0
  %v2422 = vpop.f32.mrb[0].mxu0
  %v2423 = vadd.f32 %v2382, %v2422
  %v2424 = vpop.f32.mrb[0].mxu0
  %2425 = vdwg.mxu0
  %2426 = vmatprep.subr.bf16.mxu0 0
  %2427 = vmatpush1.bf16.msra.mxu0 %v1814
  %2428 = vmatprep.subr.bf16.mxu0 0
  %2429 = vmatpush1.bf16.msra.mxu0 %v1815
  %2430 = vmatprep.subr.bf16.mxu0 0
  %2431 = vmatpush1.bf16.msra.mxu0 %v1816
  %2432 = vmatprep.subr.bf16.mxu0 0
  %2433 = vmatpush1.bf16.msra.mxu0 %v1817
  %2434 = vmatprep.subr.bf16.mxu0 0
  %2435 = vmatpush1.bf16.msra.mxu0 %v1818
  %2436 = vmatprep.subr.bf16.mxu0 0
  %2437 = vmatpush1.bf16.msra.mxu0 %v1819
  %2438 = vmatprep.subr.bf16.mxu0 0
  %2439 = vmatpush1.bf16.msra.mxu0 %v1820
  %2440 = vmatprep.subr.bf16.mxu0 0
  %2441 = vmatpush1.bf16.msra.mxu0 %v1821
  %2442 = vmatprep.subr.bf16.mxu0 0
  %2443 = vmatpush1.bf16.msra.mxu0 %v1822
  %2444 = vmatprep.subr.bf16.mxu0 0
  %2445 = vmatpush1.bf16.msra.mxu0 %v1823
  %2446 = vmatprep.subr.bf16.mxu0 0
  %2447 = vmatpush1.bf16.msra.mxu0 %v1824
  %2448 = vmatprep.subr.bf16.mxu0 0
  %2449 = vmatpush1.bf16.msra.mxu0 %v1825
  %2450 = vmatprep.subr.bf16.mxu0 0
  %2451 = vmatpush1.bf16.msra.mxu0 %v1826
  %2452 = vmatprep.subr.bf16.mxu0 0
  %2453 = vmatpush1.bf16.msra.mxu0 %v1827
  %2454 = vmatprep.subr.bf16.mxu0 0
  %2455 = vmatpush1.bf16.msra.mxu0 %v1828
  %2456 = vmatprep.subr.bf16.mxu0 0
  %2457 = vmatpush1.bf16.msra.mxu0 %v1829
  %2458 = vmatprep.mubr.bf16.mxu0 %v671
  %2459 = vmatmul.mubr.bf16.gmra.mrb[0].mxu0 %v670
  %v2460 = vpop.f32.mrb[0].mxu0
  %v2461 = vadd.f32 %v2420, %v2460
  %v2462 = vpop.f32.mrb[0].mxu0
  %v2463 = vpop.f32.mrb[0].mxu0
  %v2464 = vadd.f32 %v2423, %v2463
  %v2465 = vpop.f32.mrb[0].mxu0
  %2466 = vdwg.mxu0
  %2467 = vmatprep.subr.bf16.mxu0 0
  %2468 = vmatpush1.bf16.msra.mxu0 %v1830
  %2469 = vmatprep.subr.bf16.mxu0 0
  %2470 = vmatpush1.bf16.msra.mxu0 %v1831
  %2471 = vmatprep.subr.bf16.mxu0 0
  %2472 = vmatpush1.bf16.msra.mxu0 %v1832
  %2473 = vmatprep.subr.bf16.mxu0 0
  %2474 = vmatpush1.bf16.msra.mxu0 %v1833
  %2475 = vmatprep.subr.bf16.mxu0 0
  %2476 = vmatpush1.bf16.msra.mxu0 %v1834
  %2477 = vmatprep.subr.bf16.mxu0 0
  %2478 = vmatpush1.bf16.msra.mxu0 %v1835
  %2479 = vmatprep.subr.bf16.mxu0 0
  %2480 = vmatpush1.bf16.msra.mxu0 %v1836
  %2481 = vmatprep.subr.bf16.mxu0 0
  %2482 = vmatpush1.bf16.msra.mxu0 %v1837
  %2483 = vmatprep.subr.bf16.mxu0 0
  %2484 = vmatpush1.bf16.msra.mxu0 %v1838
  %2485 = vmatprep.subr.bf16.mxu0 0
  %2486 = vmatpush1.bf16.msra.mxu0 %v1839
  %2487 = vmatprep.subr.bf16.mxu0 0
  %2488 = vmatpush1.bf16.msra.mxu0 %v1840
  %2489 = vmatprep.subr.bf16.mxu0 0
  %2490 = vmatpush1.bf16.msra.mxu0 %v1841
  %2491 = vmatprep.subr.bf16.mxu0 0
  %2492 = vmatpush1.bf16.msra.mxu0 %v1842
  %2493 = vmatprep.subr.bf16.mxu0 0
  %2494 = vmatpush1.bf16.msra.mxu0 %v1843
  %2495 = vmatprep.subr.bf16.mxu0 0
  %2496 = vmatpush1.bf16.msra.mxu0 %v1844
  %2497 = vmatprep.subr.bf16.mxu0 0
  %2498 = vmatpush1.bf16.msra.mxu0 %v1845
  %2499 = vmatprep.mubr.bf16.mxu0 %v673
  %2500 = vmatmul.mubr.bf16.gmra.mrb[0].mxu0 %v672
  %v2501 = vpop.f32.mrb[0].mxu0
  %v2502 = vadd.f32 %v2461, %v2501
  %v2503 = vpop.f32.mrb[0].mxu0
  %v2504 = vpop.f32.mrb[0].mxu0
  %v2505 = vadd.f32 %v2464, %v2504
  %v2506 = vpop.f32.mrb[0].mxu0
  %2507 = vdwg.mxu0
  %2508 = vmatprep.subr.bf16.mxu0 0
  %2509 = vmatpush1.bf16.msra.mxu0 %v1846
  %2510 = vmatprep.subr.bf16.mxu0 0
  %2511 = vmatpush1.bf16.msra.mxu0 %v1847
  %2512 = vmatprep.subr.bf16.mxu0 0
  %2513 = vmatpush1.bf16.msra.mxu0 %v1848
  %2514 = vmatprep.subr.bf16.mxu0 0
  %2515 = vmatpush1.bf16.msra.mxu0 %v1849
  %2516 = vmatprep.subr.bf16.mxu0 0
  %2517 = vmatpush1.bf16.msra.mxu0 %v1850
  %2518 = vmatprep.subr.bf16.mxu0 0
  %2519 = vmatpush1.bf16.msra.mxu0 %v1851
  %2520 = vmatprep.subr.bf16.mxu0 0
  %2521 = vmatpush1.bf16.msra.mxu0 %v1852
  %2522 = vmatprep.subr.bf16.mxu0 0
  %2523 = vmatpush1.bf16.msra.mxu0 %v1853
  %2524 = vmatprep.subr.bf16.mxu0 0
  %2525 = vmatpush1.bf16.msra.mxu0 %v1854
  %2526 = vmatprep.subr.bf16.mxu0 0
  %2527 = vmatpush1.bf16.msra.mxu0 %v1855
  %2528 = vmatprep.subr.bf16.mxu0 0
  %2529 = vmatpush1.bf16.msra.mxu0 %v1856
  %2530 = vmatprep.subr.bf16.mxu0 0
  %2531 = vmatpush1.bf16.msra.mxu0 %v1857
  %2532 = vmatprep.subr.bf16.mxu0 0
  %2533 = vmatpush1.bf16.msra.mxu0 %v1858
  %2534 = vmatprep.subr.bf16.mxu0 0
  %2535 = vmatpush1.bf16.msra.mxu0 %v1859
  %2536 = vmatprep.subr.bf16.mxu0 0
  %2537 = vmatpush1.bf16.msra.mxu0 %v1860
  %2538 = vmatprep.subr.bf16.mxu0 0
  %2539 = vmatpush1.bf16.msra.mxu0 %v1861
  %2540 = vmatprep.mubr.bf16.mxu0 %v675
  %2541 = vmatmul.mubr.bf16.gmra.mrb[0].mxu0 %v674
  %v2542 = vpop.f32.mrb[0].mxu0
  %v2543 = vadd.f32 %v2502, %v2542
  %v2544 = vpop.f32.mrb[0].mxu0
  %v2545 = vpop.f32.mrb[0].mxu0
  %v2546 = vadd.f32 %v2505, %v2545
  %v2547 = vpop.f32.mrb[0].mxu0
  %2548 = vdwg.mxu0
  %2549 = vmatprep.subr.bf16.mxu0 0
  %2550 = vmatpush1.bf16.msra.mxu0 %v1862
  %2551 = vmatprep.subr.bf16.mxu0 0
  %2552 = vmatpush1.bf16.msra.mxu0 %v1863
  %2553 = vmatprep.subr.bf16.mxu0 0
  %2554 = vmatpush1.bf16.msra.mxu0 %v1864
  %2555 = vmatprep.subr.bf16.mxu0 0
  %2556 = vmatpush1.bf16.msra.mxu0 %v1865
  %2557 = vmatprep.subr.bf16.mxu0 0
  %2558 = vmatpush1.bf16.msra.mxu0 %v1866
  %2559 = vmatprep.subr.bf16.mxu0 0
  %2560 = vmatpush1.bf16.msra.mxu0 %v1867
  %2561 = vmatprep.subr.bf16.mxu0 0
  %2562 = vmatpush1.bf16.msra.mxu0 %v1868
  %2563 = vmatprep.subr.bf16.mxu0 0
  %2564 = vmatpush1.bf16.msra.mxu0 %v1869
  %2565 = vmatprep.subr.bf16.mxu0 0
  %2566 = vmatpush1.bf16.msra.mxu0 %v1870
  %2567 = vmatprep.subr.bf16.mxu0 0
  %2568 = vmatpush1.bf16.msra.mxu0 %v1871
  %2569 = vmatprep.subr.bf16.mxu0 0
  %2570 = vmatpush1.bf16.msra.mxu0 %v1872
  %2571 = vmatprep.subr.bf16.mxu0 0
  %2572 = vmatpush1.bf16.msra.mxu0 %v1873
  %2573 = vmatprep.subr.bf16.mxu0 0
  %2574 = vmatpush1.bf16.msra.mxu0 %v1874
  %2575 = vmatprep.subr.bf16.mxu0 0
  %2576 = vmatpush1.bf16.msra.mxu0 %v1875
  %2577 = vmatprep.subr.bf16.mxu0 0
  %2578 = vmatpush1.bf16.msra.mxu0 %v1876
  %2579 = vmatprep.subr.bf16.mxu0 0
  %2580 = vmatpush1.bf16.msra.mxu0 %v1877
  %2581 = vmatprep.mubr.bf16.mxu0 %v677
  %2582 = vmatmul.mubr.bf16.gmra.mrb[0].mxu0 %v676
  %v2583 = vpop.f32.mrb[0].mxu0
  %v2584 = vadd.f32 %v2543, %v2583
  %v2585 = vpop.f32.mrb[0].mxu0
  %v2586 = vpop.f32.mrb[0].mxu0
  %v2587 = vadd.f32 %v2546, %v2586
  %v2588 = vpop.f32.mrb[0].mxu0
  %2589 = vdwg.mxu0
  %2590 = vmatprep.subr.bf16.mxu0 0
  %2591 = vmatpush1.bf16.msra.mxu0 %v1878
  %2592 = vmatprep.subr.bf16.mxu0 0
  %2593 = vmatpush1.bf16.msra.mxu0 %v1879
  %2594 = vmatprep.subr.bf16.mxu0 0
  %2595 = vmatpush1.bf16.msra.mxu0 %v1880
  %2596 = vmatprep.subr.bf16.mxu0 0
  %2597 = vmatpush1.bf16.msra.mxu0 %v1881
  %2598 = vmatprep.subr.bf16.mxu0 0
  %2599 = vmatpush1.bf16.msra.mxu0 %v1882
  %2600 = vmatprep.subr.bf16.mxu0 0
  %2601 = vmatpush1.bf16.msra.mxu0 %v1883
  %2602 = vmatprep.subr.bf16.mxu0 0
  %2603 = vmatpush1.bf16.msra.mxu0 %v1884
  %2604 = vmatprep.subr.bf16.mxu0 0
  %2605 = vmatpush1.bf16.msra.mxu0 %v1885
  %2606 = vmatprep.subr.bf16.mxu0 0
  %2607 = vmatpush1.bf16.msra.mxu0 %v1886
  %2608 = vmatprep.subr.bf16.mxu0 0
  %2609 = vmatpush1.bf16.msra.mxu0 %v1887
  %2610 = vmatprep.subr.bf16.mxu0 0
  %2611 = vmatpush1.bf16.msra.mxu0 %v1888
  %2612 = vmatprep.subr.bf16.mxu0 0
  %2613 = vmatpush1.bf16.msra.mxu0 %v1889
  %2614 = vmatprep.subr.bf16.mxu0 0
  %2615 = vmatpush1.bf16.msra.mxu0 %v1890
  %2616 = vmatprep.subr.bf16.mxu0 0
  %2617 = vmatpush1.bf16.msra.mxu0 %v1891
  %2618 = vmatprep.subr.bf16.mxu0 0
  %2619 = vmatpush1.bf16.msra.mxu0 %v1892
  %2620 = vmatprep.subr.bf16.mxu0 0
  %2621 = vmatpush1.bf16.msra.mxu0 %v1893
  %2622 = vmatprep.mubr.bf16.mxu0 %v679
  %2623 = vmatmul.mubr.bf16.gmra.mrb[0].mxu0 %v678
  %v2624 = vpop.f32.mrb[0].mxu0
  %v2625 = vadd.f32 %v2584, %v2624
  %v2626 = vpop.f32.mrb[0].mxu0
  %v2627 = vpop.f32.mrb[0].mxu0
  %v2628 = vadd.f32 %v2587, %v2627
  %v2629 = vpop.f32.mrb[0].mxu0
  %2630 = vdwg.mxu0
  %2631 = vmatprep.subr.bf16.mxu0 0
  %2632 = vmatpush1.bf16.msra.mxu0 %v1894
  %2633 = vmatprep.subr.bf16.mxu0 0
  %2634 = vmatpush1.bf16.msra.mxu0 %v1895
  %2635 = vmatprep.subr.bf16.mxu0 0
  %2636 = vmatpush1.bf16.msra.mxu0 %v1896
  %2637 = vmatprep.subr.bf16.mxu0 0
  %2638 = vmatpush1.bf16.msra.mxu0 %v1897
  %2639 = vmatprep.subr.bf16.mxu0 0
  %2640 = vmatpush1.bf16.msra.mxu0 %v1898
  %2641 = vmatprep.subr.bf16.mxu0 0
  %2642 = vmatpush1.bf16.msra.mxu0 %v1899
  %2643 = vmatprep.subr.bf16.mxu0 0
  %2644 = vmatpush1.bf16.msra.mxu0 %v1900
  %2645 = vmatprep.subr.bf16.mxu0 0
  %2646 = vmatpush1.bf16.msra.mxu0 %v1901
  %2647 = vmatprep.subr.bf16.mxu0 0
  %2648 = vmatpush1.bf16.msra.mxu0 %v1902
  %2649 = vmatprep.subr.bf16.mxu0 0
  %2650 = vmatpush1.bf16.msra.mxu0 %v1903
  %2651 = vmatprep.subr.bf16.mxu0 0
  %2652 = vmatpush1.bf16.msra.mxu0 %v1904
  %2653 = vmatprep.subr.bf16.mxu0 0
  %2654 = vmatpush1.bf16.msra.mxu0 %v1905
  %2655 = vmatprep.subr.bf16.mxu0 0
  %2656 = vmatpush1.bf16.msra.mxu0 %v1906
  %2657 = vmatprep.subr.bf16.mxu0 0
  %2658 = vmatpush1.bf16.msra.mxu0 %v1907
  %2659 = vmatprep.subr.bf16.mxu0 0
  %2660 = vmatpush1.bf16.msra.mxu0 %v1908
  %2661 = vmatprep.subr.bf16.mxu0 0
  %2662 = vmatpush1.bf16.msra.mxu0 %v1909
  %2663 = vmatprep.mubr.bf16.mxu0 %v681
  %2664 = vmatmul.mubr.bf16.gmra.mrb[0].mxu0 %v680
  %v2665 = vpop.f32.mrb[0].mxu0
  %v2666 = vadd.f32 %v2625, %v2665
  %v2667 = vpop.f32.mrb[0].mxu0
  %v2668 = vpop.f32.mrb[0].mxu0
  %v2669 = vadd.f32 %v2628, %v2668
  %v2670 = vpop.f32.mrb[0].mxu0
  %2671 = vdwg.mxu0
  %2672 = vmatprep.subr.bf16.mxu0 0
  %2673 = vmatpush1.bf16.msra.mxu0 %v1910
  %2674 = vmatprep.subr.bf16.mxu0 0
  %2675 = vmatpush1.bf16.msra.mxu0 %v1911
  %2676 = vmatprep.subr.bf16.mxu0 0
  %2677 = vmatpush1.bf16.msra.mxu0 %v1912
  %2678 = vmatprep.subr.bf16.mxu0 0
  %2679 = vmatpush1.bf16.msra.mxu0 %v1913
  %2680 = vmatprep.subr.bf16.mxu0 0
  %2681 = vmatpush1.bf16.msra.mxu0 %v1914
  %2682 = vmatprep.subr.bf16.mxu0 0
  %2683 = vmatpush1.bf16.msra.mxu0 %v1915
  %2684 = vmatprep.subr.bf16.mxu0 0
  %2685 = vmatpush1.bf16.msra.mxu0 %v1916
  %2686 = vmatprep.subr.bf16.mxu0 0
  %2687 = vmatpush1.bf16.msra.mxu0 %v1917
  %2688 = vmatprep.subr.bf16.mxu0 0
  %2689 = vmatpush1.bf16.msra.mxu0 %v1918
  %2690 = vmatprep.subr.bf16.mxu0 0
  %2691 = vmatpush1.bf16.msra.mxu0 %v1919
  %2692 = vmatprep.subr.bf16.mxu0 0
  %2693 = vmatpush1.bf16.msra.mxu0 %v1920
  %2694 = vmatprep.subr.bf16.mxu0 0
  %2695 = vmatpush1.bf16.msra.mxu0 %v1921
  %2696 = vmatprep.subr.bf16.mxu0 0
  %2697 = vmatpush1.bf16.msra.mxu0 %v1922
  %2698 = vmatprep.subr.bf16.mxu0 0
  %2699 = vmatpush1.bf16.msra.mxu0 %v1923
  %2700 = vmatprep.subr.bf16.mxu0 0
  %2701 = vmatpush1.bf16.msra.mxu0 %v1924
  %2702 = vmatprep.subr.bf16.mxu0 0
  %2703 = vmatpush1.bf16.msra.mxu0 %v1925
  %2704 = vmatprep.mubr.bf16.mxu0 %v683
  %2705 = vmatmul.mubr.bf16.gmra.mrb[0].mxu0 %v682
  %v2706 = vpop.f32.mrb[0].mxu0
  %v2707 = vadd.f32 %v2666, %v2706
  %v2708 = vpop.f32.mrb[0].mxu0
  %v2709 = vpop.f32.mrb[0].mxu0
  %v2710 = vadd.f32 %v2669, %v2709
  %v2711 = vpop.f32.mrb[0].mxu0
  %2712 = vdwg.mxu0
  %2713 = vmatprep.subr.bf16.mxu0 0
  %2714 = vmatpush1.bf16.msra.mxu0 %v1926
  %2715 = vmatprep.subr.bf16.mxu0 0
  %2716 = vmatpush1.bf16.msra.mxu0 %v1927
  %2717 = vmatprep.subr.bf16.mxu0 0
  %2718 = vmatpush1.bf16.msra.mxu0 %v1928
  %2719 = vmatprep.subr.bf16.mxu0 0
  %2720 = vmatpush1.bf16.msra.mxu0 %v1929
  %2721 = vmatprep.subr.bf16.mxu0 0
  %2722 = vmatpush1.bf16.msra.mxu0 %v1930
  %2723 = vmatprep.subr.bf16.mxu0 0
  %2724 = vmatpush1.bf16.msra.mxu0 %v1931
  %2725 = vmatprep.subr.bf16.mxu0 0
  %2726 = vmatpush1.bf16.msra.mxu0 %v1932
  %2727 = vmatprep.subr.bf16.mxu0 0
  %2728 = vmatpush1.bf16.msra.mxu0 %v1933
  %2729 = vmatprep.subr.bf16.mxu0 0
  %2730 = vmatpush1.bf16.msra.mxu0 %v1934
  %2731 = vmatprep.subr.bf16.mxu0 0
  %2732 = vmatpush1.bf16.msra.mxu0 %v1935
  %2733 = vmatprep.subr.bf16.mxu0 0
  %2734 = vmatpush1.bf16.msra.mxu0 %v1936
  %2735 = vmatprep.subr.bf16.mxu0 0
  %2736 = vmatpush1.bf16.msra.mxu0 %v1937
  %2737 = vmatprep.subr.bf16.mxu0 0
  %2738 = vmatpush1.bf16.msra.mxu0 %v1938
  %2739 = vmatprep.subr.bf16.mxu0 0
  %2740 = vmatpush1.bf16.msra.mxu0 %v1939
  %2741 = vmatprep.subr.bf16.mxu0 0
  %2742 = vmatpush1.bf16.msra.mxu0 %v1940
  %2743 = vmatprep.subr.bf16.mxu0 0
  %2744 = vmatpush1.bf16.msra.mxu0 %v1941
  %2745 = vmatprep.mubr.bf16.mxu0 %v685
  %2746 = vmatmul.mubr.bf16.gmra.mrb[0].mxu0 %v684
  %v2747 = vpop.f32.mrb[0].mxu0
  %v2748 = vadd.f32 %v2707, %v2747
  %v2749 = vpop.f32.mrb[0].mxu0
  %v2750 = vpop.f32.mrb[0].mxu0
  %v2751 = vadd.f32 %v2710, %v2750
  %v2752 = vpop.f32.mrb[0].mxu0
  %2753 = vdwg.mxu0
  %2754 = vmatprep.subr.bf16.mxu0 0
  %2755 = vmatpush1.bf16.msra.mxu0 %v1942
  %2756 = vmatprep.subr.bf16.mxu0 0
  %2757 = vmatpush1.bf16.msra.mxu0 %v1943
  %2758 = vmatprep.subr.bf16.mxu0 0
  %2759 = vmatpush1.bf16.msra.mxu0 %v1944
  %2760 = vmatprep.subr.bf16.mxu0 0
  %2761 = vmatpush1.bf16.msra.mxu0 %v1945
  %2762 = vmatprep.subr.bf16.mxu0 0
  %2763 = vmatpush1.bf16.msra.mxu0 %v1946
  %2764 = vmatprep.subr.bf16.mxu0 0
  %2765 = vmatpush1.bf16.msra.mxu0 %v1947
  %2766 = vmatprep.subr.bf16.mxu0 0
  %2767 = vmatpush1.bf16.msra.mxu0 %v1948
  %2768 = vmatprep.subr.bf16.mxu0 0
  %2769 = vmatpush1.bf16.msra.mxu0 %v1949
  %2770 = vmatprep.subr.bf16.mxu0 0
  %2771 = vmatpush1.bf16.msra.mxu0 %v1950
  %2772 = vmatprep.subr.bf16.mxu0 0
  %2773 = vmatpush1.bf16.msra.mxu0 %v1951
  %2774 = vmatprep.subr.bf16.mxu0 0
  %2775 = vmatpush1.bf16.msra.mxu0 %v1952
  %2776 = vmatprep.subr.bf16.mxu0 0
  %2777 = vmatpush1.bf16.msra.mxu0 %v1953
  %2778 = vmatprep.subr.bf16.mxu0 0
  %2779 = vmatpush1.bf16.msra.mxu0 %v1954
  %2780 = vmatprep.subr.bf16.mxu0 0
  %2781 = vmatpush1.bf16.msra.mxu0 %v1955
  %2782 = vmatprep.subr.bf16.mxu0 0
  %2783 = vmatpush1.bf16.msra.mxu0 %v1956
  %2784 = vmatprep.subr.bf16.mxu0 0
  %2785 = vmatpush1.bf16.msra.mxu0 %v1957
  %2786 = vmatprep.mubr.bf16.mxu0 %v687
  %2787 = vmatmul.mubr.bf16.gmra.mrb[0].mxu0 %v686
  %v2788 = vpop.f32.mrb[0].mxu0
  %v2789 = vadd.f32 %v2748, %v2788
  %v2790 = vpop.f32.mrb[0].mxu0
  %v2791 = vpop.f32.mrb[0].mxu0
  %v2792 = vadd.f32 %v2751, %v2791
  %v2793 = vpop.f32.mrb[0].mxu0
  %2794 = vdwg.mxu0
  %2795 = vmatprep.subr.bf16.mxu0 0
  %2796 = vmatpush1.bf16.msra.mxu0 %v1958
  %2797 = vmatprep.subr.bf16.mxu0 0
  %2798 = vmatpush1.bf16.msra.mxu0 %v1959
  %2799 = vmatprep.subr.bf16.mxu0 0
  %2800 = vmatpush1.bf16.msra.mxu0 %v1960
  %2801 = vmatprep.subr.bf16.mxu0 0
  %2802 = vmatpush1.bf16.msra.mxu0 %v1961
  %2803 = vmatprep.subr.bf16.mxu0 0
  %2804 = vmatpush1.bf16.msra.mxu0 %v1962
  %2805 = vmatprep.subr.bf16.mxu0 0
  %2806 = vmatpush1.bf16.msra.mxu0 %v1963
  %2807 = vmatprep.subr.bf16.mxu0 0
  %2808 = vmatpush1.bf16.msra.mxu0 %v1964
  %2809 = vmatprep.subr.bf16.mxu0 0
  %2810 = vmatpush1.bf16.msra.mxu0 %v1965
  %2811 = vmatprep.subr.bf16.mxu0 0
  %2812 = vmatpush1.bf16.msra.mxu0 %v1966
  %2813 = vmatprep.subr.bf16.mxu0 0
  %2814 = vmatpush1.bf16.msra.mxu0 %v1967
  %2815 = vmatprep.subr.bf16.mxu0 0
  %2816 = vmatpush1.bf16.msra.mxu0 %v1968
  %2817 = vmatprep.subr.bf16.mxu0 0
  %2818 = vmatpush1.bf16.msra.mxu0 %v1969
  %2819 = vmatprep.subr.bf16.mxu0 0
  %2820 = vmatpush1.bf16.msra.mxu0 %v1970
  %2821 = vmatprep.subr.bf16.mxu0 0
  %2822 = vmatpush1.bf16.msra.mxu0 %v1971
  %2823 = vmatprep.subr.bf16.mxu0 0
  %2824 = vmatpush1.bf16.msra.mxu0 %v1972
  %2825 = vmatprep.subr.bf16.mxu0 0
  %2826 = vmatpush1.bf16.msra.mxu0 %v1973
  %2827 = vmatprep.mubr.bf16.mxu0 %v689
  %2828 = vmatmul.mubr.bf16.gmra.mrb[0].mxu0 %v688
  %v2829 = vpop.f32.mrb[0].mxu0
  %v2830 = vadd.f32 %v2789, %v2829
  %v2831 = vpop.f32.mrb[0].mxu0
  %v2832 = vpop.f32.mrb[0].mxu0
  %v2833 = vadd.f32 %v2792, %v2832
  %v2834 = vpop.f32.mrb[0].mxu0
  %2835 = vdwg.mxu0
  %2836 = vmatprep.subr.bf16.mxu0 0
  %2837 = vmatpush1.bf16.msra.mxu0 %v1974
  %2838 = vmatprep.subr.bf16.mxu0 0
  %2839 = vmatpush1.bf16.msra.mxu0 %v1975
  %2840 = vmatprep.subr.bf16.mxu0 0
  %2841 = vmatpush1.bf16.msra.mxu0 %v1976
  %2842 = vmatprep.subr.bf16.mxu0 0
  %2843 = vmatpush1.bf16.msra.mxu0 %v1977
  %2844 = vmatprep.subr.bf16.mxu0 0
  %2845 = vmatpush1.bf16.msra.mxu0 %v1978
  %2846 = vmatprep.subr.bf16.mxu0 0
  %2847 = vmatpush1.bf16.msra.mxu0 %v1979
  %2848 = vmatprep.subr.bf16.mxu0 0
  %2849 = vmatpush1.bf16.msra.mxu0 %v1980
  %2850 = vmatprep.subr.bf16.mxu0 0
  %2851 = vmatpush1.bf16.msra.mxu0 %v1981
  %2852 = vmatprep.subr.bf16.mxu0 0
  %2853 = vmatpush1.bf16.msra.mxu0 %v1982
  %2854 = vmatprep.subr.bf16.mxu0 0
  %2855 = vmatpush1.bf16.msra.mxu0 %v1983
  %2856 = vmatprep.subr.bf16.mxu0 0
  %2857 = vmatpush1.bf16.msra.mxu0 %v1984
  %2858 = vmatprep.subr.bf16.mxu0 0
  %2859 = vmatpush1.bf16.msra.mxu0 %v1985
  %2860 = vmatprep.subr.bf16.mxu0 0
  %2861 = vmatpush1.bf16.msra.mxu0 %v1986
  %2862 = vmatprep.subr.bf16.mxu0 0
  %2863 = vmatpush1.bf16.msra.mxu0 %v1987
  %2864 = vmatprep.subr.bf16.mxu0 0
  %2865 = vmatpush1.bf16.msra.mxu0 %v1988
  %2866 = vmatprep.subr.bf16.mxu0 0
  %2867 = vmatpush1.bf16.msra.mxu0 %v1989
  %2868 = vmatprep.mubr.bf16.mxu0 %v691
  %2869 = vmatmul.mubr.bf16.gmra.mrb[0].mxu0 %v690
  %v2870 = vpop.f32.mrb[0].mxu0
  %v2871 = vadd.f32 %v2830, %v2870
  %v2872 = vpop.f32.mrb[0].mxu0
  %v2873 = vpop.f32.mrb[0].mxu0
  %v2874 = vadd.f32 %v2833, %v2873
  %v2875 = vpop.f32.mrb[0].mxu0
  %2876 = vdwg.mxu0
  %2877 = vmatprep.subr.bf16.mxu0 0
  %2878 = vmatpush1.bf16.msra.mxu0 %v1990
  %2879 = vmatprep.subr.bf16.mxu0 0
  %2880 = vmatpush1.bf16.msra.mxu0 %v1991
  %2881 = vmatprep.subr.bf16.mxu0 0
  %2882 = vmatpush1.bf16.msra.mxu0 %v1992
  %2883 = vmatprep.subr.bf16.mxu0 0
  %2884 = vmatpush1.bf16.msra.mxu0 %v1993
  %2885 = vmatprep.subr.bf16.mxu0 0
  %2886 = vmatpush1.bf16.msra.mxu0 %v1994
  %2887 = vmatprep.subr.bf16.mxu0 0
  %2888 = vmatpush1.bf16.msra.mxu0 %v1995
  %2889 = vmatprep.subr.bf16.mxu0 0
  %2890 = vmatpush1.bf16.msra.mxu0 %v1996
  %2891 = vmatprep.subr.bf16.mxu0 0
  %2892 = vmatpush1.bf16.msra.mxu0 %v1997
  %2893 = vmatprep.subr.bf16.mxu0 0
  %2894 = vmatpush1.bf16.msra.mxu0 %v1998
  %2895 = vmatprep.subr.bf16.mxu0 0
  %2896 = vmatpush1.bf16.msra.mxu0 %v1999
  %2897 = vmatprep.subr.bf16.mxu0 0
  %2898 = vmatpush1.bf16.msra.mxu0 %v2000
  %2899 = vmatprep.subr.bf16.mxu0 0
  %2900 = vmatpush1.bf16.msra.mxu0 %v2001
  %2901 = vmatprep.subr.bf16.mxu0 0
  %2902 = vmatpush1.bf16.msra.mxu0 %v2002
  %2903 = vmatprep.subr.bf16.mxu0 0
  %2904 = vmatpush1.bf16.msra.mxu0 %v2003
  %2905 = vmatprep.subr.bf16.mxu0 0
  %2906 = vmatpush1.bf16.msra.mxu0 %v2004
  %2907 = vmatprep.subr.bf16.mxu0 0
  %2908 = vmatpush1.bf16.msra.mxu0 %v2005
  %2909 = vmatprep.mubr.bf16.mxu0 %v693
  %2910 = vmatmul.mubr.bf16.gmra.mrb[0].mxu0 %v692
  %v2911 = vpop.f32.mrb[0].mxu0
  %v2912 = vadd.f32 %v2871, %v2911
  %v2913 = vpop.f32.mrb[0].mxu0
  %v2914 = vpop.f32.mrb[0].mxu0
  %v2915 = vadd.f32 %v2874, %v2914
  %v2916 = vpop.f32.mrb[0].mxu0
  %2917 = vdwg.mxu0
  %2918 = vst [vmem:[%s3] sm:$0xff] %v2912
  %2919 = vst [vmem:[%s3 + $0x8] sm:$0xff] %v2915
  // Predicated region
  $region14: #{task_specific_discriminator_forward.13} parent=0 // pred_check
    _
  $region15: #{task_specific_discriminator_forward.13} parent=0 // pred_check_branch
    %2921 = sbr.rel (0) target = $region17
  $region16: #{task_specific_discriminator_forward.13} parent=0 // pred_region
    _
  $region17: #{task_specific_discriminator_forward.13} parent=0 // pred_fallthru
    _
  // Predicated region
  $region18: #{task_specific_discriminator_forward.13} parent=0 // pred_check
    _
  $region19: #{task_specific_discriminator_forward.13} parent=0 // pred_check_branch
    %2923 = sbr.rel (0) target = $region21
  $region20: #{task_specific_discriminator_forward.13} parent=0 // pred_region
    _
  $region21: #{task_specific_discriminator_forward.13} parent=0 // pred_fallthru
    _

</llo_original>
